<compile_context>
chip_gen: v7x
topology: tpu7x:2x2x1
jax: 0.10.0
libtpu: 0.0.40
codegen_flags: <defaults>
</compile_context>

<pallas_src>
import jax
import jax.numpy as jnp
from jax.experimental import pallas as pl
from jax.experimental.pallas import tpu as pltpu

K = 4                       # every ConvTranspose2d in the Generator is 4x4
_VMEM_LIMIT = 32 * 1024 * 1024   # safe on v5e/v6e/v7x; tiles here are << this


# ----------------------------- Pallas kernels ------------------------------

def _conv_stats_kernel(x_ref, w_ref, y_ref, s_ref, ss_ref):
    """One M-tile: bf16 matmul (fp32 acc) + per-tile BN partial statistics."""
    y = jnp.dot(x_ref[...], w_ref[...], preferred_element_type=jnp.float32)
    y_ref[...] = y
    s_ref[...] = jnp.sum(y, axis=0, keepdims=True)[None]        # (1, 1, C)
    ss_ref[...] = jnp.sum(y * y, axis=0, keepdims=True)[None]   # (1, 1, C)


def _conv_tanh_kernel(x_ref, w_ref, y_ref):
    """One M-tile of the final layer: matmul + fused tanh epilogue."""
    y = jnp.dot(x_ref[...], w_ref[...], preferred_element_type=jnp.float32)
    y_ref[...] = jnp.tanh(y)


def _bn_apply_relu_kernel(y_ref, sc_ref, sh_ref, o_ref):
    """Apply precomputed BN scale/shift + ReLU on one M-tile (fp32 math)."""
    o = jnp.maximum(y_ref[...] * sc_ref[...] + sh_ref[...], 0.0)
    o_ref[...] = o.astype(o_ref.dtype)


# ------------------------------ helpers ------------------------------------

def _pick_tile(m, target):
    """Largest divisor of m that is <= target and a multiple of 8."""
    if m <= target:
        return m
    best = 8
    for d in range(8, target + 1, 8):
        if m % d == 0:
            best = d
    return best


def _im2col(x, stride, pad):
    """Dilate+pad NHWC input, fold the 16 taps into the contraction axis."""
    N, H, W, Cin = x.shape
    Ho = (H - 1) * stride - 2 * pad + K
    Wo = (W - 1) * stride - 2 * pad + K
    Hd, Wd = (H - 1) * stride + 1, (W - 1) * stride + 1
    xd = jnp.zeros((N, Hd, Wd, Cin), x.dtype).at[:, ::stride, ::stride, :].set(x)
    pp = K - 1 - pad
    xp = jnp.pad(xd, ((0, 0), (pp, pp), (pp, pp), (0, 0)))
    taps = [xp[:, kh:kh + Ho, kw:kw + Wo, :]
            for kh in range(K) for kw in range(K)]
    x_col = jnp.stack(taps, axis=3).reshape(N * Ho * Wo, K * K * Cin)
    return x_col.astype(jnp.bfloat16), (N, Ho, Wo)


def _prep_weight(w_t, cout_pad=None):
    """PyTorch ConvTranspose2d weight (Cin,Cout,K,K) -> (K*K*Cin, Cout) bf16."""
    Cin, Cout = w_t.shape[0], w_t.shape[1]
    w = jnp.flip(w_t, axis=(2, 3)).transpose(2, 3, 0, 1)        # (K,K,Cin,Cout)
    w = w.reshape(K * K * Cin, Cout)
    if cout_pad is not None and cout_pad > Cout:
        w = jnp.pad(w, ((0, 0), (0, cout_pad - Cout)))          # lane-dense pad
    return w.astype(jnp.bfloat16)


# ----------------------------- layer wrappers ------------------------------

def conv_bn_relu(x, w_t, stride, pad, gamma, beta):
    """ConvTranspose2d (no bias) + BatchNorm2d (batch stats) + ReLU."""
    x_col, (N, Ho, Wo) = _im2col(x, stride, pad)
    w = _prep_weight(w_t)
    M, KC = x_col.shape
    Cout = w.shape[1]

    TM = _pick_tile(M, 256)
    T = M // TM
    y, psum, psumsq = pl.pallas_call(
        _conv_stats_kernel,
        out_shape=(jax.ShapeDtypeStruct((M, Cout), jnp.float32),
                   jax.ShapeDtypeStruct((T, 1, Cout), jnp.float32),
                   jax.ShapeDtypeStruct((T, 1, Cout), jnp.float32)),
        grid_spec=pltpu.PrefetchScalarGridSpec(
            num_scalar_prefetch=0,
            grid=(T,),
            in_specs=[pl.BlockSpec((TM, KC), lambda i: (i, 0)),
                      pl.BlockSpec((KC, Cout), lambda i: (0, 0))],   # resident
            out_specs=(pl.BlockSpec((TM, Cout), lambda i: (i, 0)),
                       pl.BlockSpec((1, 1, Cout), lambda i: (i, 0, 0)),
                       pl.BlockSpec((1, 1, Cout), lambda i: (i, 0, 0)))),
        compiler_params=pltpu.CompilerParams(
            dimension_semantics=("parallel",),
            vmem_limit_bytes=_VMEM_LIMIT),
    )(x_col, w)

    # Finish the (tiny) cross-tile stats reduction in plain JAX.
    mean = jnp.sum(psum[:, 0, :], axis=0) / M
    var = jnp.sum(psumsq[:, 0, :], axis=0) / M - mean * mean    # biased, like torch
    scale = gamma * jax.lax.rsqrt(var + 1e-5)
    shift = beta - mean * scale

    TM2 = _pick_tile(M, 1024)
    T2 = M // TM2
    out = pl.pallas_call(
        _bn_apply_relu_kernel,
        out_shape=jax.ShapeDtypeStruct((M, Cout), jnp.bfloat16),
        grid_spec=pltpu.PrefetchScalarGridSpec(
            num_scalar_prefetch=0,
            grid=(T2,),
            in_specs=[pl.BlockSpec((TM2, Cout), lambda i: (i, 0)),
                      pl.BlockSpec((1, Cout), lambda i: (0, 0)),
                      pl.BlockSpec((1, Cout), lambda i: (0, 0))],
            out_specs=pl.BlockSpec((TM2, Cout), lambda i: (i, 0))),
        compiler_params=pltpu.CompilerParams(
            dimension_semantics=("parallel",),
            vmem_limit_bytes=_VMEM_LIMIT),
    )(y, scale.reshape(1, Cout).astype(jnp.float32),
      shift.reshape(1, Cout).astype(jnp.float32))
    return out.reshape(N, Ho, Wo, Cout)


def conv_tanh(x, w_t, stride, pad):
    """Final ConvTranspose2d + fused tanh; Cout padded to 128 lanes."""
    x_col, (N, Ho, Wo) = _im2col(x, stride, pad)
    Cout = w_t.shape[1]
    Coutp = max(128, ((Cout + 127) // 128) * 128)
    w = _prep_weight(w_t, Coutp)
    M, KC = x_col.shape

    TM = _pick_tile(M, 256)
    T = M // TM
    y = pl.pallas_call(
        _conv_tanh_kernel,
        out_shape=jax.ShapeDtypeStruct((M, Coutp), jnp.float32),
        grid_spec=pltpu.PrefetchScalarGridSpec(
            num_scalar_prefetch=0,
            grid=(T,),
            in_specs=[pl.BlockSpec((TM, KC), lambda i: (i, 0)),
                      pl.BlockSpec((KC, Coutp), lambda i: (0, 0))],
            out_specs=pl.BlockSpec((TM, Coutp), lambda i: (i, 0))),
        compiler_params=pltpu.CompilerParams(
            dimension_semantics=("parallel",),
            vmem_limit_bytes=_VMEM_LIMIT),
    )(x_col, w)
    return y[:, :Cout].reshape(N, Ho, Wo, Cout)


# ------------------------------- Generator ---------------------------------

class Generator:
    """Pallas port of the PyTorch DCGAN Generator(nz, ngf, nc)."""

    def __init__(self, nz, ngf, nc, key):
        # (Cin, Cout, stride, pad) for the 5 ConvTranspose2d layers.
        self.cfg = [(nz, ngf * 8, 1, 0),
                    (ngf * 8, ngf * 4, 2, 1),
                    (ngf * 4, ngf * 2, 2, 1),
                    (ngf * 2, ngf, 2, 1),
                    (ngf, nc, 2, 1)]
        keys = jax.random.split(key, len(self.cfg))
        # Deterministic synthetic weights (ConvTranspose2d layout (Cin,Cout,4,4), no bias).
        self.weights = [
            0.05 * jax.random.normal(k, (cin, cout, K, K), jnp.float32)
            for k, (cin, cout, _, _) in zip(keys, self.cfg)]
        # BatchNorm2d default init: weight = 1, bias = 0.
        self.gammas = [jnp.ones((cout,), jnp.float32)
                       for (_, cout, _, _) in self.cfg[:-1]]
        self.betas = [jnp.zeros((cout,), jnp.float32)
                      for (_, cout, _, _) in self.cfg[:-1]]

    def __call__(self, x_nchw):
        x = jnp.transpose(x_nchw, (0, 2, 3, 1)).astype(jnp.float32)  # NCHW -> NHWC
        for i, (_, _, stride, pad) in enumerate(self.cfg[:-1]):
            x = conv_bn_relu(x, self.weights[i], stride, pad,
                             self.gammas[i], self.betas[i])
        _, _, stride, pad = self.cfg[-1]
        x = conv_tanh(x, self.weights[-1], stride, pad)
        return jnp.transpose(x, (0, 3, 1, 2))                        # NHWC -> NCHW


if __name__ == "__main__":
    key = jax.random.PRNGKey(0)
    kparam, kz = jax.random.split(key)

    nz, ngf, nc, batch = 8, 8, 3, 2
    gen = Generator(nz, ngf, nc, kparam)

    z = jax.random.normal(kz, (batch, nz, 1, 1), jnp.float32)  # (N, nz, 1, 1) NCHW
    out = jax.jit(gen.__call__)(z)
    out = jax.block_until_ready(out)

    assert out.shape == (batch, nc, 64, 64), out.shape
    assert bool(jnp.all(jnp.isfinite(out)))
    assert bool(jnp.all(jnp.abs(out) <= 1.0))  # tanh output range
    print("KERNEL_OK")
</pallas_src>

<mosaic_0001>
module attributes {stable_mosaic.version = 11 : i64} {
  func.func @_conv_stats_kernel(%arg0: i32, %arg1: memref<32x128xbf16, #tpu.memory_space<vmem>>, %arg2: memref<128x64xbf16, #tpu.memory_space<vmem>>, %arg3: memref<32x64xf32, #tpu.memory_space<vmem>>, %arg4: memref<1x1x64xf32, #tpu.memory_space<vmem>>, %arg5: memref<1x1x64xf32, #tpu.memory_space<vmem>>) attributes {dimension_semantics = [#tpu.dimension_semantics<parallel>], iteration_bounds = array<i64: 1>, scalar_prefetch = 0 : i64, scratch_operands = 0 : i64, tpu.core_type = #tpu.core_type<tc>, window_params = [{transform_indices = @transform_0, window_bounds = array<i64: 32, 128>}, {pipeline_mode = #tpu.pipeline_mode<synchronous>, transform_indices = @transform_1, window_bounds = array<i64: 128, 64>}, {transform_indices = @transform_2, window_bounds = array<i64: 32, 64>}, {transform_indices = @transform_3, window_bounds = array<i64: 1, 1, 64>}, {transform_indices = @transform_4, window_bounds = array<i64: 1, 1, 64>}]} {
    %c0 = arith.constant 0 : index
    %c0_0 = arith.constant 0 : index
    %0 = vector.load %arg1[%c0, %c0_0] : memref<32x128xbf16, #tpu.memory_space<vmem>>, vector<32x128xbf16>
    %c0_1 = arith.constant 0 : index
    %c0_2 = arith.constant 0 : index
    %1 = vector.load %arg2[%c0_1, %c0_2] : memref<128x64xbf16, #tpu.memory_space<vmem>>, vector<128x64xbf16>
    %cst = arith.constant dense<0.000000e+00> : vector<32x64xf32>
    %2 = tpu.matmul %0, %1, %cst {dimension_numbers = #tpu.dot_dimension_numbers<[1], [0], [0], [1], [0, 0, 1, 1], [], []>} : vector<32x128xbf16>, vector<128x64xbf16>, vector<32x64xf32> -> vector<32x64xf32>
    %c0_3 = arith.constant 0 : index
    %c0_4 = arith.constant 0 : index
    %3 = vector.load %arg3[%c0_3, %c0_4] : memref<32x64xf32, #tpu.memory_space<vmem>>, vector<32x64xf32>
    tpu.vector_store %arg3[%c0_3, %c0_4], %2 {strides = array<i32>} : memref<32x64xf32, #tpu.memory_space<vmem>>, vector<32x64xf32>,
    %cst_5 = arith.constant dense<0.000000e+00> : vector<64xf32>
    %4 = vector.multi_reduction <add>, %2, %cst_5 [0] : vector<32x64xf32> to vector<64xf32>
    %5 = vector.shape_cast %4 : vector<64xf32> to vector<1x64xf32>
    %6 = vector.shape_cast %5 : vector<1x64xf32> to vector<1x1x64xf32>
    %c0_6 = arith.constant 0 : index
    %c0_7 = arith.constant 0 : index
    %c0_8 = arith.constant 0 : index
    %7 = vector.load %arg4[%c0_6, %c0_7, %c0_8] : memref<1x1x64xf32, #tpu.memory_space<vmem>>, vector<1x1x64xf32>
    tpu.vector_store %arg4[%c0_6, %c0_7, %c0_8], %6 {strides = array<i32>} : memref<1x1x64xf32, #tpu.memory_space<vmem>>, vector<1x1x64xf32>,
    %8 = arith.mulf %2, %2 : vector<32x64xf32>
    %cst_9 = arith.constant dense<0.000000e+00> : vector<64xf32>
    %9 = vector.multi_reduction <add>, %8, %cst_9 [0] : vector<32x64xf32> to vector<64xf32>
    %10 = vector.shape_cast %9 : vector<64xf32> to vector<1x64xf32>
    %11 = vector.shape_cast %10 : vector<1x64xf32> to vector<1x1x64xf32>
    %c0_10 = arith.constant 0 : index
    %c0_11 = arith.constant 0 : index
    %c0_12 = arith.constant 0 : index
    %12 = vector.load %arg5[%c0_10, %c0_11, %c0_12] : memref<1x1x64xf32, #tpu.memory_space<vmem>>, vector<1x1x64xf32>
    tpu.vector_store %arg5[%c0_10, %c0_11, %c0_12], %11 {strides = array<i32>} : memref<1x1x64xf32, #tpu.memory_space<vmem>>, vector<1x1x64xf32>,
    return
  }
  func.func @transform_0(%arg0: i32) -> (i32, i32) {
    %c0_i32 = arith.constant 0 : i32
    %c0_i32_0 = arith.constant 0 : i32
    return %arg0, %c0_i32 : i32, i32
  }
  func.func @transform_1(%arg0: i32) -> (i32, i32) {
    %c0_i32 = arith.constant 0 : i32
    %c0_i32_0 = arith.constant 0 : i32
    %c0_i32_1 = arith.constant 0 : i32
    return %c0_i32, %c0_i32_0 : i32, i32
  }
  func.func @transform_2(%arg0: i32) -> (i32, i32) {
    %c0_i32 = arith.constant 0 : i32
    %c0_i32_0 = arith.constant 0 : i32
    return %arg0, %c0_i32 : i32, i32
  }
  func.func @transform_3(%arg0: i32) -> (i32, i32, i32) {
    %c0_i32 = arith.constant 0 : i32
    %c0_i32_0 = arith.constant 0 : i32
    %c0_i32_1 = arith.constant 0 : i32
    return %arg0, %c0_i32, %c0_i32_0 : i32, i32, i32
  }
  func.func @transform_4(%arg0: i32) -> (i32, i32, i32) {
    %c0_i32 = arith.constant 0 : i32
    %c0_i32_0 = arith.constant 0 : i32
    %c0_i32_1 = arith.constant 0 : i32
    return %arg0, %c0_i32, %c0_i32_0 : i32, i32, i32
  }
}

module attributes {stable_mosaic.version = 11 : i64} {
  func.func @_bn_apply_relu_kernel(%arg0: i32, %arg1: memref<32x64xf32, #tpu.memory_space<vmem>>, %arg2: memref<1x64xf32, #tpu.memory_space<vmem>>, %arg3: memref<1x64xf32, #tpu.memory_space<vmem>>, %arg4: memref<32x64xbf16, #tpu.memory_space<vmem>>) attributes {dimension_semantics = [#tpu.dimension_semantics<parallel>], iteration_bounds = array<i64: 1>, scalar_prefetch = 0 : i64, scratch_operands = 0 : i64, tpu.core_type = #tpu.core_type<tc>, window_params = [{transform_indices = @transform_0, window_bounds = array<i64: 32, 64>}, {pipeline_mode = #tpu.pipeline_mode<synchronous>, transform_indices = @transform_1, window_bounds = array<i64: 1, 64>}, {pipeline_mode = #tpu.pipeline_mode<synchronous>, transform_indices = @transform_2, window_bounds = array<i64: 1, 64>}, {transform_indices = @transform_3, window_bounds = array<i64: 32, 64>}]} {
    %c0 = arith.constant 0 : index
    %c0_0 = arith.constant 0 : index
    %0 = vector.load %arg1[%c0, %c0_0] : memref<32x64xf32, #tpu.memory_space<vmem>>, vector<32x64xf32>
    %c0_1 = arith.constant 0 : index
    %c0_2 = arith.constant 0 : index
    %1 = vector.load %arg2[%c0_1, %c0_2] : memref<1x64xf32, #tpu.memory_space<vmem>>, vector<1x64xf32>
    %2 = vector.broadcast %1 : vector<1x64xf32> to vector<32x64xf32>
    %3 = arith.mulf %0, %2 : vector<32x64xf32>
    %c0_3 = arith.constant 0 : index
    %c0_4 = arith.constant 0 : index
    %4 = vector.load %arg3[%c0_3, %c0_4] : memref<1x64xf32, #tpu.memory_space<vmem>>, vector<1x64xf32>
    %5 = vector.broadcast %4 : vector<1x64xf32> to vector<32x64xf32>
    %6 = arith.addf %3, %5 : vector<32x64xf32>
    %cst = arith.constant 0.000000e+00 : f32
    %7 = vector.broadcast %cst : f32 to vector<32x64xf32>
    %8 = arith.maximumf %6, %7 : vector<32x64xf32>
    %9 = arith.truncf %8 : vector<32x64xf32> to vector<32x64xbf16>
    %c0_5 = arith.constant 0 : index
    %c0_6 = arith.constant 0 : index
    %10 = vector.load %arg4[%c0_5, %c0_6] : memref<32x64xbf16, #tpu.memory_space<vmem>>, vector<32x64xbf16>
    tpu.vector_store %arg4[%c0_5, %c0_6], %9 {strides = array<i32>} : memref<32x64xbf16, #tpu.memory_space<vmem>>, vector<32x64xbf16>,
    return
  }
  func.func @transform_0(%arg0: i32) -> (i32, i32) {
    %c0_i32 = arith.constant 0 : i32
    %c0_i32_0 = arith.constant 0 : i32
    return %arg0, %c0_i32 : i32, i32
  }
  func.func @transform_1(%arg0: i32) -> (i32, i32) {
    %c0_i32 = arith.constant 0 : i32
    %c0_i32_0 = arith.constant 0 : i32
    %c0_i32_1 = arith.constant 0 : i32
    return %c0_i32, %c0_i32_0 : i32, i32
  }
  func.func @transform_2(%arg0: i32) -> (i32, i32) {
    %c0_i32 = arith.constant 0 : i32
    %c0_i32_0 = arith.constant 0 : i32
    %c0_i32_1 = arith.constant 0 : i32
    return %c0_i32, %c0_i32_0 : i32, i32
  }
  func.func @transform_3(%arg0: i32) -> (i32, i32) {
    %c0_i32 = arith.constant 0 : i32
    %c0_i32_0 = arith.constant 0 : i32
    return %arg0, %c0_i32 : i32, i32
  }
}

module attributes {stable_mosaic.version = 11 : i64} {
  func.func @_conv_stats_kernel(%arg0: i32, %arg1: memref<128x1024xbf16, #tpu.memory_space<vmem>>, %arg2: memref<1024x32xbf16, #tpu.memory_space<vmem>>, %arg3: memref<128x32xf32, #tpu.memory_space<vmem>>, %arg4: memref<1x1x32xf32, #tpu.memory_space<vmem>>, %arg5: memref<1x1x32xf32, #tpu.memory_space<vmem>>) attributes {dimension_semantics = [#tpu.dimension_semantics<parallel>], iteration_bounds = array<i64: 1>, scalar_prefetch = 0 : i64, scratch_operands = 0 : i64, tpu.core_type = #tpu.core_type<tc>, window_params = [{transform_indices = @transform_0, window_bounds = array<i64: 128, 1024>}, {pipeline_mode = #tpu.pipeline_mode<synchronous>, transform_indices = @transform_1, window_bounds = array<i64: 1024, 32>}, {transform_indices = @transform_2, window_bounds = array<i64: 128, 32>}, {transform_indices = @transform_3, window_bounds = array<i64: 1, 1, 32>}, {transform_indices = @transform_4, window_bounds = array<i64: 1, 1, 32>}]} {
    %c0 = arith.constant 0 : index
    %c0_0 = arith.constant 0 : index
    %0 = vector.load %arg1[%c0, %c0_0] : memref<128x1024xbf16, #tpu.memory_space<vmem>>, vector<128x1024xbf16>
    %c0_1 = arith.constant 0 : index
    %c0_2 = arith.constant 0 : index
    %1 = vector.load %arg2[%c0_1, %c0_2] : memref<1024x32xbf16, #tpu.memory_space<vmem>>, vector<1024x32xbf16>
    %cst = arith.constant dense<0.000000e+00> : vector<128x32xf32>
    %2 = tpu.matmul %0, %1, %cst {dimension_numbers = #tpu.dot_dimension_numbers<[1], [0], [0], [1], [0, 0, 1, 1], [], []>} : vector<128x1024xbf16>, vector<1024x32xbf16>, vector<128x32xf32> -> vector<128x32xf32>
    %c0_3 = arith.constant 0 : index
    %c0_4 = arith.constant 0 : index
    %3 = vector.load %arg3[%c0_3, %c0_4] : memref<128x32xf32, #tpu.memory_space<vmem>>, vector<128x32xf32>
    tpu.vector_store %arg3[%c0_3, %c0_4], %2 {strides = array<i32>} : memref<128x32xf32, #tpu.memory_space<vmem>>, vector<128x32xf32>,
    %cst_5 = arith.constant dense<0.000000e+00> : vector<32xf32>
    %4 = vector.multi_reduction <add>, %2, %cst_5 [0] : vector<128x32xf32> to vector<32xf32>
    %5 = vector.shape_cast %4 : vector<32xf32> to vector<1x32xf32>
    %6 = vector.shape_cast %5 : vector<1x32xf32> to vector<1x1x32xf32>
    %c0_6 = arith.constant 0 : index
    %c0_7 = arith.constant 0 : index
    %c0_8 = arith.constant 0 : index
    %7 = vector.load %arg4[%c0_6, %c0_7, %c0_8] : memref<1x1x32xf32, #tpu.memory_space<vmem>>, vector<1x1x32xf32>
    tpu.vector_store %arg4[%c0_6, %c0_7, %c0_8], %6 {strides = array<i32>} : memref<1x1x32xf32, #tpu.memory_space<vmem>>, vector<1x1x32xf32>,
    %8 = arith.mulf %2, %2 : vector<128x32xf32>
    %cst_9 = arith.constant dense<0.000000e+00> : vector<32xf32>
    %9 = vector.multi_reduction <add>, %8, %cst_9 [0] : vector<128x32xf32> to vector<32xf32>
    %10 = vector.shape_cast %9 : vector<32xf32> to vector<1x32xf32>
    %11 = vector.shape_cast %10 : vector<1x32xf32> to vector<1x1x32xf32>
    %c0_10 = arith.constant 0 : index
    %c0_11 = arith.constant 0 : index
    %c0_12 = arith.constant 0 : index
    %12 = vector.load %arg5[%c0_10, %c0_11, %c0_12] : memref<1x1x32xf32, #tpu.memory_space<vmem>>, vector<1x1x32xf32>
    tpu.vector_store %arg5[%c0_10, %c0_11, %c0_12], %11 {strides = array<i32>} : memref<1x1x32xf32, #tpu.memory_space<vmem>>, vector<1x1x32xf32>,
    return
  }
  func.func @transform_0(%arg0: i32) -> (i32, i32) {
    %c0_i32 = arith.constant 0 : i32
    %c0_i32_0 = arith.constant 0 : i32
    return %arg0, %c0_i32 : i32, i32
  }
  func.func @transform_1(%arg0: i32) -> (i32, i32) {
    %c0_i32 = arith.constant 0 : i32
    %c0_i32_0 = arith.constant 0 : i32
    %c0_i32_1 = arith.constant 0 : i32
    return %c0_i32, %c0_i32_0 : i32, i32
  }
  func.func @transform_2(%arg0: i32) -> (i32, i32) {
    %c0_i32 = arith.constant 0 : i32
    %c0_i32_0 = arith.constant 0 : i32
    return %arg0, %c0_i32 : i32, i32
  }
  func.func @transform_3(%arg0: i32) -> (i32, i32, i32) {
    %c0_i32 = arith.constant 0 : i32
    %c0_i32_0 = arith.constant 0 : i32
    %c0_i32_1 = arith.constant 0 : i32
    return %arg0, %c0_i32, %c0_i32_0 : i32, i32, i32
  }
  func.func @transform_4(%arg0: i32) -> (i32, i32, i32) {
    %c0_i32 = arith.constant 0 : i32
    %c0_i32_0 = arith.constant 0 : i32
    %c0_i32_1 = arith.constant 0 : i32
    return %arg0, %c0_i32, %c0_i32_0 : i32, i32, i32
  }
}

module attributes {stable_mosaic.version = 11 : i64} {
  func.func @_bn_apply_relu_kernel(%arg0: i32, %arg1: memref<128x32xf32, #tpu.memory_space<vmem>>, %arg2: memref<1x32xf32, #tpu.memory_space<vmem>>, %arg3: memref<1x32xf32, #tpu.memory_space<vmem>>, %arg4: memref<128x32xbf16, #tpu.memory_space<vmem>>) attributes {dimension_semantics = [#tpu.dimension_semantics<parallel>], iteration_bounds = array<i64: 1>, scalar_prefetch = 0 : i64, scratch_operands = 0 : i64, tpu.core_type = #tpu.core_type<tc>, window_params = [{transform_indices = @transform_0, window_bounds = array<i64: 128, 32>}, {pipeline_mode = #tpu.pipeline_mode<synchronous>, transform_indices = @transform_1, window_bounds = array<i64: 1, 32>}, {pipeline_mode = #tpu.pipeline_mode<synchronous>, transform_indices = @transform_2, window_bounds = array<i64: 1, 32>}, {transform_indices = @transform_3, window_bounds = array<i64: 128, 32>}]} {
    %c0 = arith.constant 0 : index
    %c0_0 = arith.constant 0 : index
    %0 = vector.load %arg1[%c0, %c0_0] : memref<128x32xf32, #tpu.memory_space<vmem>>, vector<128x32xf32>
    %c0_1 = arith.constant 0 : index
    %c0_2 = arith.constant 0 : index
    %1 = vector.load %arg2[%c0_1, %c0_2] : memref<1x32xf32, #tpu.memory_space<vmem>>, vector<1x32xf32>
    %2 = vector.broadcast %1 : vector<1x32xf32> to vector<128x32xf32>
    %3 = arith.mulf %0, %2 : vector<128x32xf32>
    %c0_3 = arith.constant 0 : index
    %c0_4 = arith.constant 0 : index
    %4 = vector.load %arg3[%c0_3, %c0_4] : memref<1x32xf32, #tpu.memory_space<vmem>>, vector<1x32xf32>
    %5 = vector.broadcast %4 : vector<1x32xf32> to vector<128x32xf32>
    %6 = arith.addf %3, %5 : vector<128x32xf32>
    %cst = arith.constant 0.000000e+00 : f32
    %7 = vector.broadcast %cst : f32 to vector<128x32xf32>
    %8 = arith.maximumf %6, %7 : vector<128x32xf32>
    %9 = arith.truncf %8 : vector<128x32xf32> to vector<128x32xbf16>
    %c0_5 = arith.constant 0 : index
    %c0_6 = arith.constant 0 : index
    %10 = vector.load %arg4[%c0_5, %c0_6] : memref<128x32xbf16, #tpu.memory_space<vmem>>, vector<128x32xbf16>
    tpu.vector_store %arg4[%c0_5, %c0_6], %9 {strides = array<i32>} : memref<128x32xbf16, #tpu.memory_space<vmem>>, vector<128x32xbf16>,
    return
  }
  func.func @transform_0(%arg0: i32) -> (i32, i32) {
    %c0_i32 = arith.constant 0 : i32
    %c0_i32_0 = arith.constant 0 : i32
    return %arg0, %c0_i32 : i32, i32
  }
  func.func @transform_1(%arg0: i32) -> (i32, i32) {
    %c0_i32 = arith.constant 0 : i32
    %c0_i32_0 = arith.constant 0 : i32
    %c0_i32_1 = arith.constant 0 : i32
    return %c0_i32, %c0_i32_0 : i32, i32
  }
  func.func @transform_2(%arg0: i32) -> (i32, i32) {
    %c0_i32 = arith.constant 0 : i32
    %c0_i32_0 = arith.constant 0 : i32
    %c0_i32_1 = arith.constant 0 : i32
    return %c0_i32, %c0_i32_0 : i32, i32
  }
  func.func @transform_3(%arg0: i32) -> (i32, i32) {
    %c0_i32 = arith.constant 0 : i32
    %c0_i32_0 = arith.constant 0 : i32
    return %arg0, %c0_i32 : i32, i32
  }
}

module attributes {stable_mosaic.version = 11 : i64} {
  func.func @_conv_stats_kernel(%arg0: i32, %arg1: memref<256x512xbf16, #tpu.memory_space<vmem>>, %arg2: memref<512x16xbf16, #tpu.memory_space<vmem>>, %arg3: memref<256x16xf32, #tpu.memory_space<vmem>>, %arg4: memref<1x1x16xf32, #tpu.memory_space<vmem>>, %arg5: memref<1x1x16xf32, #tpu.memory_space<vmem>>) attributes {dimension_semantics = [#tpu.dimension_semantics<parallel>], iteration_bounds = array<i64: 2>, scalar_prefetch = 0 : i64, scratch_operands = 0 : i64, tpu.core_type = #tpu.core_type<tc>, window_params = [{transform_indices = @transform_0, window_bounds = array<i64: 256, 512>}, {pipeline_mode = #tpu.pipeline_mode<synchronous>, transform_indices = @transform_1, window_bounds = array<i64: 512, 16>}, {transform_indices = @transform_2, window_bounds = array<i64: 256, 16>}, {transform_indices = @transform_3, window_bounds = array<i64: 1, 1, 16>}, {transform_indices = @transform_4, window_bounds = array<i64: 1, 1, 16>}]} {
    %c0 = arith.constant 0 : index
    %c0_0 = arith.constant 0 : index
    %0 = vector.load %arg1[%c0, %c0_0] : memref<256x512xbf16, #tpu.memory_space<vmem>>, vector<256x512xbf16>
    %c0_1 = arith.constant 0 : index
    %c0_2 = arith.constant 0 : index
    %1 = vector.load %arg2[%c0_1, %c0_2] : memref<512x16xbf16, #tpu.memory_space<vmem>>, vector<512x16xbf16>
    %cst = arith.constant dense<0.000000e+00> : vector<256x16xf32>
    %2 = tpu.matmul %0, %1, %cst {dimension_numbers = #tpu.dot_dimension_numbers<[1], [0], [0], [1], [0, 0, 1, 1], [], []>} : vector<256x512xbf16>, vector<512x16xbf16>, vector<256x16xf32> -> vector<256x16xf32>
    %c0_3 = arith.constant 0 : index
    %c0_4 = arith.constant 0 : index
    %3 = vector.load %arg3[%c0_3, %c0_4] : memref<256x16xf32, #tpu.memory_space<vmem>>, vector<256x16xf32>
    tpu.vector_store %arg3[%c0_3, %c0_4], %2 {strides = array<i32>} : memref<256x16xf32, #tpu.memory_space<vmem>>, vector<256x16xf32>,
    %cst_5 = arith.constant dense<0.000000e+00> : vector<16xf32>
    %4 = vector.multi_reduction <add>, %2, %cst_5 [0] : vector<256x16xf32> to vector<16xf32>
    %5 = vector.shape_cast %4 : vector<16xf32> to vector<1x16xf32>
    %6 = vector.shape_cast %5 : vector<1x16xf32> to vector<1x1x16xf32>
    %c0_6 = arith.constant 0 : index
    %c0_7 = arith.constant 0 : index
    %c0_8 = arith.constant 0 : index
    %7 = vector.load %arg4[%c0_6, %c0_7, %c0_8] : memref<1x1x16xf32, #tpu.memory_space<vmem>>, vector<1x1x16xf32>
    tpu.vector_store %arg4[%c0_6, %c0_7, %c0_8], %6 {strides = array<i32>} : memref<1x1x16xf32, #tpu.memory_space<vmem>>, vector<1x1x16xf32>,
    %8 = arith.mulf %2, %2 : vector<256x16xf32>
    %cst_9 = arith.constant dense<0.000000e+00> : vector<16xf32>
    %9 = vector.multi_reduction <add>, %8, %cst_9 [0] : vector<256x16xf32> to vector<16xf32>
    %10 = vector.shape_cast %9 : vector<16xf32> to vector<1x16xf32>
    %11 = vector.shape_cast %10 : vector<1x16xf32> to vector<1x1x16xf32>
    %c0_10 = arith.constant 0 : index
    %c0_11 = arith.constant 0 : index
    %c0_12 = arith.constant 0 : index
    %12 = vector.load %arg5[%c0_10, %c0_11, %c0_12] : memref<1x1x16xf32, #tpu.memory_space<vmem>>, vector<1x1x16xf32>
    tpu.vector_store %arg5[%c0_10, %c0_11, %c0_12], %11 {strides = array<i32>} : memref<1x1x16xf32, #tpu.memory_space<vmem>>, vector<1x1x16xf32>,
    return
  }
  func.func @transform_0(%arg0: i32) -> (i32, i32) {
    %c0_i32 = arith.constant 0 : i32
    %c0_i32_0 = arith.constant 0 : i32
    return %arg0, %c0_i32 : i32, i32
  }
  func.func @transform_1(%arg0: i32) -> (i32, i32) {
    %c0_i32 = arith.constant 0 : i32
    %c0_i32_0 = arith.constant 0 : i32
    %c0_i32_1 = arith.constant 0 : i32
    return %c0_i32, %c0_i32_0 : i32, i32
  }
  func.func @transform_2(%arg0: i32) -> (i32, i32) {
    %c0_i32 = arith.constant 0 : i32
    %c0_i32_0 = arith.constant 0 : i32
    return %arg0, %c0_i32 : i32, i32
  }
  func.func @transform_3(%arg0: i32) -> (i32, i32, i32) {
    %c0_i32 = arith.constant 0 : i32
    %c0_i32_0 = arith.constant 0 : i32
    %c0_i32_1 = arith.constant 0 : i32
    return %arg0, %c0_i32, %c0_i32_0 : i32, i32, i32
  }
  func.func @transform_4(%arg0: i32) -> (i32, i32, i32) {
    %c0_i32 = arith.constant 0 : i32
    %c0_i32_0 = arith.constant 0 : i32
    %c0_i32_1 = arith.constant 0 : i32
    return %arg0, %c0_i32, %c0_i32_0 : i32, i32, i32
  }
}

module attributes {stable_mosaic.version = 11 : i64} {
  func.func @_bn_apply_relu_kernel(%arg0: i32, %arg1: memref<512x16xf32, #tpu.memory_space<vmem>>, %arg2: memref<1x16xf32, #tpu.memory_space<vmem>>, %arg3: memref<1x16xf32, #tpu.memory_space<vmem>>, %arg4: memref<512x16xbf16, #tpu.memory_space<vmem>>) attributes {dimension_semantics = [#tpu.dimension_semantics<parallel>], iteration_bounds = array<i64: 1>, scalar_prefetch = 0 : i64, scratch_operands = 0 : i64, tpu.core_type = #tpu.core_type<tc>, window_params = [{transform_indices = @transform_0, window_bounds = array<i64: 512, 16>}, {pipeline_mode = #tpu.pipeline_mode<synchronous>, transform_indices = @transform_1, window_bounds = array<i64: 1, 16>}, {pipeline_mode = #tpu.pipeline_mode<synchronous>, transform_indices = @transform_2, window_bounds = array<i64: 1, 16>}, {transform_indices = @transform_3, window_bounds = array<i64: 512, 16>}]} {
    %c0 = arith.constant 0 : index
    %c0_0 = arith.constant 0 : index
    %0 = vector.load %arg1[%c0, %c0_0] : memref<512x16xf32, #tpu.memory_space<vmem>>, vector<512x16xf32>
    %c0_1 = arith.constant 0 : index
    %c0_2 = arith.constant 0 : index
    %1 = vector.load %arg2[%c0_1, %c0_2] : memref<1x16xf32, #tpu.memory_space<vmem>>, vector<1x16xf32>
    %2 = vector.broadcast %1 : vector<1x16xf32> to vector<512x16xf32>
    %3 = arith.mulf %0, %2 : vector<512x16xf32>
    %c0_3 = arith.constant 0 : index
    %c0_4 = arith.constant 0 : index
    %4 = vector.load %arg3[%c0_3, %c0_4] : memref<1x16xf32, #tpu.memory_space<vmem>>, vector<1x16xf32>
    %5 = vector.broadcast %4 : vector<1x16xf32> to vector<512x16xf32>
    %6 = arith.addf %3, %5 : vector<512x16xf32>
    %cst = arith.constant 0.000000e+00 : f32
    %7 = vector.broadcast %cst : f32 to vector<512x16xf32>
    %8 = arith.maximumf %6, %7 : vector<512x16xf32>
    %9 = arith.truncf %8 : vector<512x16xf32> to vector<512x16xbf16>
    %c0_5 = arith.constant 0 : index
    %c0_6 = arith.constant 0 : index
    %10 = vector.load %arg4[%c0_5, %c0_6] : memref<512x16xbf16, #tpu.memory_space<vmem>>, vector<512x16xbf16>
    tpu.vector_store %arg4[%c0_5, %c0_6], %9 {strides = array<i32>} : memref<512x16xbf16, #tpu.memory_space<vmem>>, vector<512x16xbf16>,
    return
  }
  func.func @transform_0(%arg0: i32) -> (i32, i32) {
    %c0_i32 = arith.constant 0 : i32
    %c0_i32_0 = arith.constant 0 : i32
    return %arg0, %c0_i32 : i32, i32
  }
  func.func @transform_1(%arg0: i32) -> (i32, i32) {
    %c0_i32 = arith.constant 0 : i32
    %c0_i32_0 = arith.constant 0 : i32
    %c0_i32_1 = arith.constant 0 : i32
    return %c0_i32, %c0_i32_0 : i32, i32
  }
  func.func @transform_2(%arg0: i32) -> (i32, i32) {
    %c0_i32 = arith.constant 0 : i32
    %c0_i32_0 = arith.constant 0 : i32
    %c0_i32_1 = arith.constant 0 : i32
    return %c0_i32, %c0_i32_0 : i32, i32
  }
  func.func @transform_3(%arg0: i32) -> (i32, i32) {
    %c0_i32 = arith.constant 0 : i32
    %c0_i32_0 = arith.constant 0 : i32
    return %arg0, %c0_i32 : i32, i32
  }
}

module attributes {stable_mosaic.version = 11 : i64} {
  func.func @_conv_stats_kernel(%arg0: i32, %arg1: memref<256x256xbf16, #tpu.memory_space<vmem>>, %arg2: memref<256x8xbf16, #tpu.memory_space<vmem>>, %arg3: memref<256x8xf32, #tpu.memory_space<vmem>>, %arg4: memref<1x1x8xf32, #tpu.memory_space<vmem>>, %arg5: memref<1x1x8xf32, #tpu.memory_space<vmem>>) attributes {dimension_semantics = [#tpu.dimension_semantics<parallel>], iteration_bounds = array<i64: 8>, scalar_prefetch = 0 : i64, scratch_operands = 0 : i64, tpu.core_type = #tpu.core_type<tc>, window_params = [{transform_indices = @transform_0, window_bounds = array<i64: 256, 256>}, {pipeline_mode = #tpu.pipeline_mode<synchronous>, transform_indices = @transform_1, window_bounds = array<i64: 256, 8>}, {transform_indices = @transform_2, window_bounds = array<i64: 256, 8>}, {transform_indices = @transform_3, window_bounds = array<i64: 1, 1, 8>}, {transform_indices = @transform_4, window_bounds = array<i64: 1, 1, 8>}]} {
    %c0 = arith.constant 0 : index
    %c0_0 = arith.constant 0 : index
    %0 = vector.load %arg1[%c0, %c0_0] : memref<256x256xbf16, #tpu.memory_space<vmem>>, vector<256x256xbf16>
    %c0_1 = arith.constant 0 : index
    %c0_2 = arith.constant 0 : index
    %1 = vector.load %arg2[%c0_1, %c0_2] : memref<256x8xbf16, #tpu.memory_space<vmem>>, vector<256x8xbf16>
    %cst = arith.constant dense<0.000000e+00> : vector<256x8xf32>
    %2 = tpu.matmul %0, %1, %cst {dimension_numbers = #tpu.dot_dimension_numbers<[1], [0], [0], [1], [0, 0, 1, 1], [], []>} : vector<256x256xbf16>, vector<256x8xbf16>, vector<256x8xf32> -> vector<256x8xf32>
    %c0_3 = arith.constant 0 : index
    %c0_4 = arith.constant 0 : index
    %3 = vector.load %arg3[%c0_3, %c0_4] : memref<256x8xf32, #tpu.memory_space<vmem>>, vector<256x8xf32>
    tpu.vector_store %arg3[%c0_3, %c0_4], %2 {strides = array<i32>} : memref<256x8xf32, #tpu.memory_space<vmem>>, vector<256x8xf32>,
    %cst_5 = arith.constant dense<0.000000e+00> : vector<8xf32>
    %4 = vector.multi_reduction <add>, %2, %cst_5 [0] : vector<256x8xf32> to vector<8xf32>
    %5 = vector.shape_cast %4 : vector<8xf32> to vector<1x8xf32>
    %6 = vector.shape_cast %5 : vector<1x8xf32> to vector<1x1x8xf32>
    %c0_6 = arith.constant 0 : index
    %c0_7 = arith.constant 0 : index
    %c0_8 = arith.constant 0 : index
    %7 = vector.load %arg4[%c0_6, %c0_7, %c0_8] : memref<1x1x8xf32, #tpu.memory_space<vmem>>, vector<1x1x8xf32>
    tpu.vector_store %arg4[%c0_6, %c0_7, %c0_8], %6 {strides = array<i32>} : memref<1x1x8xf32, #tpu.memory_space<vmem>>, vector<1x1x8xf32>,
    %8 = arith.mulf %2, %2 : vector<256x8xf32>
    %cst_9 = arith.constant dense<0.000000e+00> : vector<8xf32>
    %9 = vector.multi_reduction <add>, %8, %cst_9 [0] : vector<256x8xf32> to vector<8xf32>
    %10 = vector.shape_cast %9 : vector<8xf32> to vector<1x8xf32>
    %11 = vector.shape_cast %10 : vector<1x8xf32> to vector<1x1x8xf32>
    %c0_10 = arith.constant 0 : index
    %c0_11 = arith.constant 0 : index
    %c0_12 = arith.constant 0 : index
    %12 = vector.load %arg5[%c0_10, %c0_11, %c0_12] : memref<1x1x8xf32, #tpu.memory_space<vmem>>, vector<1x1x8xf32>
    tpu.vector_store %arg5[%c0_10, %c0_11, %c0_12], %11 {strides = array<i32>} : memref<1x1x8xf32, #tpu.memory_space<vmem>>, vector<1x1x8xf32>,
    return
  }
  func.func @transform_0(%arg0: i32) -> (i32, i32) {
    %c0_i32 = arith.constant 0 : i32
    %c0_i32_0 = arith.constant 0 : i32
    return %arg0, %c0_i32 : i32, i32
  }
  func.func @transform_1(%arg0: i32) -> (i32, i32) {
    %c0_i32 = arith.constant 0 : i32
    %c0_i32_0 = arith.constant 0 : i32
    %c0_i32_1 = arith.constant 0 : i32
    return %c0_i32, %c0_i32_0 : i32, i32
  }
  func.func @transform_2(%arg0: i32) -> (i32, i32) {
    %c0_i32 = arith.constant 0 : i32
    %c0_i32_0 = arith.constant 0 : i32
    return %arg0, %c0_i32 : i32, i32
  }
  func.func @transform_3(%arg0: i32) -> (i32, i32, i32) {
    %c0_i32 = arith.constant 0 : i32
    %c0_i32_0 = arith.constant 0 : i32
    %c0_i32_1 = arith.constant 0 : i32
    return %arg0, %c0_i32, %c0_i32_0 : i32, i32, i32
  }
  func.func @transform_4(%arg0: i32) -> (i32, i32, i32) {
    %c0_i32 = arith.constant 0 : i32
    %c0_i32_0 = arith.constant 0 : i32
    %c0_i32_1 = arith.constant 0 : i32
    return %arg0, %c0_i32, %c0_i32_0 : i32, i32, i32
  }
}

module attributes {stable_mosaic.version = 11 : i64} {
  func.func @_bn_apply_relu_kernel(%arg0: i32, %arg1: memref<1024x8xf32, #tpu.memory_space<vmem>>, %arg2: memref<1x8xf32, #tpu.memory_space<vmem>>, %arg3: memref<1x8xf32, #tpu.memory_space<vmem>>, %arg4: memref<1024x8xbf16, #tpu.memory_space<vmem>>) attributes {dimension_semantics = [#tpu.dimension_semantics<parallel>], iteration_bounds = array<i64: 2>, scalar_prefetch = 0 : i64, scratch_operands = 0 : i64, tpu.core_type = #tpu.core_type<tc>, window_params = [{transform_indices = @transform_0, window_bounds = array<i64: 1024, 8>}, {pipeline_mode = #tpu.pipeline_mode<synchronous>, transform_indices = @transform_1, window_bounds = array<i64: 1, 8>}, {pipeline_mode = #tpu.pipeline_mode<synchronous>, transform_indices = @transform_2, window_bounds = array<i64: 1, 8>}, {transform_indices = @transform_3, window_bounds = array<i64: 1024, 8>}]} {
    %c0 = arith.constant 0 : index
    %c0_0 = arith.constant 0 : index
    %0 = vector.load %arg1[%c0, %c0_0] : memref<1024x8xf32, #tpu.memory_space<vmem>>, vector<1024x8xf32>
    %c0_1 = arith.constant 0 : index
    %c0_2 = arith.constant 0 : index
    %1 = vector.load %arg2[%c0_1, %c0_2] : memref<1x8xf32, #tpu.memory_space<vmem>>, vector<1x8xf32>
    %2 = vector.broadcast %1 : vector<1x8xf32> to vector<1024x8xf32>
    %3 = arith.mulf %0, %2 : vector<1024x8xf32>
    %c0_3 = arith.constant 0 : index
    %c0_4 = arith.constant 0 : index
    %4 = vector.load %arg3[%c0_3, %c0_4] : memref<1x8xf32, #tpu.memory_space<vmem>>, vector<1x8xf32>
    %5 = vector.broadcast %4 : vector<1x8xf32> to vector<1024x8xf32>
    %6 = arith.addf %3, %5 : vector<1024x8xf32>
    %cst = arith.constant 0.000000e+00 : f32
    %7 = vector.broadcast %cst : f32 to vector<1024x8xf32>
    %8 = arith.maximumf %6, %7 : vector<1024x8xf32>
    %9 = arith.truncf %8 : vector<1024x8xf32> to vector<1024x8xbf16>
    %c0_5 = arith.constant 0 : index
    %c0_6 = arith.constant 0 : index
    %10 = vector.load %arg4[%c0_5, %c0_6] : memref<1024x8xbf16, #tpu.memory_space<vmem>>, vector<1024x8xbf16>
    tpu.vector_store %arg4[%c0_5, %c0_6], %9 {strides = array<i32>} : memref<1024x8xbf16, #tpu.memory_space<vmem>>, vector<1024x8xbf16>,
    return
  }
  func.func @transform_0(%arg0: i32) -> (i32, i32) {
    %c0_i32 = arith.constant 0 : i32
    %c0_i32_0 = arith.constant 0 : i32
    return %arg0, %c0_i32 : i32, i32
  }
  func.func @transform_1(%arg0: i32) -> (i32, i32) {
    %c0_i32 = arith.constant 0 : i32
    %c0_i32_0 = arith.constant 0 : i32
    %c0_i32_1 = arith.constant 0 : i32
    return %c0_i32, %c0_i32_0 : i32, i32
  }
  func.func @transform_2(%arg0: i32) -> (i32, i32) {
    %c0_i32 = arith.constant 0 : i32
    %c0_i32_0 = arith.constant 0 : i32
    %c0_i32_1 = arith.constant 0 : i32
    return %c0_i32, %c0_i32_0 : i32, i32
  }
  func.func @transform_3(%arg0: i32) -> (i32, i32) {
    %c0_i32 = arith.constant 0 : i32
    %c0_i32_0 = arith.constant 0 : i32
    return %arg0, %c0_i32 : i32, i32
  }
}

module attributes {stable_mosaic.version = 11 : i64} {
  func.func @_conv_tanh_kernel(%arg0: i32, %arg1: memref<256x128xbf16, #tpu.memory_space<vmem>>, %arg2: memref<128x128xbf16, #tpu.memory_space<vmem>>, %arg3: memref<256x128xf32, #tpu.memory_space<vmem>>) attributes {dimension_semantics = [#tpu.dimension_semantics<parallel>], iteration_bounds = array<i64: 32>, scalar_prefetch = 0 : i64, scratch_operands = 0 : i64, tpu.core_type = #tpu.core_type<tc>, window_params = [{transform_indices = @transform_0, window_bounds = array<i64: 256, 128>}, {pipeline_mode = #tpu.pipeline_mode<synchronous>, transform_indices = @transform_1, window_bounds = array<i64: 128, 128>}, {transform_indices = @transform_2, window_bounds = array<i64: 256, 128>}]} {
    %c0 = arith.constant 0 : index
    %c0_0 = arith.constant 0 : index
    %0 = vector.load %arg1[%c0, %c0_0] : memref<256x128xbf16, #tpu.memory_space<vmem>>, vector<256x128xbf16>
    %c0_1 = arith.constant 0 : index
    %c0_2 = arith.constant 0 : index
    %1 = vector.load %arg2[%c0_1, %c0_2] : memref<128x128xbf16, #tpu.memory_space<vmem>>, vector<128x128xbf16>
    %cst = arith.constant dense<0.000000e+00> : vector<256x128xf32>
    %2 = tpu.matmul %0, %1, %cst {dimension_numbers = #tpu.dot_dimension_numbers<[1], [0], [0], [1], [0, 0, 1, 1], [], []>} : vector<256x128xbf16>, vector<128x128xbf16>, vector<256x128xf32> -> vector<256x128xf32>
    %3 = math.tanh %2 : vector<256x128xf32>
    %c0_3 = arith.constant 0 : index
    %c0_4 = arith.constant 0 : index
    %4 = vector.load %arg3[%c0_3, %c0_4] : memref<256x128xf32, #tpu.memory_space<vmem>>, vector<256x128xf32>
    tpu.vector_store %arg3[%c0_3, %c0_4], %3 {strides = array<i32>} : memref<256x128xf32, #tpu.memory_space<vmem>>, vector<256x128xf32>,
    return
  }
  func.func @transform_0(%arg0: i32) -> (i32, i32) {
    %c0_i32 = arith.constant 0 : i32
    %c0_i32_0 = arith.constant 0 : i32
    return %arg0, %c0_i32 : i32, i32
  }
  func.func @transform_1(%arg0: i32) -> (i32, i32) {
    %c0_i32 = arith.constant 0 : i32
    %c0_i32_0 = arith.constant 0 : i32
    %c0_i32_1 = arith.constant 0 : i32
    return %c0_i32, %c0_i32_0 : i32, i32
  }
  func.func @transform_2(%arg0: i32) -> (i32, i32) {
    %c0_i32 = arith.constant 0 : i32
    %c0_i32_0 = arith.constant 0 : i32
    return %arg0, %c0_i32 : i32, i32
  }
}

</mosaic_0001>

<llo_original>
// kernel: a_call__.10
$region0: #{a_call__.10}
  #allocation0 [shape = 'u32[]', space=smem, size = 0x4, offset = 0x4, fixed_abs, tag = 'smem constant byte address 0x4 - core index']
  #allocation1 [shape = 'u32[144,128]{1,0:T(1,128)}', space=vmem, size = 0x12000, scoped, tag = 'internal scratch']
  %s0 = inlined_call_operand.vmem [shape: f32[32,64], index: 0, kind: input, shape index: {}]
  %s1 = inlined_call_operand.vmem [shape: f32[1,64], index: 1, kind: input, shape index: {}]
  %s2 = inlined_call_operand.vmem [shape: f32[1,64], index: 2, kind: input, shape index: {}]
  %s3 = inlined_call_operand.vmem [shape: bf16[32,64], index: 3, kind: output, shape index: {}]
  %s4 = sld [smem:[#allocation0]]
  $region22: #{a_call__.10} parent=0
    _
  %s6 = ssub.s32 1, %s4
  %s7 = scalar_select 0, %s6, %s4
  // Predicated region
  $region2: #{a_call__.10} parent=0 // pred_check
    _
  $region3: #{a_call__.10} parent=0 // pred_check_branch
    %9 = sbr.rel (0) target = $region5
  $region4: #{a_call__.10} parent=0 // pred_region
    _
  $region5: #{a_call__.10} parent=0 // pred_fallthru
    _
  // Predicated region
  $region6: #{a_call__.10} parent=0 // pred_check
    _
  $region7: #{a_call__.10} parent=0 // pred_check_branch
    %11 = sbr.rel (0) target = $region9
  $region8: #{a_call__.10} parent=0 // pred_region
    _
  $region9: #{a_call__.10} parent=0 // pred_fallthru
    _
  // Predicated region
  $region10: #{a_call__.10} parent=0 // pred_check
    _
  $region11: #{a_call__.10} parent=0 // pred_check_branch
    %13 = sbr.rel (0) target = $region13
  $region12: #{a_call__.10} parent=0 // pred_region
    _
  $region13: #{a_call__.10} parent=0 // pred_fallthru
    _
  %v14 = vld [vmem:[%s0] sm:$0xff]
  %v15 = vld [vmem:[%s0 + $0x8] sm:$0xff]
  %v16 = vld [vmem:[%s0 + $0x10] sm:$0xff]
  %v17 = vld [vmem:[%s0 + $0x18] sm:$0xff]
  %v18 = vld [vmem:[%s1] sm:$0x1]
  %v20 = vlaneseq
  %v21 = vshrl.u32 %v20, 7
  %v22 = vsub.s32 0, %v21
  %v23 = vrot.slane %v18, %v22
  %v25 = vmul.f32 %v14, %v23
  %v26 = vmul.f32 %v15, %v23
  %v27 = vmul.f32 %v16, %v23
  %v28 = vmul.f32 %v17, %v23
  %v29 = vld [vmem:[%s2] sm:$0x1]
  %v31 = vlaneseq
  %v32 = vshrl.u32 %v31, 7
  %v33 = vsub.s32 0, %v32
  %v34 = vrot.slane %v29, %v33
  %v36 = vadd.f32 %v25, %v34
  %v37 = vadd.f32 %v26, %v34
  %v38 = vadd.f32 %v27, %v34
  %v39 = vadd.f32 %v28, %v34
  %v40 = vmax.f32 %v36, 0.0
  %v41 = vmax.f32 %v37, 0.0
  %v42 = vmax.f32 %v38, 0.0
  %v43 = vmax.f32 %v39, 0.0
  %v44 = vpack.c.bf16 %v41, %v40
  %v45 = vpack.c.bf16 %v43, %v42
  %v48 = vunpack.c.l.b16 %v44
  %v49 = vunpack.c.h.b16 %v44
  %v50 = vunpack.c.l.b16 %v45
  %v51 = vunpack.c.h.b16 %v45
  %v52 = vpack.c.b16 %v48, %v48
  %v53 = vpack.c.b16 %v49, %v49
  %v54 = vpack.c.b16 %v50, %v50
  %v55 = vpack.c.b16 %v51, %v51
  %vm60 = vcmask 519168
  %61 = vst.msk [vmem:[%s3] sm:$0xf] %vm60, %v52
  %62 = vst.msk [vmem:[%s3 + $0x4] sm:$0xf] %vm60, %v53
  %63 = vst.msk [vmem:[%s3 + $0x8] sm:$0xf] %vm60, %v54
  %64 = vst.msk [vmem:[%s3 + $0xc] sm:$0xf] %vm60, %v55
  // Predicated region
  $region14: #{a_call__.10} parent=0 // pred_check
    _
  $region15: #{a_call__.10} parent=0 // pred_check_branch
    %66 = sbr.rel (0) target = $region17
  $region16: #{a_call__.10} parent=0 // pred_region
    _
  $region17: #{a_call__.10} parent=0 // pred_fallthru
    _
  // Predicated region
  $region18: #{a_call__.10} parent=0 // pred_check
    _
  $region19: #{a_call__.10} parent=0 // pred_check_branch
    %68 = sbr.rel (0) target = $region21
  $region20: #{a_call__.10} parent=0 // pred_region
    _
  $region21: #{a_call__.10} parent=0 // pred_fallthru
    _

// kernel: a_call__.9
$region0: #{a_call__.9}
  #allocation0 [shape = 'u32[]', space=smem, size = 0x4, offset = 0x4, fixed_abs, tag = 'smem constant byte address 0x4 - core index']
  #allocation1 [shape = 'u32[144,128]{1,0:T(1,128)}', space=vmem, size = 0x12000, scoped, tag = 'internal scratch']
  %s0 = inlined_call_operand.vmem [shape: bf16[32,128], index: 0, kind: input, shape index: {}]
  %s1 = inlined_call_operand.hbm [shape: bf16[128,64], index: 1, kind: input, shape index: {}]
  %s2 = inlined_call_operand.vmem [shape: f32[32,64], index: 2, kind: output, shape index: {0}]
  %s3 = inlined_call_operand.vmem [shape: f32[1,1,64], index: 3, kind: output, shape index: {1}]
  %s4 = inlined_call_operand.vmem [shape: f32[1,1,64], index: 4, kind: output, shape index: {2}]
  %5 = xla_tuple %s2, %s3, %s4
  %s6 = sld [smem:[#allocation0]]
  $region38: #{a_call__.9} parent=0
    _
  %s8 = ssub.s32 1, %s6
  %s9 = scalar_select 0, %s8, %s6
  $region1: #{a_call__.9} parent=0
    #allocation2 [shape = 'u8[32768]{0}', space=vmem, size = 0x8000, scoped, tag = 'input window, operand 1, single buffered']
    #allocation3 [shape = 's32[1]{0}', space=sflag, size = 0x4, scoped, tag = 'scoped memory for a_call__.9']
    %10 = vsyncpa [#allocation3], 0
    // Predicated region
    $region2: #{a_call__.9} parent=1 // pred_check
      _
    $region3: #{a_call__.9} parent=1 // pred_check_branch
      %12 = sbr.rel (0) target = $region5
    $region4: #{a_call__.9} parent=1 // pred_region
      _
    $region5: #{a_call__.9} parent=1 // pred_fallthru
      _
    // Predicated region
    $region6: #{a_call__.9} parent=1 // pred_check
      _
    $region7: #{a_call__.9} parent=1 // pred_check_branch
      %14 = sbr.rel (0) target = $region9
    $region8: #{a_call__.9} parent=1 // pred_region
      %s16 = ssub.s32 1024, 1024
      %17 = vsyncadd [#allocation3], %s16
      %s18 = sshll.u32 [#allocation2], 4
      %s19 = int_to_ptr.vmem [resolvable:$true] %s18
      %24 = dma.hbm_to_vmem [thread:$0]  %s1, 1024, %s19, [#allocation3], 64, 64, 4
    $region9: #{a_call__.9} parent=1 // pred_fallthru
      _
    // Predicated region
    $region10: #{a_call__.9} parent=1 // pred_check
      _
    $region11: #{a_call__.9} parent=1 // pred_check_branch
      %26 = sbr.rel (0) target = $region13
    $region12: #{a_call__.9} parent=1 // pred_region
      %27 = dma.done [#allocation3], 1024
    $region13: #{a_call__.9} parent=1 // pred_fallthru
      _
    %v29 = vld [vmem:[%s0] sm:$0xf]
    %v30 = vld [vmem:[%s0 + $0x4] sm:$0xf]
    %v31 = vld [vmem:[%s0 + $0x8] sm:$0xf]
    %v32 = vld [vmem:[%s0 + $0xc] sm:$0xf]
    %v33 = vld [vmem:[#allocation2] sm:$0xf]
    %v34 = vld [vmem:[#allocation2 + $0x4] sm:$0xf]
    %v35 = vld [vmem:[#allocation2 + $0x8] sm:$0xf]
    %v36 = vld [vmem:[#allocation2 + $0xc] sm:$0xf]
    %v37 = vld [vmem:[#allocation2 + $0x10] sm:$0xf]
    %v38 = vld [vmem:[#allocation2 + $0x14] sm:$0xf]
    %v39 = vld [vmem:[#allocation2 + $0x18] sm:$0xf]
    %v40 = vld [vmem:[#allocation2 + $0x1c] sm:$0xf]
    %v41 = vld [vmem:[#allocation2 + $0x20] sm:$0xf]
    %v42 = vld [vmem:[#allocation2 + $0x24] sm:$0xf]
    %v43 = vld [vmem:[#allocation2 + $0x28] sm:$0xf]
    %v44 = vld [vmem:[#allocation2 + $0x2c] sm:$0xf]
    %v45 = vld [vmem:[#allocation2 + $0x30] sm:$0xf]
    %v46 = vld [vmem:[#allocation2 + $0x34] sm:$0xf]
    %v47 = vld [vmem:[#allocation2 + $0x38] sm:$0xf]
    %v48 = vld [vmem:[#allocation2 + $0x3c] sm:$0xf]
    %v53 = vunpack.c.l.b16 %v29
    %v54 = vunpack.c.l.b16 %v30
    %v55 = vunpack.c.l.b16 %v31
    %v56 = vunpack.c.l.b16 %v32
    %v57 = vpack.c.b16 %v54, %v53
    %v58 = vpack.c.b16 %v56, %v55
    %v77 = vunpack.c.l.b16 %v33
    %v78 = vunpack.c.l.b16 %v34
    %v79 = vunpack.c.l.b16 %v35
    %v80 = vunpack.c.l.b16 %v36
    %v81 = vunpack.c.l.b16 %v37
    %v82 = vunpack.c.l.b16 %v38
    %v83 = vunpack.c.l.b16 %v39
    %v84 = vunpack.c.l.b16 %v40
    %v85 = vunpack.c.l.b16 %v41
    %v86 = vunpack.c.l.b16 %v42
    %v87 = vunpack.c.l.b16 %v43
    %v88 = vunpack.c.l.b16 %v44
    %v89 = vunpack.c.l.b16 %v45
    %v90 = vunpack.c.l.b16 %v46
    %v91 = vunpack.c.l.b16 %v47
    %v92 = vunpack.c.l.b16 %v48
    %v93 = vpack.c.b16 %v78, %v77
    %v94 = vpack.c.b16 %v80, %v79
    %v95 = vpack.c.b16 %v82, %v81
    %v96 = vpack.c.b16 %v84, %v83
    %v97 = vpack.c.b16 %v86, %v85
    %v98 = vpack.c.b16 %v88, %v87
    %v99 = vpack.c.b16 %v90, %v89
    %v100 = vpack.c.b16 %v92, %v91
    %109 = vmatprep.subr.bf16.mxu0 0
    %110 = vmatpush1.bf16.msra.mxu0 %v93
    %111 = vmatprep.subr.bf16.mxu0 0
    %112 = vmatpush1.bf16.msra.mxu0 %v94
    %113 = vmatprep.subr.bf16.mxu0 0
    %114 = vmatpush1.bf16.msra.mxu0 %v95
    %115 = vmatprep.subr.bf16.mxu0 0
    %116 = vmatpush1.bf16.msra.mxu0 %v96
    %117 = vmatprep.subr.bf16.mxu0 0
    %118 = vmatpush1.bf16.msra.mxu0 %v97
    %119 = vmatprep.subr.bf16.mxu0 0
    %120 = vmatpush1.bf16.msra.mxu0 %v98
    %121 = vmatprep.subr.bf16.mxu0 0
    %122 = vmatpush1.bf16.msra.mxu0 %v99
    %123 = vmatprep.subr.bf16.mxu0 0
    %124 = vmatpush1.bf16.msra.mxu0 %v100
    %125 = vmatprep.subr.bf16.mxu0 0
    %126 = vmatpush1.bf16.msra.mxu0 0
    %127 = vmatprep.subr.bf16.mxu0 0
    %128 = vmatpush1.bf16.msra.mxu0 0
    %129 = vmatprep.subr.bf16.mxu0 0
    %130 = vmatpush1.bf16.msra.mxu0 0
    %131 = vmatprep.subr.bf16.mxu0 0
    %132 = vmatpush1.bf16.msra.mxu0 0
    %133 = vmatprep.subr.bf16.mxu0 0
    %134 = vmatpush1.bf16.msra.mxu0 0
    %135 = vmatprep.subr.bf16.mxu0 0
    %136 = vmatpush1.bf16.msra.mxu0 0
    %137 = vmatprep.subr.bf16.mxu0 0
    %138 = vmatpush1.bf16.msra.mxu0 0
    %139 = vmatprep.subr.bf16.mxu0 0
    %140 = vmatpush1.bf16.msra.mxu0 0
    %141 = vmatprep.mubr.bf16.mxu0 0
    %142 = vmatmul.mubr.bf16.gmra.mrb[0].mxu0 %v57
    %v143 = vpop.f32.mrb[0].mxu0
    %v144 = vadd.f32 0.0, %v143
    %v145 = vpop.f32.mrb[0].mxu0
    %v146 = vpop.f32.mrb[0].mxu0
    %v147 = vadd.f32 0.0, %v146
    %v148 = vpop.f32.mrb[0].mxu0
    %149 = vmatprep.mubr.bf16.mxu0 0
    %150 = vmatmul.mubr.bf16.gmra.mrb[0].mxu0 %v58
    %v151 = vpop.f32.mrb[0].mxu0
    %v152 = vadd.f32 0.0, %v151
    %v153 = vpop.f32.mrb[0].mxu0
    %v154 = vpop.f32.mrb[0].mxu0
    %v155 = vadd.f32 0.0, %v154
    %v156 = vpop.f32.mrb[0].mxu0
    %157 = vdwg.mxu0
    %vm158 = vcmask 523264
    %159 = vst.msk [vmem:[%s2] sm:$0xff] %vm158, %v144
    %160 = vst.msk [vmem:[%s2 + $0x8] sm:$0xff] %vm158, %v147
    %161 = vst.msk [vmem:[%s2 + $0x10] sm:$0xff] %vm158, %v152
    %162 = vst.msk [vmem:[%s2 + $0x18] sm:$0xff] %vm158, %v155
    %v163 = vsel %vm158, %v144, 0.0
    %v164 = vsel %vm158, %v147, 0.0
    %v165 = vadd.f32 %v163, %v164
    %v166 = vsel %vm158, %v152, 0.0
    %v167 = vadd.f32 %v165, %v166
    %v168 = vsel %vm158, %v155, 0.0
    %v169 = vadd.f32 %v167, %v168
    %v170 = vrot.slane %v169, 4
    %v171 = vadd.f32 %v169, %v170
    %v172 = vrot.slane %v171, 2
    %v173 = vadd.f32 %v171, %v172
    %v174 = vrot.slane %v173, 1
    %v175 = vadd.f32 %v173, %v174
    %vm176 = vcmask 516096
    %177 = vst.msk [vmem:[%s3] sm:$0x1] %vm176, %v175
    %v178 = vmul.f32 %v144, %v144
    %v179 = vmul.f32 %v147, %v147
    %v180 = vmul.f32 %v152, %v152
    %v181 = vmul.f32 %v155, %v155
    %v182 = vsel %vm158, %v178, 0.0
    %v183 = vsel %vm158, %v179, 0.0
    %v184 = vadd.f32 %v182, %v183
    %v185 = vsel %vm158, %v180, 0.0
    %v186 = vadd.f32 %v184, %v185
    %v187 = vsel %vm158, %v181, 0.0
    %v188 = vadd.f32 %v186, %v187
    %v189 = vrot.slane %v188, 4
    %v190 = vadd.f32 %v188, %v189
    %v191 = vrot.slane %v190, 2
    %v192 = vadd.f32 %v190, %v191
    %v193 = vrot.slane %v192, 1
    %v194 = vadd.f32 %v192, %v193
    %195 = vst.msk [vmem:[%s4] sm:$0x1] %vm176, %v194
    // Predicated region
    $region14: #{a_call__.9} parent=1 // pred_check
      _
    $region15: #{a_call__.9} parent=1 // pred_check_branch
      %197 = sbr.rel (0) target = $region17
    $region16: #{a_call__.9} parent=1 // pred_region
      _
    $region17: #{a_call__.9} parent=1 // pred_fallthru
      _
    // Predicated region
    $region18: #{a_call__.9} parent=1 // pred_check
      _
    $region19: #{a_call__.9} parent=1 // pred_check_branch
      %199 = sbr.rel (0) target = $region21
    $region20: #{a_call__.9} parent=1 // pred_region
      _
    $region21: #{a_call__.9} parent=1 // pred_fallthru
      _
    // Predicated region
    $region22: #{a_call__.9} parent=1 // pred_check
      _
    $region23: #{a_call__.9} parent=1 // pred_check_branch
      %201 = sbr.rel (0) target = $region25
    $region24: #{a_call__.9} parent=1 // pred_region
      _
    $region25: #{a_call__.9} parent=1 // pred_fallthru
      _
    // Predicated region
    $region26: #{a_call__.9} parent=1 // pred_check
      _
    $region27: #{a_call__.9} parent=1 // pred_check_branch
      %203 = sbr.rel (0) target = $region29
    $region28: #{a_call__.9} parent=1 // pred_region
      _
    $region29: #{a_call__.9} parent=1 // pred_fallthru
      _
    // Predicated region
    $region30: #{a_call__.9} parent=1 // pred_check
      _
    $region31: #{a_call__.9} parent=1 // pred_check_branch
      %205 = sbr.rel (0) target = $region33
    $region32: #{a_call__.9} parent=1 // pred_region
      _
    $region33: #{a_call__.9} parent=1 // pred_fallthru
      _
    // Predicated region
    $region34: #{a_call__.9} parent=1 // pred_check
      _
    $region35: #{a_call__.9} parent=1 // pred_check_branch
      %207 = sbr.rel (0) target = $region37
    $region36: #{a_call__.9} parent=1 // pred_region
      _
    $region37: #{a_call__.9} parent=1 // pred_fallthru
      _
    %208 = vsyncpa [#allocation3], 1

// kernel: a_call__.12
$region0: #{a_call__.12}
  #allocation0 [shape = 'u32[]', space=smem, size = 0x4, offset = 0x4, fixed_abs, tag = 'smem constant byte address 0x4 - core index']
  #allocation1 [shape = 'u32[144,128]{1,0:T(1,128)}', space=vmem, size = 0x12000, scoped, tag = 'internal scratch']
  %s0 = inlined_call_operand.vmem [shape: f32[128,32], index: 0, kind: input, shape index: {}]
  %s1 = inlined_call_operand.vmem [shape: f32[1,32], index: 1, kind: input, shape index: {}]
  %s2 = inlined_call_operand.vmem [shape: f32[1,32], index: 2, kind: input, shape index: {}]
  %s3 = inlined_call_operand.vmem [shape: bf16[128,32], index: 3, kind: output, shape index: {}]
  %s4 = sld [smem:[#allocation0]]
  $region22: #{a_call__.12} parent=0
    _
  %s6 = ssub.s32 1, %s4
  %s7 = scalar_select 0, %s6, %s4
  // Predicated region
  $region2: #{a_call__.12} parent=0 // pred_check
    _
  $region3: #{a_call__.12} parent=0 // pred_check_branch
    %9 = sbr.rel (0) target = $region5
  $region4: #{a_call__.12} parent=0 // pred_region
    _
  $region5: #{a_call__.12} parent=0 // pred_fallthru
    _
  // Predicated region
  $region6: #{a_call__.12} parent=0 // pred_check
    _
  $region7: #{a_call__.12} parent=0 // pred_check_branch
    %11 = sbr.rel (0) target = $region9
  $region8: #{a_call__.12} parent=0 // pred_region
    _
  $region9: #{a_call__.12} parent=0 // pred_fallthru
    _
  // Predicated region
  $region10: #{a_call__.12} parent=0 // pred_check
    _
  $region11: #{a_call__.12} parent=0 // pred_check_branch
    %13 = sbr.rel (0) target = $region13
  $region12: #{a_call__.12} parent=0 // pred_region
    _
  $region13: #{a_call__.12} parent=0 // pred_fallthru
    _
  %v14 = vld [vmem:[%s0] sm:$0xff]
  %v15 = vld [vmem:[%s0 + $0x8] sm:$0xff]
  %v16 = vld [vmem:[%s0 + $0x10] sm:$0xff]
  %v17 = vld [vmem:[%s0 + $0x18] sm:$0xff]
  %v18 = vld [vmem:[%s0 + $0x20] sm:$0xff]
  %v19 = vld [vmem:[%s0 + $0x28] sm:$0xff]
  %v20 = vld [vmem:[%s0 + $0x30] sm:$0xff]
  %v21 = vld [vmem:[%s0 + $0x38] sm:$0xff]
  %v22 = vld [vmem:[%s0 + $0x40] sm:$0xff]
  %v23 = vld [vmem:[%s0 + $0x48] sm:$0xff]
  %v24 = vld [vmem:[%s0 + $0x50] sm:$0xff]
  %v25 = vld [vmem:[%s0 + $0x58] sm:$0xff]
  %v26 = vld [vmem:[%s0 + $0x60] sm:$0xff]
  %v27 = vld [vmem:[%s0 + $0x68] sm:$0xff]
  %v28 = vld [vmem:[%s0 + $0x70] sm:$0xff]
  %v29 = vld [vmem:[%s0 + $0x78] sm:$0xff]
  %v30 = vld [vmem:[%s1] sm:$0x1]
  %v32 = vlaneseq
  %v33 = vshrl.u32 %v32, 7
  %v34 = vsub.s32 0, %v33
  %v35 = vrot.slane %v30, %v34
  %v37 = vmul.f32 %v14, %v35
  %v38 = vmul.f32 %v15, %v35
  %v39 = vmul.f32 %v16, %v35
  %v40 = vmul.f32 %v17, %v35
  %v41 = vmul.f32 %v18, %v35
  %v42 = vmul.f32 %v19, %v35
  %v43 = vmul.f32 %v20, %v35
  %v44 = vmul.f32 %v21, %v35
  %v45 = vmul.f32 %v22, %v35
  %v46 = vmul.f32 %v23, %v35
  %v47 = vmul.f32 %v24, %v35
  %v48 = vmul.f32 %v25, %v35
  %v49 = vmul.f32 %v26, %v35
  %v50 = vmul.f32 %v27, %v35
  %v51 = vmul.f32 %v28, %v35
  %v52 = vmul.f32 %v29, %v35
  %v53 = vld [vmem:[%s2] sm:$0x1]
  %v55 = vlaneseq
  %v56 = vshrl.u32 %v55, 7
  %v57 = vsub.s32 0, %v56
  %v58 = vrot.slane %v53, %v57
  %v60 = vadd.f32 %v37, %v58
  %v61 = vadd.f32 %v38, %v58
  %v62 = vadd.f32 %v39, %v58
  %v63 = vadd.f32 %v40, %v58
  %v64 = vadd.f32 %v41, %v58
  %v65 = vadd.f32 %v42, %v58
  %v66 = vadd.f32 %v43, %v58
  %v67 = vadd.f32 %v44, %v58
  %v68 = vadd.f32 %v45, %v58
  %v69 = vadd.f32 %v46, %v58
  %v70 = vadd.f32 %v47, %v58
  %v71 = vadd.f32 %v48, %v58
  %v72 = vadd.f32 %v49, %v58
  %v73 = vadd.f32 %v50, %v58
  %v74 = vadd.f32 %v51, %v58
  %v75 = vadd.f32 %v52, %v58
  %v76 = vmax.f32 %v60, 0.0
  %v77 = vmax.f32 %v61, 0.0
  %v78 = vmax.f32 %v62, 0.0
  %v79 = vmax.f32 %v63, 0.0
  %v80 = vmax.f32 %v64, 0.0
  %v81 = vmax.f32 %v65, 0.0
  %v82 = vmax.f32 %v66, 0.0
  %v83 = vmax.f32 %v67, 0.0
  %v84 = vmax.f32 %v68, 0.0
  %v85 = vmax.f32 %v69, 0.0
  %v86 = vmax.f32 %v70, 0.0
  %v87 = vmax.f32 %v71, 0.0
  %v88 = vmax.f32 %v72, 0.0
  %v89 = vmax.f32 %v73, 0.0
  %v90 = vmax.f32 %v74, 0.0
  %v91 = vmax.f32 %v75, 0.0
  %v92 = vpack.c.bf16 %v77, %v76
  %v93 = vpack.c.bf16 %v79, %v78
  %v94 = vpack.c.bf16 %v81, %v80
  %v95 = vpack.c.bf16 %v83, %v82
  %v96 = vpack.c.bf16 %v85, %v84
  %v97 = vpack.c.bf16 %v87, %v86
  %v98 = vpack.c.bf16 %v89, %v88
  %v99 = vpack.c.bf16 %v91, %v90
  %v108 = vunpack.c.l.b16 %v92
  %v109 = vunpack.c.h.b16 %v92
  %v110 = vunpack.c.l.b16 %v93
  %v111 = vunpack.c.h.b16 %v93
  %v112 = vunpack.c.l.b16 %v94
  %v113 = vunpack.c.h.b16 %v94
  %v114 = vunpack.c.l.b16 %v95
  %v115 = vunpack.c.h.b16 %v95
  %v116 = vunpack.c.l.b16 %v96
  %v117 = vunpack.c.h.b16 %v96
  %v118 = vunpack.c.l.b16 %v97
  %v119 = vunpack.c.h.b16 %v97
  %v120 = vunpack.c.l.b16 %v98
  %v121 = vunpack.c.h.b16 %v98
  %v122 = vunpack.c.l.b16 %v99
  %v123 = vunpack.c.h.b16 %v99
  %v124 = vpack.c.b16 %v108, %v108
  %v125 = vpack.c.b16 %v109, %v109
  %v126 = vpack.c.b16 %v110, %v110
  %v127 = vpack.c.b16 %v111, %v111
  %v128 = vpack.c.b16 %v112, %v112
  %v129 = vpack.c.b16 %v113, %v113
  %v130 = vpack.c.b16 %v114, %v114
  %v131 = vpack.c.b16 %v115, %v115
  %v132 = vpack.c.b16 %v116, %v116
  %v133 = vpack.c.b16 %v117, %v117
  %v134 = vpack.c.b16 %v118, %v118
  %v135 = vpack.c.b16 %v119, %v119
  %v136 = vpack.c.b16 %v120, %v120
  %v137 = vpack.c.b16 %v121, %v121
  %v138 = vpack.c.b16 %v122, %v122
  %v139 = vpack.c.b16 %v123, %v123
  %vm156 = vcmask 257024
  %157 = vst.msk [vmem:[%s3] sm:$0xf] %vm156, %v124
  %158 = vst.msk [vmem:[%s3 + $0x4] sm:$0xf] %vm156, %v125
  %159 = vst.msk [vmem:[%s3 + $0x8] sm:$0xf] %vm156, %v126
  %160 = vst.msk [vmem:[%s3 + $0xc] sm:$0xf] %vm156, %v127
  %161 = vst.msk [vmem:[%s3 + $0x10] sm:$0xf] %vm156, %v128
  %162 = vst.msk [vmem:[%s3 + $0x14] sm:$0xf] %vm156, %v129
  %163 = vst.msk [vmem:[%s3 + $0x18] sm:$0xf] %vm156, %v130
  %164 = vst.msk [vmem:[%s3 + $0x1c] sm:$0xf] %vm156, %v131
  %165 = vst.msk [vmem:[%s3 + $0x20] sm:$0xf] %vm156, %v132
  %166 = vst.msk [vmem:[%s3 + $0x24] sm:$0xf] %vm156, %v133
  %167 = vst.msk [vmem:[%s3 + $0x28] sm:$0xf] %vm156, %v134
  %168 = vst.msk [vmem:[%s3 + $0x2c] sm:$0xf] %vm156, %v135
  %169 = vst.msk [vmem:[%s3 + $0x30] sm:$0xf] %vm156, %v136
  %170 = vst.msk [vmem:[%s3 + $0x34] sm:$0xf] %vm156, %v137
  %171 = vst.msk [vmem:[%s3 + $0x38] sm:$0xf] %vm156, %v138
  %172 = vst.msk [vmem:[%s3 + $0x3c] sm:$0xf] %vm156, %v139
  // Predicated region
  $region14: #{a_call__.12} parent=0 // pred_check
    _
  $region15: #{a_call__.12} parent=0 // pred_check_branch
    %174 = sbr.rel (0) target = $region17
  $region16: #{a_call__.12} parent=0 // pred_region
    _
  $region17: #{a_call__.12} parent=0 // pred_fallthru
    _
  // Predicated region
  $region18: #{a_call__.12} parent=0 // pred_check
    _
  $region19: #{a_call__.12} parent=0 // pred_check_branch
    %176 = sbr.rel (0) target = $region21
  $region20: #{a_call__.12} parent=0 // pred_region
    _
  $region21: #{a_call__.12} parent=0 // pred_fallthru
    _

// kernel: a_call__.11
$region0: #{a_call__.11}
  #allocation0 [shape = 'u32[]', space=smem, size = 0x4, offset = 0x4, fixed_abs, tag = 'smem constant byte address 0x4 - core index']
  #allocation1 [shape = 'u32[144,128]{1,0:T(1,128)}', space=vmem, size = 0x12000, scoped, tag = 'internal scratch']
  %s0 = inlined_call_operand.vmem [shape: bf16[128,1024], index: 0, kind: input, shape index: {}]
  %s1 = inlined_call_operand.hbm [shape: bf16[1024,32], index: 1, kind: input, shape index: {}]
  %s2 = inlined_call_operand.vmem [shape: f32[128,32], index: 2, kind: output, shape index: {0}]
  %s3 = inlined_call_operand.vmem [shape: f32[1,1,32], index: 3, kind: output, shape index: {1}]
  %s4 = inlined_call_operand.vmem [shape: f32[1,1,32], index: 4, kind: output, shape index: {2}]
  %5 = xla_tuple %s2, %s3, %s4
  %s6 = sld [smem:[#allocation0]]
  $region38: #{a_call__.11} parent=0
    _
  %s8 = ssub.s32 1, %s6
  %s9 = scalar_select 0, %s8, %s6
  $region1: #{a_call__.11} parent=0
    #allocation2 [shape = 'u8[262144]{0}', space=vmem, size = 0x40000, scoped, tag = 'input window, operand 1, single buffered']
    #allocation3 [shape = 's32[1]{0}', space=sflag, size = 0x4, scoped, tag = 'scoped memory for a_call__.11']
    %10 = vsyncpa [#allocation3], 0
    // Predicated region
    $region2: #{a_call__.11} parent=1 // pred_check
      _
    $region3: #{a_call__.11} parent=1 // pred_check_branch
      %12 = sbr.rel (0) target = $region5
    $region4: #{a_call__.11} parent=1 // pred_region
      _
    $region5: #{a_call__.11} parent=1 // pred_fallthru
      _
    // Predicated region
    $region6: #{a_call__.11} parent=1 // pred_check
      _
    $region7: #{a_call__.11} parent=1 // pred_check_branch
      %14 = sbr.rel (0) target = $region9
    $region8: #{a_call__.11} parent=1 // pred_region
      %s16 = ssub.s32 8192, 8192
      %17 = vsyncadd [#allocation3], %s16
      %s18 = sshll.u32 [#allocation2], 4
      %s19 = int_to_ptr.vmem [resolvable:$true] %s18
      %24 = dma.hbm_to_vmem [thread:$0]  %s1, 8192, %s19, [#allocation3], 64, 64, 4
    $region9: #{a_call__.11} parent=1 // pred_fallthru
      _
    // Predicated region
    $region10: #{a_call__.11} parent=1 // pred_check
      _
    $region11: #{a_call__.11} parent=1 // pred_check_branch
      %26 = sbr.rel (0) target = $region13
    $region12: #{a_call__.11} parent=1 // pred_region
      %27 = dma.done [#allocation3], 8192
    $region13: #{a_call__.11} parent=1 // pred_fallthru
      _
    %v29 = vld [vmem:[%s0] sm:$0xff]
    %v30 = vld [vmem:[%s0 + $0x8] sm:$0xff]
    %v31 = vld [vmem:[%s0 + $0x10] sm:$0xff]
    %v32 = vld [vmem:[%s0 + $0x18] sm:$0xff]
    %v33 = vld [vmem:[%s0 + $0x20] sm:$0xff]
    %v34 = vld [vmem:[%s0 + $0x28] sm:$0xff]
    %v35 = vld [vmem:[%s0 + $0x30] sm:$0xff]
    %v36 = vld [vmem:[%s0 + $0x38] sm:$0xff]
    %v37 = vld [vmem:[%s0 + $0x40] sm:$0xff]
    %v38 = vld [vmem:[%s0 + $0x48] sm:$0xff]
    %v39 = vld [vmem:[%s0 + $0x50] sm:$0xff]
    %v40 = vld [vmem:[%s0 + $0x58] sm:$0xff]
    %v41 = vld [vmem:[%s0 + $0x60] sm:$0xff]
    %v42 = vld [vmem:[%s0 + $0x68] sm:$0xff]
    %v43 = vld [vmem:[%s0 + $0x70] sm:$0xff]
    %v44 = vld [vmem:[%s0 + $0x78] sm:$0xff]
    %v45 = vld [vmem:[%s0 + $0x80] sm:$0xff]
    %v46 = vld [vmem:[%s0 + $0x88] sm:$0xff]
    %v47 = vld [vmem:[%s0 + $0x90] sm:$0xff]
    %v48 = vld [vmem:[%s0 + $0x98] sm:$0xff]
    %v49 = vld [vmem:[%s0 + $0xa0] sm:$0xff]
    %v50 = vld [vmem:[%s0 + $0xa8] sm:$0xff]
    %v51 = vld [vmem:[%s0 + $0xb0] sm:$0xff]
    %v52 = vld [vmem:[%s0 + $0xb8] sm:$0xff]
    %v53 = vld [vmem:[%s0 + $0xc0] sm:$0xff]
    %v54 = vld [vmem:[%s0 + $0xc8] sm:$0xff]
    %v55 = vld [vmem:[%s0 + $0xd0] sm:$0xff]
    %v56 = vld [vmem:[%s0 + $0xd8] sm:$0xff]
    %v57 = vld [vmem:[%s0 + $0xe0] sm:$0xff]
    %v58 = vld [vmem:[%s0 + $0xe8] sm:$0xff]
    %v59 = vld [vmem:[%s0 + $0xf0] sm:$0xff]
    %v60 = vld [vmem:[%s0 + $0xf8] sm:$0xff]
    %v61 = vld [vmem:[%s0 + $0x100] sm:$0xff]
    %v62 = vld [vmem:[%s0 + $0x108] sm:$0xff]
    %v63 = vld [vmem:[%s0 + $0x110] sm:$0xff]
    %v64 = vld [vmem:[%s0 + $0x118] sm:$0xff]
    %v65 = vld [vmem:[%s0 + $0x120] sm:$0xff]
    %v66 = vld [vmem:[%s0 + $0x128] sm:$0xff]
    %v67 = vld [vmem:[%s0 + $0x130] sm:$0xff]
    %v68 = vld [vmem:[%s0 + $0x138] sm:$0xff]
    %v69 = vld [vmem:[%s0 + $0x140] sm:$0xff]
    %v70 = vld [vmem:[%s0 + $0x148] sm:$0xff]
    %v71 = vld [vmem:[%s0 + $0x150] sm:$0xff]
    %v72 = vld [vmem:[%s0 + $0x158] sm:$0xff]
    %v73 = vld [vmem:[%s0 + $0x160] sm:$0xff]
    %v74 = vld [vmem:[%s0 + $0x168] sm:$0xff]
    %v75 = vld [vmem:[%s0 + $0x170] sm:$0xff]
    %v76 = vld [vmem:[%s0 + $0x178] sm:$0xff]
    %v77 = vld [vmem:[%s0 + $0x180] sm:$0xff]
    %v78 = vld [vmem:[%s0 + $0x188] sm:$0xff]
    %v79 = vld [vmem:[%s0 + $0x190] sm:$0xff]
    %v80 = vld [vmem:[%s0 + $0x198] sm:$0xff]
    %v81 = vld [vmem:[%s0 + $0x1a0] sm:$0xff]
    %v82 = vld [vmem:[%s0 + $0x1a8] sm:$0xff]
    %v83 = vld [vmem:[%s0 + $0x1b0] sm:$0xff]
    %v84 = vld [vmem:[%s0 + $0x1b8] sm:$0xff]
    %v85 = vld [vmem:[%s0 + $0x1c0] sm:$0xff]
    %v86 = vld [vmem:[%s0 + $0x1c8] sm:$0xff]
    %v87 = vld [vmem:[%s0 + $0x1d0] sm:$0xff]
    %v88 = vld [vmem:[%s0 + $0x1d8] sm:$0xff]
    %v89 = vld [vmem:[%s0 + $0x1e0] sm:$0xff]
    %v90 = vld [vmem:[%s0 + $0x1e8] sm:$0xff]
    %v91 = vld [vmem:[%s0 + $0x1f0] sm:$0xff]
    %v92 = vld [vmem:[%s0 + $0x1f8] sm:$0xff]
    %v93 = vld [vmem:[#allocation2] sm:$0xf]
    %v94 = vld [vmem:[#allocation2 + $0x4] sm:$0xf]
    %v95 = vld [vmem:[#allocation2 + $0x8] sm:$0xf]
    %v96 = vld [vmem:[#allocation2 + $0xc] sm:$0xf]
    %v97 = vld [vmem:[#allocation2 + $0x10] sm:$0xf]
    %v98 = vld [vmem:[#allocation2 + $0x14] sm:$0xf]
    %v99 = vld [vmem:[#allocation2 + $0x18] sm:$0xf]
    %v100 = vld [vmem:[#allocation2 + $0x1c] sm:$0xf]
    %v101 = vld [vmem:[#allocation2 + $0x20] sm:$0xf]
    %v102 = vld [vmem:[#allocation2 + $0x24] sm:$0xf]
    %v103 = vld [vmem:[#allocation2 + $0x28] sm:$0xf]
    %v104 = vld [vmem:[#allocation2 + $0x2c] sm:$0xf]
    %v105 = vld [vmem:[#allocation2 + $0x30] sm:$0xf]
    %v106 = vld [vmem:[#allocation2 + $0x34] sm:$0xf]
    %v107 = vld [vmem:[#allocation2 + $0x38] sm:$0xf]
    %v108 = vld [vmem:[#allocation2 + $0x3c] sm:$0xf]
    %v109 = vld [vmem:[#allocation2 + $0x40] sm:$0xf]
    %v110 = vld [vmem:[#allocation2 + $0x44] sm:$0xf]
    %v111 = vld [vmem:[#allocation2 + $0x48] sm:$0xf]
    %v112 = vld [vmem:[#allocation2 + $0x4c] sm:$0xf]
    %v113 = vld [vmem:[#allocation2 + $0x50] sm:$0xf]
    %v114 = vld [vmem:[#allocation2 + $0x54] sm:$0xf]
    %v115 = vld [vmem:[#allocation2 + $0x58] sm:$0xf]
    %v116 = vld [vmem:[#allocation2 + $0x5c] sm:$0xf]
    %v117 = vld [vmem:[#allocation2 + $0x60] sm:$0xf]
    %v118 = vld [vmem:[#allocation2 + $0x64] sm:$0xf]
    %v119 = vld [vmem:[#allocation2 + $0x68] sm:$0xf]
    %v120 = vld [vmem:[#allocation2 + $0x6c] sm:$0xf]
    %v121 = vld [vmem:[#allocation2 + $0x70] sm:$0xf]
    %v122 = vld [vmem:[#allocation2 + $0x74] sm:$0xf]
    %v123 = vld [vmem:[#allocation2 + $0x78] sm:$0xf]
    %v124 = vld [vmem:[#allocation2 + $0x7c] sm:$0xf]
    %v125 = vld [vmem:[#allocation2 + $0x80] sm:$0xf]
    %v126 = vld [vmem:[#allocation2 + $0x84] sm:$0xf]
    %v127 = vld [vmem:[#allocation2 + $0x88] sm:$0xf]
    %v128 = vld [vmem:[#allocation2 + $0x8c] sm:$0xf]
    %v129 = vld [vmem:[#allocation2 + $0x90] sm:$0xf]
    %v130 = vld [vmem:[#allocation2 + $0x94] sm:$0xf]
    %v131 = vld [vmem:[#allocation2 + $0x98] sm:$0xf]
    %v132 = vld [vmem:[#allocation2 + $0x9c] sm:$0xf]
    %v133 = vld [vmem:[#allocation2 + $0xa0] sm:$0xf]
    %v134 = vld [vmem:[#allocation2 + $0xa4] sm:$0xf]
    %v135 = vld [vmem:[#allocation2 + $0xa8] sm:$0xf]
    %v136 = vld [vmem:[#allocation2 + $0xac] sm:$0xf]
    %v137 = vld [vmem:[#allocation2 + $0xb0] sm:$0xf]
    %v138 = vld [vmem:[#allocation2 + $0xb4] sm:$0xf]
    %v139 = vld [vmem:[#allocation2 + $0xb8] sm:$0xf]
    %v140 = vld [vmem:[#allocation2 + $0xbc] sm:$0xf]
    %v141 = vld [vmem:[#allocation2 + $0xc0] sm:$0xf]
    %v142 = vld [vmem:[#allocation2 + $0xc4] sm:$0xf]
    %v143 = vld [vmem:[#allocation2 + $0xc8] sm:$0xf]
    %v144 = vld [vmem:[#allocation2 + $0xcc] sm:$0xf]
    %v145 = vld [vmem:[#allocation2 + $0xd0] sm:$0xf]
    %v146 = vld [vmem:[#allocation2 + $0xd4] sm:$0xf]
    %v147 = vld [vmem:[#allocation2 + $0xd8] sm:$0xf]
    %v148 = vld [vmem:[#allocation2 + $0xdc] sm:$0xf]
    %v149 = vld [vmem:[#allocation2 + $0xe0] sm:$0xf]
    %v150 = vld [vmem:[#allocation2 + $0xe4] sm:$0xf]
    %v151 = vld [vmem:[#allocation2 + $0xe8] sm:$0xf]
    %v152 = vld [vmem:[#allocation2 + $0xec] sm:$0xf]
    %v153 = vld [vmem:[#allocation2 + $0xf0] sm:$0xf]
    %v154 = vld [vmem:[#allocation2 + $0xf4] sm:$0xf]
    %v155 = vld [vmem:[#allocation2 + $0xf8] sm:$0xf]
    %v156 = vld [vmem:[#allocation2 + $0xfc] sm:$0xf]
    %v157 = vld [vmem:[#allocation2 + $0x100] sm:$0xf]
    %v158 = vld [vmem:[#allocation2 + $0x104] sm:$0xf]
    %v159 = vld [vmem:[#allocation2 + $0x108] sm:$0xf]
    %v160 = vld [vmem:[#allocation2 + $0x10c] sm:$0xf]
    %v161 = vld [vmem:[#allocation2 + $0x110] sm:$0xf]
    %v162 = vld [vmem:[#allocation2 + $0x114] sm:$0xf]
    %v163 = vld [vmem:[#allocation2 + $0x118] sm:$0xf]
    %v164 = vld [vmem:[#allocation2 + $0x11c] sm:$0xf]
    %v165 = vld [vmem:[#allocation2 + $0x120] sm:$0xf]
    %v166 = vld [vmem:[#allocation2 + $0x124] sm:$0xf]
    %v167 = vld [vmem:[#allocation2 + $0x128] sm:$0xf]
    %v168 = vld [vmem:[#allocation2 + $0x12c] sm:$0xf]
    %v169 = vld [vmem:[#allocation2 + $0x130] sm:$0xf]
    %v170 = vld [vmem:[#allocation2 + $0x134] sm:$0xf]
    %v171 = vld [vmem:[#allocation2 + $0x138] sm:$0xf]
    %v172 = vld [vmem:[#allocation2 + $0x13c] sm:$0xf]
    %v173 = vld [vmem:[#allocation2 + $0x140] sm:$0xf]
    %v174 = vld [vmem:[#allocation2 + $0x144] sm:$0xf]
    %v175 = vld [vmem:[#allocation2 + $0x148] sm:$0xf]
    %v176 = vld [vmem:[#allocation2 + $0x14c] sm:$0xf]
    %v177 = vld [vmem:[#allocation2 + $0x150] sm:$0xf]
    %v178 = vld [vmem:[#allocation2 + $0x154] sm:$0xf]
    %v179 = vld [vmem:[#allocation2 + $0x158] sm:$0xf]
    %v180 = vld [vmem:[#allocation2 + $0x15c] sm:$0xf]
    %v181 = vld [vmem:[#allocation2 + $0x160] sm:$0xf]
    %v182 = vld [vmem:[#allocation2 + $0x164] sm:$0xf]
    %v183 = vld [vmem:[#allocation2 + $0x168] sm:$0xf]
    %v184 = vld [vmem:[#allocation2 + $0x16c] sm:$0xf]
    %v185 = vld [vmem:[#allocation2 + $0x170] sm:$0xf]
    %v186 = vld [vmem:[#allocation2 + $0x174] sm:$0xf]
    %v187 = vld [vmem:[#allocation2 + $0x178] sm:$0xf]
    %v188 = vld [vmem:[#allocation2 + $0x17c] sm:$0xf]
    %v189 = vld [vmem:[#allocation2 + $0x180] sm:$0xf]
    %v190 = vld [vmem:[#allocation2 + $0x184] sm:$0xf]
    %v191 = vld [vmem:[#allocation2 + $0x188] sm:$0xf]
    %v192 = vld [vmem:[#allocation2 + $0x18c] sm:$0xf]
    %v193 = vld [vmem:[#allocation2 + $0x190] sm:$0xf]
    %v194 = vld [vmem:[#allocation2 + $0x194] sm:$0xf]
    %v195 = vld [vmem:[#allocation2 + $0x198] sm:$0xf]
    %v196 = vld [vmem:[#allocation2 + $0x19c] sm:$0xf]
    %v197 = vld [vmem:[#allocation2 + $0x1a0] sm:$0xf]
    %v198 = vld [vmem:[#allocation2 + $0x1a4] sm:$0xf]
    %v199 = vld [vmem:[#allocation2 + $0x1a8] sm:$0xf]
    %v200 = vld [vmem:[#allocation2 + $0x1ac] sm:$0xf]
    %v201 = vld [vmem:[#allocation2 + $0x1b0] sm:$0xf]
    %v202 = vld [vmem:[#allocation2 + $0x1b4] sm:$0xf]
    %v203 = vld [vmem:[#allocation2 + $0x1b8] sm:$0xf]
    %v204 = vld [vmem:[#allocation2 + $0x1bc] sm:$0xf]
    %v205 = vld [vmem:[#allocation2 + $0x1c0] sm:$0xf]
    %v206 = vld [vmem:[#allocation2 + $0x1c4] sm:$0xf]
    %v207 = vld [vmem:[#allocation2 + $0x1c8] sm:$0xf]
    %v208 = vld [vmem:[#allocation2 + $0x1cc] sm:$0xf]
    %v209 = vld [vmem:[#allocation2 + $0x1d0] sm:$0xf]
    %v210 = vld [vmem:[#allocation2 + $0x1d4] sm:$0xf]
    %v211 = vld [vmem:[#allocation2 + $0x1d8] sm:$0xf]
    %v212 = vld [vmem:[#allocation2 + $0x1dc] sm:$0xf]
    %v213 = vld [vmem:[#allocation2 + $0x1e0] sm:$0xf]
    %v214 = vld [vmem:[#allocation2 + $0x1e4] sm:$0xf]
    %v215 = vld [vmem:[#allocation2 + $0x1e8] sm:$0xf]
    %v216 = vld [vmem:[#allocation2 + $0x1ec] sm:$0xf]
    %v217 = vld [vmem:[#allocation2 + $0x1f0] sm:$0xf]
    %v218 = vld [vmem:[#allocation2 + $0x1f4] sm:$0xf]
    %v219 = vld [vmem:[#allocation2 + $0x1f8] sm:$0xf]
    %v220 = vld [vmem:[#allocation2 + $0x1fc] sm:$0xf]
    %v285 = vunpack.c.l.b16 %v29
    %v286 = vunpack.c.h.b16 %v29
    %v287 = vunpack.c.l.b16 %v30
    %v288 = vunpack.c.h.b16 %v30
    %v289 = vunpack.c.l.b16 %v31
    %v290 = vunpack.c.h.b16 %v31
    %v291 = vunpack.c.l.b16 %v32
    %v292 = vunpack.c.h.b16 %v32
    %v293 = vunpack.c.l.b16 %v33
    %v294 = vunpack.c.h.b16 %v33
    %v295 = vunpack.c.l.b16 %v34
    %v296 = vunpack.c.h.b16 %v34
    %v297 = vunpack.c.l.b16 %v35
    %v298 = vunpack.c.h.b16 %v35
    %v299 = vunpack.c.l.b16 %v36
    %v300 = vunpack.c.h.b16 %v36
    %v301 = vunpack.c.l.b16 %v37
    %v302 = vunpack.c.h.b16 %v37
    %v303 = vunpack.c.l.b16 %v38
    %v304 = vunpack.c.h.b16 %v38
    %v305 = vunpack.c.l.b16 %v39
    %v306 = vunpack.c.h.b16 %v39
    %v307 = vunpack.c.l.b16 %v40
    %v308 = vunpack.c.h.b16 %v40
    %v309 = vunpack.c.l.b16 %v41
    %v310 = vunpack.c.h.b16 %v41
    %v311 = vunpack.c.l.b16 %v42
    %v312 = vunpack.c.h.b16 %v42
    %v313 = vunpack.c.l.b16 %v43
    %v314 = vunpack.c.h.b16 %v43
    %v315 = vunpack.c.l.b16 %v44
    %v316 = vunpack.c.h.b16 %v44
    %v317 = vunpack.c.l.b16 %v45
    %v318 = vunpack.c.h.b16 %v45
    %v319 = vunpack.c.l.b16 %v46
    %v320 = vunpack.c.h.b16 %v46
    %v321 = vunpack.c.l.b16 %v47
    %v322 = vunpack.c.h.b16 %v47
    %v323 = vunpack.c.l.b16 %v48
    %v324 = vunpack.c.h.b16 %v48
    %v325 = vunpack.c.l.b16 %v49
    %v326 = vunpack.c.h.b16 %v49
    %v327 = vunpack.c.l.b16 %v50
    %v328 = vunpack.c.h.b16 %v50
    %v329 = vunpack.c.l.b16 %v51
    %v330 = vunpack.c.h.b16 %v51
    %v331 = vunpack.c.l.b16 %v52
    %v332 = vunpack.c.h.b16 %v52
    %v333 = vunpack.c.l.b16 %v53
    %v334 = vunpack.c.h.b16 %v53
    %v335 = vunpack.c.l.b16 %v54
    %v336 = vunpack.c.h.b16 %v54
    %v337 = vunpack.c.l.b16 %v55
    %v338 = vunpack.c.h.b16 %v55
    %v339 = vunpack.c.l.b16 %v56
    %v340 = vunpack.c.h.b16 %v56
    %v341 = vunpack.c.l.b16 %v57
    %v342 = vunpack.c.h.b16 %v57
    %v343 = vunpack.c.l.b16 %v58
    %v344 = vunpack.c.h.b16 %v58
    %v345 = vunpack.c.l.b16 %v59
    %v346 = vunpack.c.h.b16 %v59
    %v347 = vunpack.c.l.b16 %v60
    %v348 = vunpack.c.h.b16 %v60
    %v349 = vunpack.c.l.b16 %v61
    %v350 = vunpack.c.h.b16 %v61
    %v351 = vunpack.c.l.b16 %v62
    %v352 = vunpack.c.h.b16 %v62
    %v353 = vunpack.c.l.b16 %v63
    %v354 = vunpack.c.h.b16 %v63
    %v355 = vunpack.c.l.b16 %v64
    %v356 = vunpack.c.h.b16 %v64
    %v357 = vunpack.c.l.b16 %v65
    %v358 = vunpack.c.h.b16 %v65
    %v359 = vunpack.c.l.b16 %v66
    %v360 = vunpack.c.h.b16 %v66
    %v361 = vunpack.c.l.b16 %v67
    %v362 = vunpack.c.h.b16 %v67
    %v363 = vunpack.c.l.b16 %v68
    %v364 = vunpack.c.h.b16 %v68
    %v365 = vunpack.c.l.b16 %v69
    %v366 = vunpack.c.h.b16 %v69
    %v367 = vunpack.c.l.b16 %v70
    %v368 = vunpack.c.h.b16 %v70
    %v369 = vunpack.c.l.b16 %v71
    %v370 = vunpack.c.h.b16 %v71
    %v371 = vunpack.c.l.b16 %v72
    %v372 = vunpack.c.h.b16 %v72
    %v373 = vunpack.c.l.b16 %v73
    %v374 = vunpack.c.h.b16 %v73
    %v375 = vunpack.c.l.b16 %v74
    %v376 = vunpack.c.h.b16 %v74
    %v377 = vunpack.c.l.b16 %v75
    %v378 = vunpack.c.h.b16 %v75
    %v379 = vunpack.c.l.b16 %v76
    %v380 = vunpack.c.h.b16 %v76
    %v381 = vunpack.c.l.b16 %v77
    %v382 = vunpack.c.h.b16 %v77
    %v383 = vunpack.c.l.b16 %v78
    %v384 = vunpack.c.h.b16 %v78
    %v385 = vunpack.c.l.b16 %v79
    %v386 = vunpack.c.h.b16 %v79
    %v387 = vunpack.c.l.b16 %v80
    %v388 = vunpack.c.h.b16 %v80
    %v389 = vunpack.c.l.b16 %v81
    %v390 = vunpack.c.h.b16 %v81
    %v391 = vunpack.c.l.b16 %v82
    %v392 = vunpack.c.h.b16 %v82
    %v393 = vunpack.c.l.b16 %v83
    %v394 = vunpack.c.h.b16 %v83
    %v395 = vunpack.c.l.b16 %v84
    %v396 = vunpack.c.h.b16 %v84
    %v397 = vunpack.c.l.b16 %v85
    %v398 = vunpack.c.h.b16 %v85
    %v399 = vunpack.c.l.b16 %v86
    %v400 = vunpack.c.h.b16 %v86
    %v401 = vunpack.c.l.b16 %v87
    %v402 = vunpack.c.h.b16 %v87
    %v403 = vunpack.c.l.b16 %v88
    %v404 = vunpack.c.h.b16 %v88
    %v405 = vunpack.c.l.b16 %v89
    %v406 = vunpack.c.h.b16 %v89
    %v407 = vunpack.c.l.b16 %v90
    %v408 = vunpack.c.h.b16 %v90
    %v409 = vunpack.c.l.b16 %v91
    %v410 = vunpack.c.h.b16 %v91
    %v411 = vunpack.c.l.b16 %v92
    %v412 = vunpack.c.h.b16 %v92
    %v413 = vpack.c.b16 %v293, %v285
    %v414 = vpack.c.b16 %v294, %v286
    %v415 = vpack.c.b16 %v295, %v287
    %v416 = vpack.c.b16 %v296, %v288
    %v417 = vpack.c.b16 %v297, %v289
    %v418 = vpack.c.b16 %v298, %v290
    %v419 = vpack.c.b16 %v299, %v291
    %v420 = vpack.c.b16 %v300, %v292
    %v421 = vpack.c.b16 %v309, %v301
    %v422 = vpack.c.b16 %v310, %v302
    %v423 = vpack.c.b16 %v311, %v303
    %v424 = vpack.c.b16 %v312, %v304
    %v425 = vpack.c.b16 %v313, %v305
    %v426 = vpack.c.b16 %v314, %v306
    %v427 = vpack.c.b16 %v315, %v307
    %v428 = vpack.c.b16 %v316, %v308
    %v429 = vpack.c.b16 %v325, %v317
    %v430 = vpack.c.b16 %v326, %v318
    %v431 = vpack.c.b16 %v327, %v319
    %v432 = vpack.c.b16 %v328, %v320
    %v433 = vpack.c.b16 %v329, %v321
    %v434 = vpack.c.b16 %v330, %v322
    %v435 = vpack.c.b16 %v331, %v323
    %v436 = vpack.c.b16 %v332, %v324
    %v437 = vpack.c.b16 %v341, %v333
    %v438 = vpack.c.b16 %v342, %v334
    %v439 = vpack.c.b16 %v343, %v335
    %v440 = vpack.c.b16 %v344, %v336
    %v441 = vpack.c.b16 %v345, %v337
    %v442 = vpack.c.b16 %v346, %v338
    %v443 = vpack.c.b16 %v347, %v339
    %v444 = vpack.c.b16 %v348, %v340
    %v445 = vpack.c.b16 %v357, %v349
    %v446 = vpack.c.b16 %v358, %v350
    %v447 = vpack.c.b16 %v359, %v351
    %v448 = vpack.c.b16 %v360, %v352
    %v449 = vpack.c.b16 %v361, %v353
    %v450 = vpack.c.b16 %v362, %v354
    %v451 = vpack.c.b16 %v363, %v355
    %v452 = vpack.c.b16 %v364, %v356
    %v453 = vpack.c.b16 %v373, %v365
    %v454 = vpack.c.b16 %v374, %v366
    %v455 = vpack.c.b16 %v375, %v367
    %v456 = vpack.c.b16 %v376, %v368
    %v457 = vpack.c.b16 %v377, %v369
    %v458 = vpack.c.b16 %v378, %v370
    %v459 = vpack.c.b16 %v379, %v371
    %v460 = vpack.c.b16 %v380, %v372
    %v461 = vpack.c.b16 %v389, %v381
    %v462 = vpack.c.b16 %v390, %v382
    %v463 = vpack.c.b16 %v391, %v383
    %v464 = vpack.c.b16 %v392, %v384
    %v465 = vpack.c.b16 %v393, %v385
    %v466 = vpack.c.b16 %v394, %v386
    %v467 = vpack.c.b16 %v395, %v387
    %v468 = vpack.c.b16 %v396, %v388
    %v469 = vpack.c.b16 %v405, %v397
    %v470 = vpack.c.b16 %v406, %v398
    %v471 = vpack.c.b16 %v407, %v399
    %v472 = vpack.c.b16 %v408, %v400
    %v473 = vpack.c.b16 %v409, %v401
    %v474 = vpack.c.b16 %v410, %v402
    %v475 = vpack.c.b16 %v411, %v403
    %v476 = vpack.c.b16 %v412, %v404
    %v669 = vunpack.c.l.b16 %v93
    %v670 = vunpack.c.l.b16 %v94
    %v671 = vunpack.c.l.b16 %v95
    %v672 = vunpack.c.l.b16 %v96
    %v673 = vunpack.c.l.b16 %v97
    %v674 = vunpack.c.l.b16 %v98
    %v675 = vunpack.c.l.b16 %v99
    %v676 = vunpack.c.l.b16 %v100
    %v677 = vunpack.c.l.b16 %v101
    %v678 = vunpack.c.l.b16 %v102
    %v679 = vunpack.c.l.b16 %v103
    %v680 = vunpack.c.l.b16 %v104
    %v681 = vunpack.c.l.b16 %v105
    %v682 = vunpack.c.l.b16 %v106
    %v683 = vunpack.c.l.b16 %v107
    %v684 = vunpack.c.l.b16 %v108
    %v685 = vunpack.c.l.b16 %v109
    %v686 = vunpack.c.l.b16 %v110
    %v687 = vunpack.c.l.b16 %v111
    %v688 = vunpack.c.l.b16 %v112
    %v689 = vunpack.c.l.b16 %v113
    %v690 = vunpack.c.l.b16 %v114
    %v691 = vunpack.c.l.b16 %v115
    %v692 = vunpack.c.l.b16 %v116
    %v693 = vunpack.c.l.b16 %v117
    %v694 = vunpack.c.l.b16 %v118
    %v695 = vunpack.c.l.b16 %v119
    %v696 = vunpack.c.l.b16 %v120
    %v697 = vunpack.c.l.b16 %v121
    %v698 = vunpack.c.l.b16 %v122
    %v699 = vunpack.c.l.b16 %v123
    %v700 = vunpack.c.l.b16 %v124
    %v701 = vunpack.c.l.b16 %v125
    %v702 = vunpack.c.l.b16 %v126
    %v703 = vunpack.c.l.b16 %v127
    %v704 = vunpack.c.l.b16 %v128
    %v705 = vunpack.c.l.b16 %v129
    %v706 = vunpack.c.l.b16 %v130
    %v707 = vunpack.c.l.b16 %v131
    %v708 = vunpack.c.l.b16 %v132
    %v709 = vunpack.c.l.b16 %v133
    %v710 = vunpack.c.l.b16 %v134
    %v711 = vunpack.c.l.b16 %v135
    %v712 = vunpack.c.l.b16 %v136
    %v713 = vunpack.c.l.b16 %v137
    %v714 = vunpack.c.l.b16 %v138
    %v715 = vunpack.c.l.b16 %v139
    %v716 = vunpack.c.l.b16 %v140
    %v717 = vunpack.c.l.b16 %v141
    %v718 = vunpack.c.l.b16 %v142
    %v719 = vunpack.c.l.b16 %v143
    %v720 = vunpack.c.l.b16 %v144
    %v721 = vunpack.c.l.b16 %v145
    %v722 = vunpack.c.l.b16 %v146
    %v723 = vunpack.c.l.b16 %v147
    %v724 = vunpack.c.l.b16 %v148
    %v725 = vunpack.c.l.b16 %v149
    %v726 = vunpack.c.l.b16 %v150
    %v727 = vunpack.c.l.b16 %v151
    %v728 = vunpack.c.l.b16 %v152
    %v729 = vunpack.c.l.b16 %v153
    %v730 = vunpack.c.l.b16 %v154
    %v731 = vunpack.c.l.b16 %v155
    %v732 = vunpack.c.l.b16 %v156
    %v733 = vunpack.c.l.b16 %v157
    %v734 = vunpack.c.l.b16 %v158
    %v735 = vunpack.c.l.b16 %v159
    %v736 = vunpack.c.l.b16 %v160
    %v737 = vunpack.c.l.b16 %v161
    %v738 = vunpack.c.l.b16 %v162
    %v739 = vunpack.c.l.b16 %v163
    %v740 = vunpack.c.l.b16 %v164
    %v741 = vunpack.c.l.b16 %v165
    %v742 = vunpack.c.l.b16 %v166
    %v743 = vunpack.c.l.b16 %v167
    %v744 = vunpack.c.l.b16 %v168
    %v745 = vunpack.c.l.b16 %v169
    %v746 = vunpack.c.l.b16 %v170
    %v747 = vunpack.c.l.b16 %v171
    %v748 = vunpack.c.l.b16 %v172
    %v749 = vunpack.c.l.b16 %v173
    %v750 = vunpack.c.l.b16 %v174
    %v751 = vunpack.c.l.b16 %v175
    %v752 = vunpack.c.l.b16 %v176
    %v753 = vunpack.c.l.b16 %v177
    %v754 = vunpack.c.l.b16 %v178
    %v755 = vunpack.c.l.b16 %v179
    %v756 = vunpack.c.l.b16 %v180
    %v757 = vunpack.c.l.b16 %v181
    %v758 = vunpack.c.l.b16 %v182
    %v759 = vunpack.c.l.b16 %v183
    %v760 = vunpack.c.l.b16 %v184
    %v761 = vunpack.c.l.b16 %v185
    %v762 = vunpack.c.l.b16 %v186
    %v763 = vunpack.c.l.b16 %v187
    %v764 = vunpack.c.l.b16 %v188
    %v765 = vunpack.c.l.b16 %v189
    %v766 = vunpack.c.l.b16 %v190
    %v767 = vunpack.c.l.b16 %v191
    %v768 = vunpack.c.l.b16 %v192
    %v769 = vunpack.c.l.b16 %v193
    %v770 = vunpack.c.l.b16 %v194
    %v771 = vunpack.c.l.b16 %v195
    %v772 = vunpack.c.l.b16 %v196
    %v773 = vunpack.c.l.b16 %v197
    %v774 = vunpack.c.l.b16 %v198
    %v775 = vunpack.c.l.b16 %v199
    %v776 = vunpack.c.l.b16 %v200
    %v777 = vunpack.c.l.b16 %v201
    %v778 = vunpack.c.l.b16 %v202
    %v779 = vunpack.c.l.b16 %v203
    %v780 = vunpack.c.l.b16 %v204
    %v781 = vunpack.c.l.b16 %v205
    %v782 = vunpack.c.l.b16 %v206
    %v783 = vunpack.c.l.b16 %v207
    %v784 = vunpack.c.l.b16 %v208
    %v785 = vunpack.c.l.b16 %v209
    %v786 = vunpack.c.l.b16 %v210
    %v787 = vunpack.c.l.b16 %v211
    %v788 = vunpack.c.l.b16 %v212
    %v789 = vunpack.c.l.b16 %v213
    %v790 = vunpack.c.l.b16 %v214
    %v791 = vunpack.c.l.b16 %v215
    %v792 = vunpack.c.l.b16 %v216
    %v793 = vunpack.c.l.b16 %v217
    %v794 = vunpack.c.l.b16 %v218
    %v795 = vunpack.c.l.b16 %v219
    %v796 = vunpack.c.l.b16 %v220
    %v797 = vpack.c.b16 %v670, %v669
    %v798 = vpack.c.b16 %v672, %v671
    %v799 = vpack.c.b16 %v674, %v673
    %v800 = vpack.c.b16 %v676, %v675
    %v801 = vpack.c.b16 %v678, %v677
    %v802 = vpack.c.b16 %v680, %v679
    %v803 = vpack.c.b16 %v682, %v681
    %v804 = vpack.c.b16 %v684, %v683
    %v805 = vpack.c.b16 %v686, %v685
    %v806 = vpack.c.b16 %v688, %v687
    %v807 = vpack.c.b16 %v690, %v689
    %v808 = vpack.c.b16 %v692, %v691
    %v809 = vpack.c.b16 %v694, %v693
    %v810 = vpack.c.b16 %v696, %v695
    %v811 = vpack.c.b16 %v698, %v697
    %v812 = vpack.c.b16 %v700, %v699
    %v813 = vpack.c.b16 %v702, %v701
    %v814 = vpack.c.b16 %v704, %v703
    %v815 = vpack.c.b16 %v706, %v705
    %v816 = vpack.c.b16 %v708, %v707
    %v817 = vpack.c.b16 %v710, %v709
    %v818 = vpack.c.b16 %v712, %v711
    %v819 = vpack.c.b16 %v714, %v713
    %v820 = vpack.c.b16 %v716, %v715
    %v821 = vpack.c.b16 %v718, %v717
    %v822 = vpack.c.b16 %v720, %v719
    %v823 = vpack.c.b16 %v722, %v721
    %v824 = vpack.c.b16 %v724, %v723
    %v825 = vpack.c.b16 %v726, %v725
    %v826 = vpack.c.b16 %v728, %v727
    %v827 = vpack.c.b16 %v730, %v729
    %v828 = vpack.c.b16 %v732, %v731
    %v829 = vpack.c.b16 %v734, %v733
    %v830 = vpack.c.b16 %v736, %v735
    %v831 = vpack.c.b16 %v738, %v737
    %v832 = vpack.c.b16 %v740, %v739
    %v833 = vpack.c.b16 %v742, %v741
    %v834 = vpack.c.b16 %v744, %v743
    %v835 = vpack.c.b16 %v746, %v745
    %v836 = vpack.c.b16 %v748, %v747
    %v837 = vpack.c.b16 %v750, %v749
    %v838 = vpack.c.b16 %v752, %v751
    %v839 = vpack.c.b16 %v754, %v753
    %v840 = vpack.c.b16 %v756, %v755
    %v841 = vpack.c.b16 %v758, %v757
    %v842 = vpack.c.b16 %v760, %v759
    %v843 = vpack.c.b16 %v762, %v761
    %v844 = vpack.c.b16 %v764, %v763
    %v845 = vpack.c.b16 %v766, %v765
    %v846 = vpack.c.b16 %v768, %v767
    %v847 = vpack.c.b16 %v770, %v769
    %v848 = vpack.c.b16 %v772, %v771
    %v849 = vpack.c.b16 %v774, %v773
    %v850 = vpack.c.b16 %v776, %v775
    %v851 = vpack.c.b16 %v778, %v777
    %v852 = vpack.c.b16 %v780, %v779
    %v853 = vpack.c.b16 %v782, %v781
    %v854 = vpack.c.b16 %v784, %v783
    %v855 = vpack.c.b16 %v786, %v785
    %v856 = vpack.c.b16 %v788, %v787
    %v857 = vpack.c.b16 %v790, %v789
    %v858 = vpack.c.b16 %v792, %v791
    %v859 = vpack.c.b16 %v794, %v793
    %v860 = vpack.c.b16 %v796, %v795
    %925 = vmatprep.subr.bf16.mxu0 0
    %926 = vmatpush1.bf16.msra.mxu0 %v797
    %927 = vmatprep.subr.bf16.mxu0 0
    %928 = vmatpush1.bf16.msra.mxu0 %v798
    %929 = vmatprep.subr.bf16.mxu0 0
    %930 = vmatpush1.bf16.msra.mxu0 %v799
    %931 = vmatprep.subr.bf16.mxu0 0
    %932 = vmatpush1.bf16.msra.mxu0 %v800
    %933 = vmatprep.subr.bf16.mxu0 0
    %934 = vmatpush1.bf16.msra.mxu0 %v801
    %935 = vmatprep.subr.bf16.mxu0 0
    %936 = vmatpush1.bf16.msra.mxu0 %v802
    %937 = vmatprep.subr.bf16.mxu0 0
    %938 = vmatpush1.bf16.msra.mxu0 %v803
    %939 = vmatprep.subr.bf16.mxu0 0
    %940 = vmatpush1.bf16.msra.mxu0 %v804
    %941 = vmatprep.subr.bf16.mxu0 0
    %942 = vmatpush1.bf16.msra.mxu0 %v805
    %943 = vmatprep.subr.bf16.mxu0 0
    %944 = vmatpush1.bf16.msra.mxu0 %v806
    %945 = vmatprep.subr.bf16.mxu0 0
    %946 = vmatpush1.bf16.msra.mxu0 %v807
    %947 = vmatprep.subr.bf16.mxu0 0
    %948 = vmatpush1.bf16.msra.mxu0 %v808
    %949 = vmatprep.subr.bf16.mxu0 0
    %950 = vmatpush1.bf16.msra.mxu0 %v809
    %951 = vmatprep.subr.bf16.mxu0 0
    %952 = vmatpush1.bf16.msra.mxu0 %v810
    %953 = vmatprep.subr.bf16.mxu0 0
    %954 = vmatpush1.bf16.msra.mxu0 %v811
    %955 = vmatprep.subr.bf16.mxu0 0
    %956 = vmatpush1.bf16.msra.mxu0 %v812
    %957 = vmatprep.mubr.bf16.mxu0 %v414
    %958 = vmatmul.mubr.bf16.gmra.mrb[0].mxu0 %v413
    %v959 = vpop.f32.mrb[0].mxu0
    %v960 = vadd.f32 0.0, %v959
    %v961 = vpop.f32.mrb[0].mxu0
    %v962 = vpop.f32.mrb[0].mxu0
    %v963 = vadd.f32 0.0, %v962
    %v964 = vpop.f32.mrb[0].mxu0
    %965 = vmatprep.mubr.bf16.mxu0 %v422
    %966 = vmatmul.mubr.bf16.gmra.mrb[0].mxu0 %v421
    %v967 = vpop.f32.mrb[0].mxu0
    %v968 = vadd.f32 0.0, %v967
    %v969 = vpop.f32.mrb[0].mxu0
    %v970 = vpop.f32.mrb[0].mxu0
    %v971 = vadd.f32 0.0, %v970
    %v972 = vpop.f32.mrb[0].mxu0
    %973 = vmatprep.mubr.bf16.mxu0 %v430
    %974 = vmatmul.mubr.bf16.gmra.mrb[0].mxu0 %v429
    %v975 = vpop.f32.mrb[0].mxu0
    %v976 = vadd.f32 0.0, %v975
    %v977 = vpop.f32.mrb[0].mxu0
    %v978 = vpop.f32.mrb[0].mxu0
    %v979 = vadd.f32 0.0, %v978
    %v980 = vpop.f32.mrb[0].mxu0
    %981 = vmatprep.mubr.bf16.mxu0 %v438
    %982 = vmatmul.mubr.bf16.gmra.mrb[0].mxu0 %v437
    %v983 = vpop.f32.mrb[0].mxu0
    %v984 = vadd.f32 0.0, %v983
    %v985 = vpop.f32.mrb[0].mxu0
    %v986 = vpop.f32.mrb[0].mxu0
    %v987 = vadd.f32 0.0, %v986
    %v988 = vpop.f32.mrb[0].mxu0
    %989 = vmatprep.mubr.bf16.mxu0 %v446
    %990 = vmatmul.mubr.bf16.gmra.mrb[0].mxu0 %v445
    %v991 = vpop.f32.mrb[0].mxu0
    %v992 = vadd.f32 0.0, %v991
    %v993 = vpop.f32.mrb[0].mxu0
    %v994 = vpop.f32.mrb[0].mxu0
    %v995 = vadd.f32 0.0, %v994
    %v996 = vpop.f32.mrb[0].mxu0
    %997 = vmatprep.mubr.bf16.mxu0 %v454
    %998 = vmatmul.mubr.bf16.gmra.mrb[0].mxu0 %v453
    %v999 = vpop.f32.mrb[0].mxu0
    %v1000 = vadd.f32 0.0, %v999
    %v1001 = vpop.f32.mrb[0].mxu0
    %v1002 = vpop.f32.mrb[0].mxu0
    %v1003 = vadd.f32 0.0, %v1002
    %v1004 = vpop.f32.mrb[0].mxu0
    %1005 = vmatprep.mubr.bf16.mxu0 %v462
    %1006 = vmatmul.mubr.bf16.gmra.mrb[0].mxu0 %v461
    %v1007 = vpop.f32.mrb[0].mxu0
    %v1008 = vadd.f32 0.0, %v1007
    %v1009 = vpop.f32.mrb[0].mxu0
    %v1010 = vpop.f32.mrb[0].mxu0
    %v1011 = vadd.f32 0.0, %v1010
    %v1012 = vpop.f32.mrb[0].mxu0
    %1013 = vmatprep.mubr.bf16.mxu0 %v470
    %1014 = vmatmul.mubr.bf16.gmra.mrb[0].mxu0 %v469
    %v1015 = vpop.f32.mrb[0].mxu0
    %v1016 = vadd.f32 0.0, %v1015
    %v1017 = vpop.f32.mrb[0].mxu0
    %v1018 = vpop.f32.mrb[0].mxu0
    %v1019 = vadd.f32 0.0, %v1018
    %v1020 = vpop.f32.mrb[0].mxu0
    %1021 = vdwg.mxu0
    %1022 = vmatprep.subr.bf16.mxu0 0
    %1023 = vmatpush1.bf16.msra.mxu0 %v813
    %1024 = vmatprep.subr.bf16.mxu0 0
    %1025 = vmatpush1.bf16.msra.mxu0 %v814
    %1026 = vmatprep.subr.bf16.mxu0 0
    %1027 = vmatpush1.bf16.msra.mxu0 %v815
    %1028 = vmatprep.subr.bf16.mxu0 0
    %1029 = vmatpush1.bf16.msra.mxu0 %v816
    %1030 = vmatprep.subr.bf16.mxu0 0
    %1031 = vmatpush1.bf16.msra.mxu0 %v817
    %1032 = vmatprep.subr.bf16.mxu0 0
    %1033 = vmatpush1.bf16.msra.mxu0 %v818
    %1034 = vmatprep.subr.bf16.mxu0 0
    %1035 = vmatpush1.bf16.msra.mxu0 %v819
    %1036 = vmatprep.subr.bf16.mxu0 0
    %1037 = vmatpush1.bf16.msra.mxu0 %v820
    %1038 = vmatprep.subr.bf16.mxu0 0
    %1039 = vmatpush1.bf16.msra.mxu0 %v821
    %1040 = vmatprep.subr.bf16.mxu0 0
    %1041 = vmatpush1.bf16.msra.mxu0 %v822
    %1042 = vmatprep.subr.bf16.mxu0 0
    %1043 = vmatpush1.bf16.msra.mxu0 %v823
    %1044 = vmatprep.subr.bf16.mxu0 0
    %1045 = vmatpush1.bf16.msra.mxu0 %v824
    %1046 = vmatprep.subr.bf16.mxu0 0
    %1047 = vmatpush1.bf16.msra.mxu0 %v825
    %1048 = vmatprep.subr.bf16.mxu0 0
    %1049 = vmatpush1.bf16.msra.mxu0 %v826
    %1050 = vmatprep.subr.bf16.mxu0 0
    %1051 = vmatpush1.bf16.msra.mxu0 %v827
    %1052 = vmatprep.subr.bf16.mxu0 0
    %1053 = vmatpush1.bf16.msra.mxu0 %v828
    %1054 = vmatprep.mubr.bf16.mxu0 %v416
    %1055 = vmatmul.mubr.bf16.gmra.mrb[0].mxu0 %v415
    %v1056 = vpop.f32.mrb[0].mxu0
    %v1057 = vadd.f32 %v960, %v1056
    %v1058 = vpop.f32.mrb[0].mxu0
    %v1059 = vpop.f32.mrb[0].mxu0
    %v1060 = vadd.f32 %v963, %v1059
    %v1061 = vpop.f32.mrb[0].mxu0
    %1062 = vmatprep.mubr.bf16.mxu0 %v424
    %1063 = vmatmul.mubr.bf16.gmra.mrb[0].mxu0 %v423
    %v1064 = vpop.f32.mrb[0].mxu0
    %v1065 = vadd.f32 %v968, %v1064
    %v1066 = vpop.f32.mrb[0].mxu0
    %v1067 = vpop.f32.mrb[0].mxu0
    %v1068 = vadd.f32 %v971, %v1067
    %v1069 = vpop.f32.mrb[0].mxu0
    %1070 = vmatprep.mubr.bf16.mxu0 %v432
    %1071 = vmatmul.mubr.bf16.gmra.mrb[0].mxu0 %v431
    %v1072 = vpop.f32.mrb[0].mxu0
    %v1073 = vadd.f32 %v976, %v1072
    %v1074 = vpop.f32.mrb[0].mxu0
    %v1075 = vpop.f32.mrb[0].mxu0
    %v1076 = vadd.f32 %v979, %v1075
    %v1077 = vpop.f32.mrb[0].mxu0
    %1078 = vmatprep.mubr.bf16.mxu0 %v440
    %1079 = vmatmul.mubr.bf16.gmra.mrb[0].mxu0 %v439
    %v1080 = vpop.f32.mrb[0].mxu0
    %v1081 = vadd.f32 %v984, %v1080
    %v1082 = vpop.f32.mrb[0].mxu0
    %v1083 = vpop.f32.mrb[0].mxu0
    %v1084 = vadd.f32 %v987, %v1083
    %v1085 = vpop.f32.mrb[0].mxu0
    %1086 = vmatprep.mubr.bf16.mxu0 %v448
    %1087 = vmatmul.mubr.bf16.gmra.mrb[0].mxu0 %v447
    %v1088 = vpop.f32.mrb[0].mxu0
    %v1089 = vadd.f32 %v992, %v1088
    %v1090 = vpop.f32.mrb[0].mxu0
    %v1091 = vpop.f32.mrb[0].mxu0
    %v1092 = vadd.f32 %v995, %v1091
    %v1093 = vpop.f32.mrb[0].mxu0
    %1094 = vmatprep.mubr.bf16.mxu0 %v456
    %1095 = vmatmul.mubr.bf16.gmra.mrb[0].mxu0 %v455
    %v1096 = vpop.f32.mrb[0].mxu0
    %v1097 = vadd.f32 %v1000, %v1096
    %v1098 = vpop.f32.mrb[0].mxu0
    %v1099 = vpop.f32.mrb[0].mxu0
    %v1100 = vadd.f32 %v1003, %v1099
    %v1101 = vpop.f32.mrb[0].mxu0
    %1102 = vmatprep.mubr.bf16.mxu0 %v464
    %1103 = vmatmul.mubr.bf16.gmra.mrb[0].mxu0 %v463
    %v1104 = vpop.f32.mrb[0].mxu0
    %v1105 = vadd.f32 %v1008, %v1104
    %v1106 = vpop.f32.mrb[0].mxu0
    %v1107 = vpop.f32.mrb[0].mxu0
    %v1108 = vadd.f32 %v1011, %v1107
    %v1109 = vpop.f32.mrb[0].mxu0
    %1110 = vmatprep.mubr.bf16.mxu0 %v472
    %1111 = vmatmul.mubr.bf16.gmra.mrb[0].mxu0 %v471
    %v1112 = vpop.f32.mrb[0].mxu0
    %v1113 = vadd.f32 %v1016, %v1112
    %v1114 = vpop.f32.mrb[0].mxu0
    %v1115 = vpop.f32.mrb[0].mxu0
    %v1116 = vadd.f32 %v1019, %v1115
    %v1117 = vpop.f32.mrb[0].mxu0
    %1118 = vdwg.mxu0
    %1119 = vmatprep.subr.bf16.mxu0 0
    %1120 = vmatpush1.bf16.msra.mxu0 %v829
    %1121 = vmatprep.subr.bf16.mxu0 0
    %1122 = vmatpush1.bf16.msra.mxu0 %v830
    %1123 = vmatprep.subr.bf16.mxu0 0
    %1124 = vmatpush1.bf16.msra.mxu0 %v831
    %1125 = vmatprep.subr.bf16.mxu0 0
    %1126 = vmatpush1.bf16.msra.mxu0 %v832
    %1127 = vmatprep.subr.bf16.mxu0 0
    %1128 = vmatpush1.bf16.msra.mxu0 %v833
    %1129 = vmatprep.subr.bf16.mxu0 0
    %1130 = vmatpush1.bf16.msra.mxu0 %v834
    %1131 = vmatprep.subr.bf16.mxu0 0
    %1132 = vmatpush1.bf16.msra.mxu0 %v835
    %1133 = vmatprep.subr.bf16.mxu0 0
    %1134 = vmatpush1.bf16.msra.mxu0 %v836
    %1135 = vmatprep.subr.bf16.mxu0 0
    %1136 = vmatpush1.bf16.msra.mxu0 %v837
    %1137 = vmatprep.subr.bf16.mxu0 0
    %1138 = vmatpush1.bf16.msra.mxu0 %v838
    %1139 = vmatprep.subr.bf16.mxu0 0
    %1140 = vmatpush1.bf16.msra.mxu0 %v839
    %1141 = vmatprep.subr.bf16.mxu0 0
    %1142 = vmatpush1.bf16.msra.mxu0 %v840
    %1143 = vmatprep.subr.bf16.mxu0 0
    %1144 = vmatpush1.bf16.msra.mxu0 %v841
    %1145 = vmatprep.subr.bf16.mxu0 0
    %1146 = vmatpush1.bf16.msra.mxu0 %v842
    %1147 = vmatprep.subr.bf16.mxu0 0
    %1148 = vmatpush1.bf16.msra.mxu0 %v843
    %1149 = vmatprep.subr.bf16.mxu0 0
    %1150 = vmatpush1.bf16.msra.mxu0 %v844
    %1151 = vmatprep.mubr.bf16.mxu0 %v418
    %1152 = vmatmul.mubr.bf16.gmra.mrb[0].mxu0 %v417
    %v1153 = vpop.f32.mrb[0].mxu0
    %v1154 = vadd.f32 %v1057, %v1153
    %v1155 = vpop.f32.mrb[0].mxu0
    %v1156 = vpop.f32.mrb[0].mxu0
    %v1157 = vadd.f32 %v1060, %v1156
    %v1158 = vpop.f32.mrb[0].mxu0
    %1159 = vmatprep.mubr.bf16.mxu0 %v426
    %1160 = vmatmul.mubr.bf16.gmra.mrb[0].mxu0 %v425
    %v1161 = vpop.f32.mrb[0].mxu0
    %v1162 = vadd.f32 %v1065, %v1161
    %v1163 = vpop.f32.mrb[0].mxu0
    %v1164 = vpop.f32.mrb[0].mxu0
    %v1165 = vadd.f32 %v1068, %v1164
    %v1166 = vpop.f32.mrb[0].mxu0
    %1167 = vmatprep.mubr.bf16.mxu0 %v434
    %1168 = vmatmul.mubr.bf16.gmra.mrb[0].mxu0 %v433
    %v1169 = vpop.f32.mrb[0].mxu0
    %v1170 = vadd.f32 %v1073, %v1169
    %v1171 = vpop.f32.mrb[0].mxu0
    %v1172 = vpop.f32.mrb[0].mxu0
    %v1173 = vadd.f32 %v1076, %v1172
    %v1174 = vpop.f32.mrb[0].mxu0
    %1175 = vmatprep.mubr.bf16.mxu0 %v442
    %1176 = vmatmul.mubr.bf16.gmra.mrb[0].mxu0 %v441
    %v1177 = vpop.f32.mrb[0].mxu0
    %v1178 = vadd.f32 %v1081, %v1177
    %v1179 = vpop.f32.mrb[0].mxu0
    %v1180 = vpop.f32.mrb[0].mxu0
    %v1181 = vadd.f32 %v1084, %v1180
    %v1182 = vpop.f32.mrb[0].mxu0
    %1183 = vmatprep.mubr.bf16.mxu0 %v450
    %1184 = vmatmul.mubr.bf16.gmra.mrb[0].mxu0 %v449
    %v1185 = vpop.f32.mrb[0].mxu0
    %v1186 = vadd.f32 %v1089, %v1185
    %v1187 = vpop.f32.mrb[0].mxu0
    %v1188 = vpop.f32.mrb[0].mxu0
    %v1189 = vadd.f32 %v1092, %v1188
    %v1190 = vpop.f32.mrb[0].mxu0
    %1191 = vmatprep.mubr.bf16.mxu0 %v458
    %1192 = vmatmul.mubr.bf16.gmra.mrb[0].mxu0 %v457
    %v1193 = vpop.f32.mrb[0].mxu0
    %v1194 = vadd.f32 %v1097, %v1193
    %v1195 = vpop.f32.mrb[0].mxu0
    %v1196 = vpop.f32.mrb[0].mxu0
    %v1197 = vadd.f32 %v1100, %v1196
    %v1198 = vpop.f32.mrb[0].mxu0
    %1199 = vmatprep.mubr.bf16.mxu0 %v466
    %1200 = vmatmul.mubr.bf16.gmra.mrb[0].mxu0 %v465
    %v1201 = vpop.f32.mrb[0].mxu0
    %v1202 = vadd.f32 %v1105, %v1201
    %v1203 = vpop.f32.mrb[0].mxu0
    %v1204 = vpop.f32.mrb[0].mxu0
    %v1205 = vadd.f32 %v1108, %v1204
    %v1206 = vpop.f32.mrb[0].mxu0
    %1207 = vmatprep.mubr.bf16.mxu0 %v474
    %1208 = vmatmul.mubr.bf16.gmra.mrb[0].mxu0 %v473
    %v1209 = vpop.f32.mrb[0].mxu0
    %v1210 = vadd.f32 %v1113, %v1209
    %v1211 = vpop.f32.mrb[0].mxu0
    %v1212 = vpop.f32.mrb[0].mxu0
    %v1213 = vadd.f32 %v1116, %v1212
    %v1214 = vpop.f32.mrb[0].mxu0
    %1215 = vdwg.mxu0
    %1216 = vmatprep.subr.bf16.mxu0 0
    %1217 = vmatpush1.bf16.msra.mxu0 %v845
    %1218 = vmatprep.subr.bf16.mxu0 0
    %1219 = vmatpush1.bf16.msra.mxu0 %v846
    %1220 = vmatprep.subr.bf16.mxu0 0
    %1221 = vmatpush1.bf16.msra.mxu0 %v847
    %1222 = vmatprep.subr.bf16.mxu0 0
    %1223 = vmatpush1.bf16.msra.mxu0 %v848
    %1224 = vmatprep.subr.bf16.mxu0 0
    %1225 = vmatpush1.bf16.msra.mxu0 %v849
    %1226 = vmatprep.subr.bf16.mxu0 0
    %1227 = vmatpush1.bf16.msra.mxu0 %v850
    %1228 = vmatprep.subr.bf16.mxu0 0
    %1229 = vmatpush1.bf16.msra.mxu0 %v851
    %1230 = vmatprep.subr.bf16.mxu0 0
    %1231 = vmatpush1.bf16.msra.mxu0 %v852
    %1232 = vmatprep.subr.bf16.mxu0 0
    %1233 = vmatpush1.bf16.msra.mxu0 %v853
    %1234 = vmatprep.subr.bf16.mxu0 0
    %1235 = vmatpush1.bf16.msra.mxu0 %v854
    %1236 = vmatprep.subr.bf16.mxu0 0
    %1237 = vmatpush1.bf16.msra.mxu0 %v855
    %1238 = vmatprep.subr.bf16.mxu0 0
    %1239 = vmatpush1.bf16.msra.mxu0 %v856
    %1240 = vmatprep.subr.bf16.mxu0 0
    %1241 = vmatpush1.bf16.msra.mxu0 %v857
    %1242 = vmatprep.subr.bf16.mxu0 0
    %1243 = vmatpush1.bf16.msra.mxu0 %v858
    %1244 = vmatprep.subr.bf16.mxu0 0
    %1245 = vmatpush1.bf16.msra.mxu0 %v859
    %1246 = vmatprep.subr.bf16.mxu0 0
    %1247 = vmatpush1.bf16.msra.mxu0 %v860
    %1248 = vmatprep.mubr.bf16.mxu0 %v420
    %1249 = vmatmul.mubr.bf16.gmra.mrb[0].mxu0 %v419
    %v1250 = vpop.f32.mrb[0].mxu0
    %v1251 = vadd.f32 %v1154, %v1250
    %v1252 = vpop.f32.mrb[0].mxu0
    %v1253 = vpop.f32.mrb[0].mxu0
    %v1254 = vadd.f32 %v1157, %v1253
    %v1255 = vpop.f32.mrb[0].mxu0
    %1256 = vmatprep.mubr.bf16.mxu0 %v428
    %1257 = vmatmul.mubr.bf16.gmra.mrb[0].mxu0 %v427
    %v1258 = vpop.f32.mrb[0].mxu0
    %v1259 = vadd.f32 %v1162, %v1258
    %v1260 = vpop.f32.mrb[0].mxu0
    %v1261 = vpop.f32.mrb[0].mxu0
    %v1262 = vadd.f32 %v1165, %v1261
    %v1263 = vpop.f32.mrb[0].mxu0
    %1264 = vmatprep.mubr.bf16.mxu0 %v436
    %1265 = vmatmul.mubr.bf16.gmra.mrb[0].mxu0 %v435
    %v1266 = vpop.f32.mrb[0].mxu0
    %v1267 = vadd.f32 %v1170, %v1266
    %v1268 = vpop.f32.mrb[0].mxu0
    %v1269 = vpop.f32.mrb[0].mxu0
    %v1270 = vadd.f32 %v1173, %v1269
    %v1271 = vpop.f32.mrb[0].mxu0
    %1272 = vmatprep.mubr.bf16.mxu0 %v444
    %1273 = vmatmul.mubr.bf16.gmra.mrb[0].mxu0 %v443
    %v1274 = vpop.f32.mrb[0].mxu0
    %v1275 = vadd.f32 %v1178, %v1274
    %v1276 = vpop.f32.mrb[0].mxu0
    %v1277 = vpop.f32.mrb[0].mxu0
    %v1278 = vadd.f32 %v1181, %v1277
    %v1279 = vpop.f32.mrb[0].mxu0
    %1280 = vmatprep.mubr.bf16.mxu0 %v452
    %1281 = vmatmul.mubr.bf16.gmra.mrb[0].mxu0 %v451
    %v1282 = vpop.f32.mrb[0].mxu0
    %v1283 = vadd.f32 %v1186, %v1282
    %v1284 = vpop.f32.mrb[0].mxu0
    %v1285 = vpop.f32.mrb[0].mxu0
    %v1286 = vadd.f32 %v1189, %v1285
    %v1287 = vpop.f32.mrb[0].mxu0
    %1288 = vmatprep.mubr.bf16.mxu0 %v460
    %1289 = vmatmul.mubr.bf16.gmra.mrb[0].mxu0 %v459
    %v1290 = vpop.f32.mrb[0].mxu0
    %v1291 = vadd.f32 %v1194, %v1290
    %v1292 = vpop.f32.mrb[0].mxu0
    %v1293 = vpop.f32.mrb[0].mxu0
    %v1294 = vadd.f32 %v1197, %v1293
    %v1295 = vpop.f32.mrb[0].mxu0
    %1296 = vmatprep.mubr.bf16.mxu0 %v468
    %1297 = vmatmul.mubr.bf16.gmra.mrb[0].mxu0 %v467
    %v1298 = vpop.f32.mrb[0].mxu0
    %v1299 = vadd.f32 %v1202, %v1298
    %v1300 = vpop.f32.mrb[0].mxu0
    %v1301 = vpop.f32.mrb[0].mxu0
    %v1302 = vadd.f32 %v1205, %v1301
    %v1303 = vpop.f32.mrb[0].mxu0
    %1304 = vmatprep.mubr.bf16.mxu0 %v476
    %1305 = vmatmul.mubr.bf16.gmra.mrb[0].mxu0 %v475
    %v1306 = vpop.f32.mrb[0].mxu0
    %v1307 = vadd.f32 %v1210, %v1306
    %v1308 = vpop.f32.mrb[0].mxu0
    %v1309 = vpop.f32.mrb[0].mxu0
    %v1310 = vadd.f32 %v1213, %v1309
    %v1311 = vpop.f32.mrb[0].mxu0
    %1312 = vdwg.mxu0
    %vm1313 = vcmask 261120
    %1314 = vst.msk [vmem:[%s2] sm:$0xff] %vm1313, %v1251
    %1315 = vst.msk [vmem:[%s2 + $0x8] sm:$0xff] %vm1313, %v1254
    %1316 = vst.msk [vmem:[%s2 + $0x10] sm:$0xff] %vm1313, %v1259
    %1317 = vst.msk [vmem:[%s2 + $0x18] sm:$0xff] %vm1313, %v1262
    %1318 = vst.msk [vmem:[%s2 + $0x20] sm:$0xff] %vm1313, %v1267
    %1319 = vst.msk [vmem:[%s2 + $0x28] sm:$0xff] %vm1313, %v1270
    %1320 = vst.msk [vmem:[%s2 + $0x30] sm:$0xff] %vm1313, %v1275
    %1321 = vst.msk [vmem:[%s2 + $0x38] sm:$0xff] %vm1313, %v1278
    %1322 = vst.msk [vmem:[%s2 + $0x40] sm:$0xff] %vm1313, %v1283
    %1323 = vst.msk [vmem:[%s2 + $0x48] sm:$0xff] %vm1313, %v1286
    %1324 = vst.msk [vmem:[%s2 + $0x50] sm:$0xff] %vm1313, %v1291
    %1325 = vst.msk [vmem:[%s2 + $0x58] sm:$0xff] %vm1313, %v1294
    %1326 = vst.msk [vmem:[%s2 + $0x60] sm:$0xff] %vm1313, %v1299
    %1327 = vst.msk [vmem:[%s2 + $0x68] sm:$0xff] %vm1313, %v1302
    %1328 = vst.msk [vmem:[%s2 + $0x70] sm:$0xff] %vm1313, %v1307
    %1329 = vst.msk [vmem:[%s2 + $0x78] sm:$0xff] %vm1313, %v1310
    %v1330 = vsel %vm1313, %v1251, 0.0
    %v1331 = vsel %vm1313, %v1254, 0.0
    %v1332 = vadd.f32 %v1330, %v1331
    %v1333 = vsel %vm1313, %v1259, 0.0
    %v1334 = vadd.f32 %v1332, %v1333
    %v1335 = vsel %vm1313, %v1262, 0.0
    %v1336 = vadd.f32 %v1334, %v1335
    %v1337 = vsel %vm1313, %v1267, 0.0
    %v1338 = vadd.f32 %v1336, %v1337
    %v1339 = vsel %vm1313, %v1270, 0.0
    %v1340 = vadd.f32 %v1338, %v1339
    %v1341 = vsel %vm1313, %v1275, 0.0
    %v1342 = vadd.f32 %v1340, %v1341
    %v1343 = vsel %vm1313, %v1278, 0.0
    %v1344 = vadd.f32 %v1342, %v1343
    %v1345 = vsel %vm1313, %v1283, 0.0
    %v1346 = vadd.f32 %v1344, %v1345
    %v1347 = vsel %vm1313, %v1286, 0.0
    %v1348 = vadd.f32 %v1346, %v1347
    %v1349 = vsel %vm1313, %v1291, 0.0
    %v1350 = vadd.f32 %v1348, %v1349
    %v1351 = vsel %vm1313, %v1294, 0.0
    %v1352 = vadd.f32 %v1350, %v1351
    %v1353 = vsel %vm1313, %v1299, 0.0
    %v1354 = vadd.f32 %v1352, %v1353
    %v1355 = vsel %vm1313, %v1302, 0.0
    %v1356 = vadd.f32 %v1354, %v1355
    %v1357 = vsel %vm1313, %v1307, 0.0
    %v1358 = vadd.f32 %v1356, %v1357
    %v1359 = vsel %vm1313, %v1310, 0.0
    %v1360 = vadd.f32 %v1358, %v1359
    %v1361 = vrot.slane %v1360, 4
    %v1362 = vadd.f32 %v1360, %v1361
    %v1363 = vrot.slane %v1362, 2
    %v1364 = vadd.f32 %v1362, %v1363
    %v1365 = vrot.slane %v1364, 1
    %v1366 = vadd.f32 %v1364, %v1365
    %vm1367 = vcmask 253952
    %1368 = vst.msk [vmem:[%s3] sm:$0x1] %vm1367, %v1366
    %v1369 = vmul.f32 %v1251, %v1251
    %v1370 = vmul.f32 %v1254, %v1254
    %v1371 = vmul.f32 %v1259, %v1259
    %v1372 = vmul.f32 %v1262, %v1262
    %v1373 = vmul.f32 %v1267, %v1267
    %v1374 = vmul.f32 %v1270, %v1270
    %v1375 = vmul.f32 %v1275, %v1275
    %v1376 = vmul.f32 %v1278, %v1278
    %v1377 = vmul.f32 %v1283, %v1283
    %v1378 = vmul.f32 %v1286, %v1286
    %v1379 = vmul.f32 %v1291, %v1291
    %v1380 = vmul.f32 %v1294, %v1294
    %v1381 = vmul.f32 %v1299, %v1299
    %v1382 = vmul.f32 %v1302, %v1302
    %v1383 = vmul.f32 %v1307, %v1307
    %v1384 = vmul.f32 %v1310, %v1310
    %v1385 = vsel %vm1313, %v1369, 0.0
    %v1386 = vsel %vm1313, %v1370, 0.0
    %v1387 = vadd.f32 %v1385, %v1386
    %v1388 = vsel %vm1313, %v1371, 0.0
    %v1389 = vadd.f32 %v1387, %v1388
    %v1390 = vsel %vm1313, %v1372, 0.0
    %v1391 = vadd.f32 %v1389, %v1390
    %v1392 = vsel %vm1313, %v1373, 0.0
    %v1393 = vadd.f32 %v1391, %v1392
    %v1394 = vsel %vm1313, %v1374, 0.0
    %v1395 = vadd.f32 %v1393, %v1394
    %v1396 = vsel %vm1313, %v1375, 0.0
    %v1397 = vadd.f32 %v1395, %v1396
    %v1398 = vsel %vm1313, %v1376, 0.0
    %v1399 = vadd.f32 %v1397, %v1398
    %v1400 = vsel %vm1313, %v1377, 0.0
    %v1401 = vadd.f32 %v1399, %v1400
    %v1402 = vsel %vm1313, %v1378, 0.0
    %v1403 = vadd.f32 %v1401, %v1402
    %v1404 = vsel %vm1313, %v1379, 0.0
    %v1405 = vadd.f32 %v1403, %v1404
    %v1406 = vsel %vm1313, %v1380, 0.0
    %v1407 = vadd.f32 %v1405, %v1406
    %v1408 = vsel %vm1313, %v1381, 0.0
    %v1409 = vadd.f32 %v1407, %v1408
    %v1410 = vsel %vm1313, %v1382, 0.0
    %v1411 = vadd.f32 %v1409, %v1410
    %v1412 = vsel %vm1313, %v1383, 0.0
    %v1413 = vadd.f32 %v1411, %v1412
    %v1414 = vsel %vm1313, %v1384, 0.0
    %v1415 = vadd.f32 %v1413, %v1414
    %v1416 = vrot.slane %v1415, 4
    %v1417 = vadd.f32 %v1415, %v1416
    %v1418 = vrot.slane %v1417, 2
    %v1419 = vadd.f32 %v1417, %v1418
    %v1420 = vrot.slane %v1419, 1
    %v1421 = vadd.f32 %v1419, %v1420
    %1422 = vst.msk [vmem:[%s4] sm:$0x1] %vm1367, %v1421
    // Predicated region
    $region14: #{a_call__.11} parent=1 // pred_check
      _
    $region15: #{a_call__.11} parent=1 // pred_check_branch
      %1424 = sbr.rel (0) target = $region17
    $region16: #{a_call__.11} parent=1 // pred_region
      _
    $region17: #{a_call__.11} parent=1 // pred_fallthru
      _
    // Predicated region
    $region18: #{a_call__.11} parent=1 // pred_check
      _
    $region19: #{a_call__.11} parent=1 // pred_check_branch
      %1426 = sbr.rel (0) target = $region21
    $region20: #{a_call__.11} parent=1 // pred_region
      _
    $region21: #{a_call__.11} parent=1 // pred_fallthru
      _
    // Predicated region
    $region22: #{a_call__.11} parent=1 // pred_check
      _
    $region23: #{a_call__.11} parent=1 // pred_check_branch
      %1428 = sbr.rel (0) target = $region25
    $region24: #{a_call__.11} parent=1 // pred_region
      _
    $region25: #{a_call__.11} parent=1 // pred_fallthru
      _
    // Predicated region
    $region26: #{a_call__.11} parent=1 // pred_check
      _
    $region27: #{a_call__.11} parent=1 // pred_check_branch
      %1430 = sbr.rel (0) target = $region29
    $region28: #{a_call__.11} parent=1 // pred_region
      _
    $region29: #{a_call__.11} parent=1 // pred_fallthru
      _
    // Predicated region
    $region30: #{a_call__.11} parent=1 // pred_check
      _
    $region31: #{a_call__.11} parent=1 // pred_check_branch
      %1432 = sbr.rel (0) target = $region33
    $region32: #{a_call__.11} parent=1 // pred_region
      _
    $region33: #{a_call__.11} parent=1 // pred_fallthru
      _
    // Predicated region
    $region34: #{a_call__.11} parent=1 // pred_check
      _
    $region35: #{a_call__.11} parent=1 // pred_check_branch
      %1434 = sbr.rel (0) target = $region37
    $region36: #{a_call__.11} parent=1 // pred_region
      _
    $region37: #{a_call__.11} parent=1 // pred_fallthru
      _
    %1435 = vsyncpa [#allocation3], 1

// kernel: a_call__.13
$region0: #{a_call__.13}
  #allocation0 [shape = 'u32[]', space=smem, size = 0x4, offset = 0x4, fixed_abs, tag = 'smem constant byte address 0x4 - core index']
  #allocation1 [shape = 'u32[144,128]{1,0:T(1,128)}', space=vmem, size = 0x12000, scoped, tag = 'internal scratch']
  %s0 = inlined_call_operand.vmem [shape: bf16[512,512], index: 0, kind: input, shape index: {}]
  %s1 = inlined_call_operand.vmem [shape: bf16[512,16], index: 1, kind: input, shape index: {}]
  %s2 = inlined_call_operand.vmem [shape: f32[512,16], index: 2, kind: output, shape index: {0}]
  %s3 = inlined_call_operand.vmem [shape: f32[2,1,16], index: 3, kind: output, shape index: {1}]
  %s4 = inlined_call_operand.vmem [shape: f32[2,1,16], index: 4, kind: output, shape index: {2}]
  %5 = xla_tuple %s2, %s3, %s4
  %s6 = sld [smem:[#allocation0]]
  $region57: #{a_call__.13} parent=0
    _
  %s8 = ssub.s32 1, %s6
  %s9 = scalar_select 0, %s8, %s6
  loop: start=0, step=1, limit=4
  $region2: #{a_call__.13} parent=0 // loop_pre_header
    _
  $region3: #{a_call__.13} parent=0 // loop_header
    %s11 = sphi 0, %s15
    %p12 = scmp.ge.s32.totalorder %s11, 4
    %s21 = sphi 0, %s23
    %s24 = sphi 0, %s21
    %s25 = sphi 0, %s24
    %s41 = sphi 0, %s25
    %s45 = sphi 0, %s45
    %s47 = sphi 0, %s45
    %s48 = sphi 0, %s47
    %s62 = sphi 0, %s48
    %s68 = sphi 0, %s70
    %s71 = sphi 0, %s68
    %s72 = sphi 0, %s71
    %s88 = sphi 0, %s72
    %s94 = sphi 0, %s96
    %s97 = sphi 0, %s94
    %s98 = sphi 0, %s97
    %s114 = sphi 0, %s98
    %s120 = sphi 0, %s122
    %s123 = sphi 0, %s120
    %s124 = sphi 0, %s123
    %s140 = sphi 0, %s124
  $region4: #{a_call__.13} parent=0 // loop_header_branch
    %14 = sbr.rel (%p12) target = $region8
  $region5: #{a_call__.13} parent=0 // loop_body
    %s16 = ssub.s32 %s11, 1
    %s17 = ssub.s32 %s11, 2
    %s18 = sadd.s32 %s11, 1
    %s19 = ssub.s32 %s11, %s18
    %p20 = scmp.eq.s32.totalorder %s19, 0
    %s22 = sadd.s32 %s21, 1
    %s23 = scalar_select %p20, %s21, %s22
    %p26 = pneg %p20
    %p27 = scmp.eq.s32.totalorder %s11, 1
    %p28 = por %p26, %p27
    %p29 = scmp.ne.s32.totalorder %s21, %s24
    %p30 = scmp.eq.s32.totalorder %s11, 0
    %p31 = por %p29, %p30
    %p32 = scmp.ne.s32.totalorder %s21, %s24
    %p33 = scmp.eq.s32.totalorder %s16, 1
    %p34 = por %p32, %p33
    %p35 = scmp.ne.s32.totalorder %s24, %s25
    %p36 = scmp.eq.s32.totalorder %s16, 0
    %p37 = por %p35, %p36
    %p38 = scmp.ne.s32.totalorder %s24, %s25
    %p39 = scmp.eq.s32.totalorder %s17, 1
    %p40 = por %p38, %p39
    %p42 = scmp.ne.s32.totalorder %s25, %s41
    %p43 = scmp.eq.s32.totalorder %s17, 0
    %p44 = por %p42, %p43
    %s46 = sadd.s32 %s45, 1
    %p49 = scmp.eq.s32.totalorder %s11, 1
    %p50 = scmp.ne.s32.totalorder %s45, %s47
    %p51 = scmp.eq.s32.totalorder %s11, 0
    %p52 = por %p50, %p51
    %p53 = scmp.ne.s32.totalorder %s45, %s47
    %p54 = scmp.eq.s32.totalorder %s16, 1
    %p55 = por %p53, %p54
    %p56 = scmp.ne.s32.totalorder %s47, %s48
    %p57 = scmp.eq.s32.totalorder %s16, 0
    %p58 = por %p56, %p57
    %p59 = scmp.ne.s32.totalorder %s47, %s48
    %p60 = scmp.eq.s32.totalorder %s17, 1
    %p61 = por %p59, %p60
    %p63 = scmp.ne.s32.totalorder %s48, %s62
    %p64 = scmp.eq.s32.totalorder %s17, 0
    %p65 = por %p63, %p64
    %s66 = ssub.s32 %s11, %s18
    %p67 = scmp.eq.s32.totalorder %s66, 0
    %s69 = sadd.s32 %s68, 1
    %s70 = scalar_select %p67, %s68, %s69
    %p73 = pneg %p67
    %p74 = scmp.eq.s32.totalorder %s11, 1
    %p75 = por %p73, %p74
    %p76 = scmp.ne.s32.totalorder %s68, %s71
    %p77 = scmp.eq.s32.totalorder %s11, 0
    %p78 = por %p76, %p77
    %p79 = scmp.ne.s32.totalorder %s68, %s71
    %p80 = scmp.eq.s32.totalorder %s16, 1
    %p81 = por %p79, %p80
    %p82 = scmp.ne.s32.totalorder %s71, %s72
    %p83 = scmp.eq.s32.totalorder %s16, 0
    %p84 = por %p82, %p83
    %p85 = scmp.ne.s32.totalorder %s71, %s72
    %p86 = scmp.eq.s32.totalorder %s17, 1
    %p87 = por %p85, %p86
    %p89 = scmp.ne.s32.totalorder %s72, %s88
    %p90 = scmp.eq.s32.totalorder %s17, 0
    %p91 = por %p89, %p90
    %s92 = ssub.s32 %s11, %s18
    %p93 = scmp.eq.s32.totalorder %s92, 0
    %s95 = sadd.s32 %s94, 1
    %s96 = scalar_select %p93, %s94, %s95
    %p99 = pneg %p93
    %p100 = scmp.eq.s32.totalorder %s11, 1
    %p101 = por %p99, %p100
    %p102 = scmp.ne.s32.totalorder %s94, %s97
    %p103 = scmp.eq.s32.totalorder %s11, 0
    %p104 = por %p102, %p103
    %p105 = scmp.ne.s32.totalorder %s94, %s97
    %p106 = scmp.eq.s32.totalorder %s16, 1
    %p107 = por %p105, %p106
    %p108 = scmp.ne.s32.totalorder %s97, %s98
    %p109 = scmp.eq.s32.totalorder %s16, 0
    %p110 = por %p108, %p109
    %p111 = scmp.ne.s32.totalorder %s97, %s98
    %p112 = scmp.eq.s32.totalorder %s17, 1
    %p113 = por %p111, %p112
    %p115 = scmp.ne.s32.totalorder %s98, %s114
    %p116 = scmp.eq.s32.totalorder %s17, 0
    %p117 = por %p115, %p116
    %s118 = ssub.s32 %s11, %s18
    %p119 = scmp.eq.s32.totalorder %s118, 0
    %s121 = sadd.s32 %s120, 1
    %s122 = scalar_select %p119, %s120, %s121
    %p125 = pneg %p119
    %p126 = scmp.eq.s32.totalorder %s11, 1
    %p127 = por %p125, %p126
    %p128 = scmp.ne.s32.totalorder %s120, %s123
    %p129 = scmp.eq.s32.totalorder %s11, 0
    %p130 = por %p128, %p129
    %p131 = scmp.ne.s32.totalorder %s120, %s123
    %p132 = scmp.eq.s32.totalorder %s16, 1
    %p133 = por %p131, %p132
    %p134 = scmp.ne.s32.totalorder %s123, %s124
    %p135 = scmp.eq.s32.totalorder %s16, 0
    %p136 = por %p134, %p135
    %p137 = scmp.ne.s32.totalorder %s123, %s124
    %p138 = scmp.eq.s32.totalorder %s17, 1
    %p139 = por %p137, %p138
    %p141 = scmp.ne.s32.totalorder %s124, %s140
    %p142 = scmp.eq.s32.totalorder %s17, 0
    %p143 = por %p141, %p142
    %p144 = scmp.le.s32.totalorder 1, %s11
    %p145 = scmp.lt.s32.totalorder %s11, 3
    %p146 = pnand %p144, %p145
    %p147 = pneg %p146
    // Predicated region
    $region9: #{a_call__.13} parent=5 // pred_check
      _
    $region10: #{a_call__.13} parent=5 // pred_check_branch
      %149 = sbr.rel (%p146) target = $region12
    $region11: #{a_call__.13} parent=5 // pred_region
      %s150 = ssub.s32 %s11, 1
      // Predicated region
      $region13: #{a_call__.13} parent=11 // pred_check
        %p151 = pneg %p58
      $region14: #{a_call__.13} parent=11 // pred_check_branch
        %153 = sbr.rel (%p151) target = $region16
      $region15: #{a_call__.13} parent=11 // pred_region
        _
      $region16: #{a_call__.13} parent=11 // pred_fallthru
        _
    $region12: #{a_call__.13} parent=5 // pred_fallthru
      _
    %p154 = scmp.lt.s32.totalorder %s11, 2
    // Predicated region
    $region17: #{a_call__.13} parent=5 // pred_check
      %p155 = pneg %p154
    $region18: #{a_call__.13} parent=5 // pred_check_branch
      %157 = sbr.rel (%p155) target = $region20
    $region19: #{a_call__.13} parent=5 // pred_region
      // Predicated region
      $region21: #{a_call__.13} parent=19 // pred_check
        %p158 = pneg %p31
      $region22: #{a_call__.13} parent=19 // pred_check_branch
        %160 = sbr.rel (%p158) target = $region24
      $region23: #{a_call__.13} parent=19 // pred_region
        %s161 = smul.u32 32, %s11
        %p162 = scmp.lt.s32.totalorder %s161, 63
        %s163 = scalar_select %p162, %s161, 63
        %s164 = smul.addr %s163, 4
        %s165 = smul.addr %s164, 4
        %s166 = scalar_lea.vmem %s0, %s165
        %s167 = smul.u32 32, %s11
      $region24: #{a_call__.13} parent=19 // pred_fallthru
        _
    $region20: #{a_call__.13} parent=5 // pred_fallthru
      _
    %p168 = scmp.le.s32.totalorder 1, %s11
    %p169 = scmp.lt.s32.totalorder %s11, 3
    %p170 = pnand %p168, %p169
    %p171 = pneg %p170
    // Predicated region
    $region25: #{a_call__.13} parent=5 // pred_check
      _
    $region26: #{a_call__.13} parent=5 // pred_check_branch
      %173 = sbr.rel (%p170) target = $region28
    $region27: #{a_call__.13} parent=5 // pred_region
      %s174 = ssub.s32 %s11, 1
      %s175 = smul.u32 32, %s16
      %p176 = scmp.lt.s32.totalorder %s175, 63
      %s177 = scalar_select %p176, %s175, 63
      %s178 = smul.addr %s177, 4
      %s179 = smul.addr %s178, 4
      %s180 = scalar_lea.vmem %s0, %s179
      %p181 = pneg %p37
      %p182 = pneg %p34
      %p183 = pneg %p58
      %p184 = pneg %p55
      %p185 = pneg %p84
      %p186 = pneg %p81
      %s187 = smul.u32 32, %s16
      %p188 = scmp.lt.s32.totalorder %s187, 63
      %s189 = scalar_select %p188, %s187, 63
      %s190 = smul.addr %s189, 8
      %s191 = scalar_lea.vmem %s2, %s190
      %p192 = pneg %p110
      %p193 = pneg %p107
      %p194 = scmp.lt.s32.totalorder %s16, 1
      %s195 = scalar_select %p194, %s16, 1
      %s196 = scalar_lea.vmem %s3, %s195
      %p197 = pneg %p136
      %p198 = pneg %p133
      %p199 = scmp.lt.s32.totalorder %s16, 1
      %s200 = scalar_select %p199, %s16, 1
      %s201 = scalar_lea.vmem %s4, %s200
      %s202 = smul.u32 32, %s16
      %p203 = scmp.lt.s32.totalorder %s202, 63
      %s204 = scalar_select %p203, %s202, 63
      %s205 = smul.addr %s204, 4
      %s206 = smul.addr %s205, 4
      %s207 = scalar_lea.vmem %s0, %s206
      %s208 = smul.u32 32, %s16
      %s209 = smul.u32 32, %s16
      %p210 = scmp.lt.s32.totalorder %s209, 63
      %s211 = scalar_select %p210, %s209, 63
      %s212 = smul.addr %s211, 8
      %s213 = scalar_lea.vmem %s2, %s212
      %s214 = smul.u32 32, %s16
      %p215 = scmp.lt.s32.totalorder %s16, 1
      %s216 = scalar_select %p215, %s16, 1
      %s217 = scalar_lea.vmem %s3, %s216
      %p218 = scmp.lt.s32.totalorder %s16, 1
      %s219 = scalar_select %p218, %s16, 1
      %s220 = scalar_lea.vmem %s4, %s219
      %v222 = vld [vmem:[%s207] sm:$0xff]
      %v223 = vld [vmem:[%s207 + $0x8] sm:$0xff]
      %v224 = vld [vmem:[%s207 + $0x10] sm:$0xff]
      %v225 = vld [vmem:[%s207 + $0x18] sm:$0xff]
      %v226 = vld [vmem:[%s207 + $0x20] sm:$0xff]
      %v227 = vld [vmem:[%s207 + $0x28] sm:$0xff]
      %v228 = vld [vmem:[%s207 + $0x30] sm:$0xff]
      %v229 = vld [vmem:[%s207 + $0x38] sm:$0xff]
      %v230 = vld [vmem:[%s207 + $0x40] sm:$0xff]
      %v231 = vld [vmem:[%s207 + $0x48] sm:$0xff]
      %v232 = vld [vmem:[%s207 + $0x50] sm:$0xff]
      %v233 = vld [vmem:[%s207 + $0x58] sm:$0xff]
      %v234 = vld [vmem:[%s207 + $0x60] sm:$0xff]
      %v235 = vld [vmem:[%s207 + $0x68] sm:$0xff]
      %v236 = vld [vmem:[%s207 + $0x70] sm:$0xff]
      %v237 = vld [vmem:[%s207 + $0x78] sm:$0xff]
      %v238 = vld [vmem:[%s207 + $0x80] sm:$0xff]
      %v239 = vld [vmem:[%s207 + $0x88] sm:$0xff]
      %v240 = vld [vmem:[%s207 + $0x90] sm:$0xff]
      %v241 = vld [vmem:[%s207 + $0x98] sm:$0xff]
      %v242 = vld [vmem:[%s207 + $0xa0] sm:$0xff]
      %v243 = vld [vmem:[%s207 + $0xa8] sm:$0xff]
      %v244 = vld [vmem:[%s207 + $0xb0] sm:$0xff]
      %v245 = vld [vmem:[%s207 + $0xb8] sm:$0xff]
      %v246 = vld [vmem:[%s207 + $0xc0] sm:$0xff]
      %v247 = vld [vmem:[%s207 + $0xc8] sm:$0xff]
      %v248 = vld [vmem:[%s207 + $0xd0] sm:$0xff]
      %v249 = vld [vmem:[%s207 + $0xd8] sm:$0xff]
      %v250 = vld [vmem:[%s207 + $0xe0] sm:$0xff]
      %v251 = vld [vmem:[%s207 + $0xe8] sm:$0xff]
      %v252 = vld [vmem:[%s207 + $0xf0] sm:$0xff]
      %v253 = vld [vmem:[%s207 + $0xf8] sm:$0xff]
      %v254 = vld [vmem:[%s207 + $0x100] sm:$0xff]
      %v255 = vld [vmem:[%s207 + $0x108] sm:$0xff]
      %v256 = vld [vmem:[%s207 + $0x110] sm:$0xff]
      %v257 = vld [vmem:[%s207 + $0x118] sm:$0xff]
      %v258 = vld [vmem:[%s207 + $0x120] sm:$0xff]
      %v259 = vld [vmem:[%s207 + $0x128] sm:$0xff]
      %v260 = vld [vmem:[%s207 + $0x130] sm:$0xff]
      %v261 = vld [vmem:[%s207 + $0x138] sm:$0xff]
      %v262 = vld [vmem:[%s207 + $0x140] sm:$0xff]
      %v263 = vld [vmem:[%s207 + $0x148] sm:$0xff]
      %v264 = vld [vmem:[%s207 + $0x150] sm:$0xff]
      %v265 = vld [vmem:[%s207 + $0x158] sm:$0xff]
      %v266 = vld [vmem:[%s207 + $0x160] sm:$0xff]
      %v267 = vld [vmem:[%s207 + $0x168] sm:$0xff]
      %v268 = vld [vmem:[%s207 + $0x170] sm:$0xff]
      %v269 = vld [vmem:[%s207 + $0x178] sm:$0xff]
      %v270 = vld [vmem:[%s207 + $0x180] sm:$0xff]
      %v271 = vld [vmem:[%s207 + $0x188] sm:$0xff]
      %v272 = vld [vmem:[%s207 + $0x190] sm:$0xff]
      %v273 = vld [vmem:[%s207 + $0x198] sm:$0xff]
      %v274 = vld [vmem:[%s207 + $0x1a0] sm:$0xff]
      %v275 = vld [vmem:[%s207 + $0x1a8] sm:$0xff]
      %v276 = vld [vmem:[%s207 + $0x1b0] sm:$0xff]
      %v277 = vld [vmem:[%s207 + $0x1b8] sm:$0xff]
      %v278 = vld [vmem:[%s207 + $0x1c0] sm:$0xff]
      %v279 = vld [vmem:[%s207 + $0x1c8] sm:$0xff]
      %v280 = vld [vmem:[%s207 + $0x1d0] sm:$0xff]
      %v281 = vld [vmem:[%s207 + $0x1d8] sm:$0xff]
      %v282 = vld [vmem:[%s207 + $0x1e0] sm:$0xff]
      %v283 = vld [vmem:[%s207 + $0x1e8] sm:$0xff]
      %v284 = vld [vmem:[%s207 + $0x1f0] sm:$0xff]
      %v285 = vld [vmem:[%s207 + $0x1f8] sm:$0xff]
      %v286 = vld [vmem:[%s1] sm:$0xf]
      %v287 = vld [vmem:[%s1 + $0x4] sm:$0xf]
      %v288 = vld [vmem:[%s1 + $0x8] sm:$0xf]
      %v289 = vld [vmem:[%s1 + $0xc] sm:$0xf]
      %v290 = vld [vmem:[%s1 + $0x10] sm:$0xf]
      %v291 = vld [vmem:[%s1 + $0x14] sm:$0xf]
      %v292 = vld [vmem:[%s1 + $0x18] sm:$0xf]
      %v293 = vld [vmem:[%s1 + $0x1c] sm:$0xf]
      %v294 = vld [vmem:[%s1 + $0x20] sm:$0xf]
      %v295 = vld [vmem:[%s1 + $0x24] sm:$0xf]
      %v296 = vld [vmem:[%s1 + $0x28] sm:$0xf]
      %v297 = vld [vmem:[%s1 + $0x2c] sm:$0xf]
      %v298 = vld [vmem:[%s1 + $0x30] sm:$0xf]
      %v299 = vld [vmem:[%s1 + $0x34] sm:$0xf]
      %v300 = vld [vmem:[%s1 + $0x38] sm:$0xf]
      %v301 = vld [vmem:[%s1 + $0x3c] sm:$0xf]
      %v302 = vld [vmem:[%s1 + $0x40] sm:$0xf]
      %v303 = vld [vmem:[%s1 + $0x44] sm:$0xf]
      %v304 = vld [vmem:[%s1 + $0x48] sm:$0xf]
      %v305 = vld [vmem:[%s1 + $0x4c] sm:$0xf]
      %v306 = vld [vmem:[%s1 + $0x50] sm:$0xf]
      %v307 = vld [vmem:[%s1 + $0x54] sm:$0xf]
      %v308 = vld [vmem:[%s1 + $0x58] sm:$0xf]
      %v309 = vld [vmem:[%s1 + $0x5c] sm:$0xf]
      %v310 = vld [vmem:[%s1 + $0x60] sm:$0xf]
      %v311 = vld [vmem:[%s1 + $0x64] sm:$0xf]
      %v312 = vld [vmem:[%s1 + $0x68] sm:$0xf]
      %v313 = vld [vmem:[%s1 + $0x6c] sm:$0xf]
      %v314 = vld [vmem:[%s1 + $0x70] sm:$0xf]
      %v315 = vld [vmem:[%s1 + $0x74] sm:$0xf]
      %v316 = vld [vmem:[%s1 + $0x78] sm:$0xf]
      %v317 = vld [vmem:[%s1 + $0x7c] sm:$0xf]
      %v318 = vld [vmem:[%s1 + $0x80] sm:$0xf]
      %v319 = vld [vmem:[%s1 + $0x84] sm:$0xf]
      %v320 = vld [vmem:[%s1 + $0x88] sm:$0xf]
      %v321 = vld [vmem:[%s1 + $0x8c] sm:$0xf]
      %v322 = vld [vmem:[%s1 + $0x90] sm:$0xf]
      %v323 = vld [vmem:[%s1 + $0x94] sm:$0xf]
      %v324 = vld [vmem:[%s1 + $0x98] sm:$0xf]
      %v325 = vld [vmem:[%s1 + $0x9c] sm:$0xf]
      %v326 = vld [vmem:[%s1 + $0xa0] sm:$0xf]
      %v327 = vld [vmem:[%s1 + $0xa4] sm:$0xf]
      %v328 = vld [vmem:[%s1 + $0xa8] sm:$0xf]
      %v329 = vld [vmem:[%s1 + $0xac] sm:$0xf]
      %v330 = vld [vmem:[%s1 + $0xb0] sm:$0xf]
      %v331 = vld [vmem:[%s1 + $0xb4] sm:$0xf]
      %v332 = vld [vmem:[%s1 + $0xb8] sm:$0xf]
      %v333 = vld [vmem:[%s1 + $0xbc] sm:$0xf]
      %v334 = vld [vmem:[%s1 + $0xc0] sm:$0xf]
      %v335 = vld [vmem:[%s1 + $0xc4] sm:$0xf]
      %v336 = vld [vmem:[%s1 + $0xc8] sm:$0xf]
      %v337 = vld [vmem:[%s1 + $0xcc] sm:$0xf]
      %v338 = vld [vmem:[%s1 + $0xd0] sm:$0xf]
      %v339 = vld [vmem:[%s1 + $0xd4] sm:$0xf]
      %v340 = vld [vmem:[%s1 + $0xd8] sm:$0xf]
      %v341 = vld [vmem:[%s1 + $0xdc] sm:$0xf]
      %v342 = vld [vmem:[%s1 + $0xe0] sm:$0xf]
      %v343 = vld [vmem:[%s1 + $0xe4] sm:$0xf]
      %v344 = vld [vmem:[%s1 + $0xe8] sm:$0xf]
      %v345 = vld [vmem:[%s1 + $0xec] sm:$0xf]
      %v346 = vld [vmem:[%s1 + $0xf0] sm:$0xf]
      %v347 = vld [vmem:[%s1 + $0xf4] sm:$0xf]
      %v348 = vld [vmem:[%s1 + $0xf8] sm:$0xf]
      %v349 = vld [vmem:[%s1 + $0xfc] sm:$0xf]
      %v414 = vunpack.c.l.b16 %v222
      %v415 = vunpack.c.h.b16 %v222
      %v416 = vunpack.c.l.b16 %v223
      %v417 = vunpack.c.h.b16 %v223
      %v418 = vunpack.c.l.b16 %v224
      %v419 = vunpack.c.h.b16 %v224
      %v420 = vunpack.c.l.b16 %v225
      %v421 = vunpack.c.h.b16 %v225
      %v422 = vunpack.c.l.b16 %v226
      %v423 = vunpack.c.h.b16 %v226
      %v424 = vunpack.c.l.b16 %v227
      %v425 = vunpack.c.h.b16 %v227
      %v426 = vunpack.c.l.b16 %v228
      %v427 = vunpack.c.h.b16 %v228
      %v428 = vunpack.c.l.b16 %v229
      %v429 = vunpack.c.h.b16 %v229
      %v430 = vunpack.c.l.b16 %v230
      %v431 = vunpack.c.h.b16 %v230
      %v432 = vunpack.c.l.b16 %v231
      %v433 = vunpack.c.h.b16 %v231
      %v434 = vunpack.c.l.b16 %v232
      %v435 = vunpack.c.h.b16 %v232
      %v436 = vunpack.c.l.b16 %v233
      %v437 = vunpack.c.h.b16 %v233
      %v438 = vunpack.c.l.b16 %v234
      %v439 = vunpack.c.h.b16 %v234
      %v440 = vunpack.c.l.b16 %v235
      %v441 = vunpack.c.h.b16 %v235
      %v442 = vunpack.c.l.b16 %v236
      %v443 = vunpack.c.h.b16 %v236
      %v444 = vunpack.c.l.b16 %v237
      %v445 = vunpack.c.h.b16 %v237
      %v446 = vunpack.c.l.b16 %v238
      %v447 = vunpack.c.h.b16 %v238
      %v448 = vunpack.c.l.b16 %v239
      %v449 = vunpack.c.h.b16 %v239
      %v450 = vunpack.c.l.b16 %v240
      %v451 = vunpack.c.h.b16 %v240
      %v452 = vunpack.c.l.b16 %v241
      %v453 = vunpack.c.h.b16 %v241
      %v454 = vunpack.c.l.b16 %v242
      %v455 = vunpack.c.h.b16 %v242
      %v456 = vunpack.c.l.b16 %v243
      %v457 = vunpack.c.h.b16 %v243
      %v458 = vunpack.c.l.b16 %v244
      %v459 = vunpack.c.h.b16 %v244
      %v460 = vunpack.c.l.b16 %v245
      %v461 = vunpack.c.h.b16 %v245
      %v462 = vunpack.c.l.b16 %v246
      %v463 = vunpack.c.h.b16 %v246
      %v464 = vunpack.c.l.b16 %v247
      %v465 = vunpack.c.h.b16 %v247
      %v466 = vunpack.c.l.b16 %v248
      %v467 = vunpack.c.h.b16 %v248
      %v468 = vunpack.c.l.b16 %v249
      %v469 = vunpack.c.h.b16 %v249
      %v470 = vunpack.c.l.b16 %v250
      %v471 = vunpack.c.h.b16 %v250
      %v472 = vunpack.c.l.b16 %v251
      %v473 = vunpack.c.h.b16 %v251
      %v474 = vunpack.c.l.b16 %v252
      %v475 = vunpack.c.h.b16 %v252
      %v476 = vunpack.c.l.b16 %v253
      %v477 = vunpack.c.h.b16 %v253
      %v478 = vunpack.c.l.b16 %v254
      %v479 = vunpack.c.h.b16 %v254
      %v480 = vunpack.c.l.b16 %v255
      %v481 = vunpack.c.h.b16 %v255
      %v482 = vunpack.c.l.b16 %v256
      %v483 = vunpack.c.h.b16 %v256
      %v484 = vunpack.c.l.b16 %v257
      %v485 = vunpack.c.h.b16 %v257
      %v486 = vunpack.c.l.b16 %v258
      %v487 = vunpack.c.h.b16 %v258
      %v488 = vunpack.c.l.b16 %v259
      %v489 = vunpack.c.h.b16 %v259
      %v490 = vunpack.c.l.b16 %v260
      %v491 = vunpack.c.h.b16 %v260
      %v492 = vunpack.c.l.b16 %v261
      %v493 = vunpack.c.h.b16 %v261
      %v494 = vunpack.c.l.b16 %v262
      %v495 = vunpack.c.h.b16 %v262
      %v496 = vunpack.c.l.b16 %v263
      %v497 = vunpack.c.h.b16 %v263
      %v498 = vunpack.c.l.b16 %v264
      %v499 = vunpack.c.h.b16 %v264
      %v500 = vunpack.c.l.b16 %v265
      %v501 = vunpack.c.h.b16 %v265
      %v502 = vunpack.c.l.b16 %v266
      %v503 = vunpack.c.h.b16 %v266
      %v504 = vunpack.c.l.b16 %v267
      %v505 = vunpack.c.h.b16 %v267
      %v506 = vunpack.c.l.b16 %v268
      %v507 = vunpack.c.h.b16 %v268
      %v508 = vunpack.c.l.b16 %v269
      %v509 = vunpack.c.h.b16 %v269
      %v510 = vunpack.c.l.b16 %v270
      %v511 = vunpack.c.h.b16 %v270
      %v512 = vunpack.c.l.b16 %v271
      %v513 = vunpack.c.h.b16 %v271
      %v514 = vunpack.c.l.b16 %v272
      %v515 = vunpack.c.h.b16 %v272
      %v516 = vunpack.c.l.b16 %v273
      %v517 = vunpack.c.h.b16 %v273
      %v518 = vunpack.c.l.b16 %v274
      %v519 = vunpack.c.h.b16 %v274
      %v520 = vunpack.c.l.b16 %v275
      %v521 = vunpack.c.h.b16 %v275
      %v522 = vunpack.c.l.b16 %v276
      %v523 = vunpack.c.h.b16 %v276
      %v524 = vunpack.c.l.b16 %v277
      %v525 = vunpack.c.h.b16 %v277
      %v526 = vunpack.c.l.b16 %v278
      %v527 = vunpack.c.h.b16 %v278
      %v528 = vunpack.c.l.b16 %v279
      %v529 = vunpack.c.h.b16 %v279
      %v530 = vunpack.c.l.b16 %v280
      %v531 = vunpack.c.h.b16 %v280
      %v532 = vunpack.c.l.b16 %v281
      %v533 = vunpack.c.h.b16 %v281
      %v534 = vunpack.c.l.b16 %v282
      %v535 = vunpack.c.h.b16 %v282
      %v536 = vunpack.c.l.b16 %v283
      %v537 = vunpack.c.h.b16 %v283
      %v538 = vunpack.c.l.b16 %v284
      %v539 = vunpack.c.h.b16 %v284
      %v540 = vunpack.c.l.b16 %v285
      %v541 = vunpack.c.h.b16 %v285
      %v542 = vpack.c.b16 %v418, %v414
      %v543 = vpack.c.b16 %v419, %v415
      %v544 = vpack.c.b16 %v420, %v416
      %v545 = vpack.c.b16 %v421, %v417
      %v546 = vpack.c.b16 %v426, %v422
      %v547 = vpack.c.b16 %v427, %v423
      %v548 = vpack.c.b16 %v428, %v424
      %v549 = vpack.c.b16 %v429, %v425
      %v550 = vpack.c.b16 %v434, %v430
      %v551 = vpack.c.b16 %v435, %v431
      %v552 = vpack.c.b16 %v436, %v432
      %v553 = vpack.c.b16 %v437, %v433
      %v554 = vpack.c.b16 %v442, %v438
      %v555 = vpack.c.b16 %v443, %v439
      %v556 = vpack.c.b16 %v444, %v440
      %v557 = vpack.c.b16 %v445, %v441
      %v558 = vpack.c.b16 %v450, %v446
      %v559 = vpack.c.b16 %v451, %v447
      %v560 = vpack.c.b16 %v452, %v448
      %v561 = vpack.c.b16 %v453, %v449
      %v562 = vpack.c.b16 %v458, %v454
      %v563 = vpack.c.b16 %v459, %v455
      %v564 = vpack.c.b16 %v460, %v456
      %v565 = vpack.c.b16 %v461, %v457
      %v566 = vpack.c.b16 %v466, %v462
      %v567 = vpack.c.b16 %v467, %v463
      %v568 = vpack.c.b16 %v468, %v464
      %v569 = vpack.c.b16 %v469, %v465
      %v570 = vpack.c.b16 %v474, %v470
      %v571 = vpack.c.b16 %v475, %v471
      %v572 = vpack.c.b16 %v476, %v472
      %v573 = vpack.c.b16 %v477, %v473
      %v574 = vpack.c.b16 %v482, %v478
      %v575 = vpack.c.b16 %v483, %v479
      %v576 = vpack.c.b16 %v484, %v480
      %v577 = vpack.c.b16 %v485, %v481
      %v578 = vpack.c.b16 %v490, %v486
      %v579 = vpack.c.b16 %v491, %v487
      %v580 = vpack.c.b16 %v492, %v488
      %v581 = vpack.c.b16 %v493, %v489
      %v582 = vpack.c.b16 %v498, %v494
      %v583 = vpack.c.b16 %v499, %v495
      %v584 = vpack.c.b16 %v500, %v496
      %v585 = vpack.c.b16 %v501, %v497
      %v586 = vpack.c.b16 %v506, %v502
      %v587 = vpack.c.b16 %v507, %v503
      %v588 = vpack.c.b16 %v508, %v504
      %v589 = vpack.c.b16 %v509, %v505
      %v590 = vpack.c.b16 %v514, %v510
      %v591 = vpack.c.b16 %v515, %v511
      %v592 = vpack.c.b16 %v516, %v512
      %v593 = vpack.c.b16 %v517, %v513
      %v594 = vpack.c.b16 %v522, %v518
      %v595 = vpack.c.b16 %v523, %v519
      %v596 = vpack.c.b16 %v524, %v520
      %v597 = vpack.c.b16 %v525, %v521
      %v598 = vpack.c.b16 %v530, %v526
      %v599 = vpack.c.b16 %v531, %v527
      %v600 = vpack.c.b16 %v532, %v528
      %v601 = vpack.c.b16 %v533, %v529
      %v602 = vpack.c.b16 %v538, %v534
      %v603 = vpack.c.b16 %v539, %v535
      %v604 = vpack.c.b16 %v540, %v536
      %v605 = vpack.c.b16 %v541, %v537
      %v734 = vunpack.c.l.b16 %v286
      %v735 = vunpack.c.l.b16 %v287
      %v736 = vunpack.c.l.b16 %v288
      %v737 = vunpack.c.l.b16 %v289
      %v738 = vunpack.c.l.b16 %v290
      %v739 = vunpack.c.l.b16 %v291
      %v740 = vunpack.c.l.b16 %v292
      %v741 = vunpack.c.l.b16 %v293
      %v742 = vunpack.c.l.b16 %v294
      %v743 = vunpack.c.l.b16 %v295
      %v744 = vunpack.c.l.b16 %v296
      %v745 = vunpack.c.l.b16 %v297
      %v746 = vunpack.c.l.b16 %v298
      %v747 = vunpack.c.l.b16 %v299
      %v748 = vunpack.c.l.b16 %v300
      %v749 = vunpack.c.l.b16 %v301
      %v750 = vunpack.c.l.b16 %v302
      %v751 = vunpack.c.l.b16 %v303
      %v752 = vunpack.c.l.b16 %v304
      %v753 = vunpack.c.l.b16 %v305
      %v754 = vunpack.c.l.b16 %v306
      %v755 = vunpack.c.l.b16 %v307
      %v756 = vunpack.c.l.b16 %v308
      %v757 = vunpack.c.l.b16 %v309
      %v758 = vunpack.c.l.b16 %v310
      %v759 = vunpack.c.l.b16 %v311
      %v760 = vunpack.c.l.b16 %v312
      %v761 = vunpack.c.l.b16 %v313
      %v762 = vunpack.c.l.b16 %v314
      %v763 = vunpack.c.l.b16 %v315
      %v764 = vunpack.c.l.b16 %v316
      %v765 = vunpack.c.l.b16 %v317
      %v766 = vunpack.c.l.b16 %v318
      %v767 = vunpack.c.l.b16 %v319
      %v768 = vunpack.c.l.b16 %v320
      %v769 = vunpack.c.l.b16 %v321
      %v770 = vunpack.c.l.b16 %v322
      %v771 = vunpack.c.l.b16 %v323
      %v772 = vunpack.c.l.b16 %v324
      %v773 = vunpack.c.l.b16 %v325
      %v774 = vunpack.c.l.b16 %v326
      %v775 = vunpack.c.l.b16 %v327
      %v776 = vunpack.c.l.b16 %v328
      %v777 = vunpack.c.l.b16 %v329
      %v778 = vunpack.c.l.b16 %v330
      %v779 = vunpack.c.l.b16 %v331
      %v780 = vunpack.c.l.b16 %v332
      %v781 = vunpack.c.l.b16 %v333
      %v782 = vunpack.c.l.b16 %v334
      %v783 = vunpack.c.l.b16 %v335
      %v784 = vunpack.c.l.b16 %v336
      %v785 = vunpack.c.l.b16 %v337
      %v786 = vunpack.c.l.b16 %v338
      %v787 = vunpack.c.l.b16 %v339
      %v788 = vunpack.c.l.b16 %v340
      %v789 = vunpack.c.l.b16 %v341
      %v790 = vunpack.c.l.b16 %v342
      %v791 = vunpack.c.l.b16 %v343
      %v792 = vunpack.c.l.b16 %v344
      %v793 = vunpack.c.l.b16 %v345
      %v794 = vunpack.c.l.b16 %v346
      %v795 = vunpack.c.l.b16 %v347
      %v796 = vunpack.c.l.b16 %v348
      %v797 = vunpack.c.l.b16 %v349
      %v798 = vpack.c.b16 %v735, %v734
      %v799 = vpack.c.b16 %v737, %v736
      %v800 = vpack.c.b16 %v739, %v738
      %v801 = vpack.c.b16 %v741, %v740
      %v802 = vpack.c.b16 %v743, %v742
      %v803 = vpack.c.b16 %v745, %v744
      %v804 = vpack.c.b16 %v747, %v746
      %v805 = vpack.c.b16 %v749, %v748
      %v806 = vpack.c.b16 %v751, %v750
      %v807 = vpack.c.b16 %v753, %v752
      %v808 = vpack.c.b16 %v755, %v754
      %v809 = vpack.c.b16 %v757, %v756
      %v810 = vpack.c.b16 %v759, %v758
      %v811 = vpack.c.b16 %v761, %v760
      %v812 = vpack.c.b16 %v763, %v762
      %v813 = vpack.c.b16 %v765, %v764
      %v814 = vpack.c.b16 %v767, %v766
      %v815 = vpack.c.b16 %v769, %v768
      %v816 = vpack.c.b16 %v771, %v770
      %v817 = vpack.c.b16 %v773, %v772
      %v818 = vpack.c.b16 %v775, %v774
      %v819 = vpack.c.b16 %v777, %v776
      %v820 = vpack.c.b16 %v779, %v778
      %v821 = vpack.c.b16 %v781, %v780
      %v822 = vpack.c.b16 %v783, %v782
      %v823 = vpack.c.b16 %v785, %v784
      %v824 = vpack.c.b16 %v787, %v786
      %v825 = vpack.c.b16 %v789, %v788
      %v826 = vpack.c.b16 %v791, %v790
      %v827 = vpack.c.b16 %v793, %v792
      %v828 = vpack.c.b16 %v795, %v794
      %v829 = vpack.c.b16 %v797, %v796
      %862 = vmatprep.subr.bf16.mxu0 0
      %863 = vmatpush1.bf16.msra.mxu0 %v798
      %864 = vmatprep.subr.bf16.mxu0 0
      %865 = vmatpush1.bf16.msra.mxu0 %v799
      %866 = vmatprep.subr.bf16.mxu0 0
      %867 = vmatpush1.bf16.msra.mxu0 %v800
      %868 = vmatprep.subr.bf16.mxu0 0
      %869 = vmatpush1.bf16.msra.mxu0 %v801
      %870 = vmatprep.subr.bf16.mxu0 0
      %871 = vmatpush1.bf16.msra.mxu0 %v802
      %872 = vmatprep.subr.bf16.mxu0 0
      %873 = vmatpush1.bf16.msra.mxu0 %v803
      %874 = vmatprep.subr.bf16.mxu0 0
      %875 = vmatpush1.bf16.msra.mxu0 %v804
      %876 = vmatprep.subr.bf16.mxu0 0
      %877 = vmatpush1.bf16.msra.mxu0 %v805
      %878 = vmatprep.subr.bf16.mxu0 0
      %879 = vmatpush1.bf16.msra.mxu0 %v806
      %880 = vmatprep.subr.bf16.mxu0 0
      %881 = vmatpush1.bf16.msra.mxu0 %v807
      %882 = vmatprep.subr.bf16.mxu0 0
      %883 = vmatpush1.bf16.msra.mxu0 %v808
      %884 = vmatprep.subr.bf16.mxu0 0
      %885 = vmatpush1.bf16.msra.mxu0 %v809
      %886 = vmatprep.subr.bf16.mxu0 0
      %887 = vmatpush1.bf16.msra.mxu0 %v810
      %888 = vmatprep.subr.bf16.mxu0 0
      %889 = vmatpush1.bf16.msra.mxu0 %v811
      %890 = vmatprep.subr.bf16.mxu0 0
      %891 = vmatpush1.bf16.msra.mxu0 %v812
      %892 = vmatprep.subr.bf16.mxu0 0
      %893 = vmatpush1.bf16.msra.mxu0 %v813
      %894 = vmatprep.mubr.bf16.mxu0 %v543
      %895 = vmatmul.mubr.bf16.gmra.mrb[0].mxu0 %v542
      %v896 = vpop.f32.mrb[0].mxu0
      %v897 = vadd.f32 0.0, %v896
      %v898 = vpop.f32.mrb[0].mxu0
      %v899 = vpop.f32.mrb[0].mxu0
      %v900 = vadd.f32 0.0, %v899
      %v901 = vpop.f32.mrb[0].mxu0
      %902 = vmatprep.mubr.bf16.mxu0 %v547
      %903 = vmatmul.mubr.bf16.gmra.mrb[0].mxu0 %v546
      %v904 = vpop.f32.mrb[0].mxu0
      %v905 = vadd.f32 0.0, %v904
      %v906 = vpop.f32.mrb[0].mxu0
      %v907 = vpop.f32.mrb[0].mxu0
      %v908 = vadd.f32 0.0, %v907
      %v909 = vpop.f32.mrb[0].mxu0
      %910 = vmatprep.mubr.bf16.mxu0 %v551
      %911 = vmatmul.mubr.bf16.gmra.mrb[0].mxu0 %v550
      %v912 = vpop.f32.mrb[0].mxu0
      %v913 = vadd.f32 0.0, %v912
      %v914 = vpop.f32.mrb[0].mxu0
      %v915 = vpop.f32.mrb[0].mxu0
      %v916 = vadd.f32 0.0, %v915
      %v917 = vpop.f32.mrb[0].mxu0
      %918 = vmatprep.mubr.bf16.mxu0 %v555
      %919 = vmatmul.mubr.bf16.gmra.mrb[0].mxu0 %v554
      %v920 = vpop.f32.mrb[0].mxu0
      %v921 = vadd.f32 0.0, %v920
      %v922 = vpop.f32.mrb[0].mxu0
      %v923 = vpop.f32.mrb[0].mxu0
      %v924 = vadd.f32 0.0, %v923
      %v925 = vpop.f32.mrb[0].mxu0
      %926 = vmatprep.mubr.bf16.mxu0 %v559
      %927 = vmatmul.mubr.bf16.gmra.mrb[0].mxu0 %v558
      %v928 = vpop.f32.mrb[0].mxu0
      %v929 = vadd.f32 0.0, %v928
      %v930 = vpop.f32.mrb[0].mxu0
      %v931 = vpop.f32.mrb[0].mxu0
      %v932 = vadd.f32 0.0, %v931
      %v933 = vpop.f32.mrb[0].mxu0
      %934 = vmatprep.mubr.bf16.mxu0 %v563
      %935 = vmatmul.mubr.bf16.gmra.mrb[0].mxu0 %v562
      %v936 = vpop.f32.mrb[0].mxu0
      %v937 = vadd.f32 0.0, %v936
      %v938 = vpop.f32.mrb[0].mxu0
      %v939 = vpop.f32.mrb[0].mxu0
      %v940 = vadd.f32 0.0, %v939
      %v941 = vpop.f32.mrb[0].mxu0
      %942 = vmatprep.mubr.bf16.mxu0 %v567
      %943 = vmatmul.mubr.bf16.gmra.mrb[0].mxu0 %v566
      %v944 = vpop.f32.mrb[0].mxu0
      %v945 = vadd.f32 0.0, %v944
      %v946 = vpop.f32.mrb[0].mxu0
      %v947 = vpop.f32.mrb[0].mxu0
      %v948 = vadd.f32 0.0, %v947
      %v949 = vpop.f32.mrb[0].mxu0
      %950 = vmatprep.mubr.bf16.mxu0 %v571
      %951 = vmatmul.mubr.bf16.gmra.mrb[0].mxu0 %v570
      %v952 = vpop.f32.mrb[0].mxu0
      %v953 = vadd.f32 0.0, %v952
      %v954 = vpop.f32.mrb[0].mxu0
      %v955 = vpop.f32.mrb[0].mxu0
      %v956 = vadd.f32 0.0, %v955
      %v957 = vpop.f32.mrb[0].mxu0
      %958 = vmatprep.mubr.bf16.mxu0 %v575
      %959 = vmatmul.mubr.bf16.gmra.mrb[0].mxu0 %v574
      %v960 = vpop.f32.mrb[0].mxu0
      %v961 = vadd.f32 0.0, %v960
      %v962 = vpop.f32.mrb[0].mxu0
      %v963 = vpop.f32.mrb[0].mxu0
      %v964 = vadd.f32 0.0, %v963
      %v965 = vpop.f32.mrb[0].mxu0
      %966 = vmatprep.mubr.bf16.mxu0 %v579
      %967 = vmatmul.mubr.bf16.gmra.mrb[0].mxu0 %v578
      %v968 = vpop.f32.mrb[0].mxu0
      %v969 = vadd.f32 0.0, %v968
      %v970 = vpop.f32.mrb[0].mxu0
      %v971 = vpop.f32.mrb[0].mxu0
      %v972 = vadd.f32 0.0, %v971
      %v973 = vpop.f32.mrb[0].mxu0
      %974 = vmatprep.mubr.bf16.mxu0 %v583
      %975 = vmatmul.mubr.bf16.gmra.mrb[0].mxu0 %v582
      %v976 = vpop.f32.mrb[0].mxu0
      %v977 = vadd.f32 0.0, %v976
      %v978 = vpop.f32.mrb[0].mxu0
      %v979 = vpop.f32.mrb[0].mxu0
      %v980 = vadd.f32 0.0, %v979
      %v981 = vpop.f32.mrb[0].mxu0
      %982 = vmatprep.mubr.bf16.mxu0 %v587
      %983 = vmatmul.mubr.bf16.gmra.mrb[0].mxu0 %v586
      %v984 = vpop.f32.mrb[0].mxu0
      %v985 = vadd.f32 0.0, %v984
      %v986 = vpop.f32.mrb[0].mxu0
      %v987 = vpop.f32.mrb[0].mxu0
      %v988 = vadd.f32 0.0, %v987
      %v989 = vpop.f32.mrb[0].mxu0
      %990 = vmatprep.mubr.bf16.mxu0 %v591
      %991 = vmatmul.mubr.bf16.gmra.mrb[0].mxu0 %v590
      %v992 = vpop.f32.mrb[0].mxu0
      %v993 = vadd.f32 0.0, %v992
      %v994 = vpop.f32.mrb[0].mxu0
      %v995 = vpop.f32.mrb[0].mxu0
      %v996 = vadd.f32 0.0, %v995
      %v997 = vpop.f32.mrb[0].mxu0
      %998 = vmatprep.mubr.bf16.mxu0 %v595
      %999 = vmatmul.mubr.bf16.gmra.mrb[0].mxu0 %v594
      %v1000 = vpop.f32.mrb[0].mxu0
      %v1001 = vadd.f32 0.0, %v1000
      %v1002 = vpop.f32.mrb[0].mxu0
      %v1003 = vpop.f32.mrb[0].mxu0
      %v1004 = vadd.f32 0.0, %v1003
      %v1005 = vpop.f32.mrb[0].mxu0
      %1006 = vmatprep.mubr.bf16.mxu0 %v599
      %1007 = vmatmul.mubr.bf16.gmra.mrb[0].mxu0 %v598
      %v1008 = vpop.f32.mrb[0].mxu0
      %v1009 = vadd.f32 0.0, %v1008
      %v1010 = vpop.f32.mrb[0].mxu0
      %v1011 = vpop.f32.mrb[0].mxu0
      %v1012 = vadd.f32 0.0, %v1011
      %v1013 = vpop.f32.mrb[0].mxu0
      %1014 = vmatprep.mubr.bf16.mxu0 %v603
      %1015 = vmatmul.mubr.bf16.gmra.mrb[0].mxu0 %v602
      %v1016 = vpop.f32.mrb[0].mxu0
      %v1017 = vadd.f32 0.0, %v1016
      %v1018 = vpop.f32.mrb[0].mxu0
      %v1019 = vpop.f32.mrb[0].mxu0
      %v1020 = vadd.f32 0.0, %v1019
      %v1021 = vpop.f32.mrb[0].mxu0
      %1022 = vdwg.mxu0
      %1023 = vmatprep.subr.bf16.mxu0 0
      %1024 = vmatpush1.bf16.msra.mxu0 %v814
      %1025 = vmatprep.subr.bf16.mxu0 0
      %1026 = vmatpush1.bf16.msra.mxu0 %v815
      %1027 = vmatprep.subr.bf16.mxu0 0
      %1028 = vmatpush1.bf16.msra.mxu0 %v816
      %1029 = vmatprep.subr.bf16.mxu0 0
      %1030 = vmatpush1.bf16.msra.mxu0 %v817
      %1031 = vmatprep.subr.bf16.mxu0 0
      %1032 = vmatpush1.bf16.msra.mxu0 %v818
      %1033 = vmatprep.subr.bf16.mxu0 0
      %1034 = vmatpush1.bf16.msra.mxu0 %v819
      %1035 = vmatprep.subr.bf16.mxu0 0
      %1036 = vmatpush1.bf16.msra.mxu0 %v820
      %1037 = vmatprep.subr.bf16.mxu0 0
      %1038 = vmatpush1.bf16.msra.mxu0 %v821
      %1039 = vmatprep.subr.bf16.mxu0 0
      %1040 = vmatpush1.bf16.msra.mxu0 %v822
      %1041 = vmatprep.subr.bf16.mxu0 0
      %1042 = vmatpush1.bf16.msra.mxu0 %v823
      %1043 = vmatprep.subr.bf16.mxu0 0
      %1044 = vmatpush1.bf16.msra.mxu0 %v824
      %1045 = vmatprep.subr.bf16.mxu0 0
      %1046 = vmatpush1.bf16.msra.mxu0 %v825
      %1047 = vmatprep.subr.bf16.mxu0 0
      %1048 = vmatpush1.bf16.msra.mxu0 %v826
      %1049 = vmatprep.subr.bf16.mxu0 0
      %1050 = vmatpush1.bf16.msra.mxu0 %v827
      %1051 = vmatprep.subr.bf16.mxu0 0
      %1052 = vmatpush1.bf16.msra.mxu0 %v828
      %1053 = vmatprep.subr.bf16.mxu0 0
      %1054 = vmatpush1.bf16.msra.mxu0 %v829
      %1055 = vmatprep.mubr.bf16.mxu0 %v545
      %1056 = vmatmul.mubr.bf16.gmra.mrb[0].mxu0 %v544
      %v1057 = vpop.f32.mrb[0].mxu0
      %v1058 = vadd.f32 %v897, %v1057
      %v1059 = vpop.f32.mrb[0].mxu0
      %v1060 = vpop.f32.mrb[0].mxu0
      %v1061 = vadd.f32 %v900, %v1060
      %v1062 = vpop.f32.mrb[0].mxu0
      %1063 = vmatprep.mubr.bf16.mxu0 %v549
      %1064 = vmatmul.mubr.bf16.gmra.mrb[0].mxu0 %v548
      %v1065 = vpop.f32.mrb[0].mxu0
      %v1066 = vadd.f32 %v905, %v1065
      %v1067 = vpop.f32.mrb[0].mxu0
      %v1068 = vpop.f32.mrb[0].mxu0
      %v1069 = vadd.f32 %v908, %v1068
      %v1070 = vpop.f32.mrb[0].mxu0
      %1071 = vmatprep.mubr.bf16.mxu0 %v553
      %1072 = vmatmul.mubr.bf16.gmra.mrb[0].mxu0 %v552
      %v1073 = vpop.f32.mrb[0].mxu0
      %v1074 = vadd.f32 %v913, %v1073
      %v1075 = vpop.f32.mrb[0].mxu0
      %v1076 = vpop.f32.mrb[0].mxu0
      %v1077 = vadd.f32 %v916, %v1076
      %v1078 = vpop.f32.mrb[0].mxu0
      %1079 = vmatprep.mubr.bf16.mxu0 %v557
      %1080 = vmatmul.mubr.bf16.gmra.mrb[0].mxu0 %v556
      %v1081 = vpop.f32.mrb[0].mxu0
      %v1082 = vadd.f32 %v921, %v1081
      %v1083 = vpop.f32.mrb[0].mxu0
      %v1084 = vpop.f32.mrb[0].mxu0
      %v1085 = vadd.f32 %v924, %v1084
      %v1086 = vpop.f32.mrb[0].mxu0
      %1087 = vmatprep.mubr.bf16.mxu0 %v561
      %1088 = vmatmul.mubr.bf16.gmra.mrb[0].mxu0 %v560
      %v1089 = vpop.f32.mrb[0].mxu0
      %v1090 = vadd.f32 %v929, %v1089
      %v1091 = vpop.f32.mrb[0].mxu0
      %v1092 = vpop.f32.mrb[0].mxu0
      %v1093 = vadd.f32 %v932, %v1092
      %v1094 = vpop.f32.mrb[0].mxu0
      %1095 = vmatprep.mubr.bf16.mxu0 %v565
      %1096 = vmatmul.mubr.bf16.gmra.mrb[0].mxu0 %v564
      %v1097 = vpop.f32.mrb[0].mxu0
      %v1098 = vadd.f32 %v937, %v1097
      %v1099 = vpop.f32.mrb[0].mxu0
      %v1100 = vpop.f32.mrb[0].mxu0
      %v1101 = vadd.f32 %v940, %v1100
      %v1102 = vpop.f32.mrb[0].mxu0
      %1103 = vmatprep.mubr.bf16.mxu0 %v569
      %1104 = vmatmul.mubr.bf16.gmra.mrb[0].mxu0 %v568
      %v1105 = vpop.f32.mrb[0].mxu0
      %v1106 = vadd.f32 %v945, %v1105
      %v1107 = vpop.f32.mrb[0].mxu0
      %v1108 = vpop.f32.mrb[0].mxu0
      %v1109 = vadd.f32 %v948, %v1108
      %v1110 = vpop.f32.mrb[0].mxu0
      %1111 = vmatprep.mubr.bf16.mxu0 %v573
      %1112 = vmatmul.mubr.bf16.gmra.mrb[0].mxu0 %v572
      %v1113 = vpop.f32.mrb[0].mxu0
      %v1114 = vadd.f32 %v953, %v1113
      %v1115 = vpop.f32.mrb[0].mxu0
      %v1116 = vpop.f32.mrb[0].mxu0
      %v1117 = vadd.f32 %v956, %v1116
      %v1118 = vpop.f32.mrb[0].mxu0
      %1119 = vmatprep.mubr.bf16.mxu0 %v577
      %1120 = vmatmul.mubr.bf16.gmra.mrb[0].mxu0 %v576
      %v1121 = vpop.f32.mrb[0].mxu0
      %v1122 = vadd.f32 %v961, %v1121
      %v1123 = vpop.f32.mrb[0].mxu0
      %v1124 = vpop.f32.mrb[0].mxu0
      %v1125 = vadd.f32 %v964, %v1124
      %v1126 = vpop.f32.mrb[0].mxu0
      %1127 = vmatprep.mubr.bf16.mxu0 %v581
      %1128 = vmatmul.mubr.bf16.gmra.mrb[0].mxu0 %v580
      %v1129 = vpop.f32.mrb[0].mxu0
      %v1130 = vadd.f32 %v969, %v1129
      %v1131 = vpop.f32.mrb[0].mxu0
      %v1132 = vpop.f32.mrb[0].mxu0
      %v1133 = vadd.f32 %v972, %v1132
      %v1134 = vpop.f32.mrb[0].mxu0
      %1135 = vmatprep.mubr.bf16.mxu0 %v585
      %1136 = vmatmul.mubr.bf16.gmra.mrb[0].mxu0 %v584
      %v1137 = vpop.f32.mrb[0].mxu0
      %v1138 = vadd.f32 %v977, %v1137
      %v1139 = vpop.f32.mrb[0].mxu0
      %v1140 = vpop.f32.mrb[0].mxu0
      %v1141 = vadd.f32 %v980, %v1140
      %v1142 = vpop.f32.mrb[0].mxu0
      %1143 = vmatprep.mubr.bf16.mxu0 %v589
      %1144 = vmatmul.mubr.bf16.gmra.mrb[0].mxu0 %v588
      %v1145 = vpop.f32.mrb[0].mxu0
      %v1146 = vadd.f32 %v985, %v1145
      %v1147 = vpop.f32.mrb[0].mxu0
      %v1148 = vpop.f32.mrb[0].mxu0
      %v1149 = vadd.f32 %v988, %v1148
      %v1150 = vpop.f32.mrb[0].mxu0
      %1151 = vmatprep.mubr.bf16.mxu0 %v593
      %1152 = vmatmul.mubr.bf16.gmra.mrb[0].mxu0 %v592
      %v1153 = vpop.f32.mrb[0].mxu0
      %v1154 = vadd.f32 %v993, %v1153
      %v1155 = vpop.f32.mrb[0].mxu0
      %v1156 = vpop.f32.mrb[0].mxu0
      %v1157 = vadd.f32 %v996, %v1156
      %v1158 = vpop.f32.mrb[0].mxu0
      %1159 = vmatprep.mubr.bf16.mxu0 %v597
      %1160 = vmatmul.mubr.bf16.gmra.mrb[0].mxu0 %v596
      %v1161 = vpop.f32.mrb[0].mxu0
      %v1162 = vadd.f32 %v1001, %v1161
      %v1163 = vpop.f32.mrb[0].mxu0
      %v1164 = vpop.f32.mrb[0].mxu0
      %v1165 = vadd.f32 %v1004, %v1164
      %v1166 = vpop.f32.mrb[0].mxu0
      %1167 = vmatprep.mubr.bf16.mxu0 %v601
      %1168 = vmatmul.mubr.bf16.gmra.mrb[0].mxu0 %v600
      %v1169 = vpop.f32.mrb[0].mxu0
      %v1170 = vadd.f32 %v1009, %v1169
      %v1171 = vpop.f32.mrb[0].mxu0
      %v1172 = vpop.f32.mrb[0].mxu0
      %v1173 = vadd.f32 %v1012, %v1172
      %v1174 = vpop.f32.mrb[0].mxu0
      %1175 = vmatprep.mubr.bf16.mxu0 %v605
      %1176 = vmatmul.mubr.bf16.gmra.mrb[0].mxu0 %v604
      %v1177 = vpop.f32.mrb[0].mxu0
      %v1178 = vadd.f32 %v1017, %v1177
      %v1179 = vpop.f32.mrb[0].mxu0
      %v1180 = vpop.f32.mrb[0].mxu0
      %v1181 = vadd.f32 %v1020, %v1180
      %v1182 = vpop.f32.mrb[0].mxu0
      %1183 = vdwg.mxu0
      %vm1184 = vcmask 130048
      %1185 = vst.msk [vmem:[%s213] sm:$0xff] %vm1184, %v1058
      %1186 = vst.msk [vmem:[%s213 + $0x8] sm:$0xff] %vm1184, %v1061
      %1187 = vst.msk [vmem:[%s213 + $0x10] sm:$0xff] %vm1184, %v1066
      %1188 = vst.msk [vmem:[%s213 + $0x18] sm:$0xff] %vm1184, %v1069
      %1189 = vst.msk [vmem:[%s213 + $0x20] sm:$0xff] %vm1184, %v1074
      %1190 = vst.msk [vmem:[%s213 + $0x28] sm:$0xff] %vm1184, %v1077
      %1191 = vst.msk [vmem:[%s213 + $0x30] sm:$0xff] %vm1184, %v1082
      %1192 = vst.msk [vmem:[%s213 + $0x38] sm:$0xff] %vm1184, %v1085
      %1193 = vst.msk [vmem:[%s213 + $0x40] sm:$0xff] %vm1184, %v1090
      %1194 = vst.msk [vmem:[%s213 + $0x48] sm:$0xff] %vm1184, %v1093
      %1195 = vst.msk [vmem:[%s213 + $0x50] sm:$0xff] %vm1184, %v1098
      %1196 = vst.msk [vmem:[%s213 + $0x58] sm:$0xff] %vm1184, %v1101
      %1197 = vst.msk [vmem:[%s213 + $0x60] sm:$0xff] %vm1184, %v1106
      %1198 = vst.msk [vmem:[%s213 + $0x68] sm:$0xff] %vm1184, %v1109
      %1199 = vst.msk [vmem:[%s213 + $0x70] sm:$0xff] %vm1184, %v1114
      %1200 = vst.msk [vmem:[%s213 + $0x78] sm:$0xff] %vm1184, %v1117
      %1201 = vst.msk [vmem:[%s213 + $0x80] sm:$0xff] %vm1184, %v1122
      %1202 = vst.msk [vmem:[%s213 + $0x88] sm:$0xff] %vm1184, %v1125
      %1203 = vst.msk [vmem:[%s213 + $0x90] sm:$0xff] %vm1184, %v1130
      %1204 = vst.msk [vmem:[%s213 + $0x98] sm:$0xff] %vm1184, %v1133
      %1205 = vst.msk [vmem:[%s213 + $0xa0] sm:$0xff] %vm1184, %v1138
      %1206 = vst.msk [vmem:[%s213 + $0xa8] sm:$0xff] %vm1184, %v1141
      %1207 = vst.msk [vmem:[%s213 + $0xb0] sm:$0xff] %vm1184, %v1146
      %1208 = vst.msk [vmem:[%s213 + $0xb8] sm:$0xff] %vm1184, %v1149
      %1209 = vst.msk [vmem:[%s213 + $0xc0] sm:$0xff] %vm1184, %v1154
      %1210 = vst.msk [vmem:[%s213 + $0xc8] sm:$0xff] %vm1184, %v1157
      %1211 = vst.msk [vmem:[%s213 + $0xd0] sm:$0xff] %vm1184, %v1162
      %1212 = vst.msk [vmem:[%s213 + $0xd8] sm:$0xff] %vm1184, %v1165
      %1213 = vst.msk [vmem:[%s213 + $0xe0] sm:$0xff] %vm1184, %v1170
      %1214 = vst.msk [vmem:[%s213 + $0xe8] sm:$0xff] %vm1184, %v1173
      %1215 = vst.msk [vmem:[%s213 + $0xf0] sm:$0xff] %vm1184, %v1178
      %1216 = vst.msk [vmem:[%s213 + $0xf8] sm:$0xff] %vm1184, %v1181
      %v1217 = vsel %vm1184, %v1058, 0.0
      %v1218 = vsel %vm1184, %v1061, 0.0
      %v1219 = vadd.f32 %v1217, %v1218
      %v1220 = vsel %vm1184, %v1066, 0.0
      %v1221 = vadd.f32 %v1219, %v1220
      %v1222 = vsel %vm1184, %v1069, 0.0
      %v1223 = vadd.f32 %v1221, %v1222
      %v1224 = vsel %vm1184, %v1074, 0.0
      %v1225 = vadd.f32 %v1223, %v1224
      %v1226 = vsel %vm1184, %v1077, 0.0
      %v1227 = vadd.f32 %v1225, %v1226
      %v1228 = vsel %vm1184, %v1082, 0.0
      %v1229 = vadd.f32 %v1227, %v1228
      %v1230 = vsel %vm1184, %v1085, 0.0
      %v1231 = vadd.f32 %v1229, %v1230
      %v1232 = vsel %vm1184, %v1090, 0.0
      %v1233 = vadd.f32 %v1231, %v1232
      %v1234 = vsel %vm1184, %v1093, 0.0
      %v1235 = vadd.f32 %v1233, %v1234
      %v1236 = vsel %vm1184, %v1098, 0.0
      %v1237 = vadd.f32 %v1235, %v1236
      %v1238 = vsel %vm1184, %v1101, 0.0
      %v1239 = vadd.f32 %v1237, %v1238
      %v1240 = vsel %vm1184, %v1106, 0.0
      %v1241 = vadd.f32 %v1239, %v1240
      %v1242 = vsel %vm1184, %v1109, 0.0
      %v1243 = vadd.f32 %v1241, %v1242
      %v1244 = vsel %vm1184, %v1114, 0.0
      %v1245 = vadd.f32 %v1243, %v1244
      %v1246 = vsel %vm1184, %v1117, 0.0
      %v1247 = vadd.f32 %v1245, %v1246
      %v1248 = vsel %vm1184, %v1122, 0.0
      %v1249 = vadd.f32 %v1247, %v1248
      %v1250 = vsel %vm1184, %v1125, 0.0
      %v1251 = vadd.f32 %v1249, %v1250
      %v1252 = vsel %vm1184, %v1130, 0.0
      %v1253 = vadd.f32 %v1251, %v1252
      %v1254 = vsel %vm1184, %v1133, 0.0
      %v1255 = vadd.f32 %v1253, %v1254
      %v1256 = vsel %vm1184, %v1138, 0.0
      %v1257 = vadd.f32 %v1255, %v1256
      %v1258 = vsel %vm1184, %v1141, 0.0
      %v1259 = vadd.f32 %v1257, %v1258
      %v1260 = vsel %vm1184, %v1146, 0.0
      %v1261 = vadd.f32 %v1259, %v1260
      %v1262 = vsel %vm1184, %v1149, 0.0
      %v1263 = vadd.f32 %v1261, %v1262
      %v1264 = vsel %vm1184, %v1154, 0.0
      %v1265 = vadd.f32 %v1263, %v1264
      %v1266 = vsel %vm1184, %v1157, 0.0
      %v1267 = vadd.f32 %v1265, %v1266
      %v1268 = vsel %vm1184, %v1162, 0.0
      %v1269 = vadd.f32 %v1267, %v1268
      %v1270 = vsel %vm1184, %v1165, 0.0
      %v1271 = vadd.f32 %v1269, %v1270
      %v1272 = vsel %vm1184, %v1170, 0.0
      %v1273 = vadd.f32 %v1271, %v1272
      %v1274 = vsel %vm1184, %v1173, 0.0
      %v1275 = vadd.f32 %v1273, %v1274
      %v1276 = vsel %vm1184, %v1178, 0.0
      %v1277 = vadd.f32 %v1275, %v1276
      %v1278 = vsel %vm1184, %v1181, 0.0
      %v1279 = vadd.f32 %v1277, %v1278
      %v1280 = vrot.slane %v1279, 4
      %v1281 = vadd.f32 %v1279, %v1280
      %v1282 = vrot.slane %v1281, 2
      %v1283 = vadd.f32 %v1281, %v1282
      %v1284 = vrot.slane %v1283, 1
      %v1285 = vadd.f32 %v1283, %v1284
      %vm1286 = vcmask 122880
      %1287 = vst.msk [vmem:[%s217] sm:$0x1] %vm1286, %v1285
      %v1288 = vmul.f32 %v1058, %v1058
      %v1289 = vmul.f32 %v1061, %v1061
      %v1290 = vmul.f32 %v1066, %v1066
      %v1291 = vmul.f32 %v1069, %v1069
      %v1292 = vmul.f32 %v1074, %v1074
      %v1293 = vmul.f32 %v1077, %v1077
      %v1294 = vmul.f32 %v1082, %v1082
      %v1295 = vmul.f32 %v1085, %v1085
      %v1296 = vmul.f32 %v1090, %v1090
      %v1297 = vmul.f32 %v1093, %v1093
      %v1298 = vmul.f32 %v1098, %v1098
      %v1299 = vmul.f32 %v1101, %v1101
      %v1300 = vmul.f32 %v1106, %v1106
      %v1301 = vmul.f32 %v1109, %v1109
      %v1302 = vmul.f32 %v1114, %v1114
      %v1303 = vmul.f32 %v1117, %v1117
      %v1304 = vmul.f32 %v1122, %v1122
      %v1305 = vmul.f32 %v1125, %v1125
      %v1306 = vmul.f32 %v1130, %v1130
      %v1307 = vmul.f32 %v1133, %v1133
      %v1308 = vmul.f32 %v1138, %v1138
      %v1309 = vmul.f32 %v1141, %v1141
      %v1310 = vmul.f32 %v1146, %v1146
      %v1311 = vmul.f32 %v1149, %v1149
      %v1312 = vmul.f32 %v1154, %v1154
      %v1313 = vmul.f32 %v1157, %v1157
      %v1314 = vmul.f32 %v1162, %v1162
      %v1315 = vmul.f32 %v1165, %v1165
      %v1316 = vmul.f32 %v1170, %v1170
      %v1317 = vmul.f32 %v1173, %v1173
      %v1318 = vmul.f32 %v1178, %v1178
      %v1319 = vmul.f32 %v1181, %v1181
      %v1320 = vsel %vm1184, %v1288, 0.0
      %v1321 = vsel %vm1184, %v1289, 0.0
      %v1322 = vadd.f32 %v1320, %v1321
      %v1323 = vsel %vm1184, %v1290, 0.0
      %v1324 = vadd.f32 %v1322, %v1323
      %v1325 = vsel %vm1184, %v1291, 0.0
      %v1326 = vadd.f32 %v1324, %v1325
      %v1327 = vsel %vm1184, %v1292, 0.0
      %v1328 = vadd.f32 %v1326, %v1327
      %v1329 = vsel %vm1184, %v1293, 0.0
      %v1330 = vadd.f32 %v1328, %v1329
      %v1331 = vsel %vm1184, %v1294, 0.0
      %v1332 = vadd.f32 %v1330, %v1331
      %v1333 = vsel %vm1184, %v1295, 0.0
      %v1334 = vadd.f32 %v1332, %v1333
      %v1335 = vsel %vm1184, %v1296, 0.0
      %v1336 = vadd.f32 %v1334, %v1335
      %v1337 = vsel %vm1184, %v1297, 0.0
      %v1338 = vadd.f32 %v1336, %v1337
      %v1339 = vsel %vm1184, %v1298, 0.0
      %v1340 = vadd.f32 %v1338, %v1339
      %v1341 = vsel %vm1184, %v1299, 0.0
      %v1342 = vadd.f32 %v1340, %v1341
      %v1343 = vsel %vm1184, %v1300, 0.0
      %v1344 = vadd.f32 %v1342, %v1343
      %v1345 = vsel %vm1184, %v1301, 0.0
      %v1346 = vadd.f32 %v1344, %v1345
      %v1347 = vsel %vm1184, %v1302, 0.0
      %v1348 = vadd.f32 %v1346, %v1347
      %v1349 = vsel %vm1184, %v1303, 0.0
      %v1350 = vadd.f32 %v1348, %v1349
      %v1351 = vsel %vm1184, %v1304, 0.0
      %v1352 = vadd.f32 %v1350, %v1351
      %v1353 = vsel %vm1184, %v1305, 0.0
      %v1354 = vadd.f32 %v1352, %v1353
      %v1355 = vsel %vm1184, %v1306, 0.0
      %v1356 = vadd.f32 %v1354, %v1355
      %v1357 = vsel %vm1184, %v1307, 0.0
      %v1358 = vadd.f32 %v1356, %v1357
      %v1359 = vsel %vm1184, %v1308, 0.0
      %v1360 = vadd.f32 %v1358, %v1359
      %v1361 = vsel %vm1184, %v1309, 0.0
      %v1362 = vadd.f32 %v1360, %v1361
      %v1363 = vsel %vm1184, %v1310, 0.0
      %v1364 = vadd.f32 %v1362, %v1363
      %v1365 = vsel %vm1184, %v1311, 0.0
      %v1366 = vadd.f32 %v1364, %v1365
      %v1367 = vsel %vm1184, %v1312, 0.0
      %v1368 = vadd.f32 %v1366, %v1367
      %v1369 = vsel %vm1184, %v1313, 0.0
      %v1370 = vadd.f32 %v1368, %v1369
      %v1371 = vsel %vm1184, %v1314, 0.0
      %v1372 = vadd.f32 %v1370, %v1371
      %v1373 = vsel %vm1184, %v1315, 0.0
      %v1374 = vadd.f32 %v1372, %v1373
      %v1375 = vsel %vm1184, %v1316, 0.0
      %v1376 = vadd.f32 %v1374, %v1375
      %v1377 = vsel %vm1184, %v1317, 0.0
      %v1378 = vadd.f32 %v1376, %v1377
      %v1379 = vsel %vm1184, %v1318, 0.0
      %v1380 = vadd.f32 %v1378, %v1379
      %v1381 = vsel %vm1184, %v1319, 0.0
      %v1382 = vadd.f32 %v1380, %v1381
      %v1383 = vrot.slane %v1382, 4
      %v1384 = vadd.f32 %v1382, %v1383
      %v1385 = vrot.slane %v1384, 2
      %v1386 = vadd.f32 %v1384, %v1385
      %v1387 = vrot.slane %v1386, 1
      %v1388 = vadd.f32 %v1386, %v1387
      %1389 = vst.msk [vmem:[%s220] sm:$0x1] %vm1286, %v1388
      %s1390 = smul.u32 32, %s16
      %p1391 = scmp.lt.s32.totalorder %s1390, 63
      %s1392 = scalar_select %p1391, %s1390, 63
      %s1393 = smul.addr %s1392, 8
      %s1394 = scalar_lea.vmem %s2, %s1393
      %p1395 = scmp.lt.s32.totalorder %s16, 1
      %s1396 = scalar_select %p1395, %s16, 1
      %s1397 = scalar_lea.vmem %s3, %s1396
      %p1398 = scmp.lt.s32.totalorder %s16, 1
      %s1399 = scalar_select %p1398, %s16, 1
      %s1400 = scalar_lea.vmem %s4, %s1399
      // Predicated region
      $region29: #{a_call__.13} parent=27 // pred_check
        %p1401 = pneg %p81
      $region30: #{a_call__.13} parent=27 // pred_check_branch
        %1403 = sbr.rel (%p1401) target = $region32
      $region31: #{a_call__.13} parent=27 // pred_region
        %s1404 = smul.u32 32, %s16
      $region32: #{a_call__.13} parent=27 // pred_fallthru
        _
      // Predicated region
      $region33: #{a_call__.13} parent=27 // pred_check
        %p1405 = pneg %p107
      $region34: #{a_call__.13} parent=27 // pred_check_branch
        %1407 = sbr.rel (%p1405) target = $region36
      $region35: #{a_call__.13} parent=27 // pred_region
        _
      $region36: #{a_call__.13} parent=27 // pred_fallthru
        _
      // Predicated region
      $region37: #{a_call__.13} parent=27 // pred_check
        %p1408 = pneg %p133
      $region38: #{a_call__.13} parent=27 // pred_check_branch
        %1410 = sbr.rel (%p1408) target = $region40
      $region39: #{a_call__.13} parent=27 // pred_region
        _
      $region40: #{a_call__.13} parent=27 // pred_fallthru
        _
    $region28: #{a_call__.13} parent=5 // pred_fallthru
      _
    %p1411 = scmp.le.s32.totalorder 2, %s11
    // Predicated region
    $region41: #{a_call__.13} parent=5 // pred_check
      %p1412 = pneg %p1411
    $region42: #{a_call__.13} parent=5 // pred_check_branch
      %1414 = sbr.rel (%p1412) target = $region44
    $region43: #{a_call__.13} parent=5 // pred_region
      %s1415 = ssub.s32 %s11, 2
      // Predicated region
      $region45: #{a_call__.13} parent=43 // pred_check
        %p1416 = pneg %p87
      $region46: #{a_call__.13} parent=43 // pred_check_branch
        %1418 = sbr.rel (%p1416) target = $region48
      $region47: #{a_call__.13} parent=43 // pred_region
        %s1419 = smul.u32 32, %s17
        %p1420 = scmp.lt.s32.totalorder %s1419, 63
        %s1421 = scalar_select %p1420, %s1419, 63
        %s1422 = smul.addr %s1421, 8
        %s1423 = scalar_lea.vmem %s2, %s1422
      $region48: #{a_call__.13} parent=43 // pred_fallthru
        _
      // Predicated region
      $region49: #{a_call__.13} parent=43 // pred_check
        %p1424 = pneg %p113
      $region50: #{a_call__.13} parent=43 // pred_check_branch
        %1426 = sbr.rel (%p1424) target = $region52
      $region51: #{a_call__.13} parent=43 // pred_region
        %p1427 = scmp.lt.s32.totalorder %s17, 1
        %s1428 = scalar_select %p1427, %s17, 1
        %s1429 = scalar_lea.vmem %s3, %s1428
      $region52: #{a_call__.13} parent=43 // pred_fallthru
        _
      // Predicated region
      $region53: #{a_call__.13} parent=43 // pred_check
        %p1430 = pneg %p139
      $region54: #{a_call__.13} parent=43 // pred_check_branch
        %1432 = sbr.rel (%p1430) target = $region56
      $region55: #{a_call__.13} parent=43 // pred_region
        %p1433 = scmp.lt.s32.totalorder %s17, 1
        %s1434 = scalar_select %p1433, %s17, 1
        %s1435 = scalar_lea.vmem %s4, %s1434
      $region56: #{a_call__.13} parent=43 // pred_fallthru
        _
    $region44: #{a_call__.13} parent=5 // pred_fallthru
      _
  $region6: #{a_call__.13} parent=0 // loop_footer
    %s15 = sadd.s32 1, %s11
  $region7: #{a_call__.13} parent=0 // loop_footer_branch
    %10 = sbr.rel target = $region3
  $region8: #{a_call__.13} parent=0 // loop_exit
    _

// kernel: a_call__.14
$region0: #{a_call__.14}
  #allocation0 [shape = 'u32[]', space=smem, size = 0x4, offset = 0x4, fixed_abs, tag = 'smem constant byte address 0x4 - core index']
  #allocation1 [shape = 'u32[144,128]{1,0:T(1,128)}', space=vmem, size = 0x12000, scoped, tag = 'internal scratch']
  %s0 = inlined_call_operand.vmem [shape: f32[512,16], index: 0, kind: input, shape index: {}]
  %s1 = inlined_call_operand.vmem [shape: f32[1,16], index: 1, kind: input, shape index: {}]
  %s2 = inlined_call_operand.vmem [shape: f32[1,16], index: 2, kind: input, shape index: {}]
  %s3 = inlined_call_operand.vmem [shape: bf16[512,16], index: 3, kind: output, shape index: {}]
  %s4 = sld [smem:[#allocation0]]
  $region22: #{a_call__.14} parent=0
    _
  %s6 = ssub.s32 1, %s4
  %s7 = scalar_select 0, %s6, %s4
  // Predicated region
  $region2: #{a_call__.14} parent=0 // pred_check
    _
  $region3: #{a_call__.14} parent=0 // pred_check_branch
    %9 = sbr.rel (0) target = $region5
  $region4: #{a_call__.14} parent=0 // pred_region
    _
  $region5: #{a_call__.14} parent=0 // pred_fallthru
    _
  // Predicated region
  $region6: #{a_call__.14} parent=0 // pred_check
    _
  $region7: #{a_call__.14} parent=0 // pred_check_branch
    %11 = sbr.rel (0) target = $region9
  $region8: #{a_call__.14} parent=0 // pred_region
    _
  $region9: #{a_call__.14} parent=0 // pred_fallthru
    _
  // Predicated region
  $region10: #{a_call__.14} parent=0 // pred_check
    _
  $region11: #{a_call__.14} parent=0 // pred_check_branch
    %13 = sbr.rel (0) target = $region13
  $region12: #{a_call__.14} parent=0 // pred_region
    _
  $region13: #{a_call__.14} parent=0 // pred_fallthru
    _
  %v14 = vld [vmem:[%s0] sm:$0xff]
  %v15 = vld [vmem:[%s0 + $0x8] sm:$0xff]
  %v16 = vld [vmem:[%s0 + $0x10] sm:$0xff]
  %v17 = vld [vmem:[%s0 + $0x18] sm:$0xff]
  %v18 = vld [vmem:[%s0 + $0x20] sm:$0xff]
  %v19 = vld [vmem:[%s0 + $0x28] sm:$0xff]
  %v20 = vld [vmem:[%s0 + $0x30] sm:$0xff]
  %v21 = vld [vmem:[%s0 + $0x38] sm:$0xff]
  %v22 = vld [vmem:[%s0 + $0x40] sm:$0xff]
  %v23 = vld [vmem:[%s0 + $0x48] sm:$0xff]
  %v24 = vld [vmem:[%s0 + $0x50] sm:$0xff]
  %v25 = vld [vmem:[%s0 + $0x58] sm:$0xff]
  %v26 = vld [vmem:[%s0 + $0x60] sm:$0xff]
  %v27 = vld [vmem:[%s0 + $0x68] sm:$0xff]
  %v28 = vld [vmem:[%s0 + $0x70] sm:$0xff]
  %v29 = vld [vmem:[%s0 + $0x78] sm:$0xff]
  %v30 = vld [vmem:[%s0 + $0x80] sm:$0xff]
  %v31 = vld [vmem:[%s0 + $0x88] sm:$0xff]
  %v32 = vld [vmem:[%s0 + $0x90] sm:$0xff]
  %v33 = vld [vmem:[%s0 + $0x98] sm:$0xff]
  %v34 = vld [vmem:[%s0 + $0xa0] sm:$0xff]
  %v35 = vld [vmem:[%s0 + $0xa8] sm:$0xff]
  %v36 = vld [vmem:[%s0 + $0xb0] sm:$0xff]
  %v37 = vld [vmem:[%s0 + $0xb8] sm:$0xff]
  %v38 = vld [vmem:[%s0 + $0xc0] sm:$0xff]
  %v39 = vld [vmem:[%s0 + $0xc8] sm:$0xff]
  %v40 = vld [vmem:[%s0 + $0xd0] sm:$0xff]
  %v41 = vld [vmem:[%s0 + $0xd8] sm:$0xff]
  %v42 = vld [vmem:[%s0 + $0xe0] sm:$0xff]
  %v43 = vld [vmem:[%s0 + $0xe8] sm:$0xff]
  %v44 = vld [vmem:[%s0 + $0xf0] sm:$0xff]
  %v45 = vld [vmem:[%s0 + $0xf8] sm:$0xff]
  %v46 = vld [vmem:[%s0 + $0x100] sm:$0xff]
  %v47 = vld [vmem:[%s0 + $0x108] sm:$0xff]
  %v48 = vld [vmem:[%s0 + $0x110] sm:$0xff]
  %v49 = vld [vmem:[%s0 + $0x118] sm:$0xff]
  %v50 = vld [vmem:[%s0 + $0x120] sm:$0xff]
  %v51 = vld [vmem:[%s0 + $0x128] sm:$0xff]
  %v52 = vld [vmem:[%s0 + $0x130] sm:$0xff]
  %v53 = vld [vmem:[%s0 + $0x138] sm:$0xff]
  %v54 = vld [vmem:[%s0 + $0x140] sm:$0xff]
  %v55 = vld [vmem:[%s0 + $0x148] sm:$0xff]
  %v56 = vld [vmem:[%s0 + $0x150] sm:$0xff]
  %v57 = vld [vmem:[%s0 + $0x158] sm:$0xff]
  %v58 = vld [vmem:[%s0 + $0x160] sm:$0xff]
  %v59 = vld [vmem:[%s0 + $0x168] sm:$0xff]
  %v60 = vld [vmem:[%s0 + $0x170] sm:$0xff]
  %v61 = vld [vmem:[%s0 + $0x178] sm:$0xff]
  %v62 = vld [vmem:[%s0 + $0x180] sm:$0xff]
  %v63 = vld [vmem:[%s0 + $0x188] sm:$0xff]
  %v64 = vld [vmem:[%s0 + $0x190] sm:$0xff]
  %v65 = vld [vmem:[%s0 + $0x198] sm:$0xff]
  %v66 = vld [vmem:[%s0 + $0x1a0] sm:$0xff]
  %v67 = vld [vmem:[%s0 + $0x1a8] sm:$0xff]
  %v68 = vld [vmem:[%s0 + $0x1b0] sm:$0xff]
  %v69 = vld [vmem:[%s0 + $0x1b8] sm:$0xff]
  %v70 = vld [vmem:[%s0 + $0x1c0] sm:$0xff]
  %v71 = vld [vmem:[%s0 + $0x1c8] sm:$0xff]
  %v72 = vld [vmem:[%s0 + $0x1d0] sm:$0xff]
  %v73 = vld [vmem:[%s0 + $0x1d8] sm:$0xff]
  %v74 = vld [vmem:[%s0 + $0x1e0] sm:$0xff]
  %v75 = vld [vmem:[%s0 + $0x1e8] sm:$0xff]
  %v76 = vld [vmem:[%s0 + $0x1f0] sm:$0xff]
  %v77 = vld [vmem:[%s0 + $0x1f8] sm:$0xff]
  %v78 = vld [vmem:[%s1] sm:$0x1]
  %v80 = vlaneseq
  %v81 = vshrl.u32 %v80, 7
  %v82 = vsub.s32 0, %v81
  %v83 = vrot.slane %v78, %v82
  %v85 = vmul.f32 %v14, %v83
  %v86 = vmul.f32 %v15, %v83
  %v87 = vmul.f32 %v16, %v83
  %v88 = vmul.f32 %v17, %v83
  %v89 = vmul.f32 %v18, %v83
  %v90 = vmul.f32 %v19, %v83
  %v91 = vmul.f32 %v20, %v83
  %v92 = vmul.f32 %v21, %v83
  %v93 = vmul.f32 %v22, %v83
  %v94 = vmul.f32 %v23, %v83
  %v95 = vmul.f32 %v24, %v83
  %v96 = vmul.f32 %v25, %v83
  %v97 = vmul.f32 %v26, %v83
  %v98 = vmul.f32 %v27, %v83
  %v99 = vmul.f32 %v28, %v83
  %v100 = vmul.f32 %v29, %v83
  %v101 = vmul.f32 %v30, %v83
  %v102 = vmul.f32 %v31, %v83
  %v103 = vmul.f32 %v32, %v83
  %v104 = vmul.f32 %v33, %v83
  %v105 = vmul.f32 %v34, %v83
  %v106 = vmul.f32 %v35, %v83
  %v107 = vmul.f32 %v36, %v83
  %v108 = vmul.f32 %v37, %v83
  %v109 = vmul.f32 %v38, %v83
  %v110 = vmul.f32 %v39, %v83
  %v111 = vmul.f32 %v40, %v83
  %v112 = vmul.f32 %v41, %v83
  %v113 = vmul.f32 %v42, %v83
  %v114 = vmul.f32 %v43, %v83
  %v115 = vmul.f32 %v44, %v83
  %v116 = vmul.f32 %v45, %v83
  %v117 = vmul.f32 %v46, %v83
  %v118 = vmul.f32 %v47, %v83
  %v119 = vmul.f32 %v48, %v83
  %v120 = vmul.f32 %v49, %v83
  %v121 = vmul.f32 %v50, %v83
  %v122 = vmul.f32 %v51, %v83
  %v123 = vmul.f32 %v52, %v83
  %v124 = vmul.f32 %v53, %v83
  %v125 = vmul.f32 %v54, %v83
  %v126 = vmul.f32 %v55, %v83
  %v127 = vmul.f32 %v56, %v83
  %v128 = vmul.f32 %v57, %v83
  %v129 = vmul.f32 %v58, %v83
  %v130 = vmul.f32 %v59, %v83
  %v131 = vmul.f32 %v60, %v83
  %v132 = vmul.f32 %v61, %v83
  %v133 = vmul.f32 %v62, %v83
  %v134 = vmul.f32 %v63, %v83
  %v135 = vmul.f32 %v64, %v83
  %v136 = vmul.f32 %v65, %v83
  %v137 = vmul.f32 %v66, %v83
  %v138 = vmul.f32 %v67, %v83
  %v139 = vmul.f32 %v68, %v83
  %v140 = vmul.f32 %v69, %v83
  %v141 = vmul.f32 %v70, %v83
  %v142 = vmul.f32 %v71, %v83
  %v143 = vmul.f32 %v72, %v83
  %v144 = vmul.f32 %v73, %v83
  %v145 = vmul.f32 %v74, %v83
  %v146 = vmul.f32 %v75, %v83
  %v147 = vmul.f32 %v76, %v83
  %v148 = vmul.f32 %v77, %v83
  %v149 = vld [vmem:[%s2] sm:$0x1]
  %v151 = vlaneseq
  %v152 = vshrl.u32 %v151, 7
  %v153 = vsub.s32 0, %v152
  %v154 = vrot.slane %v149, %v153
  %v156 = vadd.f32 %v85, %v154
  %v157 = vadd.f32 %v86, %v154
  %v158 = vadd.f32 %v87, %v154
  %v159 = vadd.f32 %v88, %v154
  %v160 = vadd.f32 %v89, %v154
  %v161 = vadd.f32 %v90, %v154
  %v162 = vadd.f32 %v91, %v154
  %v163 = vadd.f32 %v92, %v154
  %v164 = vadd.f32 %v93, %v154
  %v165 = vadd.f32 %v94, %v154
  %v166 = vadd.f32 %v95, %v154
  %v167 = vadd.f32 %v96, %v154
  %v168 = vadd.f32 %v97, %v154
  %v169 = vadd.f32 %v98, %v154
  %v170 = vadd.f32 %v99, %v154
  %v171 = vadd.f32 %v100, %v154
  %v172 = vadd.f32 %v101, %v154
  %v173 = vadd.f32 %v102, %v154
  %v174 = vadd.f32 %v103, %v154
  %v175 = vadd.f32 %v104, %v154
  %v176 = vadd.f32 %v105, %v154
  %v177 = vadd.f32 %v106, %v154
  %v178 = vadd.f32 %v107, %v154
  %v179 = vadd.f32 %v108, %v154
  %v180 = vadd.f32 %v109, %v154
  %v181 = vadd.f32 %v110, %v154
  %v182 = vadd.f32 %v111, %v154
  %v183 = vadd.f32 %v112, %v154
  %v184 = vadd.f32 %v113, %v154
  %v185 = vadd.f32 %v114, %v154
  %v186 = vadd.f32 %v115, %v154
  %v187 = vadd.f32 %v116, %v154
  %v188 = vadd.f32 %v117, %v154
  %v189 = vadd.f32 %v118, %v154
  %v190 = vadd.f32 %v119, %v154
  %v191 = vadd.f32 %v120, %v154
  %v192 = vadd.f32 %v121, %v154
  %v193 = vadd.f32 %v122, %v154
  %v194 = vadd.f32 %v123, %v154
  %v195 = vadd.f32 %v124, %v154
  %v196 = vadd.f32 %v125, %v154
  %v197 = vadd.f32 %v126, %v154
  %v198 = vadd.f32 %v127, %v154
  %v199 = vadd.f32 %v128, %v154
  %v200 = vadd.f32 %v129, %v154
  %v201 = vadd.f32 %v130, %v154
  %v202 = vadd.f32 %v131, %v154
  %v203 = vadd.f32 %v132, %v154
  %v204 = vadd.f32 %v133, %v154
  %v205 = vadd.f32 %v134, %v154
  %v206 = vadd.f32 %v135, %v154
  %v207 = vadd.f32 %v136, %v154
  %v208 = vadd.f32 %v137, %v154
  %v209 = vadd.f32 %v138, %v154
  %v210 = vadd.f32 %v139, %v154
  %v211 = vadd.f32 %v140, %v154
  %v212 = vadd.f32 %v141, %v154
  %v213 = vadd.f32 %v142, %v154
  %v214 = vadd.f32 %v143, %v154
  %v215 = vadd.f32 %v144, %v154
  %v216 = vadd.f32 %v145, %v154
  %v217 = vadd.f32 %v146, %v154
  %v218 = vadd.f32 %v147, %v154
  %v219 = vadd.f32 %v148, %v154
  %v220 = vmax.f32 %v156, 0.0
  %v221 = vmax.f32 %v157, 0.0
  %v222 = vmax.f32 %v158, 0.0
  %v223 = vmax.f32 %v159, 0.0
  %v224 = vmax.f32 %v160, 0.0
  %v225 = vmax.f32 %v161, 0.0
  %v226 = vmax.f32 %v162, 0.0
  %v227 = vmax.f32 %v163, 0.0
  %v228 = vmax.f32 %v164, 0.0
  %v229 = vmax.f32 %v165, 0.0
  %v230 = vmax.f32 %v166, 0.0
  %v231 = vmax.f32 %v167, 0.0
  %v232 = vmax.f32 %v168, 0.0
  %v233 = vmax.f32 %v169, 0.0
  %v234 = vmax.f32 %v170, 0.0
  %v235 = vmax.f32 %v171, 0.0
  %v236 = vmax.f32 %v172, 0.0
  %v237 = vmax.f32 %v173, 0.0
  %v238 = vmax.f32 %v174, 0.0
  %v239 = vmax.f32 %v175, 0.0
  %v240 = vmax.f32 %v176, 0.0
  %v241 = vmax.f32 %v177, 0.0
  %v242 = vmax.f32 %v178, 0.0
  %v243 = vmax.f32 %v179, 0.0
  %v244 = vmax.f32 %v180, 0.0
  %v245 = vmax.f32 %v181, 0.0
  %v246 = vmax.f32 %v182, 0.0
  %v247 = vmax.f32 %v183, 0.0
  %v248 = vmax.f32 %v184, 0.0
  %v249 = vmax.f32 %v185, 0.0
  %v250 = vmax.f32 %v186, 0.0
  %v251 = vmax.f32 %v187, 0.0
  %v252 = vmax.f32 %v188, 0.0
  %v253 = vmax.f32 %v189, 0.0
  %v254 = vmax.f32 %v190, 0.0
  %v255 = vmax.f32 %v191, 0.0
  %v256 = vmax.f32 %v192, 0.0
  %v257 = vmax.f32 %v193, 0.0
  %v258 = vmax.f32 %v194, 0.0
  %v259 = vmax.f32 %v195, 0.0
  %v260 = vmax.f32 %v196, 0.0
  %v261 = vmax.f32 %v197, 0.0
  %v262 = vmax.f32 %v198, 0.0
  %v263 = vmax.f32 %v199, 0.0
  %v264 = vmax.f32 %v200, 0.0
  %v265 = vmax.f32 %v201, 0.0
  %v266 = vmax.f32 %v202, 0.0
  %v267 = vmax.f32 %v203, 0.0
  %v268 = vmax.f32 %v204, 0.0
  %v269 = vmax.f32 %v205, 0.0
  %v270 = vmax.f32 %v206, 0.0
  %v271 = vmax.f32 %v207, 0.0
  %v272 = vmax.f32 %v208, 0.0
  %v273 = vmax.f32 %v209, 0.0
  %v274 = vmax.f32 %v210, 0.0
  %v275 = vmax.f32 %v211, 0.0
  %v276 = vmax.f32 %v212, 0.0
  %v277 = vmax.f32 %v213, 0.0
  %v278 = vmax.f32 %v214, 0.0
  %v279 = vmax.f32 %v215, 0.0
  %v280 = vmax.f32 %v216, 0.0
  %v281 = vmax.f32 %v217, 0.0
  %v282 = vmax.f32 %v218, 0.0
  %v283 = vmax.f32 %v219, 0.0
  %v284 = vpack.c.bf16 %v221, %v220
  %v285 = vpack.c.bf16 %v223, %v222
  %v286 = vpack.c.bf16 %v225, %v224
  %v287 = vpack.c.bf16 %v227, %v226
  %v288 = vpack.c.bf16 %v229, %v228
  %v289 = vpack.c.bf16 %v231, %v230
  %v290 = vpack.c.bf16 %v233, %v232
  %v291 = vpack.c.bf16 %v235, %v234
  %v292 = vpack.c.bf16 %v237, %v236
  %v293 = vpack.c.bf16 %v239, %v238
  %v294 = vpack.c.bf16 %v241, %v240
  %v295 = vpack.c.bf16 %v243, %v242
  %v296 = vpack.c.bf16 %v245, %v244
  %v297 = vpack.c.bf16 %v247, %v246
  %v298 = vpack.c.bf16 %v249, %v248
  %v299 = vpack.c.bf16 %v251, %v250
  %v300 = vpack.c.bf16 %v253, %v252
  %v301 = vpack.c.bf16 %v255, %v254
  %v302 = vpack.c.bf16 %v257, %v256
  %v303 = vpack.c.bf16 %v259, %v258
  %v304 = vpack.c.bf16 %v261, %v260
  %v305 = vpack.c.bf16 %v263, %v262
  %v306 = vpack.c.bf16 %v265, %v264
  %v307 = vpack.c.bf16 %v267, %v266
  %v308 = vpack.c.bf16 %v269, %v268
  %v309 = vpack.c.bf16 %v271, %v270
  %v310 = vpack.c.bf16 %v273, %v272
  %v311 = vpack.c.bf16 %v275, %v274
  %v312 = vpack.c.bf16 %v277, %v276
  %v313 = vpack.c.bf16 %v279, %v278
  %v314 = vpack.c.bf16 %v281, %v280
  %v315 = vpack.c.bf16 %v283, %v282
  %v348 = vunpack.c.l.b16 %v284
  %v349 = vunpack.c.h.b16 %v284
  %v350 = vunpack.c.l.b16 %v285
  %v351 = vunpack.c.h.b16 %v285
  %v352 = vunpack.c.l.b16 %v286
  %v353 = vunpack.c.h.b16 %v286
  %v354 = vunpack.c.l.b16 %v287
  %v355 = vunpack.c.h.b16 %v287
  %v356 = vunpack.c.l.b16 %v288
  %v357 = vunpack.c.h.b16 %v288
  %v358 = vunpack.c.l.b16 %v289
  %v359 = vunpack.c.h.b16 %v289
  %v360 = vunpack.c.l.b16 %v290
  %v361 = vunpack.c.h.b16 %v290
  %v362 = vunpack.c.l.b16 %v291
  %v363 = vunpack.c.h.b16 %v291
  %v364 = vunpack.c.l.b16 %v292
  %v365 = vunpack.c.h.b16 %v292
  %v366 = vunpack.c.l.b16 %v293
  %v367 = vunpack.c.h.b16 %v293
  %v368 = vunpack.c.l.b16 %v294
  %v369 = vunpack.c.h.b16 %v294
  %v370 = vunpack.c.l.b16 %v295
  %v371 = vunpack.c.h.b16 %v295
  %v372 = vunpack.c.l.b16 %v296
  %v373 = vunpack.c.h.b16 %v296
  %v374 = vunpack.c.l.b16 %v297
  %v375 = vunpack.c.h.b16 %v297
  %v376 = vunpack.c.l.b16 %v298
  %v377 = vunpack.c.h.b16 %v298
  %v378 = vunpack.c.l.b16 %v299
  %v379 = vunpack.c.h.b16 %v299
  %v380 = vunpack.c.l.b16 %v300
  %v381 = vunpack.c.h.b16 %v300
  %v382 = vunpack.c.l.b16 %v301
  %v383 = vunpack.c.h.b16 %v301
  %v384 = vunpack.c.l.b16 %v302
  %v385 = vunpack.c.h.b16 %v302
  %v386 = vunpack.c.l.b16 %v303
  %v387 = vunpack.c.h.b16 %v303
  %v388 = vunpack.c.l.b16 %v304
  %v389 = vunpack.c.h.b16 %v304
  %v390 = vunpack.c.l.b16 %v305
  %v391 = vunpack.c.h.b16 %v305
  %v392 = vunpack.c.l.b16 %v306
  %v393 = vunpack.c.h.b16 %v306
  %v394 = vunpack.c.l.b16 %v307
  %v395 = vunpack.c.h.b16 %v307
  %v396 = vunpack.c.l.b16 %v308
  %v397 = vunpack.c.h.b16 %v308
  %v398 = vunpack.c.l.b16 %v309
  %v399 = vunpack.c.h.b16 %v309
  %v400 = vunpack.c.l.b16 %v310
  %v401 = vunpack.c.h.b16 %v310
  %v402 = vunpack.c.l.b16 %v311
  %v403 = vunpack.c.h.b16 %v311
  %v404 = vunpack.c.l.b16 %v312
  %v405 = vunpack.c.h.b16 %v312
  %v406 = vunpack.c.l.b16 %v313
  %v407 = vunpack.c.h.b16 %v313
  %v408 = vunpack.c.l.b16 %v314
  %v409 = vunpack.c.h.b16 %v314
  %v410 = vunpack.c.l.b16 %v315
  %v411 = vunpack.c.h.b16 %v315
  %v412 = vpack.c.b16 %v348, %v348
  %v413 = vpack.c.b16 %v349, %v349
  %v414 = vpack.c.b16 %v350, %v350
  %v415 = vpack.c.b16 %v351, %v351
  %v416 = vpack.c.b16 %v352, %v352
  %v417 = vpack.c.b16 %v353, %v353
  %v418 = vpack.c.b16 %v354, %v354
  %v419 = vpack.c.b16 %v355, %v355
  %v420 = vpack.c.b16 %v356, %v356
  %v421 = vpack.c.b16 %v357, %v357
  %v422 = vpack.c.b16 %v358, %v358
  %v423 = vpack.c.b16 %v359, %v359
  %v424 = vpack.c.b16 %v360, %v360
  %v425 = vpack.c.b16 %v361, %v361
  %v426 = vpack.c.b16 %v362, %v362
  %v427 = vpack.c.b16 %v363, %v363
  %v428 = vpack.c.b16 %v364, %v364
  %v429 = vpack.c.b16 %v365, %v365
  %v430 = vpack.c.b16 %v366, %v366
  %v431 = vpack.c.b16 %v367, %v367
  %v432 = vpack.c.b16 %v368, %v368
  %v433 = vpack.c.b16 %v369, %v369
  %v434 = vpack.c.b16 %v370, %v370
  %v435 = vpack.c.b16 %v371, %v371
  %v436 = vpack.c.b16 %v372, %v372
  %v437 = vpack.c.b16 %v373, %v373
  %v438 = vpack.c.b16 %v374, %v374
  %v439 = vpack.c.b16 %v375, %v375
  %v440 = vpack.c.b16 %v376, %v376
  %v441 = vpack.c.b16 %v377, %v377
  %v442 = vpack.c.b16 %v378, %v378
  %v443 = vpack.c.b16 %v379, %v379
  %v444 = vpack.c.b16 %v380, %v380
  %v445 = vpack.c.b16 %v381, %v381
  %v446 = vpack.c.b16 %v382, %v382
  %v447 = vpack.c.b16 %v383, %v383
  %v448 = vpack.c.b16 %v384, %v384
  %v449 = vpack.c.b16 %v385, %v385
  %v450 = vpack.c.b16 %v386, %v386
  %v451 = vpack.c.b16 %v387, %v387
  %v452 = vpack.c.b16 %v388, %v388
  %v453 = vpack.c.b16 %v389, %v389
  %v454 = vpack.c.b16 %v390, %v390
  %v455 = vpack.c.b16 %v391, %v391
  %v456 = vpack.c.b16 %v392, %v392
  %v457 = vpack.c.b16 %v393, %v393
  %v458 = vpack.c.b16 %v394, %v394
  %v459 = vpack.c.b16 %v395, %v395
  %v460 = vpack.c.b16 %v396, %v396
  %v461 = vpack.c.b16 %v397, %v397
  %v462 = vpack.c.b16 %v398, %v398
  %v463 = vpack.c.b16 %v399, %v399
  %v464 = vpack.c.b16 %v400, %v400
  %v465 = vpack.c.b16 %v401, %v401
  %v466 = vpack.c.b16 %v402, %v402
  %v467 = vpack.c.b16 %v403, %v403
  %v468 = vpack.c.b16 %v404, %v404
  %v469 = vpack.c.b16 %v405, %v405
  %v470 = vpack.c.b16 %v406, %v406
  %v471 = vpack.c.b16 %v407, %v407
  %v472 = vpack.c.b16 %v408, %v408
  %v473 = vpack.c.b16 %v409, %v409
  %v474 = vpack.c.b16 %v410, %v410
  %v475 = vpack.c.b16 %v411, %v411
  %vm540 = vcmask 125952
  %541 = vst.msk [vmem:[%s3] sm:$0xf] %vm540, %v412
  %542 = vst.msk [vmem:[%s3 + $0x4] sm:$0xf] %vm540, %v413
  %543 = vst.msk [vmem:[%s3 + $0x8] sm:$0xf] %vm540, %v414
  %544 = vst.msk [vmem:[%s3 + $0xc] sm:$0xf] %vm540, %v415
  %545 = vst.msk [vmem:[%s3 + $0x10] sm:$0xf] %vm540, %v416
  %546 = vst.msk [vmem:[%s3 + $0x14] sm:$0xf] %vm540, %v417
  %547 = vst.msk [vmem:[%s3 + $0x18] sm:$0xf] %vm540, %v418
  %548 = vst.msk [vmem:[%s3 + $0x1c] sm:$0xf] %vm540, %v419
  %549 = vst.msk [vmem:[%s3 + $0x20] sm:$0xf] %vm540, %v420
  %550 = vst.msk [vmem:[%s3 + $0x24] sm:$0xf] %vm540, %v421
  %551 = vst.msk [vmem:[%s3 + $0x28] sm:$0xf] %vm540, %v422
  %552 = vst.msk [vmem:[%s3 + $0x2c] sm:$0xf] %vm540, %v423
  %553 = vst.msk [vmem:[%s3 + $0x30] sm:$0xf] %vm540, %v424
  %554 = vst.msk [vmem:[%s3 + $0x34] sm:$0xf] %vm540, %v425
  %555 = vst.msk [vmem:[%s3 + $0x38] sm:$0xf] %vm540, %v426
  %556 = vst.msk [vmem:[%s3 + $0x3c] sm:$0xf] %vm540, %v427
  %557 = vst.msk [vmem:[%s3 + $0x40] sm:$0xf] %vm540, %v428
  %558 = vst.msk [vmem:[%s3 + $0x44] sm:$0xf] %vm540, %v429
  %559 = vst.msk [vmem:[%s3 + $0x48] sm:$0xf] %vm540, %v430
  %560 = vst.msk [vmem:[%s3 + $0x4c] sm:$0xf] %vm540, %v431
  %561 = vst.msk [vmem:[%s3 + $0x50] sm:$0xf] %vm540, %v432
  %562 = vst.msk [vmem:[%s3 + $0x54] sm:$0xf] %vm540, %v433
  %563 = vst.msk [vmem:[%s3 + $0x58] sm:$0xf] %vm540, %v434
  %564 = vst.msk [vmem:[%s3 + $0x5c] sm:$0xf] %vm540, %v435
  %565 = vst.msk [vmem:[%s3 + $0x60] sm:$0xf] %vm540, %v436
  %566 = vst.msk [vmem:[%s3 + $0x64] sm:$0xf] %vm540, %v437
  %567 = vst.msk [vmem:[%s3 + $0x68] sm:$0xf] %vm540, %v438
  %568 = vst.msk [vmem:[%s3 + $0x6c] sm:$0xf] %vm540, %v439
  %569 = vst.msk [vmem:[%s3 + $0x70] sm:$0xf] %vm540, %v440
  %570 = vst.msk [vmem:[%s3 + $0x74] sm:$0xf] %vm540, %v441
  %571 = vst.msk [vmem:[%s3 + $0x78] sm:$0xf] %vm540, %v442
  %572 = vst.msk [vmem:[%s3 + $0x7c] sm:$0xf] %vm540, %v443
  %573 = vst.msk [vmem:[%s3 + $0x80] sm:$0xf] %vm540, %v444
  %574 = vst.msk [vmem:[%s3 + $0x84] sm:$0xf] %vm540, %v445
  %575 = vst.msk [vmem:[%s3 + $0x88] sm:$0xf] %vm540, %v446
  %576 = vst.msk [vmem:[%s3 + $0x8c] sm:$0xf] %vm540, %v447
  %577 = vst.msk [vmem:[%s3 + $0x90] sm:$0xf] %vm540, %v448
  %578 = vst.msk [vmem:[%s3 + $0x94] sm:$0xf] %vm540, %v449
  %579 = vst.msk [vmem:[%s3 + $0x98] sm:$0xf] %vm540, %v450
  %580 = vst.msk [vmem:[%s3 + $0x9c] sm:$0xf] %vm540, %v451
  %581 = vst.msk [vmem:[%s3 + $0xa0] sm:$0xf] %vm540, %v452
  %582 = vst.msk [vmem:[%s3 + $0xa4] sm:$0xf] %vm540, %v453
  %583 = vst.msk [vmem:[%s3 + $0xa8] sm:$0xf] %vm540, %v454
  %584 = vst.msk [vmem:[%s3 + $0xac] sm:$0xf] %vm540, %v455
  %585 = vst.msk [vmem:[%s3 + $0xb0] sm:$0xf] %vm540, %v456
  %586 = vst.msk [vmem:[%s3 + $0xb4] sm:$0xf] %vm540, %v457
  %587 = vst.msk [vmem:[%s3 + $0xb8] sm:$0xf] %vm540, %v458
  %588 = vst.msk [vmem:[%s3 + $0xbc] sm:$0xf] %vm540, %v459
  %589 = vst.msk [vmem:[%s3 + $0xc0] sm:$0xf] %vm540, %v460
  %590 = vst.msk [vmem:[%s3 + $0xc4] sm:$0xf] %vm540, %v461
  %591 = vst.msk [vmem:[%s3 + $0xc8] sm:$0xf] %vm540, %v462
  %592 = vst.msk [vmem:[%s3 + $0xcc] sm:$0xf] %vm540, %v463
  %593 = vst.msk [vmem:[%s3 + $0xd0] sm:$0xf] %vm540, %v464
  %594 = vst.msk [vmem:[%s3 + $0xd4] sm:$0xf] %vm540, %v465
  %595 = vst.msk [vmem:[%s3 + $0xd8] sm:$0xf] %vm540, %v466
  %596 = vst.msk [vmem:[%s3 + $0xdc] sm:$0xf] %vm540, %v467
  %597 = vst.msk [vmem:[%s3 + $0xe0] sm:$0xf] %vm540, %v468
  %598 = vst.msk [vmem:[%s3 + $0xe4] sm:$0xf] %vm540, %v469
  %599 = vst.msk [vmem:[%s3 + $0xe8] sm:$0xf] %vm540, %v470
  %600 = vst.msk [vmem:[%s3 + $0xec] sm:$0xf] %vm540, %v471
  %601 = vst.msk [vmem:[%s3 + $0xf0] sm:$0xf] %vm540, %v472
  %602 = vst.msk [vmem:[%s3 + $0xf4] sm:$0xf] %vm540, %v473
  %603 = vst.msk [vmem:[%s3 + $0xf8] sm:$0xf] %vm540, %v474
  %604 = vst.msk [vmem:[%s3 + $0xfc] sm:$0xf] %vm540, %v475
  // Predicated region
  $region14: #{a_call__.14} parent=0 // pred_check
    _
  $region15: #{a_call__.14} parent=0 // pred_check_branch
    %606 = sbr.rel (0) target = $region17
  $region16: #{a_call__.14} parent=0 // pred_region
    _
  $region17: #{a_call__.14} parent=0 // pred_fallthru
    _
  // Predicated region
  $region18: #{a_call__.14} parent=0 // pred_check
    _
  $region19: #{a_call__.14} parent=0 // pred_check_branch
    %608 = sbr.rel (0) target = $region21
  $region20: #{a_call__.14} parent=0 // pred_region
    _
  $region21: #{a_call__.14} parent=0 // pred_fallthru
    _

// kernel: a_call__.15
$region0: #{a_call__.15}
  #allocation0 [shape = 'u32[]', space=smem, size = 0x4, offset = 0x4, fixed_abs, tag = 'smem constant byte address 0x4 - core index']
  #allocation1 [shape = 'u32[144,128]{1,0:T(1,128)}', space=vmem, size = 0x12000, scoped, tag = 'internal scratch']
  %s0 = inlined_call_operand.vmem [shape: bf16[2048,256], index: 0, kind: input, shape index: {}]
  %s1 = inlined_call_operand.vmem [shape: bf16[256,8], index: 1, kind: input, shape index: {}]
  %s2 = inlined_call_operand.vmem [shape: f32[2048,8], index: 2, kind: output, shape index: {0}]
  %s3 = inlined_call_operand.vmem [shape: f32[8,1,8], index: 3, kind: output, shape index: {1}]
  %s4 = inlined_call_operand.vmem [shape: f32[8,1,8], index: 4, kind: output, shape index: {2}]
  %5 = xla_tuple %s2, %s3, %s4
  %s6 = sld [smem:[#allocation0]]
  $region57: #{a_call__.15} parent=0
    _
  %s8 = ssub.s32 1, %s6
  %s9 = scalar_select 0, %s8, %s6
  loop: start=0, step=1, limit=10
  $region2: #{a_call__.15} parent=0 // loop_pre_header
    _
  $region3: #{a_call__.15} parent=0 // loop_header
    %s11 = sphi 0, %s15
    %p12 = scmp.ge.s32.totalorder %s11, 10
    %s21 = sphi 0, %s23
    %s24 = sphi 0, %s21
    %s25 = sphi 0, %s24
    %s41 = sphi 0, %s25
    %s45 = sphi 0, %s45
    %s47 = sphi 0, %s45
    %s48 = sphi 0, %s47
    %s62 = sphi 0, %s48
    %s68 = sphi 0, %s70
    %s71 = sphi 0, %s68
    %s72 = sphi 0, %s71
    %s88 = sphi 0, %s72
    %s94 = sphi 0, %s96
    %s97 = sphi 0, %s94
    %s98 = sphi 0, %s97
    %s114 = sphi 0, %s98
    %s120 = sphi 0, %s122
    %s123 = sphi 0, %s120
    %s124 = sphi 0, %s123
    %s140 = sphi 0, %s124
  $region4: #{a_call__.15} parent=0 // loop_header_branch
    %14 = sbr.rel (%p12) target = $region8
  $region5: #{a_call__.15} parent=0 // loop_body
    %s16 = ssub.s32 %s11, 1
    %s17 = ssub.s32 %s11, 2
    %s18 = sadd.s32 %s11, 1
    %s19 = ssub.s32 %s11, %s18
    %p20 = scmp.eq.s32.totalorder %s19, 0
    %s22 = sadd.s32 %s21, 1
    %s23 = scalar_select %p20, %s21, %s22
    %p26 = pneg %p20
    %p27 = scmp.eq.s32.totalorder %s11, 7
    %p28 = por %p26, %p27
    %p29 = scmp.ne.s32.totalorder %s21, %s24
    %p30 = scmp.eq.s32.totalorder %s11, 0
    %p31 = por %p29, %p30
    %p32 = scmp.ne.s32.totalorder %s21, %s24
    %p33 = scmp.eq.s32.totalorder %s16, 7
    %p34 = por %p32, %p33
    %p35 = scmp.ne.s32.totalorder %s24, %s25
    %p36 = scmp.eq.s32.totalorder %s16, 0
    %p37 = por %p35, %p36
    %p38 = scmp.ne.s32.totalorder %s24, %s25
    %p39 = scmp.eq.s32.totalorder %s17, 7
    %p40 = por %p38, %p39
    %p42 = scmp.ne.s32.totalorder %s25, %s41
    %p43 = scmp.eq.s32.totalorder %s17, 0
    %p44 = por %p42, %p43
    %s46 = sadd.s32 %s45, 1
    %p49 = scmp.eq.s32.totalorder %s11, 7
    %p50 = scmp.ne.s32.totalorder %s45, %s47
    %p51 = scmp.eq.s32.totalorder %s11, 0
    %p52 = por %p50, %p51
    %p53 = scmp.ne.s32.totalorder %s45, %s47
    %p54 = scmp.eq.s32.totalorder %s16, 7
    %p55 = por %p53, %p54
    %p56 = scmp.ne.s32.totalorder %s47, %s48
    %p57 = scmp.eq.s32.totalorder %s16, 0
    %p58 = por %p56, %p57
    %p59 = scmp.ne.s32.totalorder %s47, %s48
    %p60 = scmp.eq.s32.totalorder %s17, 7
    %p61 = por %p59, %p60
    %p63 = scmp.ne.s32.totalorder %s48, %s62
    %p64 = scmp.eq.s32.totalorder %s17, 0
    %p65 = por %p63, %p64
    %s66 = ssub.s32 %s11, %s18
    %p67 = scmp.eq.s32.totalorder %s66, 0
    %s69 = sadd.s32 %s68, 1
    %s70 = scalar_select %p67, %s68, %s69
    %p73 = pneg %p67
    %p74 = scmp.eq.s32.totalorder %s11, 7
    %p75 = por %p73, %p74
    %p76 = scmp.ne.s32.totalorder %s68, %s71
    %p77 = scmp.eq.s32.totalorder %s11, 0
    %p78 = por %p76, %p77
    %p79 = scmp.ne.s32.totalorder %s68, %s71
    %p80 = scmp.eq.s32.totalorder %s16, 7
    %p81 = por %p79, %p80
    %p82 = scmp.ne.s32.totalorder %s71, %s72
    %p83 = scmp.eq.s32.totalorder %s16, 0
    %p84 = por %p82, %p83
    %p85 = scmp.ne.s32.totalorder %s71, %s72
    %p86 = scmp.eq.s32.totalorder %s17, 7
    %p87 = por %p85, %p86
    %p89 = scmp.ne.s32.totalorder %s72, %s88
    %p90 = scmp.eq.s32.totalorder %s17, 0
    %p91 = por %p89, %p90
    %s92 = ssub.s32 %s11, %s18
    %p93 = scmp.eq.s32.totalorder %s92, 0
    %s95 = sadd.s32 %s94, 1
    %s96 = scalar_select %p93, %s94, %s95
    %p99 = pneg %p93
    %p100 = scmp.eq.s32.totalorder %s11, 7
    %p101 = por %p99, %p100
    %p102 = scmp.ne.s32.totalorder %s94, %s97
    %p103 = scmp.eq.s32.totalorder %s11, 0
    %p104 = por %p102, %p103
    %p105 = scmp.ne.s32.totalorder %s94, %s97
    %p106 = scmp.eq.s32.totalorder %s16, 7
    %p107 = por %p105, %p106
    %p108 = scmp.ne.s32.totalorder %s97, %s98
    %p109 = scmp.eq.s32.totalorder %s16, 0
    %p110 = por %p108, %p109
    %p111 = scmp.ne.s32.totalorder %s97, %s98
    %p112 = scmp.eq.s32.totalorder %s17, 7
    %p113 = por %p111, %p112
    %p115 = scmp.ne.s32.totalorder %s98, %s114
    %p116 = scmp.eq.s32.totalorder %s17, 0
    %p117 = por %p115, %p116
    %s118 = ssub.s32 %s11, %s18
    %p119 = scmp.eq.s32.totalorder %s118, 0
    %s121 = sadd.s32 %s120, 1
    %s122 = scalar_select %p119, %s120, %s121
    %p125 = pneg %p119
    %p126 = scmp.eq.s32.totalorder %s11, 7
    %p127 = por %p125, %p126
    %p128 = scmp.ne.s32.totalorder %s120, %s123
    %p129 = scmp.eq.s32.totalorder %s11, 0
    %p130 = por %p128, %p129
    %p131 = scmp.ne.s32.totalorder %s120, %s123
    %p132 = scmp.eq.s32.totalorder %s16, 7
    %p133 = por %p131, %p132
    %p134 = scmp.ne.s32.totalorder %s123, %s124
    %p135 = scmp.eq.s32.totalorder %s16, 0
    %p136 = por %p134, %p135
    %p137 = scmp.ne.s32.totalorder %s123, %s124
    %p138 = scmp.eq.s32.totalorder %s17, 7
    %p139 = por %p137, %p138
    %p141 = scmp.ne.s32.totalorder %s124, %s140
    %p142 = scmp.eq.s32.totalorder %s17, 0
    %p143 = por %p141, %p142
    %p144 = scmp.le.s32.totalorder 1, %s11
    %p145 = scmp.lt.s32.totalorder %s11, 9
    %p146 = pnand %p144, %p145
    %p147 = pneg %p146
    // Predicated region
    $region9: #{a_call__.15} parent=5 // pred_check
      _
    $region10: #{a_call__.15} parent=5 // pred_check_branch
      %149 = sbr.rel (%p146) target = $region12
    $region11: #{a_call__.15} parent=5 // pred_region
      %s150 = ssub.s32 %s11, 1
      // Predicated region
      $region13: #{a_call__.15} parent=11 // pred_check
        %p151 = pneg %p58
      $region14: #{a_call__.15} parent=11 // pred_check_branch
        %153 = sbr.rel (%p151) target = $region16
      $region15: #{a_call__.15} parent=11 // pred_region
        _
      $region16: #{a_call__.15} parent=11 // pred_fallthru
        _
    $region12: #{a_call__.15} parent=5 // pred_fallthru
      _
    %p154 = scmp.lt.s32.totalorder %s11, 8
    // Predicated region
    $region17: #{a_call__.15} parent=5 // pred_check
      %p155 = pneg %p154
    $region18: #{a_call__.15} parent=5 // pred_check_branch
      %157 = sbr.rel (%p155) target = $region20
    $region19: #{a_call__.15} parent=5 // pred_region
      // Predicated region
      $region21: #{a_call__.15} parent=19 // pred_check
        %p158 = pneg %p31
      $region22: #{a_call__.15} parent=19 // pred_check_branch
        %160 = sbr.rel (%p158) target = $region24
      $region23: #{a_call__.15} parent=19 // pred_region
        %s161 = smul.u32 32, %s11
        %p162 = scmp.lt.s32.totalorder %s161, 255
        %s163 = scalar_select %p162, %s161, 255
        %s164 = smul.addr %s163, 2
        %s165 = smul.addr %s164, 4
        %s166 = scalar_lea.vmem %s0, %s165
        %s167 = smul.u32 32, %s11
      $region24: #{a_call__.15} parent=19 // pred_fallthru
        _
    $region20: #{a_call__.15} parent=5 // pred_fallthru
      _
    %p168 = scmp.le.s32.totalorder 1, %s11
    %p169 = scmp.lt.s32.totalorder %s11, 9
    %p170 = pnand %p168, %p169
    %p171 = pneg %p170
    // Predicated region
    $region25: #{a_call__.15} parent=5 // pred_check
      _
    $region26: #{a_call__.15} parent=5 // pred_check_branch
      %173 = sbr.rel (%p170) target = $region28
    $region27: #{a_call__.15} parent=5 // pred_region
      %s174 = ssub.s32 %s11, 1
      %s175 = smul.u32 32, %s16
      %p176 = scmp.lt.s32.totalorder %s175, 255
      %s177 = scalar_select %p176, %s175, 255
      %s178 = smul.addr %s177, 2
      %s179 = smul.addr %s178, 4
      %s180 = scalar_lea.vmem %s0, %s179
      %p181 = pneg %p37
      %p182 = pneg %p34
      %p183 = pneg %p58
      %p184 = pneg %p55
      %p185 = pneg %p84
      %p186 = pneg %p81
      %s187 = smul.u32 32, %s16
      %p188 = scmp.lt.s32.totalorder %s187, 255
      %s189 = scalar_select %p188, %s187, 255
      %s190 = smul.addr %s189, 8
      %s191 = scalar_lea.vmem %s2, %s190
      %p192 = pneg %p110
      %p193 = pneg %p107
      %p194 = scmp.lt.s32.totalorder %s16, 7
      %s195 = scalar_select %p194, %s16, 7
      %s196 = scalar_lea.vmem %s3, %s195
      %p197 = pneg %p136
      %p198 = pneg %p133
      %p199 = scmp.lt.s32.totalorder %s16, 7
      %s200 = scalar_select %p199, %s16, 7
      %s201 = scalar_lea.vmem %s4, %s200
      %s202 = smul.u32 32, %s16
      %p203 = scmp.lt.s32.totalorder %s202, 255
      %s204 = scalar_select %p203, %s202, 255
      %s205 = smul.addr %s204, 2
      %s206 = smul.addr %s205, 4
      %s207 = scalar_lea.vmem %s0, %s206
      %s208 = smul.u32 32, %s16
      %s209 = smul.u32 32, %s16
      %p210 = scmp.lt.s32.totalorder %s209, 255
      %s211 = scalar_select %p210, %s209, 255
      %s212 = smul.addr %s211, 8
      %s213 = scalar_lea.vmem %s2, %s212
      %s214 = smul.u32 32, %s16
      %p215 = scmp.lt.s32.totalorder %s16, 7
      %s216 = scalar_select %p215, %s16, 7
      %s217 = scalar_lea.vmem %s3, %s216
      %p218 = scmp.lt.s32.totalorder %s16, 7
      %s219 = scalar_select %p218, %s16, 7
      %s220 = scalar_lea.vmem %s4, %s219
      %v222 = vld [vmem:[%s207] sm:$0xff]
      %v223 = vld [vmem:[%s207 + $0x8] sm:$0xff]
      %v224 = vld [vmem:[%s207 + $0x10] sm:$0xff]
      %v225 = vld [vmem:[%s207 + $0x18] sm:$0xff]
      %v226 = vld [vmem:[%s207 + $0x20] sm:$0xff]
      %v227 = vld [vmem:[%s207 + $0x28] sm:$0xff]
      %v228 = vld [vmem:[%s207 + $0x30] sm:$0xff]
      %v229 = vld [vmem:[%s207 + $0x38] sm:$0xff]
      %v230 = vld [vmem:[%s207 + $0x40] sm:$0xff]
      %v231 = vld [vmem:[%s207 + $0x48] sm:$0xff]
      %v232 = vld [vmem:[%s207 + $0x50] sm:$0xff]
      %v233 = vld [vmem:[%s207 + $0x58] sm:$0xff]
      %v234 = vld [vmem:[%s207 + $0x60] sm:$0xff]
      %v235 = vld [vmem:[%s207 + $0x68] sm:$0xff]
      %v236 = vld [vmem:[%s207 + $0x70] sm:$0xff]
      %v237 = vld [vmem:[%s207 + $0x78] sm:$0xff]
      %v238 = vld [vmem:[%s207 + $0x80] sm:$0xff]
      %v239 = vld [vmem:[%s207 + $0x88] sm:$0xff]
      %v240 = vld [vmem:[%s207 + $0x90] sm:$0xff]
      %v241 = vld [vmem:[%s207 + $0x98] sm:$0xff]
      %v242 = vld [vmem:[%s207 + $0xa0] sm:$0xff]
      %v243 = vld [vmem:[%s207 + $0xa8] sm:$0xff]
      %v244 = vld [vmem:[%s207 + $0xb0] sm:$0xff]
      %v245 = vld [vmem:[%s207 + $0xb8] sm:$0xff]
      %v246 = vld [vmem:[%s207 + $0xc0] sm:$0xff]
      %v247 = vld [vmem:[%s207 + $0xc8] sm:$0xff]
      %v248 = vld [vmem:[%s207 + $0xd0] sm:$0xff]
      %v249 = vld [vmem:[%s207 + $0xd8] sm:$0xff]
      %v250 = vld [vmem:[%s207 + $0xe0] sm:$0xff]
      %v251 = vld [vmem:[%s207 + $0xe8] sm:$0xff]
      %v252 = vld [vmem:[%s207 + $0xf0] sm:$0xff]
      %v253 = vld [vmem:[%s207 + $0xf8] sm:$0xff]
      %v254 = vld [vmem:[%s1] sm:$0xf]
      %v255 = vld [vmem:[%s1 + $0x4] sm:$0xf]
      %v256 = vld [vmem:[%s1 + $0x8] sm:$0xf]
      %v257 = vld [vmem:[%s1 + $0xc] sm:$0xf]
      %v258 = vld [vmem:[%s1 + $0x10] sm:$0xf]
      %v259 = vld [vmem:[%s1 + $0x14] sm:$0xf]
      %v260 = vld [vmem:[%s1 + $0x18] sm:$0xf]
      %v261 = vld [vmem:[%s1 + $0x1c] sm:$0xf]
      %v262 = vld [vmem:[%s1 + $0x20] sm:$0xf]
      %v263 = vld [vmem:[%s1 + $0x24] sm:$0xf]
      %v264 = vld [vmem:[%s1 + $0x28] sm:$0xf]
      %v265 = vld [vmem:[%s1 + $0x2c] sm:$0xf]
      %v266 = vld [vmem:[%s1 + $0x30] sm:$0xf]
      %v267 = vld [vmem:[%s1 + $0x34] sm:$0xf]
      %v268 = vld [vmem:[%s1 + $0x38] sm:$0xf]
      %v269 = vld [vmem:[%s1 + $0x3c] sm:$0xf]
      %v270 = vld [vmem:[%s1 + $0x40] sm:$0xf]
      %v271 = vld [vmem:[%s1 + $0x44] sm:$0xf]
      %v272 = vld [vmem:[%s1 + $0x48] sm:$0xf]
      %v273 = vld [vmem:[%s1 + $0x4c] sm:$0xf]
      %v274 = vld [vmem:[%s1 + $0x50] sm:$0xf]
      %v275 = vld [vmem:[%s1 + $0x54] sm:$0xf]
      %v276 = vld [vmem:[%s1 + $0x58] sm:$0xf]
      %v277 = vld [vmem:[%s1 + $0x5c] sm:$0xf]
      %v278 = vld [vmem:[%s1 + $0x60] sm:$0xf]
      %v279 = vld [vmem:[%s1 + $0x64] sm:$0xf]
      %v280 = vld [vmem:[%s1 + $0x68] sm:$0xf]
      %v281 = vld [vmem:[%s1 + $0x6c] sm:$0xf]
      %v282 = vld [vmem:[%s1 + $0x70] sm:$0xf]
      %v283 = vld [vmem:[%s1 + $0x74] sm:$0xf]
      %v284 = vld [vmem:[%s1 + $0x78] sm:$0xf]
      %v285 = vld [vmem:[%s1 + $0x7c] sm:$0xf]
      %v318 = vunpack.c.l.b16 %v222
      %v319 = vunpack.c.h.b16 %v222
      %v320 = vunpack.c.l.b16 %v223
      %v321 = vunpack.c.h.b16 %v223
      %v322 = vunpack.c.l.b16 %v224
      %v323 = vunpack.c.h.b16 %v224
      %v324 = vunpack.c.l.b16 %v225
      %v325 = vunpack.c.h.b16 %v225
      %v326 = vunpack.c.l.b16 %v226
      %v327 = vunpack.c.h.b16 %v226
      %v328 = vunpack.c.l.b16 %v227
      %v329 = vunpack.c.h.b16 %v227
      %v330 = vunpack.c.l.b16 %v228
      %v331 = vunpack.c.h.b16 %v228
      %v332 = vunpack.c.l.b16 %v229
      %v333 = vunpack.c.h.b16 %v229
      %v334 = vunpack.c.l.b16 %v230
      %v335 = vunpack.c.h.b16 %v230
      %v336 = vunpack.c.l.b16 %v231
      %v337 = vunpack.c.h.b16 %v231
      %v338 = vunpack.c.l.b16 %v232
      %v339 = vunpack.c.h.b16 %v232
      %v340 = vunpack.c.l.b16 %v233
      %v341 = vunpack.c.h.b16 %v233
      %v342 = vunpack.c.l.b16 %v234
      %v343 = vunpack.c.h.b16 %v234
      %v344 = vunpack.c.l.b16 %v235
      %v345 = vunpack.c.h.b16 %v235
      %v346 = vunpack.c.l.b16 %v236
      %v347 = vunpack.c.h.b16 %v236
      %v348 = vunpack.c.l.b16 %v237
      %v349 = vunpack.c.h.b16 %v237
      %v350 = vunpack.c.l.b16 %v238
      %v351 = vunpack.c.h.b16 %v238
      %v352 = vunpack.c.l.b16 %v239
      %v353 = vunpack.c.h.b16 %v239
      %v354 = vunpack.c.l.b16 %v240
      %v355 = vunpack.c.h.b16 %v240
      %v356 = vunpack.c.l.b16 %v241
      %v357 = vunpack.c.h.b16 %v241
      %v358 = vunpack.c.l.b16 %v242
      %v359 = vunpack.c.h.b16 %v242
      %v360 = vunpack.c.l.b16 %v243
      %v361 = vunpack.c.h.b16 %v243
      %v362 = vunpack.c.l.b16 %v244
      %v363 = vunpack.c.h.b16 %v244
      %v364 = vunpack.c.l.b16 %v245
      %v365 = vunpack.c.h.b16 %v245
      %v366 = vunpack.c.l.b16 %v246
      %v367 = vunpack.c.h.b16 %v246
      %v368 = vunpack.c.l.b16 %v247
      %v369 = vunpack.c.h.b16 %v247
      %v370 = vunpack.c.l.b16 %v248
      %v371 = vunpack.c.h.b16 %v248
      %v372 = vunpack.c.l.b16 %v249
      %v373 = vunpack.c.h.b16 %v249
      %v374 = vunpack.c.l.b16 %v250
      %v375 = vunpack.c.h.b16 %v250
      %v376 = vunpack.c.l.b16 %v251
      %v377 = vunpack.c.h.b16 %v251
      %v378 = vunpack.c.l.b16 %v252
      %v379 = vunpack.c.h.b16 %v252
      %v380 = vunpack.c.l.b16 %v253
      %v381 = vunpack.c.h.b16 %v253
      %v382 = vpack.c.b16 %v320, %v318
      %v383 = vpack.c.b16 %v321, %v319
      %v384 = vpack.c.b16 %v324, %v322
      %v385 = vpack.c.b16 %v325, %v323
      %v386 = vpack.c.b16 %v328, %v326
      %v387 = vpack.c.b16 %v329, %v327
      %v388 = vpack.c.b16 %v332, %v330
      %v389 = vpack.c.b16 %v333, %v331
      %v390 = vpack.c.b16 %v336, %v334
      %v391 = vpack.c.b16 %v337, %v335
      %v392 = vpack.c.b16 %v340, %v338
      %v393 = vpack.c.b16 %v341, %v339
      %v394 = vpack.c.b16 %v344, %v342
      %v395 = vpack.c.b16 %v345, %v343
      %v396 = vpack.c.b16 %v348, %v346
      %v397 = vpack.c.b16 %v349, %v347
      %v398 = vpack.c.b16 %v352, %v350
      %v399 = vpack.c.b16 %v353, %v351
      %v400 = vpack.c.b16 %v356, %v354
      %v401 = vpack.c.b16 %v357, %v355
      %v402 = vpack.c.b16 %v360, %v358
      %v403 = vpack.c.b16 %v361, %v359
      %v404 = vpack.c.b16 %v364, %v362
      %v405 = vpack.c.b16 %v365, %v363
      %v406 = vpack.c.b16 %v368, %v366
      %v407 = vpack.c.b16 %v369, %v367
      %v408 = vpack.c.b16 %v372, %v370
      %v409 = vpack.c.b16 %v373, %v371
      %v410 = vpack.c.b16 %v376, %v374
      %v411 = vpack.c.b16 %v377, %v375
      %v412 = vpack.c.b16 %v380, %v378
      %v413 = vpack.c.b16 %v381, %v379
      %v478 = vunpack.c.l.b16 %v254
      %v479 = vunpack.c.l.b16 %v255
      %v480 = vunpack.c.l.b16 %v256
      %v481 = vunpack.c.l.b16 %v257
      %v482 = vunpack.c.l.b16 %v258
      %v483 = vunpack.c.l.b16 %v259
      %v484 = vunpack.c.l.b16 %v260
      %v485 = vunpack.c.l.b16 %v261
      %v486 = vunpack.c.l.b16 %v262
      %v487 = vunpack.c.l.b16 %v263
      %v488 = vunpack.c.l.b16 %v264
      %v489 = vunpack.c.l.b16 %v265
      %v490 = vunpack.c.l.b16 %v266
      %v491 = vunpack.c.l.b16 %v267
      %v492 = vunpack.c.l.b16 %v268
      %v493 = vunpack.c.l.b16 %v269
      %v494 = vunpack.c.l.b16 %v270
      %v495 = vunpack.c.l.b16 %v271
      %v496 = vunpack.c.l.b16 %v272
      %v497 = vunpack.c.l.b16 %v273
      %v498 = vunpack.c.l.b16 %v274
      %v499 = vunpack.c.l.b16 %v275
      %v500 = vunpack.c.l.b16 %v276
      %v501 = vunpack.c.l.b16 %v277
      %v502 = vunpack.c.l.b16 %v278
      %v503 = vunpack.c.l.b16 %v279
      %v504 = vunpack.c.l.b16 %v280
      %v505 = vunpack.c.l.b16 %v281
      %v506 = vunpack.c.l.b16 %v282
      %v507 = vunpack.c.l.b16 %v283
      %v508 = vunpack.c.l.b16 %v284
      %v509 = vunpack.c.l.b16 %v285
      %v510 = vpack.c.b16 %v479, %v478
      %v511 = vpack.c.b16 %v481, %v480
      %v512 = vpack.c.b16 %v483, %v482
      %v513 = vpack.c.b16 %v485, %v484
      %v514 = vpack.c.b16 %v487, %v486
      %v515 = vpack.c.b16 %v489, %v488
      %v516 = vpack.c.b16 %v491, %v490
      %v517 = vpack.c.b16 %v493, %v492
      %v518 = vpack.c.b16 %v495, %v494
      %v519 = vpack.c.b16 %v497, %v496
      %v520 = vpack.c.b16 %v499, %v498
      %v521 = vpack.c.b16 %v501, %v500
      %v522 = vpack.c.b16 %v503, %v502
      %v523 = vpack.c.b16 %v505, %v504
      %v524 = vpack.c.b16 %v507, %v506
      %v525 = vpack.c.b16 %v509, %v508
      %542 = vmatprep.subr.bf16.mxu0 0
      %543 = vmatpush1.bf16.msra.mxu0 %v510
      %544 = vmatprep.subr.bf16.mxu0 0
      %545 = vmatpush1.bf16.msra.mxu0 %v511
      %546 = vmatprep.subr.bf16.mxu0 0
      %547 = vmatpush1.bf16.msra.mxu0 %v512
      %548 = vmatprep.subr.bf16.mxu0 0
      %549 = vmatpush1.bf16.msra.mxu0 %v513
      %550 = vmatprep.subr.bf16.mxu0 0
      %551 = vmatpush1.bf16.msra.mxu0 %v514
      %552 = vmatprep.subr.bf16.mxu0 0
      %553 = vmatpush1.bf16.msra.mxu0 %v515
      %554 = vmatprep.subr.bf16.mxu0 0
      %555 = vmatpush1.bf16.msra.mxu0 %v516
      %556 = vmatprep.subr.bf16.mxu0 0
      %557 = vmatpush1.bf16.msra.mxu0 %v517
      %558 = vmatprep.subr.bf16.mxu0 0
      %559 = vmatpush1.bf16.msra.mxu0 %v518
      %560 = vmatprep.subr.bf16.mxu0 0
      %561 = vmatpush1.bf16.msra.mxu0 %v519
      %562 = vmatprep.subr.bf16.mxu0 0
      %563 = vmatpush1.bf16.msra.mxu0 %v520
      %564 = vmatprep.subr.bf16.mxu0 0
      %565 = vmatpush1.bf16.msra.mxu0 %v521
      %566 = vmatprep.subr.bf16.mxu0 0
      %567 = vmatpush1.bf16.msra.mxu0 %v522
      %568 = vmatprep.subr.bf16.mxu0 0
      %569 = vmatpush1.bf16.msra.mxu0 %v523
      %570 = vmatprep.subr.bf16.mxu0 0
      %571 = vmatpush1.bf16.msra.mxu0 %v524
      %572 = vmatprep.subr.bf16.mxu0 0
      %573 = vmatpush1.bf16.msra.mxu0 %v525
      %574 = vmatprep.mubr.bf16.mxu0 %v383
      %575 = vmatmul.mubr.bf16.gmra.mrb[0].mxu0 %v382
      %v576 = vpop.f32.mrb[0].mxu0
      %v577 = vadd.f32 0.0, %v576
      %v578 = vpop.f32.mrb[0].mxu0
      %v579 = vpop.f32.mrb[0].mxu0
      %v580 = vadd.f32 0.0, %v579
      %v581 = vpop.f32.mrb[0].mxu0
      %582 = vmatprep.mubr.bf16.mxu0 %v385
      %583 = vmatmul.mubr.bf16.gmra.mrb[0].mxu0 %v384
      %v584 = vpop.f32.mrb[0].mxu0
      %v585 = vadd.f32 0.0, %v584
      %v586 = vpop.f32.mrb[0].mxu0
      %v587 = vpop.f32.mrb[0].mxu0
      %v588 = vadd.f32 0.0, %v587
      %v589 = vpop.f32.mrb[0].mxu0
      %590 = vmatprep.mubr.bf16.mxu0 %v387
      %591 = vmatmul.mubr.bf16.gmra.mrb[0].mxu0 %v386
      %v592 = vpop.f32.mrb[0].mxu0
      %v593 = vadd.f32 0.0, %v592
      %v594 = vpop.f32.mrb[0].mxu0
      %v595 = vpop.f32.mrb[0].mxu0
      %v596 = vadd.f32 0.0, %v595
      %v597 = vpop.f32.mrb[0].mxu0
      %598 = vmatprep.mubr.bf16.mxu0 %v389
      %599 = vmatmul.mubr.bf16.gmra.mrb[0].mxu0 %v388
      %v600 = vpop.f32.mrb[0].mxu0
      %v601 = vadd.f32 0.0, %v600
      %v602 = vpop.f32.mrb[0].mxu0
      %v603 = vpop.f32.mrb[0].mxu0
      %v604 = vadd.f32 0.0, %v603
      %v605 = vpop.f32.mrb[0].mxu0
      %606 = vmatprep.mubr.bf16.mxu0 %v391
      %607 = vmatmul.mubr.bf16.gmra.mrb[0].mxu0 %v390
      %v608 = vpop.f32.mrb[0].mxu0
      %v609 = vadd.f32 0.0, %v608
      %v610 = vpop.f32.mrb[0].mxu0
      %v611 = vpop.f32.mrb[0].mxu0
      %v612 = vadd.f32 0.0, %v611
      %v613 = vpop.f32.mrb[0].mxu0
      %614 = vmatprep.mubr.bf16.mxu0 %v393
      %615 = vmatmul.mubr.bf16.gmra.mrb[0].mxu0 %v392
      %v616 = vpop.f32.mrb[0].mxu0
      %v617 = vadd.f32 0.0, %v616
      %v618 = vpop.f32.mrb[0].mxu0
      %v619 = vpop.f32.mrb[0].mxu0
      %v620 = vadd.f32 0.0, %v619
      %v621 = vpop.f32.mrb[0].mxu0
      %622 = vmatprep.mubr.bf16.mxu0 %v395
      %623 = vmatmul.mubr.bf16.gmra.mrb[0].mxu0 %v394
      %v624 = vpop.f32.mrb[0].mxu0
      %v625 = vadd.f32 0.0, %v624
      %v626 = vpop.f32.mrb[0].mxu0
      %v627 = vpop.f32.mrb[0].mxu0
      %v628 = vadd.f32 0.0, %v627
      %v629 = vpop.f32.mrb[0].mxu0
      %630 = vmatprep.mubr.bf16.mxu0 %v397
      %631 = vmatmul.mubr.bf16.gmra.mrb[0].mxu0 %v396
      %v632 = vpop.f32.mrb[0].mxu0
      %v633 = vadd.f32 0.0, %v632
      %v634 = vpop.f32.mrb[0].mxu0
      %v635 = vpop.f32.mrb[0].mxu0
      %v636 = vadd.f32 0.0, %v635
      %v637 = vpop.f32.mrb[0].mxu0
      %638 = vmatprep.mubr.bf16.mxu0 %v399
      %639 = vmatmul.mubr.bf16.gmra.mrb[0].mxu0 %v398
      %v640 = vpop.f32.mrb[0].mxu0
      %v641 = vadd.f32 0.0, %v640
      %v642 = vpop.f32.mrb[0].mxu0
      %v643 = vpop.f32.mrb[0].mxu0
      %v644 = vadd.f32 0.0, %v643
      %v645 = vpop.f32.mrb[0].mxu0
      %646 = vmatprep.mubr.bf16.mxu0 %v401
      %647 = vmatmul.mubr.bf16.gmra.mrb[0].mxu0 %v400
      %v648 = vpop.f32.mrb[0].mxu0
      %v649 = vadd.f32 0.0, %v648
      %v650 = vpop.f32.mrb[0].mxu0
      %v651 = vpop.f32.mrb[0].mxu0
      %v652 = vadd.f32 0.0, %v651
      %v653 = vpop.f32.mrb[0].mxu0
      %654 = vmatprep.mubr.bf16.mxu0 %v403
      %655 = vmatmul.mubr.bf16.gmra.mrb[0].mxu0 %v402
      %v656 = vpop.f32.mrb[0].mxu0
      %v657 = vadd.f32 0.0, %v656
      %v658 = vpop.f32.mrb[0].mxu0
      %v659 = vpop.f32.mrb[0].mxu0
      %v660 = vadd.f32 0.0, %v659
      %v661 = vpop.f32.mrb[0].mxu0
      %662 = vmatprep.mubr.bf16.mxu0 %v405
      %663 = vmatmul.mubr.bf16.gmra.mrb[0].mxu0 %v404
      %v664 = vpop.f32.mrb[0].mxu0
      %v665 = vadd.f32 0.0, %v664
      %v666 = vpop.f32.mrb[0].mxu0
      %v667 = vpop.f32.mrb[0].mxu0
      %v668 = vadd.f32 0.0, %v667
      %v669 = vpop.f32.mrb[0].mxu0
      %670 = vmatprep.mubr.bf16.mxu0 %v407
      %671 = vmatmul.mubr.bf16.gmra.mrb[0].mxu0 %v406
      %v672 = vpop.f32.mrb[0].mxu0
      %v673 = vadd.f32 0.0, %v672
      %v674 = vpop.f32.mrb[0].mxu0
      %v675 = vpop.f32.mrb[0].mxu0
      %v676 = vadd.f32 0.0, %v675
      %v677 = vpop.f32.mrb[0].mxu0
      %678 = vmatprep.mubr.bf16.mxu0 %v409
      %679 = vmatmul.mubr.bf16.gmra.mrb[0].mxu0 %v408
      %v680 = vpop.f32.mrb[0].mxu0
      %v681 = vadd.f32 0.0, %v680
      %v682 = vpop.f32.mrb[0].mxu0
      %v683 = vpop.f32.mrb[0].mxu0
      %v684 = vadd.f32 0.0, %v683
      %v685 = vpop.f32.mrb[0].mxu0
      %686 = vmatprep.mubr.bf16.mxu0 %v411
      %687 = vmatmul.mubr.bf16.gmra.mrb[0].mxu0 %v410
      %v688 = vpop.f32.mrb[0].mxu0
      %v689 = vadd.f32 0.0, %v688
      %v690 = vpop.f32.mrb[0].mxu0
      %v691 = vpop.f32.mrb[0].mxu0
      %v692 = vadd.f32 0.0, %v691
      %v693 = vpop.f32.mrb[0].mxu0
      %694 = vmatprep.mubr.bf16.mxu0 %v413
      %695 = vmatmul.mubr.bf16.gmra.mrb[0].mxu0 %v412
      %v696 = vpop.f32.mrb[0].mxu0
      %v697 = vadd.f32 0.0, %v696
      %v698 = vpop.f32.mrb[0].mxu0
      %v699 = vpop.f32.mrb[0].mxu0
      %v700 = vadd.f32 0.0, %v699
      %v701 = vpop.f32.mrb[0].mxu0
      %702 = vdwg.mxu0
      %vm703 = vcmask 64512
      %704 = vst.msk [vmem:[%s213] sm:$0xff] %vm703, %v577
      %705 = vst.msk [vmem:[%s213 + $0x8] sm:$0xff] %vm703, %v580
      %706 = vst.msk [vmem:[%s213 + $0x10] sm:$0xff] %vm703, %v585
      %707 = vst.msk [vmem:[%s213 + $0x18] sm:$0xff] %vm703, %v588
      %708 = vst.msk [vmem:[%s213 + $0x20] sm:$0xff] %vm703, %v593
      %709 = vst.msk [vmem:[%s213 + $0x28] sm:$0xff] %vm703, %v596
      %710 = vst.msk [vmem:[%s213 + $0x30] sm:$0xff] %vm703, %v601
      %711 = vst.msk [vmem:[%s213 + $0x38] sm:$0xff] %vm703, %v604
      %712 = vst.msk [vmem:[%s213 + $0x40] sm:$0xff] %vm703, %v609
      %713 = vst.msk [vmem:[%s213 + $0x48] sm:$0xff] %vm703, %v612
      %714 = vst.msk [vmem:[%s213 + $0x50] sm:$0xff] %vm703, %v617
      %715 = vst.msk [vmem:[%s213 + $0x58] sm:$0xff] %vm703, %v620
      %716 = vst.msk [vmem:[%s213 + $0x60] sm:$0xff] %vm703, %v625
      %717 = vst.msk [vmem:[%s213 + $0x68] sm:$0xff] %vm703, %v628
      %718 = vst.msk [vmem:[%s213 + $0x70] sm:$0xff] %vm703, %v633
      %719 = vst.msk [vmem:[%s213 + $0x78] sm:$0xff] %vm703, %v636
      %720 = vst.msk [vmem:[%s213 + $0x80] sm:$0xff] %vm703, %v641
      %721 = vst.msk [vmem:[%s213 + $0x88] sm:$0xff] %vm703, %v644
      %722 = vst.msk [vmem:[%s213 + $0x90] sm:$0xff] %vm703, %v649
      %723 = vst.msk [vmem:[%s213 + $0x98] sm:$0xff] %vm703, %v652
      %724 = vst.msk [vmem:[%s213 + $0xa0] sm:$0xff] %vm703, %v657
      %725 = vst.msk [vmem:[%s213 + $0xa8] sm:$0xff] %vm703, %v660
      %726 = vst.msk [vmem:[%s213 + $0xb0] sm:$0xff] %vm703, %v665
      %727 = vst.msk [vmem:[%s213 + $0xb8] sm:$0xff] %vm703, %v668
      %728 = vst.msk [vmem:[%s213 + $0xc0] sm:$0xff] %vm703, %v673
      %729 = vst.msk [vmem:[%s213 + $0xc8] sm:$0xff] %vm703, %v676
      %730 = vst.msk [vmem:[%s213 + $0xd0] sm:$0xff] %vm703, %v681
      %731 = vst.msk [vmem:[%s213 + $0xd8] sm:$0xff] %vm703, %v684
      %732 = vst.msk [vmem:[%s213 + $0xe0] sm:$0xff] %vm703, %v689
      %733 = vst.msk [vmem:[%s213 + $0xe8] sm:$0xff] %vm703, %v692
      %734 = vst.msk [vmem:[%s213 + $0xf0] sm:$0xff] %vm703, %v697
      %735 = vst.msk [vmem:[%s213 + $0xf8] sm:$0xff] %vm703, %v700
      %v736 = vsel %vm703, %v577, 0.0
      %v737 = vsel %vm703, %v580, 0.0
      %v738 = vadd.f32 %v736, %v737
      %v739 = vsel %vm703, %v585, 0.0
      %v740 = vadd.f32 %v738, %v739
      %v741 = vsel %vm703, %v588, 0.0
      %v742 = vadd.f32 %v740, %v741
      %v743 = vsel %vm703, %v593, 0.0
      %v744 = vadd.f32 %v742, %v743
      %v745 = vsel %vm703, %v596, 0.0
      %v746 = vadd.f32 %v744, %v745
      %v747 = vsel %vm703, %v601, 0.0
      %v748 = vadd.f32 %v746, %v747
      %v749 = vsel %vm703, %v604, 0.0
      %v750 = vadd.f32 %v748, %v749
      %v751 = vsel %vm703, %v609, 0.0
      %v752 = vadd.f32 %v750, %v751
      %v753 = vsel %vm703, %v612, 0.0
      %v754 = vadd.f32 %v752, %v753
      %v755 = vsel %vm703, %v617, 0.0
      %v756 = vadd.f32 %v754, %v755
      %v757 = vsel %vm703, %v620, 0.0
      %v758 = vadd.f32 %v756, %v757
      %v759 = vsel %vm703, %v625, 0.0
      %v760 = vadd.f32 %v758, %v759
      %v761 = vsel %vm703, %v628, 0.0
      %v762 = vadd.f32 %v760, %v761
      %v763 = vsel %vm703, %v633, 0.0
      %v764 = vadd.f32 %v762, %v763
      %v765 = vsel %vm703, %v636, 0.0
      %v766 = vadd.f32 %v764, %v765
      %v767 = vsel %vm703, %v641, 0.0
      %v768 = vadd.f32 %v766, %v767
      %v769 = vsel %vm703, %v644, 0.0
      %v770 = vadd.f32 %v768, %v769
      %v771 = vsel %vm703, %v649, 0.0
      %v772 = vadd.f32 %v770, %v771
      %v773 = vsel %vm703, %v652, 0.0
      %v774 = vadd.f32 %v772, %v773
      %v775 = vsel %vm703, %v657, 0.0
      %v776 = vadd.f32 %v774, %v775
      %v777 = vsel %vm703, %v660, 0.0
      %v778 = vadd.f32 %v776, %v777
      %v779 = vsel %vm703, %v665, 0.0
      %v780 = vadd.f32 %v778, %v779
      %v781 = vsel %vm703, %v668, 0.0
      %v782 = vadd.f32 %v780, %v781
      %v783 = vsel %vm703, %v673, 0.0
      %v784 = vadd.f32 %v782, %v783
      %v785 = vsel %vm703, %v676, 0.0
      %v786 = vadd.f32 %v784, %v785
      %v787 = vsel %vm703, %v681, 0.0
      %v788 = vadd.f32 %v786, %v787
      %v789 = vsel %vm703, %v684, 0.0
      %v790 = vadd.f32 %v788, %v789
      %v791 = vsel %vm703, %v689, 0.0
      %v792 = vadd.f32 %v790, %v791
      %v793 = vsel %vm703, %v692, 0.0
      %v794 = vadd.f32 %v792, %v793
      %v795 = vsel %vm703, %v697, 0.0
      %v796 = vadd.f32 %v794, %v795
      %v797 = vsel %vm703, %v700, 0.0
      %v798 = vadd.f32 %v796, %v797
      %v799 = vrot.slane %v798, 4
      %v800 = vadd.f32 %v798, %v799
      %v801 = vrot.slane %v800, 2
      %v802 = vadd.f32 %v800, %v801
      %v803 = vrot.slane %v802, 1
      %v804 = vadd.f32 %v802, %v803
      %vm805 = vcmask 57344
      %806 = vst.msk [vmem:[%s217] sm:$0x1] %vm805, %v804
      %v807 = vmul.f32 %v577, %v577
      %v808 = vmul.f32 %v580, %v580
      %v809 = vmul.f32 %v585, %v585
      %v810 = vmul.f32 %v588, %v588
      %v811 = vmul.f32 %v593, %v593
      %v812 = vmul.f32 %v596, %v596
      %v813 = vmul.f32 %v601, %v601
      %v814 = vmul.f32 %v604, %v604
      %v815 = vmul.f32 %v609, %v609
      %v816 = vmul.f32 %v612, %v612
      %v817 = vmul.f32 %v617, %v617
      %v818 = vmul.f32 %v620, %v620
      %v819 = vmul.f32 %v625, %v625
      %v820 = vmul.f32 %v628, %v628
      %v821 = vmul.f32 %v633, %v633
      %v822 = vmul.f32 %v636, %v636
      %v823 = vmul.f32 %v641, %v641
      %v824 = vmul.f32 %v644, %v644
      %v825 = vmul.f32 %v649, %v649
      %v826 = vmul.f32 %v652, %v652
      %v827 = vmul.f32 %v657, %v657
      %v828 = vmul.f32 %v660, %v660
      %v829 = vmul.f32 %v665, %v665
      %v830 = vmul.f32 %v668, %v668
      %v831 = vmul.f32 %v673, %v673
      %v832 = vmul.f32 %v676, %v676
      %v833 = vmul.f32 %v681, %v681
      %v834 = vmul.f32 %v684, %v684
      %v835 = vmul.f32 %v689, %v689
      %v836 = vmul.f32 %v692, %v692
      %v837 = vmul.f32 %v697, %v697
      %v838 = vmul.f32 %v700, %v700
      %v839 = vsel %vm703, %v807, 0.0
      %v840 = vsel %vm703, %v808, 0.0
      %v841 = vadd.f32 %v839, %v840
      %v842 = vsel %vm703, %v809, 0.0
      %v843 = vadd.f32 %v841, %v842
      %v844 = vsel %vm703, %v810, 0.0
      %v845 = vadd.f32 %v843, %v844
      %v846 = vsel %vm703, %v811, 0.0
      %v847 = vadd.f32 %v845, %v846
      %v848 = vsel %vm703, %v812, 0.0
      %v849 = vadd.f32 %v847, %v848
      %v850 = vsel %vm703, %v813, 0.0
      %v851 = vadd.f32 %v849, %v850
      %v852 = vsel %vm703, %v814, 0.0
      %v853 = vadd.f32 %v851, %v852
      %v854 = vsel %vm703, %v815, 0.0
      %v855 = vadd.f32 %v853, %v854
      %v856 = vsel %vm703, %v816, 0.0
      %v857 = vadd.f32 %v855, %v856
      %v858 = vsel %vm703, %v817, 0.0
      %v859 = vadd.f32 %v857, %v858
      %v860 = vsel %vm703, %v818, 0.0
      %v861 = vadd.f32 %v859, %v860
      %v862 = vsel %vm703, %v819, 0.0
      %v863 = vadd.f32 %v861, %v862
      %v864 = vsel %vm703, %v820, 0.0
      %v865 = vadd.f32 %v863, %v864
      %v866 = vsel %vm703, %v821, 0.0
      %v867 = vadd.f32 %v865, %v866
      %v868 = vsel %vm703, %v822, 0.0
      %v869 = vadd.f32 %v867, %v868
      %v870 = vsel %vm703, %v823, 0.0
      %v871 = vadd.f32 %v869, %v870
      %v872 = vsel %vm703, %v824, 0.0
      %v873 = vadd.f32 %v871, %v872
      %v874 = vsel %vm703, %v825, 0.0
      %v875 = vadd.f32 %v873, %v874
      %v876 = vsel %vm703, %v826, 0.0
      %v877 = vadd.f32 %v875, %v876
      %v878 = vsel %vm703, %v827, 0.0
      %v879 = vadd.f32 %v877, %v878
      %v880 = vsel %vm703, %v828, 0.0
      %v881 = vadd.f32 %v879, %v880
      %v882 = vsel %vm703, %v829, 0.0
      %v883 = vadd.f32 %v881, %v882
      %v884 = vsel %vm703, %v830, 0.0
      %v885 = vadd.f32 %v883, %v884
      %v886 = vsel %vm703, %v831, 0.0
      %v887 = vadd.f32 %v885, %v886
      %v888 = vsel %vm703, %v832, 0.0
      %v889 = vadd.f32 %v887, %v888
      %v890 = vsel %vm703, %v833, 0.0
      %v891 = vadd.f32 %v889, %v890
      %v892 = vsel %vm703, %v834, 0.0
      %v893 = vadd.f32 %v891, %v892
      %v894 = vsel %vm703, %v835, 0.0
      %v895 = vadd.f32 %v893, %v894
      %v896 = vsel %vm703, %v836, 0.0
      %v897 = vadd.f32 %v895, %v896
      %v898 = vsel %vm703, %v837, 0.0
      %v899 = vadd.f32 %v897, %v898
      %v900 = vsel %vm703, %v838, 0.0
      %v901 = vadd.f32 %v899, %v900
      %v902 = vrot.slane %v901, 4
      %v903 = vadd.f32 %v901, %v902
      %v904 = vrot.slane %v903, 2
      %v905 = vadd.f32 %v903, %v904
      %v906 = vrot.slane %v905, 1
      %v907 = vadd.f32 %v905, %v906
      %908 = vst.msk [vmem:[%s220] sm:$0x1] %vm805, %v907
      %s909 = smul.u32 32, %s16
      %p910 = scmp.lt.s32.totalorder %s909, 255
      %s911 = scalar_select %p910, %s909, 255
      %s912 = smul.addr %s911, 8
      %s913 = scalar_lea.vmem %s2, %s912
      %p914 = scmp.lt.s32.totalorder %s16, 7
      %s915 = scalar_select %p914, %s16, 7
      %s916 = scalar_lea.vmem %s3, %s915
      %p917 = scmp.lt.s32.totalorder %s16, 7
      %s918 = scalar_select %p917, %s16, 7
      %s919 = scalar_lea.vmem %s4, %s918
      // Predicated region
      $region29: #{a_call__.15} parent=27 // pred_check
        %p920 = pneg %p81
      $region30: #{a_call__.15} parent=27 // pred_check_branch
        %922 = sbr.rel (%p920) target = $region32
      $region31: #{a_call__.15} parent=27 // pred_region
        %s923 = smul.u32 32, %s16
      $region32: #{a_call__.15} parent=27 // pred_fallthru
        _
      // Predicated region
      $region33: #{a_call__.15} parent=27 // pred_check
        %p924 = pneg %p107
      $region34: #{a_call__.15} parent=27 // pred_check_branch
        %926 = sbr.rel (%p924) target = $region36
      $region35: #{a_call__.15} parent=27 // pred_region
        _
      $region36: #{a_call__.15} parent=27 // pred_fallthru
        _
      // Predicated region
      $region37: #{a_call__.15} parent=27 // pred_check
        %p927 = pneg %p133
      $region38: #{a_call__.15} parent=27 // pred_check_branch
        %929 = sbr.rel (%p927) target = $region40
      $region39: #{a_call__.15} parent=27 // pred_region
        _
      $region40: #{a_call__.15} parent=27 // pred_fallthru
        _
    $region28: #{a_call__.15} parent=5 // pred_fallthru
      _
    %p930 = scmp.le.s32.totalorder 2, %s11
    // Predicated region
    $region41: #{a_call__.15} parent=5 // pred_check
      %p931 = pneg %p930
    $region42: #{a_call__.15} parent=5 // pred_check_branch
      %933 = sbr.rel (%p931) target = $region44
    $region43: #{a_call__.15} parent=5 // pred_region
      %s934 = ssub.s32 %s11, 2
      // Predicated region
      $region45: #{a_call__.15} parent=43 // pred_check
        %p935 = pneg %p87
      $region46: #{a_call__.15} parent=43 // pred_check_branch
        %937 = sbr.rel (%p935) target = $region48
      $region47: #{a_call__.15} parent=43 // pred_region
        %s938 = smul.u32 32, %s17
        %p939 = scmp.lt.s32.totalorder %s938, 255
        %s940 = scalar_select %p939, %s938, 255
        %s941 = smul.addr %s940, 8
        %s942 = scalar_lea.vmem %s2, %s941
      $region48: #{a_call__.15} parent=43 // pred_fallthru
        _
      // Predicated region
      $region49: #{a_call__.15} parent=43 // pred_check
        %p943 = pneg %p113
      $region50: #{a_call__.15} parent=43 // pred_check_branch
        %945 = sbr.rel (%p943) target = $region52
      $region51: #{a_call__.15} parent=43 // pred_region
        %p946 = scmp.lt.s32.totalorder %s17, 7
        %s947 = scalar_select %p946, %s17, 7
        %s948 = scalar_lea.vmem %s3, %s947
      $region52: #{a_call__.15} parent=43 // pred_fallthru
        _
      // Predicated region
      $region53: #{a_call__.15} parent=43 // pred_check
        %p949 = pneg %p139
      $region54: #{a_call__.15} parent=43 // pred_check_branch
        %951 = sbr.rel (%p949) target = $region56
      $region55: #{a_call__.15} parent=43 // pred_region
        %p952 = scmp.lt.s32.totalorder %s17, 7
        %s953 = scalar_select %p952, %s17, 7
        %s954 = scalar_lea.vmem %s4, %s953
      $region56: #{a_call__.15} parent=43 // pred_fallthru
        _
    $region44: #{a_call__.15} parent=5 // pred_fallthru
      _
  $region6: #{a_call__.15} parent=0 // loop_footer
    %s15 = sadd.s32 1, %s11
  $region7: #{a_call__.15} parent=0 // loop_footer_branch
    %10 = sbr.rel target = $region3
  $region8: #{a_call__.15} parent=0 // loop_exit
    _

// kernel: a_call__.16
$region0: #{a_call__.16}
  #allocation0 [shape = 'u32[]', space=smem, size = 0x4, offset = 0x4, fixed_abs, tag = 'smem constant byte address 0x4 - core index']
  #allocation1 [shape = 'u32[144,128]{1,0:T(1,128)}', space=vmem, size = 0x12000, scoped, tag = 'internal scratch']
  %s0 = inlined_call_operand.vmem [shape: f32[2048,8], index: 0, kind: input, shape index: {}]
  %s1 = inlined_call_operand.vmem [shape: f32[1,8], index: 1, kind: input, shape index: {}]
  %s2 = inlined_call_operand.vmem [shape: f32[1,8], index: 2, kind: input, shape index: {}]
  %s3 = inlined_call_operand.vmem [shape: bf16[2048,8], index: 3, kind: output, shape index: {}]
  %s4 = sld [smem:[#allocation0]]
  $region45: #{a_call__.16} parent=0
    _
  %s6 = ssub.s32 1, %s4
  %s7 = scalar_select 0, %s6, %s4
  loop: start=0, step=1, limit=4
  $region2: #{a_call__.16} parent=0 // loop_pre_header
    _
  $region3: #{a_call__.16} parent=0 // loop_header
    %s9 = sphi 0, %s13
    %p10 = scmp.ge.s32.totalorder %s9, 4
    %s19 = sphi 0, %s21
    %s22 = sphi 0, %s19
    %s23 = sphi 0, %s22
    %s39 = sphi 0, %s23
    %s43 = sphi 0, %s43
    %s45 = sphi 0, %s43
    %s46 = sphi 0, %s45
    %s60 = sphi 0, %s46
    %s64 = sphi 0, %s64
    %s66 = sphi 0, %s64
    %s67 = sphi 0, %s66
    %s81 = sphi 0, %s67
    %s87 = sphi 0, %s89
    %s90 = sphi 0, %s87
    %s91 = sphi 0, %s90
    %s107 = sphi 0, %s91
  $region4: #{a_call__.16} parent=0 // loop_header_branch
    %12 = sbr.rel (%p10) target = $region8
  $region5: #{a_call__.16} parent=0 // loop_body
    %s14 = ssub.s32 %s9, 1
    %s15 = ssub.s32 %s9, 2
    %s16 = sadd.s32 %s9, 1
    %s17 = ssub.s32 %s9, %s16
    %p18 = scmp.eq.s32.totalorder %s17, 0
    %s20 = sadd.s32 %s19, 1
    %s21 = scalar_select %p18, %s19, %s20
    %p24 = pneg %p18
    %p25 = scmp.eq.s32.totalorder %s9, 1
    %p26 = por %p24, %p25
    %p27 = scmp.ne.s32.totalorder %s19, %s22
    %p28 = scmp.eq.s32.totalorder %s9, 0
    %p29 = por %p27, %p28
    %p30 = scmp.ne.s32.totalorder %s19, %s22
    %p31 = scmp.eq.s32.totalorder %s14, 1
    %p32 = por %p30, %p31
    %p33 = scmp.ne.s32.totalorder %s22, %s23
    %p34 = scmp.eq.s32.totalorder %s14, 0
    %p35 = por %p33, %p34
    %p36 = scmp.ne.s32.totalorder %s22, %s23
    %p37 = scmp.eq.s32.totalorder %s15, 1
    %p38 = por %p36, %p37
    %p40 = scmp.ne.s32.totalorder %s23, %s39
    %p41 = scmp.eq.s32.totalorder %s15, 0
    %p42 = por %p40, %p41
    %s44 = sadd.s32 %s43, 1
    %p47 = scmp.eq.s32.totalorder %s9, 1
    %p48 = scmp.ne.s32.totalorder %s43, %s45
    %p49 = scmp.eq.s32.totalorder %s9, 0
    %p50 = por %p48, %p49
    %p51 = scmp.ne.s32.totalorder %s43, %s45
    %p52 = scmp.eq.s32.totalorder %s14, 1
    %p53 = por %p51, %p52
    %p54 = scmp.ne.s32.totalorder %s45, %s46
    %p55 = scmp.eq.s32.totalorder %s14, 0
    %p56 = por %p54, %p55
    %p57 = scmp.ne.s32.totalorder %s45, %s46
    %p58 = scmp.eq.s32.totalorder %s15, 1
    %p59 = por %p57, %p58
    %p61 = scmp.ne.s32.totalorder %s46, %s60
    %p62 = scmp.eq.s32.totalorder %s15, 0
    %p63 = por %p61, %p62
    %s65 = sadd.s32 %s64, 1
    %p68 = scmp.eq.s32.totalorder %s9, 1
    %p69 = scmp.ne.s32.totalorder %s64, %s66
    %p70 = scmp.eq.s32.totalorder %s9, 0
    %p71 = por %p69, %p70
    %p72 = scmp.ne.s32.totalorder %s64, %s66
    %p73 = scmp.eq.s32.totalorder %s14, 1
    %p74 = por %p72, %p73
    %p75 = scmp.ne.s32.totalorder %s66, %s67
    %p76 = scmp.eq.s32.totalorder %s14, 0
    %p77 = por %p75, %p76
    %p78 = scmp.ne.s32.totalorder %s66, %s67
    %p79 = scmp.eq.s32.totalorder %s15, 1
    %p80 = por %p78, %p79
    %p82 = scmp.ne.s32.totalorder %s67, %s81
    %p83 = scmp.eq.s32.totalorder %s15, 0
    %p84 = por %p82, %p83
    %s85 = ssub.s32 %s9, %s16
    %p86 = scmp.eq.s32.totalorder %s85, 0
    %s88 = sadd.s32 %s87, 1
    %s89 = scalar_select %p86, %s87, %s88
    %p92 = pneg %p86
    %p93 = scmp.eq.s32.totalorder %s9, 1
    %p94 = por %p92, %p93
    %p95 = scmp.ne.s32.totalorder %s87, %s90
    %p96 = scmp.eq.s32.totalorder %s9, 0
    %p97 = por %p95, %p96
    %p98 = scmp.ne.s32.totalorder %s87, %s90
    %p99 = scmp.eq.s32.totalorder %s14, 1
    %p100 = por %p98, %p99
    %p101 = scmp.ne.s32.totalorder %s90, %s91
    %p102 = scmp.eq.s32.totalorder %s14, 0
    %p103 = por %p101, %p102
    %p104 = scmp.ne.s32.totalorder %s90, %s91
    %p105 = scmp.eq.s32.totalorder %s15, 1
    %p106 = por %p104, %p105
    %p108 = scmp.ne.s32.totalorder %s91, %s107
    %p109 = scmp.eq.s32.totalorder %s15, 0
    %p110 = por %p108, %p109
    %p111 = scmp.le.s32.totalorder 1, %s9
    %p112 = scmp.lt.s32.totalorder %s9, 3
    %p113 = pnand %p111, %p112
    %p114 = pneg %p113
    // Predicated region
    $region9: #{a_call__.16} parent=5 // pred_check
      _
    $region10: #{a_call__.16} parent=5 // pred_check_branch
      %116 = sbr.rel (%p113) target = $region12
    $region11: #{a_call__.16} parent=5 // pred_region
      %s117 = ssub.s32 %s9, 1
      // Predicated region
      $region13: #{a_call__.16} parent=11 // pred_check
        %p118 = pneg %p56
      $region14: #{a_call__.16} parent=11 // pred_check_branch
        %120 = sbr.rel (%p118) target = $region16
      $region15: #{a_call__.16} parent=11 // pred_region
        _
      $region16: #{a_call__.16} parent=11 // pred_fallthru
        _
      // Predicated region
      $region17: #{a_call__.16} parent=11 // pred_check
        %p121 = pneg %p77
      $region18: #{a_call__.16} parent=11 // pred_check_branch
        %123 = sbr.rel (%p121) target = $region20
      $region19: #{a_call__.16} parent=11 // pred_region
        _
      $region20: #{a_call__.16} parent=11 // pred_fallthru
        _
    $region12: #{a_call__.16} parent=5 // pred_fallthru
      _
    %p124 = scmp.lt.s32.totalorder %s9, 2
    // Predicated region
    $region21: #{a_call__.16} parent=5 // pred_check
      %p125 = pneg %p124
    $region22: #{a_call__.16} parent=5 // pred_check_branch
      %127 = sbr.rel (%p125) target = $region24
    $region23: #{a_call__.16} parent=5 // pred_region
      // Predicated region
      $region25: #{a_call__.16} parent=23 // pred_check
        %p128 = pneg %p29
      $region26: #{a_call__.16} parent=23 // pred_check_branch
        %130 = sbr.rel (%p128) target = $region28
      $region27: #{a_call__.16} parent=23 // pred_region
        %s131 = smul.u32 128, %s9
        %p132 = scmp.lt.s32.totalorder %s131, 255
        %s133 = scalar_select %p132, %s131, 255
        %s134 = smul.addr %s133, 8
        %s135 = scalar_lea.vmem %s0, %s134
        %s136 = smul.u32 128, %s9
      $region28: #{a_call__.16} parent=23 // pred_fallthru
        _
    $region24: #{a_call__.16} parent=5 // pred_fallthru
      _
    %p137 = scmp.le.s32.totalorder 1, %s9
    %p138 = scmp.lt.s32.totalorder %s9, 3
    %p139 = pnand %p137, %p138
    %p140 = pneg %p139
    // Predicated region
    $region29: #{a_call__.16} parent=5 // pred_check
      _
    $region30: #{a_call__.16} parent=5 // pred_check_branch
      %142 = sbr.rel (%p139) target = $region32
    $region31: #{a_call__.16} parent=5 // pred_region
      %s143 = ssub.s32 %s9, 1
      %s144 = smul.u32 128, %s14
      %p145 = scmp.lt.s32.totalorder %s144, 255
      %s146 = scalar_select %p145, %s144, 255
      %s147 = smul.addr %s146, 8
      %s148 = scalar_lea.vmem %s0, %s147
      %p149 = pneg %p35
      %p150 = pneg %p32
      %p151 = pneg %p56
      %p152 = pneg %p53
      %p153 = pneg %p77
      %p154 = pneg %p74
      %p155 = pneg %p103
      %p156 = pneg %p100
      %s157 = smul.u32 128, %s14
      %p158 = scmp.lt.s32.totalorder %s157, 255
      %s159 = scalar_select %p158, %s157, 255
      %s160 = smul.addr %s159, 4
      %s161 = scalar_lea.vmem %s3, %s160
      %s162 = smul.u32 128, %s14
      %p163 = scmp.lt.s32.totalorder %s162, 255
      %s164 = scalar_select %p163, %s162, 255
      %s165 = smul.addr %s164, 8
      %s166 = scalar_lea.vmem %s0, %s165
      %s167 = smul.u32 128, %s14
      %s168 = smul.u32 128, %s14
      %p169 = scmp.lt.s32.totalorder %s168, 255
      %s170 = scalar_select %p169, %s168, 255
      %s171 = smul.addr %s170, 4
      %s172 = scalar_lea.vmem %s3, %s171
      %s173 = smul.u32 128, %s14
      %v174 = vld [vmem:[%s166] sm:$0xff]
      %v175 = vld [vmem:[%s166 + $0x8] sm:$0xff]
      %v176 = vld [vmem:[%s166 + $0x10] sm:$0xff]
      %v177 = vld [vmem:[%s166 + $0x18] sm:$0xff]
      %v178 = vld [vmem:[%s166 + $0x20] sm:$0xff]
      %v179 = vld [vmem:[%s166 + $0x28] sm:$0xff]
      %v180 = vld [vmem:[%s166 + $0x30] sm:$0xff]
      %v181 = vld [vmem:[%s166 + $0x38] sm:$0xff]
      %v182 = vld [vmem:[%s166 + $0x40] sm:$0xff]
      %v183 = vld [vmem:[%s166 + $0x48] sm:$0xff]
      %v184 = vld [vmem:[%s166 + $0x50] sm:$0xff]
      %v185 = vld [vmem:[%s166 + $0x58] sm:$0xff]
      %v186 = vld [vmem:[%s166 + $0x60] sm:$0xff]
      %v187 = vld [vmem:[%s166 + $0x68] sm:$0xff]
      %v188 = vld [vmem:[%s166 + $0x70] sm:$0xff]
      %v189 = vld [vmem:[%s166 + $0x78] sm:$0xff]
      %v190 = vld [vmem:[%s166 + $0x80] sm:$0xff]
      %v191 = vld [vmem:[%s166 + $0x88] sm:$0xff]
      %v192 = vld [vmem:[%s166 + $0x90] sm:$0xff]
      %v193 = vld [vmem:[%s166 + $0x98] sm:$0xff]
      %v194 = vld [vmem:[%s166 + $0xa0] sm:$0xff]
      %v195 = vld [vmem:[%s166 + $0xa8] sm:$0xff]
      %v196 = vld [vmem:[%s166 + $0xb0] sm:$0xff]
      %v197 = vld [vmem:[%s166 + $0xb8] sm:$0xff]
      %v198 = vld [vmem:[%s166 + $0xc0] sm:$0xff]
      %v199 = vld [vmem:[%s166 + $0xc8] sm:$0xff]
      %v200 = vld [vmem:[%s166 + $0xd0] sm:$0xff]
      %v201 = vld [vmem:[%s166 + $0xd8] sm:$0xff]
      %v202 = vld [vmem:[%s166 + $0xe0] sm:$0xff]
      %v203 = vld [vmem:[%s166 + $0xe8] sm:$0xff]
      %v204 = vld [vmem:[%s166 + $0xf0] sm:$0xff]
      %v205 = vld [vmem:[%s166 + $0xf8] sm:$0xff]
      %v206 = vld [vmem:[%s166 + $0x100] sm:$0xff]
      %v207 = vld [vmem:[%s166 + $0x108] sm:$0xff]
      %v208 = vld [vmem:[%s166 + $0x110] sm:$0xff]
      %v209 = vld [vmem:[%s166 + $0x118] sm:$0xff]
      %v210 = vld [vmem:[%s166 + $0x120] sm:$0xff]
      %v211 = vld [vmem:[%s166 + $0x128] sm:$0xff]
      %v212 = vld [vmem:[%s166 + $0x130] sm:$0xff]
      %v213 = vld [vmem:[%s166 + $0x138] sm:$0xff]
      %v214 = vld [vmem:[%s166 + $0x140] sm:$0xff]
      %v215 = vld [vmem:[%s166 + $0x148] sm:$0xff]
      %v216 = vld [vmem:[%s166 + $0x150] sm:$0xff]
      %v217 = vld [vmem:[%s166 + $0x158] sm:$0xff]
      %v218 = vld [vmem:[%s166 + $0x160] sm:$0xff]
      %v219 = vld [vmem:[%s166 + $0x168] sm:$0xff]
      %v220 = vld [vmem:[%s166 + $0x170] sm:$0xff]
      %v221 = vld [vmem:[%s166 + $0x178] sm:$0xff]
      %v222 = vld [vmem:[%s166 + $0x180] sm:$0xff]
      %v223 = vld [vmem:[%s166 + $0x188] sm:$0xff]
      %v224 = vld [vmem:[%s166 + $0x190] sm:$0xff]
      %v225 = vld [vmem:[%s166 + $0x198] sm:$0xff]
      %v226 = vld [vmem:[%s166 + $0x1a0] sm:$0xff]
      %v227 = vld [vmem:[%s166 + $0x1a8] sm:$0xff]
      %v228 = vld [vmem:[%s166 + $0x1b0] sm:$0xff]
      %v229 = vld [vmem:[%s166 + $0x1b8] sm:$0xff]
      %v230 = vld [vmem:[%s166 + $0x1c0] sm:$0xff]
      %v231 = vld [vmem:[%s166 + $0x1c8] sm:$0xff]
      %v232 = vld [vmem:[%s166 + $0x1d0] sm:$0xff]
      %v233 = vld [vmem:[%s166 + $0x1d8] sm:$0xff]
      %v234 = vld [vmem:[%s166 + $0x1e0] sm:$0xff]
      %v235 = vld [vmem:[%s166 + $0x1e8] sm:$0xff]
      %v236 = vld [vmem:[%s166 + $0x1f0] sm:$0xff]
      %v237 = vld [vmem:[%s166 + $0x1f8] sm:$0xff]
      %v238 = vld [vmem:[%s166 + $0x200] sm:$0xff]
      %v239 = vld [vmem:[%s166 + $0x208] sm:$0xff]
      %v240 = vld [vmem:[%s166 + $0x210] sm:$0xff]
      %v241 = vld [vmem:[%s166 + $0x218] sm:$0xff]
      %v242 = vld [vmem:[%s166 + $0x220] sm:$0xff]
      %v243 = vld [vmem:[%s166 + $0x228] sm:$0xff]
      %v244 = vld [vmem:[%s166 + $0x230] sm:$0xff]
      %v245 = vld [vmem:[%s166 + $0x238] sm:$0xff]
      %v246 = vld [vmem:[%s166 + $0x240] sm:$0xff]
      %v247 = vld [vmem:[%s166 + $0x248] sm:$0xff]
      %v248 = vld [vmem:[%s166 + $0x250] sm:$0xff]
      %v249 = vld [vmem:[%s166 + $0x258] sm:$0xff]
      %v250 = vld [vmem:[%s166 + $0x260] sm:$0xff]
      %v251 = vld [vmem:[%s166 + $0x268] sm:$0xff]
      %v252 = vld [vmem:[%s166 + $0x270] sm:$0xff]
      %v253 = vld [vmem:[%s166 + $0x278] sm:$0xff]
      %v254 = vld [vmem:[%s166 + $0x280] sm:$0xff]
      %v255 = vld [vmem:[%s166 + $0x288] sm:$0xff]
      %v256 = vld [vmem:[%s166 + $0x290] sm:$0xff]
      %v257 = vld [vmem:[%s166 + $0x298] sm:$0xff]
      %v258 = vld [vmem:[%s166 + $0x2a0] sm:$0xff]
      %v259 = vld [vmem:[%s166 + $0x2a8] sm:$0xff]
      %v260 = vld [vmem:[%s166 + $0x2b0] sm:$0xff]
      %v261 = vld [vmem:[%s166 + $0x2b8] sm:$0xff]
      %v262 = vld [vmem:[%s166 + $0x2c0] sm:$0xff]
      %v263 = vld [vmem:[%s166 + $0x2c8] sm:$0xff]
      %v264 = vld [vmem:[%s166 + $0x2d0] sm:$0xff]
      %v265 = vld [vmem:[%s166 + $0x2d8] sm:$0xff]
      %v266 = vld [vmem:[%s166 + $0x2e0] sm:$0xff]
      %v267 = vld [vmem:[%s166 + $0x2e8] sm:$0xff]
      %v268 = vld [vmem:[%s166 + $0x2f0] sm:$0xff]
      %v269 = vld [vmem:[%s166 + $0x2f8] sm:$0xff]
      %v270 = vld [vmem:[%s166 + $0x300] sm:$0xff]
      %v271 = vld [vmem:[%s166 + $0x308] sm:$0xff]
      %v272 = vld [vmem:[%s166 + $0x310] sm:$0xff]
      %v273 = vld [vmem:[%s166 + $0x318] sm:$0xff]
      %v274 = vld [vmem:[%s166 + $0x320] sm:$0xff]
      %v275 = vld [vmem:[%s166 + $0x328] sm:$0xff]
      %v276 = vld [vmem:[%s166 + $0x330] sm:$0xff]
      %v277 = vld [vmem:[%s166 + $0x338] sm:$0xff]
      %v278 = vld [vmem:[%s166 + $0x340] sm:$0xff]
      %v279 = vld [vmem:[%s166 + $0x348] sm:$0xff]
      %v280 = vld [vmem:[%s166 + $0x350] sm:$0xff]
      %v281 = vld [vmem:[%s166 + $0x358] sm:$0xff]
      %v282 = vld [vmem:[%s166 + $0x360] sm:$0xff]
      %v283 = vld [vmem:[%s166 + $0x368] sm:$0xff]
      %v284 = vld [vmem:[%s166 + $0x370] sm:$0xff]
      %v285 = vld [vmem:[%s166 + $0x378] sm:$0xff]
      %v286 = vld [vmem:[%s166 + $0x380] sm:$0xff]
      %v287 = vld [vmem:[%s166 + $0x388] sm:$0xff]
      %v288 = vld [vmem:[%s166 + $0x390] sm:$0xff]
      %v289 = vld [vmem:[%s166 + $0x398] sm:$0xff]
      %v290 = vld [vmem:[%s166 + $0x3a0] sm:$0xff]
      %v291 = vld [vmem:[%s166 + $0x3a8] sm:$0xff]
      %v292 = vld [vmem:[%s166 + $0x3b0] sm:$0xff]
      %v293 = vld [vmem:[%s166 + $0x3b8] sm:$0xff]
      %v294 = vld [vmem:[%s166 + $0x3c0] sm:$0xff]
      %v295 = vld [vmem:[%s166 + $0x3c8] sm:$0xff]
      %v296 = vld [vmem:[%s166 + $0x3d0] sm:$0xff]
      %v297 = vld [vmem:[%s166 + $0x3d8] sm:$0xff]
      %v298 = vld [vmem:[%s166 + $0x3e0] sm:$0xff]
      %v299 = vld [vmem:[%s166 + $0x3e8] sm:$0xff]
      %v300 = vld [vmem:[%s166 + $0x3f0] sm:$0xff]
      %v301 = vld [vmem:[%s166 + $0x3f8] sm:$0xff]
      %v302 = vld [vmem:[%s1] sm:$0x1]
      %v304 = vlaneseq
      %v305 = vshrl.u32 %v304, 7
      %v306 = vsub.s32 0, %v305
      %v307 = vrot.slane %v302, %v306
      %v309 = vmul.f32 %v174, %v307
      %v310 = vmul.f32 %v175, %v307
      %v311 = vmul.f32 %v176, %v307
      %v312 = vmul.f32 %v177, %v307
      %v313 = vmul.f32 %v178, %v307
      %v314 = vmul.f32 %v179, %v307
      %v315 = vmul.f32 %v180, %v307
      %v316 = vmul.f32 %v181, %v307
      %v317 = vmul.f32 %v182, %v307
      %v318 = vmul.f32 %v183, %v307
      %v319 = vmul.f32 %v184, %v307
      %v320 = vmul.f32 %v185, %v307
      %v321 = vmul.f32 %v186, %v307
      %v322 = vmul.f32 %v187, %v307
      %v323 = vmul.f32 %v188, %v307
      %v324 = vmul.f32 %v189, %v307
      %v325 = vmul.f32 %v190, %v307
      %v326 = vmul.f32 %v191, %v307
      %v327 = vmul.f32 %v192, %v307
      %v328 = vmul.f32 %v193, %v307
      %v329 = vmul.f32 %v194, %v307
      %v330 = vmul.f32 %v195, %v307
      %v331 = vmul.f32 %v196, %v307
      %v332 = vmul.f32 %v197, %v307
      %v333 = vmul.f32 %v198, %v307
      %v334 = vmul.f32 %v199, %v307
      %v335 = vmul.f32 %v200, %v307
      %v336 = vmul.f32 %v201, %v307
      %v337 = vmul.f32 %v202, %v307
      %v338 = vmul.f32 %v203, %v307
      %v339 = vmul.f32 %v204, %v307
      %v340 = vmul.f32 %v205, %v307
      %v341 = vmul.f32 %v206, %v307
      %v342 = vmul.f32 %v207, %v307
      %v343 = vmul.f32 %v208, %v307
      %v344 = vmul.f32 %v209, %v307
      %v345 = vmul.f32 %v210, %v307
      %v346 = vmul.f32 %v211, %v307
      %v347 = vmul.f32 %v212, %v307
      %v348 = vmul.f32 %v213, %v307
      %v349 = vmul.f32 %v214, %v307
      %v350 = vmul.f32 %v215, %v307
      %v351 = vmul.f32 %v216, %v307
      %v352 = vmul.f32 %v217, %v307
      %v353 = vmul.f32 %v218, %v307
      %v354 = vmul.f32 %v219, %v307
      %v355 = vmul.f32 %v220, %v307
      %v356 = vmul.f32 %v221, %v307
      %v357 = vmul.f32 %v222, %v307
      %v358 = vmul.f32 %v223, %v307
      %v359 = vmul.f32 %v224, %v307
      %v360 = vmul.f32 %v225, %v307
      %v361 = vmul.f32 %v226, %v307
      %v362 = vmul.f32 %v227, %v307
      %v363 = vmul.f32 %v228, %v307
      %v364 = vmul.f32 %v229, %v307
      %v365 = vmul.f32 %v230, %v307
      %v366 = vmul.f32 %v231, %v307
      %v367 = vmul.f32 %v232, %v307
      %v368 = vmul.f32 %v233, %v307
      %v369 = vmul.f32 %v234, %v307
      %v370 = vmul.f32 %v235, %v307
      %v371 = vmul.f32 %v236, %v307
      %v372 = vmul.f32 %v237, %v307
      %v373 = vmul.f32 %v238, %v307
      %v374 = vmul.f32 %v239, %v307
      %v375 = vmul.f32 %v240, %v307
      %v376 = vmul.f32 %v241, %v307
      %v377 = vmul.f32 %v242, %v307
      %v378 = vmul.f32 %v243, %v307
      %v379 = vmul.f32 %v244, %v307
      %v380 = vmul.f32 %v245, %v307
      %v381 = vmul.f32 %v246, %v307
      %v382 = vmul.f32 %v247, %v307
      %v383 = vmul.f32 %v248, %v307
      %v384 = vmul.f32 %v249, %v307
      %v385 = vmul.f32 %v250, %v307
      %v386 = vmul.f32 %v251, %v307
      %v387 = vmul.f32 %v252, %v307
      %v388 = vmul.f32 %v253, %v307
      %v389 = vmul.f32 %v254, %v307
      %v390 = vmul.f32 %v255, %v307
      %v391 = vmul.f32 %v256, %v307
      %v392 = vmul.f32 %v257, %v307
      %v393 = vmul.f32 %v258, %v307
      %v394 = vmul.f32 %v259, %v307
      %v395 = vmul.f32 %v260, %v307
      %v396 = vmul.f32 %v261, %v307
      %v397 = vmul.f32 %v262, %v307
      %v398 = vmul.f32 %v263, %v307
      %v399 = vmul.f32 %v264, %v307
      %v400 = vmul.f32 %v265, %v307
      %v401 = vmul.f32 %v266, %v307
      %v402 = vmul.f32 %v267, %v307
      %v403 = vmul.f32 %v268, %v307
      %v404 = vmul.f32 %v269, %v307
      %v405 = vmul.f32 %v270, %v307
      %v406 = vmul.f32 %v271, %v307
      %v407 = vmul.f32 %v272, %v307
      %v408 = vmul.f32 %v273, %v307
      %v409 = vmul.f32 %v274, %v307
      %v410 = vmul.f32 %v275, %v307
      %v411 = vmul.f32 %v276, %v307
      %v412 = vmul.f32 %v277, %v307
      %v413 = vmul.f32 %v278, %v307
      %v414 = vmul.f32 %v279, %v307
      %v415 = vmul.f32 %v280, %v307
      %v416 = vmul.f32 %v281, %v307
      %v417 = vmul.f32 %v282, %v307
      %v418 = vmul.f32 %v283, %v307
      %v419 = vmul.f32 %v284, %v307
      %v420 = vmul.f32 %v285, %v307
      %v421 = vmul.f32 %v286, %v307
      %v422 = vmul.f32 %v287, %v307
      %v423 = vmul.f32 %v288, %v307
      %v424 = vmul.f32 %v289, %v307
      %v425 = vmul.f32 %v290, %v307
      %v426 = vmul.f32 %v291, %v307
      %v427 = vmul.f32 %v292, %v307
      %v428 = vmul.f32 %v293, %v307
      %v429 = vmul.f32 %v294, %v307
      %v430 = vmul.f32 %v295, %v307
      %v431 = vmul.f32 %v296, %v307
      %v432 = vmul.f32 %v297, %v307
      %v433 = vmul.f32 %v298, %v307
      %v434 = vmul.f32 %v299, %v307
      %v435 = vmul.f32 %v300, %v307
      %v436 = vmul.f32 %v301, %v307
      %v437 = vld [vmem:[%s2] sm:$0x1]
      %v439 = vlaneseq
      %v440 = vshrl.u32 %v439, 7
      %v441 = vsub.s32 0, %v440
      %v442 = vrot.slane %v437, %v441
      %v444 = vadd.f32 %v309, %v442
      %v445 = vadd.f32 %v310, %v442
      %v446 = vadd.f32 %v311, %v442
      %v447 = vadd.f32 %v312, %v442
      %v448 = vadd.f32 %v313, %v442
      %v449 = vadd.f32 %v314, %v442
      %v450 = vadd.f32 %v315, %v442
      %v451 = vadd.f32 %v316, %v442
      %v452 = vadd.f32 %v317, %v442
      %v453 = vadd.f32 %v318, %v442
      %v454 = vadd.f32 %v319, %v442
      %v455 = vadd.f32 %v320, %v442
      %v456 = vadd.f32 %v321, %v442
      %v457 = vadd.f32 %v322, %v442
      %v458 = vadd.f32 %v323, %v442
      %v459 = vadd.f32 %v324, %v442
      %v460 = vadd.f32 %v325, %v442
      %v461 = vadd.f32 %v326, %v442
      %v462 = vadd.f32 %v327, %v442
      %v463 = vadd.f32 %v328, %v442
      %v464 = vadd.f32 %v329, %v442
      %v465 = vadd.f32 %v330, %v442
      %v466 = vadd.f32 %v331, %v442
      %v467 = vadd.f32 %v332, %v442
      %v468 = vadd.f32 %v333, %v442
      %v469 = vadd.f32 %v334, %v442
      %v470 = vadd.f32 %v335, %v442
      %v471 = vadd.f32 %v336, %v442
      %v472 = vadd.f32 %v337, %v442
      %v473 = vadd.f32 %v338, %v442
      %v474 = vadd.f32 %v339, %v442
      %v475 = vadd.f32 %v340, %v442
      %v476 = vadd.f32 %v341, %v442
      %v477 = vadd.f32 %v342, %v442
      %v478 = vadd.f32 %v343, %v442
      %v479 = vadd.f32 %v344, %v442
      %v480 = vadd.f32 %v345, %v442
      %v481 = vadd.f32 %v346, %v442
      %v482 = vadd.f32 %v347, %v442
      %v483 = vadd.f32 %v348, %v442
      %v484 = vadd.f32 %v349, %v442
      %v485 = vadd.f32 %v350, %v442
      %v486 = vadd.f32 %v351, %v442
      %v487 = vadd.f32 %v352, %v442
      %v488 = vadd.f32 %v353, %v442
      %v489 = vadd.f32 %v354, %v442
      %v490 = vadd.f32 %v355, %v442
      %v491 = vadd.f32 %v356, %v442
      %v492 = vadd.f32 %v357, %v442
      %v493 = vadd.f32 %v358, %v442
      %v494 = vadd.f32 %v359, %v442
      %v495 = vadd.f32 %v360, %v442
      %v496 = vadd.f32 %v361, %v442
      %v497 = vadd.f32 %v362, %v442
      %v498 = vadd.f32 %v363, %v442
      %v499 = vadd.f32 %v364, %v442
      %v500 = vadd.f32 %v365, %v442
      %v501 = vadd.f32 %v366, %v442
      %v502 = vadd.f32 %v367, %v442
      %v503 = vadd.f32 %v368, %v442
      %v504 = vadd.f32 %v369, %v442
      %v505 = vadd.f32 %v370, %v442
      %v506 = vadd.f32 %v371, %v442
      %v507 = vadd.f32 %v372, %v442
      %v508 = vadd.f32 %v373, %v442
      %v509 = vadd.f32 %v374, %v442
      %v510 = vadd.f32 %v375, %v442
      %v511 = vadd.f32 %v376, %v442
      %v512 = vadd.f32 %v377, %v442
      %v513 = vadd.f32 %v378, %v442
      %v514 = vadd.f32 %v379, %v442
      %v515 = vadd.f32 %v380, %v442
      %v516 = vadd.f32 %v381, %v442
      %v517 = vadd.f32 %v382, %v442
      %v518 = vadd.f32 %v383, %v442
      %v519 = vadd.f32 %v384, %v442
      %v520 = vadd.f32 %v385, %v442
      %v521 = vadd.f32 %v386, %v442
      %v522 = vadd.f32 %v387, %v442
      %v523 = vadd.f32 %v388, %v442
      %v524 = vadd.f32 %v389, %v442
      %v525 = vadd.f32 %v390, %v442
      %v526 = vadd.f32 %v391, %v442
      %v527 = vadd.f32 %v392, %v442
      %v528 = vadd.f32 %v393, %v442
      %v529 = vadd.f32 %v394, %v442
      %v530 = vadd.f32 %v395, %v442
      %v531 = vadd.f32 %v396, %v442
      %v532 = vadd.f32 %v397, %v442
      %v533 = vadd.f32 %v398, %v442
      %v534 = vadd.f32 %v399, %v442
      %v535 = vadd.f32 %v400, %v442
      %v536 = vadd.f32 %v401, %v442
      %v537 = vadd.f32 %v402, %v442
      %v538 = vadd.f32 %v403, %v442
      %v539 = vadd.f32 %v404, %v442
      %v540 = vadd.f32 %v405, %v442
      %v541 = vadd.f32 %v406, %v442
      %v542 = vadd.f32 %v407, %v442
      %v543 = vadd.f32 %v408, %v442
      %v544 = vadd.f32 %v409, %v442
      %v545 = vadd.f32 %v410, %v442
      %v546 = vadd.f32 %v411, %v442
      %v547 = vadd.f32 %v412, %v442
      %v548 = vadd.f32 %v413, %v442
      %v549 = vadd.f32 %v414, %v442
      %v550 = vadd.f32 %v415, %v442
      %v551 = vadd.f32 %v416, %v442
      %v552 = vadd.f32 %v417, %v442
      %v553 = vadd.f32 %v418, %v442
      %v554 = vadd.f32 %v419, %v442
      %v555 = vadd.f32 %v420, %v442
      %v556 = vadd.f32 %v421, %v442
      %v557 = vadd.f32 %v422, %v442
      %v558 = vadd.f32 %v423, %v442
      %v559 = vadd.f32 %v424, %v442
      %v560 = vadd.f32 %v425, %v442
      %v561 = vadd.f32 %v426, %v442
      %v562 = vadd.f32 %v427, %v442
      %v563 = vadd.f32 %v428, %v442
      %v564 = vadd.f32 %v429, %v442
      %v565 = vadd.f32 %v430, %v442
      %v566 = vadd.f32 %v431, %v442
      %v567 = vadd.f32 %v432, %v442
      %v568 = vadd.f32 %v433, %v442
      %v569 = vadd.f32 %v434, %v442
      %v570 = vadd.f32 %v435, %v442
      %v571 = vadd.f32 %v436, %v442
      %v572 = vmax.f32 %v444, 0.0
      %v573 = vmax.f32 %v445, 0.0
      %v574 = vmax.f32 %v446, 0.0
      %v575 = vmax.f32 %v447, 0.0
      %v576 = vmax.f32 %v448, 0.0
      %v577 = vmax.f32 %v449, 0.0
      %v578 = vmax.f32 %v450, 0.0
      %v579 = vmax.f32 %v451, 0.0
      %v580 = vmax.f32 %v452, 0.0
      %v581 = vmax.f32 %v453, 0.0
      %v582 = vmax.f32 %v454, 0.0
      %v583 = vmax.f32 %v455, 0.0
      %v584 = vmax.f32 %v456, 0.0
      %v585 = vmax.f32 %v457, 0.0
      %v586 = vmax.f32 %v458, 0.0
      %v587 = vmax.f32 %v459, 0.0
      %v588 = vmax.f32 %v460, 0.0
      %v589 = vmax.f32 %v461, 0.0
      %v590 = vmax.f32 %v462, 0.0
      %v591 = vmax.f32 %v463, 0.0
      %v592 = vmax.f32 %v464, 0.0
      %v593 = vmax.f32 %v465, 0.0
      %v594 = vmax.f32 %v466, 0.0
      %v595 = vmax.f32 %v467, 0.0
      %v596 = vmax.f32 %v468, 0.0
      %v597 = vmax.f32 %v469, 0.0
      %v598 = vmax.f32 %v470, 0.0
      %v599 = vmax.f32 %v471, 0.0
      %v600 = vmax.f32 %v472, 0.0
      %v601 = vmax.f32 %v473, 0.0
      %v602 = vmax.f32 %v474, 0.0
      %v603 = vmax.f32 %v475, 0.0
      %v604 = vmax.f32 %v476, 0.0
      %v605 = vmax.f32 %v477, 0.0
      %v606 = vmax.f32 %v478, 0.0
      %v607 = vmax.f32 %v479, 0.0
      %v608 = vmax.f32 %v480, 0.0
      %v609 = vmax.f32 %v481, 0.0
      %v610 = vmax.f32 %v482, 0.0
      %v611 = vmax.f32 %v483, 0.0
      %v612 = vmax.f32 %v484, 0.0
      %v613 = vmax.f32 %v485, 0.0
      %v614 = vmax.f32 %v486, 0.0
      %v615 = vmax.f32 %v487, 0.0
      %v616 = vmax.f32 %v488, 0.0
      %v617 = vmax.f32 %v489, 0.0
      %v618 = vmax.f32 %v490, 0.0
      %v619 = vmax.f32 %v491, 0.0
      %v620 = vmax.f32 %v492, 0.0
      %v621 = vmax.f32 %v493, 0.0
      %v622 = vmax.f32 %v494, 0.0
      %v623 = vmax.f32 %v495, 0.0
      %v624 = vmax.f32 %v496, 0.0
      %v625 = vmax.f32 %v497, 0.0
      %v626 = vmax.f32 %v498, 0.0
      %v627 = vmax.f32 %v499, 0.0
      %v628 = vmax.f32 %v500, 0.0
      %v629 = vmax.f32 %v501, 0.0
      %v630 = vmax.f32 %v502, 0.0
      %v631 = vmax.f32 %v503, 0.0
      %v632 = vmax.f32 %v504, 0.0
      %v633 = vmax.f32 %v505, 0.0
      %v634 = vmax.f32 %v506, 0.0
      %v635 = vmax.f32 %v507, 0.0
      %v636 = vmax.f32 %v508, 0.0
      %v637 = vmax.f32 %v509, 0.0
      %v638 = vmax.f32 %v510, 0.0
      %v639 = vmax.f32 %v511, 0.0
      %v640 = vmax.f32 %v512, 0.0
      %v641 = vmax.f32 %v513, 0.0
      %v642 = vmax.f32 %v514, 0.0
      %v643 = vmax.f32 %v515, 0.0
      %v644 = vmax.f32 %v516, 0.0
      %v645 = vmax.f32 %v517, 0.0
      %v646 = vmax.f32 %v518, 0.0
      %v647 = vmax.f32 %v519, 0.0
      %v648 = vmax.f32 %v520, 0.0
      %v649 = vmax.f32 %v521, 0.0
      %v650 = vmax.f32 %v522, 0.0
      %v651 = vmax.f32 %v523, 0.0
      %v652 = vmax.f32 %v524, 0.0
      %v653 = vmax.f32 %v525, 0.0
      %v654 = vmax.f32 %v526, 0.0
      %v655 = vmax.f32 %v527, 0.0
      %v656 = vmax.f32 %v528, 0.0
      %v657 = vmax.f32 %v529, 0.0
      %v658 = vmax.f32 %v530, 0.0
      %v659 = vmax.f32 %v531, 0.0
      %v660 = vmax.f32 %v532, 0.0
      %v661 = vmax.f32 %v533, 0.0
      %v662 = vmax.f32 %v534, 0.0
      %v663 = vmax.f32 %v535, 0.0
      %v664 = vmax.f32 %v536, 0.0
      %v665 = vmax.f32 %v537, 0.0
      %v666 = vmax.f32 %v538, 0.0
      %v667 = vmax.f32 %v539, 0.0
      %v668 = vmax.f32 %v540, 0.0
      %v669 = vmax.f32 %v541, 0.0
      %v670 = vmax.f32 %v542, 0.0
      %v671 = vmax.f32 %v543, 0.0
      %v672 = vmax.f32 %v544, 0.0
      %v673 = vmax.f32 %v545, 0.0
      %v674 = vmax.f32 %v546, 0.0
      %v675 = vmax.f32 %v547, 0.0
      %v676 = vmax.f32 %v548, 0.0
      %v677 = vmax.f32 %v549, 0.0
      %v678 = vmax.f32 %v550, 0.0
      %v679 = vmax.f32 %v551, 0.0
      %v680 = vmax.f32 %v552, 0.0
      %v681 = vmax.f32 %v553, 0.0
      %v682 = vmax.f32 %v554, 0.0
      %v683 = vmax.f32 %v555, 0.0
      %v684 = vmax.f32 %v556, 0.0
      %v685 = vmax.f32 %v557, 0.0
      %v686 = vmax.f32 %v558, 0.0
      %v687 = vmax.f32 %v559, 0.0
      %v688 = vmax.f32 %v560, 0.0
      %v689 = vmax.f32 %v561, 0.0
      %v690 = vmax.f32 %v562, 0.0
      %v691 = vmax.f32 %v563, 0.0
      %v692 = vmax.f32 %v564, 0.0
      %v693 = vmax.f32 %v565, 0.0
      %v694 = vmax.f32 %v566, 0.0
      %v695 = vmax.f32 %v567, 0.0
      %v696 = vmax.f32 %v568, 0.0
      %v697 = vmax.f32 %v569, 0.0
      %v698 = vmax.f32 %v570, 0.0
      %v699 = vmax.f32 %v571, 0.0
      %v700 = vpack.c.bf16 %v573, %v572
      %v701 = vpack.c.bf16 %v575, %v574
      %v702 = vpack.c.bf16 %v577, %v576
      %v703 = vpack.c.bf16 %v579, %v578
      %v704 = vpack.c.bf16 %v581, %v580
      %v705 = vpack.c.bf16 %v583, %v582
      %v706 = vpack.c.bf16 %v585, %v584
      %v707 = vpack.c.bf16 %v587, %v586
      %v708 = vpack.c.bf16 %v589, %v588
      %v709 = vpack.c.bf16 %v591, %v590
      %v710 = vpack.c.bf16 %v593, %v592
      %v711 = vpack.c.bf16 %v595, %v594
      %v712 = vpack.c.bf16 %v597, %v596
      %v713 = vpack.c.bf16 %v599, %v598
      %v714 = vpack.c.bf16 %v601, %v600
      %v715 = vpack.c.bf16 %v603, %v602
      %v716 = vpack.c.bf16 %v605, %v604
      %v717 = vpack.c.bf16 %v607, %v606
      %v718 = vpack.c.bf16 %v609, %v608
      %v719 = vpack.c.bf16 %v611, %v610
      %v720 = vpack.c.bf16 %v613, %v612
      %v721 = vpack.c.bf16 %v615, %v614
      %v722 = vpack.c.bf16 %v617, %v616
      %v723 = vpack.c.bf16 %v619, %v618
      %v724 = vpack.c.bf16 %v621, %v620
      %v725 = vpack.c.bf16 %v623, %v622
      %v726 = vpack.c.bf16 %v625, %v624
      %v727 = vpack.c.bf16 %v627, %v626
      %v728 = vpack.c.bf16 %v629, %v628
      %v729 = vpack.c.bf16 %v631, %v630
      %v730 = vpack.c.bf16 %v633, %v632
      %v731 = vpack.c.bf16 %v635, %v634
      %v732 = vpack.c.bf16 %v637, %v636
      %v733 = vpack.c.bf16 %v639, %v638
      %v734 = vpack.c.bf16 %v641, %v640
      %v735 = vpack.c.bf16 %v643, %v642
      %v736 = vpack.c.bf16 %v645, %v644
      %v737 = vpack.c.bf16 %v647, %v646
      %v738 = vpack.c.bf16 %v649, %v648
      %v739 = vpack.c.bf16 %v651, %v650
      %v740 = vpack.c.bf16 %v653, %v652
      %v741 = vpack.c.bf16 %v655, %v654
      %v742 = vpack.c.bf16 %v657, %v656
      %v743 = vpack.c.bf16 %v659, %v658
      %v744 = vpack.c.bf16 %v661, %v660
      %v745 = vpack.c.bf16 %v663, %v662
      %v746 = vpack.c.bf16 %v665, %v664
      %v747 = vpack.c.bf16 %v667, %v666
      %v748 = vpack.c.bf16 %v669, %v668
      %v749 = vpack.c.bf16 %v671, %v670
      %v750 = vpack.c.bf16 %v673, %v672
      %v751 = vpack.c.bf16 %v675, %v674
      %v752 = vpack.c.bf16 %v677, %v676
      %v753 = vpack.c.bf16 %v679, %v678
      %v754 = vpack.c.bf16 %v681, %v680
      %v755 = vpack.c.bf16 %v683, %v682
      %v756 = vpack.c.bf16 %v685, %v684
      %v757 = vpack.c.bf16 %v687, %v686
      %v758 = vpack.c.bf16 %v689, %v688
      %v759 = vpack.c.bf16 %v691, %v690
      %v760 = vpack.c.bf16 %v693, %v692
      %v761 = vpack.c.bf16 %v695, %v694
      %v762 = vpack.c.bf16 %v697, %v696
      %v763 = vpack.c.bf16 %v699, %v698
      %v828 = vunpack.c.l.b16 %v700
      %v829 = vunpack.c.h.b16 %v700
      %v830 = vunpack.c.l.b16 %v701
      %v831 = vunpack.c.h.b16 %v701
      %v832 = vunpack.c.l.b16 %v702
      %v833 = vunpack.c.h.b16 %v702
      %v834 = vunpack.c.l.b16 %v703
      %v835 = vunpack.c.h.b16 %v703
      %v836 = vunpack.c.l.b16 %v704
      %v837 = vunpack.c.h.b16 %v704
      %v838 = vunpack.c.l.b16 %v705
      %v839 = vunpack.c.h.b16 %v705
      %v840 = vunpack.c.l.b16 %v706
      %v841 = vunpack.c.h.b16 %v706
      %v842 = vunpack.c.l.b16 %v707
      %v843 = vunpack.c.h.b16 %v707
      %v844 = vunpack.c.l.b16 %v708
      %v845 = vunpack.c.h.b16 %v708
      %v846 = vunpack.c.l.b16 %v709
      %v847 = vunpack.c.h.b16 %v709
      %v848 = vunpack.c.l.b16 %v710
      %v849 = vunpack.c.h.b16 %v710
      %v850 = vunpack.c.l.b16 %v711
      %v851 = vunpack.c.h.b16 %v711
      %v852 = vunpack.c.l.b16 %v712
      %v853 = vunpack.c.h.b16 %v712
      %v854 = vunpack.c.l.b16 %v713
      %v855 = vunpack.c.h.b16 %v713
      %v856 = vunpack.c.l.b16 %v714
      %v857 = vunpack.c.h.b16 %v714
      %v858 = vunpack.c.l.b16 %v715
      %v859 = vunpack.c.h.b16 %v715
      %v860 = vunpack.c.l.b16 %v716
      %v861 = vunpack.c.h.b16 %v716
      %v862 = vunpack.c.l.b16 %v717
      %v863 = vunpack.c.h.b16 %v717
      %v864 = vunpack.c.l.b16 %v718
      %v865 = vunpack.c.h.b16 %v718
      %v866 = vunpack.c.l.b16 %v719
      %v867 = vunpack.c.h.b16 %v719
      %v868 = vunpack.c.l.b16 %v720
      %v869 = vunpack.c.h.b16 %v720
      %v870 = vunpack.c.l.b16 %v721
      %v871 = vunpack.c.h.b16 %v721
      %v872 = vunpack.c.l.b16 %v722
      %v873 = vunpack.c.h.b16 %v722
      %v874 = vunpack.c.l.b16 %v723
      %v875 = vunpack.c.h.b16 %v723
      %v876 = vunpack.c.l.b16 %v724
      %v877 = vunpack.c.h.b16 %v724
      %v878 = vunpack.c.l.b16 %v725
      %v879 = vunpack.c.h.b16 %v725
      %v880 = vunpack.c.l.b16 %v726
      %v881 = vunpack.c.h.b16 %v726
      %v882 = vunpack.c.l.b16 %v727
      %v883 = vunpack.c.h.b16 %v727
      %v884 = vunpack.c.l.b16 %v728
      %v885 = vunpack.c.h.b16 %v728
      %v886 = vunpack.c.l.b16 %v729
      %v887 = vunpack.c.h.b16 %v729
      %v888 = vunpack.c.l.b16 %v730
      %v889 = vunpack.c.h.b16 %v730
      %v890 = vunpack.c.l.b16 %v731
      %v891 = vunpack.c.h.b16 %v731
      %v892 = vunpack.c.l.b16 %v732
      %v893 = vunpack.c.h.b16 %v732
      %v894 = vunpack.c.l.b16 %v733
      %v895 = vunpack.c.h.b16 %v733
      %v896 = vunpack.c.l.b16 %v734
      %v897 = vunpack.c.h.b16 %v734
      %v898 = vunpack.c.l.b16 %v735
      %v899 = vunpack.c.h.b16 %v735
      %v900 = vunpack.c.l.b16 %v736
      %v901 = vunpack.c.h.b16 %v736
      %v902 = vunpack.c.l.b16 %v737
      %v903 = vunpack.c.h.b16 %v737
      %v904 = vunpack.c.l.b16 %v738
      %v905 = vunpack.c.h.b16 %v738
      %v906 = vunpack.c.l.b16 %v739
      %v907 = vunpack.c.h.b16 %v739
      %v908 = vunpack.c.l.b16 %v740
      %v909 = vunpack.c.h.b16 %v740
      %v910 = vunpack.c.l.b16 %v741
      %v911 = vunpack.c.h.b16 %v741
      %v912 = vunpack.c.l.b16 %v742
      %v913 = vunpack.c.h.b16 %v742
      %v914 = vunpack.c.l.b16 %v743
      %v915 = vunpack.c.h.b16 %v743
      %v916 = vunpack.c.l.b16 %v744
      %v917 = vunpack.c.h.b16 %v744
      %v918 = vunpack.c.l.b16 %v745
      %v919 = vunpack.c.h.b16 %v745
      %v920 = vunpack.c.l.b16 %v746
      %v921 = vunpack.c.h.b16 %v746
      %v922 = vunpack.c.l.b16 %v747
      %v923 = vunpack.c.h.b16 %v747
      %v924 = vunpack.c.l.b16 %v748
      %v925 = vunpack.c.h.b16 %v748
      %v926 = vunpack.c.l.b16 %v749
      %v927 = vunpack.c.h.b16 %v749
      %v928 = vunpack.c.l.b16 %v750
      %v929 = vunpack.c.h.b16 %v750
      %v930 = vunpack.c.l.b16 %v751
      %v931 = vunpack.c.h.b16 %v751
      %v932 = vunpack.c.l.b16 %v752
      %v933 = vunpack.c.h.b16 %v752
      %v934 = vunpack.c.l.b16 %v753
      %v935 = vunpack.c.h.b16 %v753
      %v936 = vunpack.c.l.b16 %v754
      %v937 = vunpack.c.h.b16 %v754
      %v938 = vunpack.c.l.b16 %v755
      %v939 = vunpack.c.h.b16 %v755
      %v940 = vunpack.c.l.b16 %v756
      %v941 = vunpack.c.h.b16 %v756
      %v942 = vunpack.c.l.b16 %v757
      %v943 = vunpack.c.h.b16 %v757
      %v944 = vunpack.c.l.b16 %v758
      %v945 = vunpack.c.h.b16 %v758
      %v946 = vunpack.c.l.b16 %v759
      %v947 = vunpack.c.h.b16 %v759
      %v948 = vunpack.c.l.b16 %v760
      %v949 = vunpack.c.h.b16 %v760
      %v950 = vunpack.c.l.b16 %v761
      %v951 = vunpack.c.h.b16 %v761
      %v952 = vunpack.c.l.b16 %v762
      %v953 = vunpack.c.h.b16 %v762
      %v954 = vunpack.c.l.b16 %v763
      %v955 = vunpack.c.h.b16 %v763
      %v956 = vpack.c.b16 %v828, %v828
      %v957 = vpack.c.b16 %v829, %v829
      %v958 = vpack.c.b16 %v830, %v830
      %v959 = vpack.c.b16 %v831, %v831
      %v960 = vpack.c.b16 %v832, %v832
      %v961 = vpack.c.b16 %v833, %v833
      %v962 = vpack.c.b16 %v834, %v834
      %v963 = vpack.c.b16 %v835, %v835
      %v964 = vpack.c.b16 %v836, %v836
      %v965 = vpack.c.b16 %v837, %v837
      %v966 = vpack.c.b16 %v838, %v838
      %v967 = vpack.c.b16 %v839, %v839
      %v968 = vpack.c.b16 %v840, %v840
      %v969 = vpack.c.b16 %v841, %v841
      %v970 = vpack.c.b16 %v842, %v842
      %v971 = vpack.c.b16 %v843, %v843
      %v972 = vpack.c.b16 %v844, %v844
      %v973 = vpack.c.b16 %v845, %v845
      %v974 = vpack.c.b16 %v846, %v846
      %v975 = vpack.c.b16 %v847, %v847
      %v976 = vpack.c.b16 %v848, %v848
      %v977 = vpack.c.b16 %v849, %v849
      %v978 = vpack.c.b16 %v850, %v850
      %v979 = vpack.c.b16 %v851, %v851
      %v980 = vpack.c.b16 %v852, %v852
      %v981 = vpack.c.b16 %v853, %v853
      %v982 = vpack.c.b16 %v854, %v854
      %v983 = vpack.c.b16 %v855, %v855
      %v984 = vpack.c.b16 %v856, %v856
      %v985 = vpack.c.b16 %v857, %v857
      %v986 = vpack.c.b16 %v858, %v858
      %v987 = vpack.c.b16 %v859, %v859
      %v988 = vpack.c.b16 %v860, %v860
      %v989 = vpack.c.b16 %v861, %v861
      %v990 = vpack.c.b16 %v862, %v862
      %v991 = vpack.c.b16 %v863, %v863
      %v992 = vpack.c.b16 %v864, %v864
      %v993 = vpack.c.b16 %v865, %v865
      %v994 = vpack.c.b16 %v866, %v866
      %v995 = vpack.c.b16 %v867, %v867
      %v996 = vpack.c.b16 %v868, %v868
      %v997 = vpack.c.b16 %v869, %v869
      %v998 = vpack.c.b16 %v870, %v870
      %v999 = vpack.c.b16 %v871, %v871
      %v1000 = vpack.c.b16 %v872, %v872
      %v1001 = vpack.c.b16 %v873, %v873
      %v1002 = vpack.c.b16 %v874, %v874
      %v1003 = vpack.c.b16 %v875, %v875
      %v1004 = vpack.c.b16 %v876, %v876
      %v1005 = vpack.c.b16 %v877, %v877
      %v1006 = vpack.c.b16 %v878, %v878
      %v1007 = vpack.c.b16 %v879, %v879
      %v1008 = vpack.c.b16 %v880, %v880
      %v1009 = vpack.c.b16 %v881, %v881
      %v1010 = vpack.c.b16 %v882, %v882
      %v1011 = vpack.c.b16 %v883, %v883
      %v1012 = vpack.c.b16 %v884, %v884
      %v1013 = vpack.c.b16 %v885, %v885
      %v1014 = vpack.c.b16 %v886, %v886
      %v1015 = vpack.c.b16 %v887, %v887
      %v1016 = vpack.c.b16 %v888, %v888
      %v1017 = vpack.c.b16 %v889, %v889
      %v1018 = vpack.c.b16 %v890, %v890
      %v1019 = vpack.c.b16 %v891, %v891
      %v1020 = vpack.c.b16 %v892, %v892
      %v1021 = vpack.c.b16 %v893, %v893
      %v1022 = vpack.c.b16 %v894, %v894
      %v1023 = vpack.c.b16 %v895, %v895
      %v1024 = vpack.c.b16 %v896, %v896
      %v1025 = vpack.c.b16 %v897, %v897
      %v1026 = vpack.c.b16 %v898, %v898
      %v1027 = vpack.c.b16 %v899, %v899
      %v1028 = vpack.c.b16 %v900, %v900
      %v1029 = vpack.c.b16 %v901, %v901
      %v1030 = vpack.c.b16 %v902, %v902
      %v1031 = vpack.c.b16 %v903, %v903
      %v1032 = vpack.c.b16 %v904, %v904
      %v1033 = vpack.c.b16 %v905, %v905
      %v1034 = vpack.c.b16 %v906, %v906
      %v1035 = vpack.c.b16 %v907, %v907
      %v1036 = vpack.c.b16 %v908, %v908
      %v1037 = vpack.c.b16 %v909, %v909
      %v1038 = vpack.c.b16 %v910, %v910
      %v1039 = vpack.c.b16 %v911, %v911
      %v1040 = vpack.c.b16 %v912, %v912
      %v1041 = vpack.c.b16 %v913, %v913
      %v1042 = vpack.c.b16 %v914, %v914
      %v1043 = vpack.c.b16 %v915, %v915
      %v1044 = vpack.c.b16 %v916, %v916
      %v1045 = vpack.c.b16 %v917, %v917
      %v1046 = vpack.c.b16 %v918, %v918
      %v1047 = vpack.c.b16 %v919, %v919
      %v1048 = vpack.c.b16 %v920, %v920
      %v1049 = vpack.c.b16 %v921, %v921
      %v1050 = vpack.c.b16 %v922, %v922
      %v1051 = vpack.c.b16 %v923, %v923
      %v1052 = vpack.c.b16 %v924, %v924
      %v1053 = vpack.c.b16 %v925, %v925
      %v1054 = vpack.c.b16 %v926, %v926
      %v1055 = vpack.c.b16 %v927, %v927
      %v1056 = vpack.c.b16 %v928, %v928
      %v1057 = vpack.c.b16 %v929, %v929
      %v1058 = vpack.c.b16 %v930, %v930
      %v1059 = vpack.c.b16 %v931, %v931
      %v1060 = vpack.c.b16 %v932, %v932
      %v1061 = vpack.c.b16 %v933, %v933
      %v1062 = vpack.c.b16 %v934, %v934
      %v1063 = vpack.c.b16 %v935, %v935
      %v1064 = vpack.c.b16 %v936, %v936
      %v1065 = vpack.c.b16 %v937, %v937
      %v1066 = vpack.c.b16 %v938, %v938
      %v1067 = vpack.c.b16 %v939, %v939
      %v1068 = vpack.c.b16 %v940, %v940
      %v1069 = vpack.c.b16 %v941, %v941
      %v1070 = vpack.c.b16 %v942, %v942
      %v1071 = vpack.c.b16 %v943, %v943
      %v1072 = vpack.c.b16 %v944, %v944
      %v1073 = vpack.c.b16 %v945, %v945
      %v1074 = vpack.c.b16 %v946, %v946
      %v1075 = vpack.c.b16 %v947, %v947
      %v1076 = vpack.c.b16 %v948, %v948
      %v1077 = vpack.c.b16 %v949, %v949
      %v1078 = vpack.c.b16 %v950, %v950
      %v1079 = vpack.c.b16 %v951, %v951
      %v1080 = vpack.c.b16 %v952, %v952
      %v1081 = vpack.c.b16 %v953, %v953
      %v1082 = vpack.c.b16 %v954, %v954
      %v1083 = vpack.c.b16 %v955, %v955
      %vm1212 = vcmask 60416
      %1213 = vst.msk [vmem:[%s172] sm:$0xf] %vm1212, %v956
      %1214 = vst.msk [vmem:[%s172 + $0x4] sm:$0xf] %vm1212, %v957
      %1215 = vst.msk [vmem:[%s172 + $0x8] sm:$0xf] %vm1212, %v958
      %1216 = vst.msk [vmem:[%s172 + $0xc] sm:$0xf] %vm1212, %v959
      %1217 = vst.msk [vmem:[%s172 + $0x10] sm:$0xf] %vm1212, %v960
      %1218 = vst.msk [vmem:[%s172 + $0x14] sm:$0xf] %vm1212, %v961
      %1219 = vst.msk [vmem:[%s172 + $0x18] sm:$0xf] %vm1212, %v962
      %1220 = vst.msk [vmem:[%s172 + $0x1c] sm:$0xf] %vm1212, %v963
      %1221 = vst.msk [vmem:[%s172 + $0x20] sm:$0xf] %vm1212, %v964
      %1222 = vst.msk [vmem:[%s172 + $0x24] sm:$0xf] %vm1212, %v965
      %1223 = vst.msk [vmem:[%s172 + $0x28] sm:$0xf] %vm1212, %v966
      %1224 = vst.msk [vmem:[%s172 + $0x2c] sm:$0xf] %vm1212, %v967
      %1225 = vst.msk [vmem:[%s172 + $0x30] sm:$0xf] %vm1212, %v968
      %1226 = vst.msk [vmem:[%s172 + $0x34] sm:$0xf] %vm1212, %v969
      %1227 = vst.msk [vmem:[%s172 + $0x38] sm:$0xf] %vm1212, %v970
      %1228 = vst.msk [vmem:[%s172 + $0x3c] sm:$0xf] %vm1212, %v971
      %1229 = vst.msk [vmem:[%s172 + $0x40] sm:$0xf] %vm1212, %v972
      %1230 = vst.msk [vmem:[%s172 + $0x44] sm:$0xf] %vm1212, %v973
      %1231 = vst.msk [vmem:[%s172 + $0x48] sm:$0xf] %vm1212, %v974
      %1232 = vst.msk [vmem:[%s172 + $0x4c] sm:$0xf] %vm1212, %v975
      %1233 = vst.msk [vmem:[%s172 + $0x50] sm:$0xf] %vm1212, %v976
      %1234 = vst.msk [vmem:[%s172 + $0x54] sm:$0xf] %vm1212, %v977
      %1235 = vst.msk [vmem:[%s172 + $0x58] sm:$0xf] %vm1212, %v978
      %1236 = vst.msk [vmem:[%s172 + $0x5c] sm:$0xf] %vm1212, %v979
      %1237 = vst.msk [vmem:[%s172 + $0x60] sm:$0xf] %vm1212, %v980
      %1238 = vst.msk [vmem:[%s172 + $0x64] sm:$0xf] %vm1212, %v981
      %1239 = vst.msk [vmem:[%s172 + $0x68] sm:$0xf] %vm1212, %v982
      %1240 = vst.msk [vmem:[%s172 + $0x6c] sm:$0xf] %vm1212, %v983
      %1241 = vst.msk [vmem:[%s172 + $0x70] sm:$0xf] %vm1212, %v984
      %1242 = vst.msk [vmem:[%s172 + $0x74] sm:$0xf] %vm1212, %v985
      %1243 = vst.msk [vmem:[%s172 + $0x78] sm:$0xf] %vm1212, %v986
      %1244 = vst.msk [vmem:[%s172 + $0x7c] sm:$0xf] %vm1212, %v987
      %1245 = vst.msk [vmem:[%s172 + $0x80] sm:$0xf] %vm1212, %v988
      %1246 = vst.msk [vmem:[%s172 + $0x84] sm:$0xf] %vm1212, %v989
      %1247 = vst.msk [vmem:[%s172 + $0x88] sm:$0xf] %vm1212, %v990
      %1248 = vst.msk [vmem:[%s172 + $0x8c] sm:$0xf] %vm1212, %v991
      %1249 = vst.msk [vmem:[%s172 + $0x90] sm:$0xf] %vm1212, %v992
      %1250 = vst.msk [vmem:[%s172 + $0x94] sm:$0xf] %vm1212, %v993
      %1251 = vst.msk [vmem:[%s172 + $0x98] sm:$0xf] %vm1212, %v994
      %1252 = vst.msk [vmem:[%s172 + $0x9c] sm:$0xf] %vm1212, %v995
      %1253 = vst.msk [vmem:[%s172 + $0xa0] sm:$0xf] %vm1212, %v996
      %1254 = vst.msk [vmem:[%s172 + $0xa4] sm:$0xf] %vm1212, %v997
      %1255 = vst.msk [vmem:[%s172 + $0xa8] sm:$0xf] %vm1212, %v998
      %1256 = vst.msk [vmem:[%s172 + $0xac] sm:$0xf] %vm1212, %v999
      %1257 = vst.msk [vmem:[%s172 + $0xb0] sm:$0xf] %vm1212, %v1000
      %1258 = vst.msk [vmem:[%s172 + $0xb4] sm:$0xf] %vm1212, %v1001
      %1259 = vst.msk [vmem:[%s172 + $0xb8] sm:$0xf] %vm1212, %v1002
      %1260 = vst.msk [vmem:[%s172 + $0xbc] sm:$0xf] %vm1212, %v1003
      %1261 = vst.msk [vmem:[%s172 + $0xc0] sm:$0xf] %vm1212, %v1004
      %1262 = vst.msk [vmem:[%s172 + $0xc4] sm:$0xf] %vm1212, %v1005
      %1263 = vst.msk [vmem:[%s172 + $0xc8] sm:$0xf] %vm1212, %v1006
      %1264 = vst.msk [vmem:[%s172 + $0xcc] sm:$0xf] %vm1212, %v1007
      %1265 = vst.msk [vmem:[%s172 + $0xd0] sm:$0xf] %vm1212, %v1008
      %1266 = vst.msk [vmem:[%s172 + $0xd4] sm:$0xf] %vm1212, %v1009
      %1267 = vst.msk [vmem:[%s172 + $0xd8] sm:$0xf] %vm1212, %v1010
      %1268 = vst.msk [vmem:[%s172 + $0xdc] sm:$0xf] %vm1212, %v1011
      %1269 = vst.msk [vmem:[%s172 + $0xe0] sm:$0xf] %vm1212, %v1012
      %1270 = vst.msk [vmem:[%s172 + $0xe4] sm:$0xf] %vm1212, %v1013
      %1271 = vst.msk [vmem:[%s172 + $0xe8] sm:$0xf] %vm1212, %v1014
      %1272 = vst.msk [vmem:[%s172 + $0xec] sm:$0xf] %vm1212, %v1015
      %1273 = vst.msk [vmem:[%s172 + $0xf0] sm:$0xf] %vm1212, %v1016
      %1274 = vst.msk [vmem:[%s172 + $0xf4] sm:$0xf] %vm1212, %v1017
      %1275 = vst.msk [vmem:[%s172 + $0xf8] sm:$0xf] %vm1212, %v1018
      %1276 = vst.msk [vmem:[%s172 + $0xfc] sm:$0xf] %vm1212, %v1019
      %1277 = vst.msk [vmem:[%s172 + $0x100] sm:$0xf] %vm1212, %v1020
      %1278 = vst.msk [vmem:[%s172 + $0x104] sm:$0xf] %vm1212, %v1021
      %1279 = vst.msk [vmem:[%s172 + $0x108] sm:$0xf] %vm1212, %v1022
      %1280 = vst.msk [vmem:[%s172 + $0x10c] sm:$0xf] %vm1212, %v1023
      %1281 = vst.msk [vmem:[%s172 + $0x110] sm:$0xf] %vm1212, %v1024
      %1282 = vst.msk [vmem:[%s172 + $0x114] sm:$0xf] %vm1212, %v1025
      %1283 = vst.msk [vmem:[%s172 + $0x118] sm:$0xf] %vm1212, %v1026
      %1284 = vst.msk [vmem:[%s172 + $0x11c] sm:$0xf] %vm1212, %v1027
      %1285 = vst.msk [vmem:[%s172 + $0x120] sm:$0xf] %vm1212, %v1028
      %1286 = vst.msk [vmem:[%s172 + $0x124] sm:$0xf] %vm1212, %v1029
      %1287 = vst.msk [vmem:[%s172 + $0x128] sm:$0xf] %vm1212, %v1030
      %1288 = vst.msk [vmem:[%s172 + $0x12c] sm:$0xf] %vm1212, %v1031
      %1289 = vst.msk [vmem:[%s172 + $0x130] sm:$0xf] %vm1212, %v1032
      %1290 = vst.msk [vmem:[%s172 + $0x134] sm:$0xf] %vm1212, %v1033
      %1291 = vst.msk [vmem:[%s172 + $0x138] sm:$0xf] %vm1212, %v1034
      %1292 = vst.msk [vmem:[%s172 + $0x13c] sm:$0xf] %vm1212, %v1035
      %1293 = vst.msk [vmem:[%s172 + $0x140] sm:$0xf] %vm1212, %v1036
      %1294 = vst.msk [vmem:[%s172 + $0x144] sm:$0xf] %vm1212, %v1037
      %1295 = vst.msk [vmem:[%s172 + $0x148] sm:$0xf] %vm1212, %v1038
      %1296 = vst.msk [vmem:[%s172 + $0x14c] sm:$0xf] %vm1212, %v1039
      %1297 = vst.msk [vmem:[%s172 + $0x150] sm:$0xf] %vm1212, %v1040
      %1298 = vst.msk [vmem:[%s172 + $0x154] sm:$0xf] %vm1212, %v1041
      %1299 = vst.msk [vmem:[%s172 + $0x158] sm:$0xf] %vm1212, %v1042
      %1300 = vst.msk [vmem:[%s172 + $0x15c] sm:$0xf] %vm1212, %v1043
      %1301 = vst.msk [vmem:[%s172 + $0x160] sm:$0xf] %vm1212, %v1044
      %1302 = vst.msk [vmem:[%s172 + $0x164] sm:$0xf] %vm1212, %v1045
      %1303 = vst.msk [vmem:[%s172 + $0x168] sm:$0xf] %vm1212, %v1046
      %1304 = vst.msk [vmem:[%s172 + $0x16c] sm:$0xf] %vm1212, %v1047
      %1305 = vst.msk [vmem:[%s172 + $0x170] sm:$0xf] %vm1212, %v1048
      %1306 = vst.msk [vmem:[%s172 + $0x174] sm:$0xf] %vm1212, %v1049
      %1307 = vst.msk [vmem:[%s172 + $0x178] sm:$0xf] %vm1212, %v1050
      %1308 = vst.msk [vmem:[%s172 + $0x17c] sm:$0xf] %vm1212, %v1051
      %1309 = vst.msk [vmem:[%s172 + $0x180] sm:$0xf] %vm1212, %v1052
      %1310 = vst.msk [vmem:[%s172 + $0x184] sm:$0xf] %vm1212, %v1053
      %1311 = vst.msk [vmem:[%s172 + $0x188] sm:$0xf] %vm1212, %v1054
      %1312 = vst.msk [vmem:[%s172 + $0x18c] sm:$0xf] %vm1212, %v1055
      %1313 = vst.msk [vmem:[%s172 + $0x190] sm:$0xf] %vm1212, %v1056
      %1314 = vst.msk [vmem:[%s172 + $0x194] sm:$0xf] %vm1212, %v1057
      %1315 = vst.msk [vmem:[%s172 + $0x198] sm:$0xf] %vm1212, %v1058
      %1316 = vst.msk [vmem:[%s172 + $0x19c] sm:$0xf] %vm1212, %v1059
      %1317 = vst.msk [vmem:[%s172 + $0x1a0] sm:$0xf] %vm1212, %v1060
      %1318 = vst.msk [vmem:[%s172 + $0x1a4] sm:$0xf] %vm1212, %v1061
      %1319 = vst.msk [vmem:[%s172 + $0x1a8] sm:$0xf] %vm1212, %v1062
      %1320 = vst.msk [vmem:[%s172 + $0x1ac] sm:$0xf] %vm1212, %v1063
      %1321 = vst.msk [vmem:[%s172 + $0x1b0] sm:$0xf] %vm1212, %v1064
      %1322 = vst.msk [vmem:[%s172 + $0x1b4] sm:$0xf] %vm1212, %v1065
      %1323 = vst.msk [vmem:[%s172 + $0x1b8] sm:$0xf] %vm1212, %v1066
      %1324 = vst.msk [vmem:[%s172 + $0x1bc] sm:$0xf] %vm1212, %v1067
      %1325 = vst.msk [vmem:[%s172 + $0x1c0] sm:$0xf] %vm1212, %v1068
      %1326 = vst.msk [vmem:[%s172 + $0x1c4] sm:$0xf] %vm1212, %v1069
      %1327 = vst.msk [vmem:[%s172 + $0x1c8] sm:$0xf] %vm1212, %v1070
      %1328 = vst.msk [vmem:[%s172 + $0x1cc] sm:$0xf] %vm1212, %v1071
      %1329 = vst.msk [vmem:[%s172 + $0x1d0] sm:$0xf] %vm1212, %v1072
      %1330 = vst.msk [vmem:[%s172 + $0x1d4] sm:$0xf] %vm1212, %v1073
      %1331 = vst.msk [vmem:[%s172 + $0x1d8] sm:$0xf] %vm1212, %v1074
      %1332 = vst.msk [vmem:[%s172 + $0x1dc] sm:$0xf] %vm1212, %v1075
      %1333 = vst.msk [vmem:[%s172 + $0x1e0] sm:$0xf] %vm1212, %v1076
      %1334 = vst.msk [vmem:[%s172 + $0x1e4] sm:$0xf] %vm1212, %v1077
      %1335 = vst.msk [vmem:[%s172 + $0x1e8] sm:$0xf] %vm1212, %v1078
      %1336 = vst.msk [vmem:[%s172 + $0x1ec] sm:$0xf] %vm1212, %v1079
      %1337 = vst.msk [vmem:[%s172 + $0x1f0] sm:$0xf] %vm1212, %v1080
      %1338 = vst.msk [vmem:[%s172 + $0x1f4] sm:$0xf] %vm1212, %v1081
      %1339 = vst.msk [vmem:[%s172 + $0x1f8] sm:$0xf] %vm1212, %v1082
      %1340 = vst.msk [vmem:[%s172 + $0x1fc] sm:$0xf] %vm1212, %v1083
      %s1341 = smul.u32 128, %s14
      %p1342 = scmp.lt.s32.totalorder %s1341, 255
      %s1343 = scalar_select %p1342, %s1341, 255
      %s1344 = smul.addr %s1343, 4
      %s1345 = scalar_lea.vmem %s3, %s1344
      // Predicated region
      $region33: #{a_call__.16} parent=31 // pred_check
        %p1346 = pneg %p100
      $region34: #{a_call__.16} parent=31 // pred_check_branch
        %1348 = sbr.rel (%p1346) target = $region36
      $region35: #{a_call__.16} parent=31 // pred_region
        %s1349 = smul.u32 128, %s14
      $region36: #{a_call__.16} parent=31 // pred_fallthru
        _
    $region32: #{a_call__.16} parent=5 // pred_fallthru
      _
    %p1350 = scmp.le.s32.totalorder 2, %s9
    // Predicated region
    $region37: #{a_call__.16} parent=5 // pred_check
      %p1351 = pneg %p1350
    $region38: #{a_call__.16} parent=5 // pred_check_branch
      %1353 = sbr.rel (%p1351) target = $region40
    $region39: #{a_call__.16} parent=5 // pred_region
      %s1354 = ssub.s32 %s9, 2
      // Predicated region
      $region41: #{a_call__.16} parent=39 // pred_check
        %p1355 = pneg %p106
      $region42: #{a_call__.16} parent=39 // pred_check_branch
        %1357 = sbr.rel (%p1355) target = $region44
      $region43: #{a_call__.16} parent=39 // pred_region
        %s1358 = smul.u32 128, %s15
        %p1359 = scmp.lt.s32.totalorder %s1358, 255
        %s1360 = scalar_select %p1359, %s1358, 255
        %s1361 = smul.addr %s1360, 4
        %s1362 = scalar_lea.vmem %s3, %s1361
      $region44: #{a_call__.16} parent=39 // pred_fallthru
        _
    $region40: #{a_call__.16} parent=5 // pred_fallthru
      _
  $region6: #{a_call__.16} parent=0 // loop_footer
    %s13 = sadd.s32 1, %s9
  $region7: #{a_call__.16} parent=0 // loop_footer_branch
    %8 = sbr.rel target = $region3
  $region8: #{a_call__.16} parent=0 // loop_exit
    _

// kernel: a_call__.17
$region0: #{a_call__.17}
  #allocation0 [shape = 'u32[]', space=smem, size = 0x4, offset = 0x4, fixed_abs, tag = 'smem constant byte address 0x4 - core index']
  #allocation1 [shape = 'u32[144,128]{1,0:T(1,128)}', space=vmem, size = 0x12000, scoped, tag = 'internal scratch']
  %s0 = inlined_call_operand.vmem [shape: bf16[8192,128], index: 0, kind: input, shape index: {}]
  %s1 = inlined_call_operand.vmem [shape: bf16[128,128], index: 1, kind: input, shape index: {}]
  %s2 = inlined_call_operand.vmem [shape: f32[8192,128], index: 2, kind: output, shape index: {}]
  %s3 = sld [smem:[#allocation0]]
  $region41: #{a_call__.17} parent=0
    _
  %s5 = ssub.s32 1, %s3
  %s6 = scalar_select 0, %s5, %s3
  loop: start=0, step=1, limit=34
  $region2: #{a_call__.17} parent=0 // loop_pre_header
    _
  $region3: #{a_call__.17} parent=0 // loop_header
    %s8 = sphi 0, %s12
    %p9 = scmp.ge.s32.totalorder %s8, 34
    %s18 = sphi 0, %s20
    %s21 = sphi 0, %s18
    %s22 = sphi 0, %s21
    %s38 = sphi 0, %s22
    %s42 = sphi 0, %s42
    %s44 = sphi 0, %s42
    %s45 = sphi 0, %s44
    %s59 = sphi 0, %s45
    %s65 = sphi 0, %s67
    %s68 = sphi 0, %s65
    %s69 = sphi 0, %s68
    %s85 = sphi 0, %s69
  $region4: #{a_call__.17} parent=0 // loop_header_branch
    %11 = sbr.rel (%p9) target = $region8
  $region5: #{a_call__.17} parent=0 // loop_body
    %s13 = ssub.s32 %s8, 1
    %s14 = ssub.s32 %s8, 2
    %s15 = sadd.s32 %s8, 1
    %s16 = ssub.s32 %s8, %s15
    %p17 = scmp.eq.s32.totalorder %s16, 0
    %s19 = sadd.s32 %s18, 1
    %s20 = scalar_select %p17, %s18, %s19
    %p23 = pneg %p17
    %p24 = scmp.eq.s32.totalorder %s8, 31
    %p25 = por %p23, %p24
    %p26 = scmp.ne.s32.totalorder %s18, %s21
    %p27 = scmp.eq.s32.totalorder %s8, 0
    %p28 = por %p26, %p27
    %p29 = scmp.ne.s32.totalorder %s18, %s21
    %p30 = scmp.eq.s32.totalorder %s13, 31
    %p31 = por %p29, %p30
    %p32 = scmp.ne.s32.totalorder %s21, %s22
    %p33 = scmp.eq.s32.totalorder %s13, 0
    %p34 = por %p32, %p33
    %p35 = scmp.ne.s32.totalorder %s21, %s22
    %p36 = scmp.eq.s32.totalorder %s14, 31
    %p37 = por %p35, %p36
    %p39 = scmp.ne.s32.totalorder %s22, %s38
    %p40 = scmp.eq.s32.totalorder %s14, 0
    %p41 = por %p39, %p40
    %s43 = sadd.s32 %s42, 1
    %p46 = scmp.eq.s32.totalorder %s8, 31
    %p47 = scmp.ne.s32.totalorder %s42, %s44
    %p48 = scmp.eq.s32.totalorder %s8, 0
    %p49 = por %p47, %p48
    %p50 = scmp.ne.s32.totalorder %s42, %s44
    %p51 = scmp.eq.s32.totalorder %s13, 31
    %p52 = por %p50, %p51
    %p53 = scmp.ne.s32.totalorder %s44, %s45
    %p54 = scmp.eq.s32.totalorder %s13, 0
    %p55 = por %p53, %p54
    %p56 = scmp.ne.s32.totalorder %s44, %s45
    %p57 = scmp.eq.s32.totalorder %s14, 31
    %p58 = por %p56, %p57
    %p60 = scmp.ne.s32.totalorder %s45, %s59
    %p61 = scmp.eq.s32.totalorder %s14, 0
    %p62 = por %p60, %p61
    %s63 = ssub.s32 %s8, %s15
    %p64 = scmp.eq.s32.totalorder %s63, 0
    %s66 = sadd.s32 %s65, 1
    %s67 = scalar_select %p64, %s65, %s66
    %p70 = pneg %p64
    %p71 = scmp.eq.s32.totalorder %s8, 31
    %p72 = por %p70, %p71
    %p73 = scmp.ne.s32.totalorder %s65, %s68
    %p74 = scmp.eq.s32.totalorder %s8, 0
    %p75 = por %p73, %p74
    %p76 = scmp.ne.s32.totalorder %s65, %s68
    %p77 = scmp.eq.s32.totalorder %s13, 31
    %p78 = por %p76, %p77
    %p79 = scmp.ne.s32.totalorder %s68, %s69
    %p80 = scmp.eq.s32.totalorder %s13, 0
    %p81 = por %p79, %p80
    %p82 = scmp.ne.s32.totalorder %s68, %s69
    %p83 = scmp.eq.s32.totalorder %s14, 31
    %p84 = por %p82, %p83
    %p86 = scmp.ne.s32.totalorder %s69, %s85
    %p87 = scmp.eq.s32.totalorder %s14, 0
    %p88 = por %p86, %p87
    %p89 = scmp.le.s32.totalorder 1, %s8
    %p90 = scmp.lt.s32.totalorder %s8, 33
    %p91 = pnand %p89, %p90
    %p92 = pneg %p91
    // Predicated region
    $region9: #{a_call__.17} parent=5 // pred_check
      _
    $region10: #{a_call__.17} parent=5 // pred_check_branch
      %94 = sbr.rel (%p91) target = $region12
    $region11: #{a_call__.17} parent=5 // pred_region
      %s95 = ssub.s32 %s8, 1
      // Predicated region
      $region13: #{a_call__.17} parent=11 // pred_check
        %p96 = pneg %p55
      $region14: #{a_call__.17} parent=11 // pred_check_branch
        %98 = sbr.rel (%p96) target = $region16
      $region15: #{a_call__.17} parent=11 // pred_region
        _
      $region16: #{a_call__.17} parent=11 // pred_fallthru
        _
    $region12: #{a_call__.17} parent=5 // pred_fallthru
      _
    %p99 = scmp.lt.s32.totalorder %s8, 32
    // Predicated region
    $region17: #{a_call__.17} parent=5 // pred_check
      %p100 = pneg %p99
    $region18: #{a_call__.17} parent=5 // pred_check_branch
      %102 = sbr.rel (%p100) target = $region20
    $region19: #{a_call__.17} parent=5 // pred_region
      // Predicated region
      $region21: #{a_call__.17} parent=19 // pred_check
        %p103 = pneg %p28
      $region22: #{a_call__.17} parent=19 // pred_check_branch
        %105 = sbr.rel (%p103) target = $region24
      $region23: #{a_call__.17} parent=19 // pred_region
        %s106 = smul.u32 32, %s8
        %p107 = scmp.lt.s32.totalorder %s106, 1023
        %s108 = scalar_select %p107, %s106, 1023
        %s109 = smul.addr %s108, 4
        %s110 = scalar_lea.vmem %s0, %s109
        %s111 = smul.u32 32, %s8
      $region24: #{a_call__.17} parent=19 // pred_fallthru
        _
    $region20: #{a_call__.17} parent=5 // pred_fallthru
      _
    %p112 = scmp.le.s32.totalorder 1, %s8
    %p113 = scmp.lt.s32.totalorder %s8, 33
    %p114 = pnand %p112, %p113
    %p115 = pneg %p114
    // Predicated region
    $region25: #{a_call__.17} parent=5 // pred_check
      _
    $region26: #{a_call__.17} parent=5 // pred_check_branch
      %117 = sbr.rel (%p114) target = $region28
    $region27: #{a_call__.17} parent=5 // pred_region
      %s118 = ssub.s32 %s8, 1
      %s119 = smul.u32 32, %s13
      %p120 = scmp.lt.s32.totalorder %s119, 1023
      %s121 = scalar_select %p120, %s119, 1023
      %s122 = smul.addr %s121, 4
      %s123 = scalar_lea.vmem %s0, %s122
      %p124 = pneg %p34
      %p125 = pneg %p31
      %p126 = pneg %p55
      %p127 = pneg %p52
      %p128 = pneg %p81
      %p129 = pneg %p78
      %s130 = smul.u32 32, %s13
      %p131 = scmp.lt.s32.totalorder %s130, 1023
      %s132 = scalar_select %p131, %s130, 1023
      %s133 = smul.addr %s132, 8
      %s134 = scalar_lea.vmem %s2, %s133
      %s135 = smul.u32 32, %s13
      %p136 = scmp.lt.s32.totalorder %s135, 1023
      %s137 = scalar_select %p136, %s135, 1023
      %s138 = smul.addr %s137, 4
      %s139 = scalar_lea.vmem %s0, %s138
      %s140 = smul.u32 32, %s13
      %s141 = smul.u32 32, %s13
      %p142 = scmp.lt.s32.totalorder %s141, 1023
      %s143 = scalar_select %p142, %s141, 1023
      %s144 = smul.addr %s143, 8
      %s145 = scalar_lea.vmem %s2, %s144
      %s146 = smul.u32 32, %s13
      %v148 = vld [vmem:[%s139] sm:$0xf]
      %v149 = vld [vmem:[%s139 + $0x4] sm:$0xf]
      %v150 = vld [vmem:[%s139 + $0x8] sm:$0xf]
      %v151 = vld [vmem:[%s139 + $0xc] sm:$0xf]
      %v152 = vld [vmem:[%s139 + $0x10] sm:$0xf]
      %v153 = vld [vmem:[%s139 + $0x14] sm:$0xf]
      %v154 = vld [vmem:[%s139 + $0x18] sm:$0xf]
      %v155 = vld [vmem:[%s139 + $0x1c] sm:$0xf]
      %v156 = vld [vmem:[%s139 + $0x20] sm:$0xf]
      %v157 = vld [vmem:[%s139 + $0x24] sm:$0xf]
      %v158 = vld [vmem:[%s139 + $0x28] sm:$0xf]
      %v159 = vld [vmem:[%s139 + $0x2c] sm:$0xf]
      %v160 = vld [vmem:[%s139 + $0x30] sm:$0xf]
      %v161 = vld [vmem:[%s139 + $0x34] sm:$0xf]
      %v162 = vld [vmem:[%s139 + $0x38] sm:$0xf]
      %v163 = vld [vmem:[%s139 + $0x3c] sm:$0xf]
      %v164 = vld [vmem:[%s139 + $0x40] sm:$0xf]
      %v165 = vld [vmem:[%s139 + $0x44] sm:$0xf]
      %v166 = vld [vmem:[%s139 + $0x48] sm:$0xf]
      %v167 = vld [vmem:[%s139 + $0x4c] sm:$0xf]
      %v168 = vld [vmem:[%s139 + $0x50] sm:$0xf]
      %v169 = vld [vmem:[%s139 + $0x54] sm:$0xf]
      %v170 = vld [vmem:[%s139 + $0x58] sm:$0xf]
      %v171 = vld [vmem:[%s139 + $0x5c] sm:$0xf]
      %v172 = vld [vmem:[%s139 + $0x60] sm:$0xf]
      %v173 = vld [vmem:[%s139 + $0x64] sm:$0xf]
      %v174 = vld [vmem:[%s139 + $0x68] sm:$0xf]
      %v175 = vld [vmem:[%s139 + $0x6c] sm:$0xf]
      %v176 = vld [vmem:[%s139 + $0x70] sm:$0xf]
      %v177 = vld [vmem:[%s139 + $0x74] sm:$0xf]
      %v178 = vld [vmem:[%s139 + $0x78] sm:$0xf]
      %v179 = vld [vmem:[%s139 + $0x7c] sm:$0xf]
      %v180 = vld [vmem:[%s1] sm:$0xf]
      %v181 = vld [vmem:[%s1 + $0x4] sm:$0xf]
      %v182 = vld [vmem:[%s1 + $0x8] sm:$0xf]
      %v183 = vld [vmem:[%s1 + $0xc] sm:$0xf]
      %v184 = vld [vmem:[%s1 + $0x10] sm:$0xf]
      %v185 = vld [vmem:[%s1 + $0x14] sm:$0xf]
      %v186 = vld [vmem:[%s1 + $0x18] sm:$0xf]
      %v187 = vld [vmem:[%s1 + $0x1c] sm:$0xf]
      %v188 = vld [vmem:[%s1 + $0x20] sm:$0xf]
      %v189 = vld [vmem:[%s1 + $0x24] sm:$0xf]
      %v190 = vld [vmem:[%s1 + $0x28] sm:$0xf]
      %v191 = vld [vmem:[%s1 + $0x2c] sm:$0xf]
      %v192 = vld [vmem:[%s1 + $0x30] sm:$0xf]
      %v193 = vld [vmem:[%s1 + $0x34] sm:$0xf]
      %v194 = vld [vmem:[%s1 + $0x38] sm:$0xf]
      %v195 = vld [vmem:[%s1 + $0x3c] sm:$0xf]
      %v228 = vunpack.c.l.b16 %v148
      %v229 = vunpack.c.l.b16 %v149
      %v230 = vunpack.c.l.b16 %v150
      %v231 = vunpack.c.l.b16 %v151
      %v232 = vunpack.c.l.b16 %v152
      %v233 = vunpack.c.l.b16 %v153
      %v234 = vunpack.c.l.b16 %v154
      %v235 = vunpack.c.l.b16 %v155
      %v236 = vunpack.c.l.b16 %v156
      %v237 = vunpack.c.l.b16 %v157
      %v238 = vunpack.c.l.b16 %v158
      %v239 = vunpack.c.l.b16 %v159
      %v240 = vunpack.c.l.b16 %v160
      %v241 = vunpack.c.l.b16 %v161
      %v242 = vunpack.c.l.b16 %v162
      %v243 = vunpack.c.l.b16 %v163
      %v244 = vunpack.c.l.b16 %v164
      %v245 = vunpack.c.l.b16 %v165
      %v246 = vunpack.c.l.b16 %v166
      %v247 = vunpack.c.l.b16 %v167
      %v248 = vunpack.c.l.b16 %v168
      %v249 = vunpack.c.l.b16 %v169
      %v250 = vunpack.c.l.b16 %v170
      %v251 = vunpack.c.l.b16 %v171
      %v252 = vunpack.c.l.b16 %v172
      %v253 = vunpack.c.l.b16 %v173
      %v254 = vunpack.c.l.b16 %v174
      %v255 = vunpack.c.l.b16 %v175
      %v256 = vunpack.c.l.b16 %v176
      %v257 = vunpack.c.l.b16 %v177
      %v258 = vunpack.c.l.b16 %v178
      %v259 = vunpack.c.l.b16 %v179
      %v260 = vpack.c.b16 %v229, %v228
      %v261 = vpack.c.b16 %v231, %v230
      %v262 = vpack.c.b16 %v233, %v232
      %v263 = vpack.c.b16 %v235, %v234
      %v264 = vpack.c.b16 %v237, %v236
      %v265 = vpack.c.b16 %v239, %v238
      %v266 = vpack.c.b16 %v241, %v240
      %v267 = vpack.c.b16 %v243, %v242
      %v268 = vpack.c.b16 %v245, %v244
      %v269 = vpack.c.b16 %v247, %v246
      %v270 = vpack.c.b16 %v249, %v248
      %v271 = vpack.c.b16 %v251, %v250
      %v272 = vpack.c.b16 %v253, %v252
      %v273 = vpack.c.b16 %v255, %v254
      %v274 = vpack.c.b16 %v257, %v256
      %v275 = vpack.c.b16 %v259, %v258
      %v308 = vunpack.c.l.b16 %v180
      %v309 = vunpack.c.l.b16 %v181
      %v310 = vunpack.c.l.b16 %v182
      %v311 = vunpack.c.l.b16 %v183
      %v312 = vunpack.c.l.b16 %v184
      %v313 = vunpack.c.l.b16 %v185
      %v314 = vunpack.c.l.b16 %v186
      %v315 = vunpack.c.l.b16 %v187
      %v316 = vunpack.c.l.b16 %v188
      %v317 = vunpack.c.l.b16 %v189
      %v318 = vunpack.c.l.b16 %v190
      %v319 = vunpack.c.l.b16 %v191
      %v320 = vunpack.c.l.b16 %v192
      %v321 = vunpack.c.l.b16 %v193
      %v322 = vunpack.c.l.b16 %v194
      %v323 = vunpack.c.l.b16 %v195
      %v324 = vpack.c.b16 %v309, %v308
      %v325 = vpack.c.b16 %v311, %v310
      %v326 = vpack.c.b16 %v313, %v312
      %v327 = vpack.c.b16 %v315, %v314
      %v328 = vpack.c.b16 %v317, %v316
      %v329 = vpack.c.b16 %v319, %v318
      %v330 = vpack.c.b16 %v321, %v320
      %v331 = vpack.c.b16 %v323, %v322
      %340 = vmatprep.subr.bf16.mxu0 0
      %341 = vmatpush1.bf16.msra.mxu0 %v324
      %342 = vmatprep.subr.bf16.mxu0 0
      %343 = vmatpush1.bf16.msra.mxu0 %v325
      %344 = vmatprep.subr.bf16.mxu0 0
      %345 = vmatpush1.bf16.msra.mxu0 %v326
      %346 = vmatprep.subr.bf16.mxu0 0
      %347 = vmatpush1.bf16.msra.mxu0 %v327
      %348 = vmatprep.subr.bf16.mxu0 0
      %349 = vmatpush1.bf16.msra.mxu0 %v328
      %350 = vmatprep.subr.bf16.mxu0 0
      %351 = vmatpush1.bf16.msra.mxu0 %v329
      %352 = vmatprep.subr.bf16.mxu0 0
      %353 = vmatpush1.bf16.msra.mxu0 %v330
      %354 = vmatprep.subr.bf16.mxu0 0
      %355 = vmatpush1.bf16.msra.mxu0 %v331
      %356 = vmatprep.subr.bf16.mxu0 0
      %357 = vmatpush1.bf16.msra.mxu0 0
      %358 = vmatprep.subr.bf16.mxu0 0
      %359 = vmatpush1.bf16.msra.mxu0 0
      %360 = vmatprep.subr.bf16.mxu0 0
      %361 = vmatpush1.bf16.msra.mxu0 0
      %362 = vmatprep.subr.bf16.mxu0 0
      %363 = vmatpush1.bf16.msra.mxu0 0
      %364 = vmatprep.subr.bf16.mxu0 0
      %365 = vmatpush1.bf16.msra.mxu0 0
      %366 = vmatprep.subr.bf16.mxu0 0
      %367 = vmatpush1.bf16.msra.mxu0 0
      %368 = vmatprep.subr.bf16.mxu0 0
      %369 = vmatpush1.bf16.msra.mxu0 0
      %370 = vmatprep.subr.bf16.mxu0 0
      %371 = vmatpush1.bf16.msra.mxu0 0
      %372 = vmatprep.mubr.bf16.mxu0 0
      %373 = vmatmul.mubr.bf16.gmra.mrb[0].mxu0 %v260
      %v374 = vpop.f32.mrb[0].mxu0
      %v375 = vadd.f32 0.0, %v374
      %v376 = vpop.f32.mrb[0].mxu0
      %v377 = vpop.f32.mrb[0].mxu0
      %v378 = vadd.f32 0.0, %v377
      %v379 = vpop.f32.mrb[0].mxu0
      %380 = vmatprep.mubr.bf16.mxu0 0
      %381 = vmatmul.mubr.bf16.gmra.mrb[0].mxu0 %v261
      %v382 = vpop.f32.mrb[0].mxu0
      %v383 = vadd.f32 0.0, %v382
      %v384 = vpop.f32.mrb[0].mxu0
      %v385 = vpop.f32.mrb[0].mxu0
      %v386 = vadd.f32 0.0, %v385
      %v387 = vpop.f32.mrb[0].mxu0
      %388 = vmatprep.mubr.bf16.mxu0 0
      %389 = vmatmul.mubr.bf16.gmra.mrb[0].mxu0 %v262
      %v390 = vpop.f32.mrb[0].mxu0
      %v391 = vadd.f32 0.0, %v390
      %v392 = vpop.f32.mrb[0].mxu0
      %v393 = vpop.f32.mrb[0].mxu0
      %v394 = vadd.f32 0.0, %v393
      %v395 = vpop.f32.mrb[0].mxu0
      %396 = vmatprep.mubr.bf16.mxu0 0
      %397 = vmatmul.mubr.bf16.gmra.mrb[0].mxu0 %v263
      %v398 = vpop.f32.mrb[0].mxu0
      %v399 = vadd.f32 0.0, %v398
      %v400 = vpop.f32.mrb[0].mxu0
      %v401 = vpop.f32.mrb[0].mxu0
      %v402 = vadd.f32 0.0, %v401
      %v403 = vpop.f32.mrb[0].mxu0
      %404 = vmatprep.mubr.bf16.mxu0 0
      %405 = vmatmul.mubr.bf16.gmra.mrb[0].mxu0 %v264
      %v406 = vpop.f32.mrb[0].mxu0
      %v407 = vadd.f32 0.0, %v406
      %v408 = vpop.f32.mrb[0].mxu0
      %v409 = vpop.f32.mrb[0].mxu0
      %v410 = vadd.f32 0.0, %v409
      %v411 = vpop.f32.mrb[0].mxu0
      %412 = vmatprep.mubr.bf16.mxu0 0
      %413 = vmatmul.mubr.bf16.gmra.mrb[0].mxu0 %v265
      %v414 = vpop.f32.mrb[0].mxu0
      %v415 = vadd.f32 0.0, %v414
      %v416 = vpop.f32.mrb[0].mxu0
      %v417 = vpop.f32.mrb[0].mxu0
      %v418 = vadd.f32 0.0, %v417
      %v419 = vpop.f32.mrb[0].mxu0
      %420 = vmatprep.mubr.bf16.mxu0 0
      %421 = vmatmul.mubr.bf16.gmra.mrb[0].mxu0 %v266
      %v422 = vpop.f32.mrb[0].mxu0
      %v423 = vadd.f32 0.0, %v422
      %v424 = vpop.f32.mrb[0].mxu0
      %v425 = vpop.f32.mrb[0].mxu0
      %v426 = vadd.f32 0.0, %v425
      %v427 = vpop.f32.mrb[0].mxu0
      %428 = vmatprep.mubr.bf16.mxu0 0
      %429 = vmatmul.mubr.bf16.gmra.mrb[0].mxu0 %v267
      %v430 = vpop.f32.mrb[0].mxu0
      %v431 = vadd.f32 0.0, %v430
      %v432 = vpop.f32.mrb[0].mxu0
      %v433 = vpop.f32.mrb[0].mxu0
      %v434 = vadd.f32 0.0, %v433
      %v435 = vpop.f32.mrb[0].mxu0
      %436 = vmatprep.mubr.bf16.mxu0 0
      %437 = vmatmul.mubr.bf16.gmra.mrb[0].mxu0 %v268
      %v438 = vpop.f32.mrb[0].mxu0
      %v439 = vadd.f32 0.0, %v438
      %v440 = vpop.f32.mrb[0].mxu0
      %v441 = vpop.f32.mrb[0].mxu0
      %v442 = vadd.f32 0.0, %v441
      %v443 = vpop.f32.mrb[0].mxu0
      %444 = vmatprep.mubr.bf16.mxu0 0
      %445 = vmatmul.mubr.bf16.gmra.mrb[0].mxu0 %v269
      %v446 = vpop.f32.mrb[0].mxu0
      %v447 = vadd.f32 0.0, %v446
      %v448 = vpop.f32.mrb[0].mxu0
      %v449 = vpop.f32.mrb[0].mxu0
      %v450 = vadd.f32 0.0, %v449
      %v451 = vpop.f32.mrb[0].mxu0
      %452 = vmatprep.mubr.bf16.mxu0 0
      %453 = vmatmul.mubr.bf16.gmra.mrb[0].mxu0 %v270
      %v454 = vpop.f32.mrb[0].mxu0
      %v455 = vadd.f32 0.0, %v454
      %v456 = vpop.f32.mrb[0].mxu0
      %v457 = vpop.f32.mrb[0].mxu0
      %v458 = vadd.f32 0.0, %v457
      %v459 = vpop.f32.mrb[0].mxu0
      %460 = vmatprep.mubr.bf16.mxu0 0
      %461 = vmatmul.mubr.bf16.gmra.mrb[0].mxu0 %v271
      %v462 = vpop.f32.mrb[0].mxu0
      %v463 = vadd.f32 0.0, %v462
      %v464 = vpop.f32.mrb[0].mxu0
      %v465 = vpop.f32.mrb[0].mxu0
      %v466 = vadd.f32 0.0, %v465
      %v467 = vpop.f32.mrb[0].mxu0
      %468 = vmatprep.mubr.bf16.mxu0 0
      %469 = vmatmul.mubr.bf16.gmra.mrb[0].mxu0 %v272
      %v470 = vpop.f32.mrb[0].mxu0
      %v471 = vadd.f32 0.0, %v470
      %v472 = vpop.f32.mrb[0].mxu0
      %v473 = vpop.f32.mrb[0].mxu0
      %v474 = vadd.f32 0.0, %v473
      %v475 = vpop.f32.mrb[0].mxu0
      %476 = vmatprep.mubr.bf16.mxu0 0
      %477 = vmatmul.mubr.bf16.gmra.mrb[0].mxu0 %v273
      %v478 = vpop.f32.mrb[0].mxu0
      %v479 = vadd.f32 0.0, %v478
      %v480 = vpop.f32.mrb[0].mxu0
      %v481 = vpop.f32.mrb[0].mxu0
      %v482 = vadd.f32 0.0, %v481
      %v483 = vpop.f32.mrb[0].mxu0
      %484 = vmatprep.mubr.bf16.mxu0 0
      %485 = vmatmul.mubr.bf16.gmra.mrb[0].mxu0 %v274
      %v486 = vpop.f32.mrb[0].mxu0
      %v487 = vadd.f32 0.0, %v486
      %v488 = vpop.f32.mrb[0].mxu0
      %v489 = vpop.f32.mrb[0].mxu0
      %v490 = vadd.f32 0.0, %v489
      %v491 = vpop.f32.mrb[0].mxu0
      %492 = vmatprep.mubr.bf16.mxu0 0
      %493 = vmatmul.mubr.bf16.gmra.mrb[0].mxu0 %v275
      %v494 = vpop.f32.mrb[0].mxu0
      %v495 = vadd.f32 0.0, %v494
      %v496 = vpop.f32.mrb[0].mxu0
      %v497 = vpop.f32.mrb[0].mxu0
      %v498 = vadd.f32 0.0, %v497
      %v499 = vpop.f32.mrb[0].mxu0
      %500 = vdwg.mxu0
      %v501 = vtanh.pop %v375
      %v502 = vtanh.pop %v378
      %v503 = vtanh.pop %v383
      %v504 = vtanh.pop %v386
      %v505 = vtanh.pop %v391
      %v506 = vtanh.pop %v394
      %v507 = vtanh.pop %v399
      %v508 = vtanh.pop %v402
      %v509 = vtanh.pop %v407
      %v510 = vtanh.pop %v410
      %v511 = vtanh.pop %v415
      %v512 = vtanh.pop %v418
      %v513 = vtanh.pop %v423
      %v514 = vtanh.pop %v426
      %v515 = vtanh.pop %v431
      %v516 = vtanh.pop %v434
      %v517 = vtanh.pop %v439
      %v518 = vtanh.pop %v442
      %v519 = vtanh.pop %v447
      %v520 = vtanh.pop %v450
      %v521 = vtanh.pop %v455
      %v522 = vtanh.pop %v458
      %v523 = vtanh.pop %v463
      %v524 = vtanh.pop %v466
      %v525 = vtanh.pop %v471
      %v526 = vtanh.pop %v474
      %v527 = vtanh.pop %v479
      %v528 = vtanh.pop %v482
      %v529 = vtanh.pop %v487
      %v530 = vtanh.pop %v490
      %v531 = vtanh.pop %v495
      %v532 = vtanh.pop %v498
      %533 = vst [vmem:[%s145] sm:$0xff] %v501
      %534 = vst [vmem:[%s145 + $0x8] sm:$0xff] %v502
      %535 = vst [vmem:[%s145 + $0x10] sm:$0xff] %v503
      %536 = vst [vmem:[%s145 + $0x18] sm:$0xff] %v504
      %537 = vst [vmem:[%s145 + $0x20] sm:$0xff] %v505
      %538 = vst [vmem:[%s145 + $0x28] sm:$0xff] %v506
      %539 = vst [vmem:[%s145 + $0x30] sm:$0xff] %v507
      %540 = vst [vmem:[%s145 + $0x38] sm:$0xff] %v508
      %541 = vst [vmem:[%s145 + $0x40] sm:$0xff] %v509
      %542 = vst [vmem:[%s145 + $0x48] sm:$0xff] %v510
      %543 = vst [vmem:[%s145 + $0x50] sm:$0xff] %v511
      %544 = vst [vmem:[%s145 + $0x58] sm:$0xff] %v512
      %545 = vst [vmem:[%s145 + $0x60] sm:$0xff] %v513
      %546 = vst [vmem:[%s145 + $0x68] sm:$0xff] %v514
      %547 = vst [vmem:[%s145 + $0x70] sm:$0xff] %v515
      %548 = vst [vmem:[%s145 + $0x78] sm:$0xff] %v516
      %549 = vst [vmem:[%s145 + $0x80] sm:$0xff] %v517
      %550 = vst [vmem:[%s145 + $0x88] sm:$0xff] %v518
      %551 = vst [vmem:[%s145 + $0x90] sm:$0xff] %v519
      %552 = vst [vmem:[%s145 + $0x98] sm:$0xff] %v520
      %553 = vst [vmem:[%s145 + $0xa0] sm:$0xff] %v521
      %554 = vst [vmem:[%s145 + $0xa8] sm:$0xff] %v522
      %555 = vst [vmem:[%s145 + $0xb0] sm:$0xff] %v523
      %556 = vst [vmem:[%s145 + $0xb8] sm:$0xff] %v524
      %557 = vst [vmem:[%s145 + $0xc0] sm:$0xff] %v525
      %558 = vst [vmem:[%s145 + $0xc8] sm:$0xff] %v526
      %559 = vst [vmem:[%s145 + $0xd0] sm:$0xff] %v527
      %560 = vst [vmem:[%s145 + $0xd8] sm:$0xff] %v528
      %561 = vst [vmem:[%s145 + $0xe0] sm:$0xff] %v529
      %562 = vst [vmem:[%s145 + $0xe8] sm:$0xff] %v530
      %563 = vst [vmem:[%s145 + $0xf0] sm:$0xff] %v531
      %564 = vst [vmem:[%s145 + $0xf8] sm:$0xff] %v532
      %s565 = smul.u32 32, %s13
      %p566 = scmp.lt.s32.totalorder %s565, 1023
      %s567 = scalar_select %p566, %s565, 1023
      %s568 = smul.addr %s567, 8
      %s569 = scalar_lea.vmem %s2, %s568
      // Predicated region
      $region29: #{a_call__.17} parent=27 // pred_check
        %p570 = pneg %p78
      $region30: #{a_call__.17} parent=27 // pred_check_branch
        %572 = sbr.rel (%p570) target = $region32
      $region31: #{a_call__.17} parent=27 // pred_region
        %s573 = smul.u32 32, %s13
      $region32: #{a_call__.17} parent=27 // pred_fallthru
        _
    $region28: #{a_call__.17} parent=5 // pred_fallthru
      _
    %p574 = scmp.le.s32.totalorder 2, %s8
    // Predicated region
    $region33: #{a_call__.17} parent=5 // pred_check
      %p575 = pneg %p574
    $region34: #{a_call__.17} parent=5 // pred_check_branch
      %577 = sbr.rel (%p575) target = $region36
    $region35: #{a_call__.17} parent=5 // pred_region
      %s578 = ssub.s32 %s8, 2
      // Predicated region
      $region37: #{a_call__.17} parent=35 // pred_check
        %p579 = pneg %p84
      $region38: #{a_call__.17} parent=35 // pred_check_branch
        %581 = sbr.rel (%p579) target = $region40
      $region39: #{a_call__.17} parent=35 // pred_region
        %s582 = smul.u32 32, %s14
        %p583 = scmp.lt.s32.totalorder %s582, 1023
        %s584 = scalar_select %p583, %s582, 1023
        %s585 = smul.addr %s584, 8
        %s586 = scalar_lea.vmem %s2, %s585
      $region40: #{a_call__.17} parent=35 // pred_fallthru
        _
    $region36: #{a_call__.17} parent=5 // pred_fallthru
      _
  $region6: #{a_call__.17} parent=0 // loop_footer
    %s12 = sadd.s32 1, %s8
  $region7: #{a_call__.17} parent=0 // loop_footer_branch
    %7 = sbr.rel target = $region3
  $region8: #{a_call__.17} parent=0 // loop_exit
    _

</llo_original>
